<compile_context>
chip_gen: v7x
topology: tpu7x:2x2x1
jax: 0.10.0
libtpu: 0.0.40
codegen_flags: <defaults>
</compile_context>

<pallas_src>
import numpy as np
import jax
import jax.numpy as jnp
from jax.experimental import pallas as pl
from jax.experimental.pallas import tpu as pltpu


# ----------------------------------------------------------------------------
# model constants (synthetic stand-in sizes)
# ----------------------------------------------------------------------------
IMG_SIZE = 32          # input H = W
FEAT_SIZE = 16         # backbone output spatial size (stride 2)
STRIDE = IMG_SIZE // FEAT_SIZE
C_IN = 3
C1, C2 = 16, 32        # backbone channels
NUM_ANCHORS = 3
ANCHOR_SIZES = (4.0, 8.0, 16.0)
TOPK = 8               # proposals / detections per image
FC_DIM = 64
EMB_DIM = 32
NUM_CLASSES = 1        # + background
NUM_TRACKS = 4         # synthetic track memory slots

W_PAD = IMG_SIZE + 2            # 34 horizontally padded pixels for conv1
ROW1 = W_PAD * C_IN             # 102 : conv1 input row width  (W_pad * Cin)
ROW2 = IMG_SIZE * C1            # 512 : conv1 output / conv2 input row width
ROW3 = FEAT_SIZE * C2           # 512 : conv2 output / RPN conv row width
RPN_PX = 16                     # per-pixel RPN head cols: obj(3) + box(12) + pad(1)
ROWR = FEAT_SIZE * RPN_PX       # 256 : RPN head output row width (lane dense)
ROI_HEAD_N = 128                # lane-dense fused emb | cls | box | sim | pad
CLS_OFF = EMB_DIM                       # 32
BOX_OFF = EMB_DIM + NUM_CLASSES + 1     # 34
SIM_OFF = BOX_OFF + 4                   # 38


def _full_spec(shape):
    n = len(shape)
    return pl.BlockSpec(shape, lambda i: (0,) * n)


# ----------------------------------------------------------------------------
# Pallas kernel 1: fused backbone (conv1, conv2) + RPN (3x3 conv + 1x1 heads)
# ----------------------------------------------------------------------------
def _backbone_rpn_kernel(xe_ref, xo_ref, wb1_ref, b1_ref, wb2_ref, b2_ref,
                         wbr_ref, br_ref, whd_ref, bhd_ref,
                         feat_ref, rpn_ref, y1o_ref, fpad_ref):
    B = xe_ref.shape[0]
    M = B * FEAT_SIZE

    def bf2d(v, k):
        # (B, 16, k) f32 view -> (B*16, k) bf16 MXU operand
        return v.reshape(M, k).astype(jnp.bfloat16)

    # ---- conv1: 3x3 stride 1, row parity split (even / odd output rows) ----
    xe0 = bf2d(xe_ref[:, 0:FEAT_SIZE, :], ROW1)        # image rows 0,2,...,30
    xe1 = bf2d(xe_ref[:, 1:FEAT_SIZE + 1, :], ROW1)    # image rows 2,4,...,32(pad)
    xo0 = bf2d(xo_ref[:, 0:FEAT_SIZE, :], ROW1)        # image rows -1(pad),1,...,29
    xo1 = bf2d(xo_ref[:, 1:FEAT_SIZE + 1, :], ROW1)    # image rows 1,3,...,31

    wA, wB, wC = wb1_ref[0], wb1_ref[1], wb1_ref[2]
    b1 = b1_ref[...]
    y1e = jnp.maximum(                                  # conv1 output rows 0,2,...,30
        jnp.dot(xo0, wA, preferred_element_type=jnp.float32)
        + jnp.dot(xe0, wB, preferred_element_type=jnp.float32)
        + jnp.dot(xo1, wC, preferred_element_type=jnp.float32) + b1, 0.0)
    y1o = jnp.maximum(                                  # conv1 output rows 1,3,...,31
        jnp.dot(xe0, wA, preferred_element_type=jnp.float32)
        + jnp.dot(xo1, wB, preferred_element_type=jnp.float32)
        + jnp.dot(xe1, wC, preferred_element_type=jnp.float32) + b1, 0.0)

    # stage the odd conv1 rows with one leading zero row so the stride-2 conv2's
    # "row above" tap (y1 row 2i-1) is a plain unit-stride slice
    y1o_ref[:, 0:1, :] = jnp.zeros((B, 1, ROW2), jnp.float32)
    y1o_ref[:, 1:FEAT_SIZE + 1, :] = y1o.reshape(B, FEAT_SIZE, ROW2)

    # ---- conv2: 3x3 stride 2, pad 1 ----
    c2_top = bf2d(y1o_ref[:, 0:FEAT_SIZE, :], ROW2)     # y1 rows 2i-1 (zero at i=0)
    feat = jnp.maximum(
        jnp.dot(c2_top, wb2_ref[0], preferred_element_type=jnp.float32)
        + jnp.dot(y1e.astype(jnp.bfloat16), wb2_ref[1], preferred_element_type=jnp.float32)
        + jnp.dot(y1o.astype(jnp.bfloat16), wb2_ref[2], preferred_element_type=jnp.float32)
        + b2_ref[...], 0.0)                             # (B*16, 512) f32
    feat_ref[...] = feat.reshape(B, FEAT_SIZE, ROW3)

    # ---- RPN 3x3 conv (stride 1, pad 1) + fused 1x1 obj/box heads ----
    fpad_ref[:, 0:1, :] = jnp.zeros((B, 1, ROW3), jnp.float32)
    fpad_ref[:, FEAT_SIZE + 1:FEAT_SIZE + 2, :] = jnp.zeros((B, 1, ROW3), jnp.float32)
    fpad_ref[:, 1:FEAT_SIZE + 1, :] = feat.reshape(B, FEAT_SIZE, ROW3)

    r_top = bf2d(fpad_ref[:, 0:FEAT_SIZE, :], ROW3)             # feat rows i-1
    r_bot = bf2d(fpad_ref[:, 2:FEAT_SIZE + 2, :], ROW3)         # feat rows i+1
    t = jnp.maximum(
        jnp.dot(r_top, wbr_ref[0], preferred_element_type=jnp.float32)
        + jnp.dot(feat.astype(jnp.bfloat16), wbr_ref[1], preferred_element_type=jnp.float32)
        + jnp.dot(r_bot, wbr_ref[2], preferred_element_type=jnp.float32)
        + br_ref[...], 0.0)
    rpn = jnp.dot(t.astype(jnp.bfloat16), whd_ref[...],
                  preferred_element_type=jnp.float32) + bhd_ref[...]
    rpn_ref[...] = rpn.reshape(B, FEAT_SIZE, ROWR)


def backbone_rpn_fused(xe, xo, wb1, b1, wb2, b2, wbr, br, whd, bhd):
    B = xe.shape[0]
    out_shape = (jax.ShapeDtypeStruct((B, FEAT_SIZE, ROW3), jnp.float32),
                 jax.ShapeDtypeStruct((B, FEAT_SIZE, ROWR), jnp.float32))
    args = (xe, xo, wb1, b1, wb2, b2, wbr, br, whd, bhd)
    return pl.pallas_call(
        _backbone_rpn_kernel,
        out_shape=out_shape,
        grid_spec=pltpu.PrefetchScalarGridSpec(
            num_scalar_prefetch=0,
            grid=(1,),
            in_specs=[_full_spec(a.shape) for a in args],
            out_specs=(_full_spec(out_shape[0].shape), _full_spec(out_shape[1].shape)),
            scratch_shapes=[pltpu.VMEM((B, FEAT_SIZE + 1, ROW2), jnp.float32),
                            pltpu.VMEM((B, FEAT_SIZE + 2, ROW3), jnp.float32)]),
        compiler_params=pltpu.CompilerParams(dimension_semantics=("arbitrary",)),
    )(*args)


# ----------------------------------------------------------------------------
# Pallas kernel 2: ROI gather -> fc1 -> fc2 -> [emb|cls|box] -> L2 norm -> track sim
# ----------------------------------------------------------------------------
def _roi_track_kernel(idx_ref, feat_ref, w1_ref, b1_ref, w2_ref, b2_ref,
                      wh_ref, bh_ref, mem_ref, o_ref):
    M = idx_ref.shape[0]
    P = feat_ref.shape[0]

    # in-kernel ROI center-cell gather via one-hot matmul (no XLA gather round trip)
    idx = idx_ref[...]                                              # (M, 1) int32
    cols = jax.lax.broadcasted_iota(jnp.int32, (M, P), 1)
    onehot = jnp.where(cols == idx, 1.0, 0.0).astype(jnp.bfloat16)  # (M, P)
    roi = jnp.dot(onehot, feat_ref[...].astype(jnp.bfloat16),
                  preferred_element_type=jnp.float32)               # (M, C2)

    h = jnp.maximum(jnp.dot(roi.astype(jnp.bfloat16), w1_ref[...],
                            preferred_element_type=jnp.float32) + b1_ref[...], 0.0)
    h = jnp.maximum(jnp.dot(h.astype(jnp.bfloat16), w2_ref[...],
                            preferred_element_type=jnp.float32) + b2_ref[...], 0.0)
    heads = jnp.dot(h.astype(jnp.bfloat16), wh_ref[...],
                    preferred_element_type=jnp.float32) + bh_ref[...]

    # column layout of heads: [emb(32) | cls(2) | box(4) | zeros]
    col = jax.lax.broadcasted_iota(jnp.int32, heads.shape, 1)
    emb_mask = col < EMB_DIM
    emb_sq = jnp.where(emb_mask, heads * heads, 0.0)
    inv_norm = jax.lax.rsqrt(jnp.sum(emb_sq, axis=-1, keepdims=True) + 1e-12)
    emb_n = jnp.where(emb_mask, heads * inv_norm, 0.0)
    # mem_ref places memory.T into output columns [SIM_OFF, SIM_OFF + NUM_TRACKS)
    sim = jnp.dot(emb_n.astype(jnp.bfloat16), mem_ref[...],
                  preferred_element_type=jnp.float32)
    o_ref[...] = jnp.where(emb_mask, emb_n, heads) + sim


def roi_track_fused(idx, feat2, w1, b1, w2, b2, wh, bh, mem_pad):
    M = idx.shape[0]
    args = (idx, feat2, w1, b1, w2, b2, wh, bh, mem_pad)
    return pl.pallas_call(
        _roi_track_kernel,
        out_shape=jax.ShapeDtypeStruct((M, ROI_HEAD_N), jnp.float32),
        grid_spec=pltpu.PrefetchScalarGridSpec(
            num_scalar_prefetch=0,
            grid=(1,),
            in_specs=[_full_spec(a.shape) for a in args],
            out_specs=_full_spec((M, ROI_HEAD_N))),
        compiler_params=pltpu.CompilerParams(dimension_semantics=("arbitrary",)),
    )(*args)


# ----------------------------------------------------------------------------
# JAX glue
# ----------------------------------------------------------------------------
def _make_anchors():
    ys = (jnp.arange(FEAT_SIZE, dtype=jnp.float32) + 0.5) * STRIDE
    xs = (jnp.arange(FEAT_SIZE, dtype=jnp.float32) + 0.5) * STRIDE
    sizes = jnp.asarray(ANCHOR_SIZES, jnp.float32)
    shape = (FEAT_SIZE, FEAT_SIZE, NUM_ANCHORS)
    acy = jnp.broadcast_to(ys[:, None, None], shape).reshape(-1)
    acx = jnp.broadcast_to(xs[None, :, None], shape).reshape(-1)
    asz = jnp.broadcast_to(sizes[None, None, :], shape).reshape(-1)
    return acx, acy, asz


def _decode(acx, acy, asz, dx, dy, dw, dh):
    cx = acx + dx * asz
    cy = acy + dy * asz
    w = asz * jnp.exp(dw)
    h = asz * jnp.exp(dh)
    boxes = jnp.stack([cx - w / 2, cy - h / 2, cx + w / 2, cy + h / 2], axis=-1)
    return jnp.clip(boxes, 0.0, float(IMG_SIZE))


def init_params(key):
    def nrm(k, shape, scale):
        return jax.random.normal(k, shape, jnp.float32) * scale

    ks = jax.random.split(key, 12)
    return {
        "bb_conv1_w": nrm(ks[0], (C1, C_IN, 3, 3), 0.1),
        "bb_conv1_b": jnp.zeros((C1,), jnp.float32),
        "bb_conv2_w": nrm(ks[1], (C2, C1, 3, 3), 0.05),
        "bb_conv2_b": jnp.zeros((C2,), jnp.float32),
        "rpn_conv_w": nrm(ks[2], (C2, C2, 3, 3), 0.05),
        "rpn_conv_b": jnp.zeros((C2,), jnp.float32),
        "rpn_obj_w": nrm(ks[3], (NUM_ANCHORS, C2, 1, 1), 0.05),
        "rpn_obj_b": jnp.zeros((NUM_ANCHORS,), jnp.float32),
        "rpn_box_w": nrm(ks[4], (NUM_ANCHORS * 4, C2, 1, 1), 0.01),
        "rpn_box_b": jnp.zeros((NUM_ANCHORS * 4,), jnp.float32),
        "box_fc1_w": nrm(ks[5], (C2, FC_DIM), 0.05),
        "box_fc1_b": jnp.zeros((FC_DIM,), jnp.float32),
        "box_fc2_w": nrm(ks[6], (FC_DIM, FC_DIM), 0.05),
        "box_fc2_b": jnp.zeros((FC_DIM,), jnp.float32),
        "cls_w": nrm(ks[7], (FC_DIM, NUM_CLASSES + 1), 0.05),
        "cls_b": jnp.zeros((NUM_CLASSES + 1,), jnp.float32),
        "bbox_w": nrm(ks[8], (FC_DIM, 4), 0.01),
        "bbox_b": jnp.zeros((4,), jnp.float32),
        "trk_emb_w": nrm(ks[9], (FC_DIM, EMB_DIM), 0.05),
        "trk_emb_b": jnp.zeros((EMB_DIM,), jnp.float32),
    }


class MOTRCNNPallas:
    """Inference-mode MOT_RCNN; the hot compute runs in 2 fused Pallas kernels."""

    def __init__(self, params):
        self.params = params
        # detectron2-style BGR pixel statistics
        self.pixel_mean = jnp.asarray([103.53, 116.28, 123.675], jnp.float32)
        self.pixel_std = jnp.asarray([57.375, 57.12, 58.395], jnp.float32)
        self._prepare_weights()
        self.flush_memory(None)
        self._core = jax.jit(self._forward_core)

    # --------------------------------------------------------------
    def _prepare_weights(self):
        p = self.params
        f32 = np.float32
        mean = np.asarray(self.pixel_mean, f32)
        std = np.asarray(self.pixel_std, f32)
        inv_std = 1.0 / std

        # ---- conv1, normalization folded: w' = w/std, b' = b - sum(w*mean/std) ----
        w1_raw = np.asarray(p["bb_conv1_w"], f32)                     # (16,3,3,3)
        w1 = w1_raw * inv_std[None, :, None, None]
        b1 = np.asarray(p["bb_conv1_b"], f32) - np.sum(
            w1_raw * (mean * inv_std)[None, :, None, None], axis=(1, 2, 3))
        wo = np.arange(IMG_SIZE)
        wb1 = np.zeros((3, W_PAD, C_IN, IMG_SIZE, C1), f32)
        for dh in range(3):
            for dw in range(3):
                wb1[dh, wo + dw, :, wo, :] = w1[:, :, dh, dw].T        # (3,16)
        self.wb1 = jnp.asarray(wb1.reshape(3, ROW1, ROW2), jnp.bfloat16)
        self.b1 = jnp.asarray(np.tile(b1, IMG_SIZE)[None, :], jnp.float32)        # (1,512)

        # ---- conv2 (3x3, stride 2, pad 1) ----
        w2 = np.asarray(p["bb_conv2_w"], f32)                          # (32,16,3,3)
        b2 = np.asarray(p["bb_conv2_b"], f32)
        jo = np.arange(FEAT_SIZE)
        wb2 = np.zeros((3, IMG_SIZE, C1, FEAT_SIZE, C2), f32)
        for dh in range(3):
            for dw in range(3):
                wi = 2 * jo + dw - 1
                valid = (wi >= 0) & (wi < IMG_SIZE)
                wb2[dh, wi[valid], :, jo[valid], :] = w2[:, :, dh, dw].T
        self.wb2 = jnp.asarray(wb2.reshape(3, ROW2, ROW3), jnp.bfloat16)
        self.b2 = jnp.asarray(np.tile(b2, FEAT_SIZE)[None, :], jnp.float32)       # (1,512)

        # ---- RPN 3x3 conv (stride 1, pad 1) ----
        wr = np.asarray(p["rpn_conv_w"], f32)                          # (32,32,3,3)
        br = np.asarray(p["rpn_conv_b"], f32)
        wbr = np.zeros((3, FEAT_SIZE, C2, FEAT_SIZE, C2), f32)
        for dh in range(3):
            for dw in range(3):
                wi = jo + dw - 1
                valid = (wi >= 0) & (wi < FEAT_SIZE)
                wbr[dh, wi[valid], :, jo[valid], :] = wr[:, :, dh, dw].T
        self.wbr = jnp.asarray(wbr.reshape(3, ROW3, ROW3), jnp.bfloat16)
        self.br = jnp.asarray(np.tile(br, FEAT_SIZE)[None, :], jnp.float32)       # (1,512)

        # ---- RPN 1x1 heads (obj + box), block-diagonal over the 16 W positions ----
        whead = np.concatenate(
            [np.asarray(p["rpn_obj_w"], f32).reshape(NUM_ANCHORS, C2),
             np.asarray(p["rpn_box_w"], f32).reshape(NUM_ANCHORS * 4, C2)], axis=0).T  # (32,15)
        bhead = np.concatenate([np.asarray(p["rpn_obj_b"], f32),
                                np.asarray(p["rpn_box_b"], f32)])                      # (15,)
        whd = np.zeros((FEAT_SIZE, C2, FEAT_SIZE, RPN_PX), f32)
        whd[jo, :, jo, :NUM_ANCHORS * 5] = whead
        self.wrpn_head = jnp.asarray(whd.reshape(ROW3, ROWR), jnp.bfloat16)             # (512,256)
        bh_px = np.zeros((RPN_PX,), f32)
        bh_px[:NUM_ANCHORS * 5] = bhead
        self.brpn_head = jnp.asarray(np.tile(bh_px, FEAT_SIZE)[None, :], jnp.float32)   # (1,256)

        # ---- ROI box head + track embedding head (fused output columns) ----
        self.fc1_w = jnp.asarray(p["box_fc1_w"], jnp.bfloat16)                 # (32,64)
        self.fc1_b = jnp.asarray(p["box_fc1_b"], jnp.float32).reshape(1, FC_DIM)
        self.fc2_w = jnp.asarray(p["box_fc2_w"], jnp.bfloat16)                 # (64,64)
        self.fc2_b = jnp.asarray(p["box_fc2_b"], jnp.float32).reshape(1, FC_DIM)
        head_w = jnp.concatenate([p["trk_emb_w"], p["cls_w"], p["bbox_w"]], axis=1)   # (64,38)
        head_b = jnp.concatenate([p["trk_emb_b"], p["cls_b"], p["bbox_b"]])           # (38,)
        self.roi_head_w = jnp.pad(
            head_w, ((0, 0), (0, ROI_HEAD_N - head_w.shape[1]))).astype(jnp.bfloat16)
        self.roi_head_b = jnp.pad(
            head_b, (0, ROI_HEAD_N - head_b.shape[0])
        ).reshape(1, ROI_HEAD_N).astype(jnp.float32)

    # --------------------------------------------------------------
    def flush_memory(self, cache=None):
        self.track_memory = cache
        memory = cache if cache is not None else jnp.zeros((NUM_TRACKS, EMB_DIM), jnp.float32)
        mem = jnp.zeros((ROI_HEAD_N, ROI_HEAD_N), jnp.float32)
        mem = mem.at[:EMB_DIM, SIM_OFF:SIM_OFF + NUM_TRACKS].set(memory.T)
        self.mem_pad = mem.astype(jnp.bfloat16)     # hoisted out of the per-frame forward

    # --------------------------------------------------------------
    def _forward_core(self, images_nchw, mem_pad):
        B = images_nchw.shape[0]
        x = jnp.transpose(images_nchw, (0, 2, 3, 1))                         # (B,32,32,3)

        # pad W with the per-channel pixel mean (keeps the conv1 normalization fold exact),
        # flatten rows to W*C and split by row parity (even / odd) with mean pad rows.
        mean = self.pixel_mean
        wpad = jnp.broadcast_to(mean.reshape(1, 1, 1, C_IN), (B, IMG_SIZE, 1, C_IN))
        xw = jnp.concatenate([wpad, x, wpad], axis=2).reshape(B, IMG_SIZE, ROW1)
        mean_row = jnp.broadcast_to(jnp.tile(mean, W_PAD).reshape(1, 1, ROW1), (B, 1, ROW1))
        xe = jnp.concatenate([xw[:, 0::2, :], mean_row], axis=1)             # rows 0,2,...,30,pad
        xo = jnp.concatenate([mean_row, xw[:, 1::2, :]], axis=1)             # pad,1,3,...,31

        # fused backbone + RPN kernel
        feat, rpn = backbone_rpn_fused(xe, xo, self.wb1, self.b1, self.wb2, self.b2,
                                       self.wbr, self.br, self.wrpn_head, self.brpn_head)

        # proposal generation (sigmoid / decode / top-k stay in XLA)
        A = NUM_ANCHORS
        HW = FEAT_SIZE * FEAT_SIZE
        rpn_px = rpn.reshape(B, FEAT_SIZE, FEAT_SIZE, RPN_PX)
        scores = jax.nn.sigmoid(rpn_px[..., :A].reshape(B, HW * A))
        d = rpn_px[..., A:A + 4 * A].reshape(B, HW * A, 4)
        acx, acy, asz = _make_anchors()
        boxes_all = _decode(acx[None], acy[None], asz[None],
                            d[..., 0], d[..., 1], d[..., 2], d[..., 3])      # (B, HW*A, 4)
        _, top_idx = jax.lax.top_k(scores, TOPK)
        gidx = jnp.broadcast_to(top_idx[..., None], (B, TOPK, 4))
        proposals = jnp.take_along_axis(boxes_all, gidx, axis=1)             # (B, K, 4)

        # naive "ROIAlign": feature at the proposal center cell, gathered inside kernel 2
        # TODO(synk): real ROIAlign with bilinear sampling is not implemented.
        cx = (proposals[..., 0] + proposals[..., 2]) / 2.0
        cy = (proposals[..., 1] + proposals[..., 3]) / 2.0
        ix = jnp.clip(jnp.floor(cx / STRIDE), 0, FEAT_SIZE - 1).astype(jnp.int32)
        iy = jnp.clip(jnp.floor(cy / STRIDE), 0, FEAT_SIZE - 1).astype(jnp.int32)
        flat = (jnp.arange(B, dtype=jnp.int32)[:, None] * HW + iy * FEAT_SIZE + ix)
        flat = flat.reshape(B * TOPK, 1)
        feat2 = feat.reshape(B * HW, C2)      # bit-identical row-major view of (B,16,16,32)

        out = roi_track_fused(flat, feat2, self.fc1_w, self.fc1_b, self.fc2_w, self.fc2_b,
                              self.roi_head_w, self.roi_head_b, mem_pad)     # (B*K, 128)

        emb_n = out[:, :EMB_DIM]
        cls_logits = out[:, CLS_OFF:CLS_OFF + NUM_CLASSES + 1]
        box_deltas = out[:, BOX_OFF:BOX_OFF + 4]
        sim = out[:, SIM_OFF:SIM_OFF + NUM_TRACKS]

        prop_flat = proposals.reshape(B * TOPK, 4)
        pcx = (prop_flat[:, 0] + prop_flat[:, 2]) / 2.0
        pcy = (prop_flat[:, 1] + prop_flat[:, 3]) / 2.0
        psz = jnp.maximum(prop_flat[:, 2] - prop_flat[:, 0], 1.0)
        det_boxes = _decode(pcx, pcy, psz,
                            box_deltas[:, 0], box_deltas[:, 1],
                            box_deltas[:, 2], box_deltas[:, 3])
        probs = jax.nn.softmax(cls_logits, axis=-1)
        cache = emb_n[:NUM_TRACKS]   # TODO(synk): per-image track memory for B > 1
        return (det_boxes.reshape(B, TOPK, 4),
                probs[:, 1].reshape(B, TOPK),
                sim.reshape(B, TOPK, NUM_TRACKS),
                cache)

    # --------------------------------------------------------------
    @staticmethod
    def _postprocess(result, batched_inputs, image_sizes):
        B = result["boxes"].shape[0]
        scale = jnp.asarray(
            [[inp.get("width", sz[1]) / float(sz[1]),
              inp.get("height", sz[0]) / float(sz[0])]
             for inp, sz in zip(batched_inputs, image_sizes)], jnp.float32)   # (B, 2)
        scale4 = jnp.stack([scale[:, 0], scale[:, 1], scale[:, 0], scale[:, 1]], axis=1)
        boxes = result["boxes"] * scale4[:, None, :]
        processed = []
        for i in range(B):
            processed.append({"instances": {
                "boxes": boxes[i],
                "scores": result["scores"][i],
                "pred_classes": result["classes"][i],
                "track_sim": result["track_sim"][i],
            }})
        return processed

    # --------------------------------------------------------------
    def forward(self, batched_inputs):
        images = jnp.stack([x["image"] for x in batched_inputs]).astype(jnp.float32)
        B, _, H, W = images.shape
        boxes, scores, sim, cache = self._core(images, self.mem_pad)
        self.flush_memory(cache=cache)          # inference: update track memory
        result = {
            "boxes": boxes,
            "scores": scores,
            "classes": jnp.zeros((B, TOPK), jnp.int32),
            "track_sim": sim,
        }
        return self._postprocess(result, batched_inputs, [(H, W)] * B)


# ----------------------------------------------------------------------------
if __name__ == "__main__":
    key = jax.random.PRNGKey(0)
    pkey, ikey = jax.random.split(key)
    params = init_params(pkey)
    model = MOTRCNNPallas(params)

    img_keys = jax.random.split(ikey, 2)
    batched_inputs = [
        {"image": jax.random.uniform(img_keys[b], (C_IN, IMG_SIZE, IMG_SIZE),
                                     jnp.float32, 0.0, 255.0),
         "height": 64, "width": 64}
        for b in range(2)
    ]

    results = model.forward(batched_inputs)
    # second frame: exercises the track-memory path against cached embeddings
    results2 = model.forward(batched_inputs)

    for r in results + results2:
        jax.block_until_ready(r["instances"]["boxes"])
        jax.block_until_ready(r["instances"]["scores"])
        jax.block_until_ready(r["instances"]["track_sim"])

    print("KERNEL_OK")
</pallas_src>

<mosaic_0001>
module attributes {stable_mosaic.version = 11 : i64} {
  func.func @_backbone_rpn_kernel(%arg0: i32, %arg1: memref<2x17x102xf32, #tpu.memory_space<vmem>>, %arg2: memref<2x17x102xf32, #tpu.memory_space<vmem>>, %arg3: memref<3x102x512xbf16, #tpu.memory_space<vmem>>, %arg4: memref<1x512xf32, #tpu.memory_space<vmem>>, %arg5: memref<3x512x512xbf16, #tpu.memory_space<vmem>>, %arg6: memref<1x512xf32, #tpu.memory_space<vmem>>, %arg7: memref<3x512x512xbf16, #tpu.memory_space<vmem>>, %arg8: memref<1x512xf32, #tpu.memory_space<vmem>>, %arg9: memref<512x256xbf16, #tpu.memory_space<vmem>>, %arg10: memref<1x256xf32, #tpu.memory_space<vmem>>, %arg11: memref<2x16x512xf32, #tpu.memory_space<vmem>>, %arg12: memref<2x16x256xf32, #tpu.memory_space<vmem>>, %arg13: memref<2x17x512xf32, #tpu.memory_space<vmem>>, %arg14: memref<2x18x512xf32, #tpu.memory_space<vmem>>) attributes {dimension_semantics = [#tpu.dimension_semantics<arbitrary>], iteration_bounds = array<i64: 1>, scalar_prefetch = 0 : i64, scratch_operands = 2 : i64, tpu.core_type = #tpu.core_type<tc>, window_params = [{pipeline_mode = #tpu.pipeline_mode<synchronous>, transform_indices = @transform_0, window_bounds = array<i64: 2, 17, 102>}, {pipeline_mode = #tpu.pipeline_mode<synchronous>, transform_indices = @transform_1, window_bounds = array<i64: 2, 17, 102>}, {pipeline_mode = #tpu.pipeline_mode<synchronous>, transform_indices = @transform_2, window_bounds = array<i64: 3, 102, 512>}, {pipeline_mode = #tpu.pipeline_mode<synchronous>, transform_indices = @transform_3, window_bounds = array<i64: 1, 512>}, {pipeline_mode = #tpu.pipeline_mode<synchronous>, transform_indices = @transform_4, window_bounds = array<i64: 3, 512, 512>}, {pipeline_mode = #tpu.pipeline_mode<synchronous>, transform_indices = @transform_5, window_bounds = array<i64: 1, 512>}, {pipeline_mode = #tpu.pipeline_mode<synchronous>, transform_indices = @transform_6, window_bounds = array<i64: 3, 512, 512>}, {pipeline_mode = #tpu.pipeline_mode<synchronous>, transform_indices = @transform_7, window_bounds = array<i64: 1, 512>}, {pipeline_mode = #tpu.pipeline_mode<synchronous>, transform_indices = @transform_8, window_bounds = array<i64: 512, 256>}, {pipeline_mode = #tpu.pipeline_mode<synchronous>, transform_indices = @transform_9, window_bounds = array<i64: 1, 256>}, {pipeline_mode = #tpu.pipeline_mode<synchronous>, transform_indices = @transform_10, window_bounds = array<i64: 2, 16, 512>}, {pipeline_mode = #tpu.pipeline_mode<synchronous>, transform_indices = @transform_11, window_bounds = array<i64: 2, 16, 256>}]} {
    %c0 = arith.constant 0 : index
    %c0_0 = arith.constant 0 : index
    %c0_1 = arith.constant 0 : index
    %0 = vector.load %arg1[%c0, %c0_0, %c0_1] : memref<2x17x102xf32, #tpu.memory_space<vmem>>, vector<2x16x102xf32>
    %1 = vector.shape_cast %0 : vector<2x16x102xf32> to vector<32x102xf32>
    %2 = arith.truncf %1 : vector<32x102xf32> to vector<32x102xbf16>
    %c0_2 = arith.constant 0 : index
    %c1 = arith.constant 1 : index
    %c0_3 = arith.constant 0 : index
    %3 = vector.load %arg1[%c0_2, %c1, %c0_3] : memref<2x17x102xf32, #tpu.memory_space<vmem>>, vector<2x16x102xf32>
    %4 = vector.shape_cast %3 : vector<2x16x102xf32> to vector<32x102xf32>
    %5 = arith.truncf %4 : vector<32x102xf32> to vector<32x102xbf16>
    %c0_4 = arith.constant 0 : index
    %c0_5 = arith.constant 0 : index
    %c0_6 = arith.constant 0 : index
    %6 = vector.load %arg2[%c0_4, %c0_5, %c0_6] : memref<2x17x102xf32, #tpu.memory_space<vmem>>, vector<2x16x102xf32>
    %7 = vector.shape_cast %6 : vector<2x16x102xf32> to vector<32x102xf32>
    %8 = arith.truncf %7 : vector<32x102xf32> to vector<32x102xbf16>
    %c0_7 = arith.constant 0 : index
    %c1_8 = arith.constant 1 : index
    %c0_9 = arith.constant 0 : index
    %9 = vector.load %arg2[%c0_7, %c1_8, %c0_9] : memref<2x17x102xf32, #tpu.memory_space<vmem>>, vector<2x16x102xf32>
    %10 = vector.shape_cast %9 : vector<2x16x102xf32> to vector<32x102xf32>
    %11 = arith.truncf %10 : vector<32x102xf32> to vector<32x102xbf16>
    %c0_10 = arith.constant 0 : index
    %c0_11 = arith.constant 0 : index
    %c0_12 = arith.constant 0 : index
    %12 = vector.load %arg3[%c0_10, %c0_11, %c0_12] : memref<3x102x512xbf16, #tpu.memory_space<vmem>>, vector<1x102x512xbf16>
    %13 = vector.shape_cast %12 : vector<1x102x512xbf16> to vector<102x512xbf16>
    %c1_13 = arith.constant 1 : index
    %c0_14 = arith.constant 0 : index
    %c0_15 = arith.constant 0 : index
    %14 = vector.load %arg3[%c1_13, %c0_14, %c0_15] : memref<3x102x512xbf16, #tpu.memory_space<vmem>>, vector<1x102x512xbf16>
    %15 = vector.shape_cast %14 : vector<1x102x512xbf16> to vector<102x512xbf16>
    %c2 = arith.constant 2 : index
    %c0_16 = arith.constant 0 : index
    %c0_17 = arith.constant 0 : index
    %16 = vector.load %arg3[%c2, %c0_16, %c0_17] : memref<3x102x512xbf16, #tpu.memory_space<vmem>>, vector<1x102x512xbf16>
    %17 = vector.shape_cast %16 : vector<1x102x512xbf16> to vector<102x512xbf16>
    %c0_18 = arith.constant 0 : index
    %c0_19 = arith.constant 0 : index
    %18 = vector.load %arg4[%c0_18, %c0_19] : memref<1x512xf32, #tpu.memory_space<vmem>>, vector<1x512xf32>
    %cst = arith.constant dense<0.000000e+00> : vector<32x512xf32>
    %19 = tpu.matmul %8, %13, %cst {dimension_numbers = #tpu.dot_dimension_numbers<[1], [0], [0], [1], [0, 0, 1, 1], [], []>} : vector<32x102xbf16>, vector<102x512xbf16>, vector<32x512xf32> -> vector<32x512xf32>
    %cst_20 = arith.constant dense<0.000000e+00> : vector<32x512xf32>
    %20 = tpu.matmul %2, %15, %cst_20 {dimension_numbers = #tpu.dot_dimension_numbers<[1], [0], [0], [1], [0, 0, 1, 1], [], []>} : vector<32x102xbf16>, vector<102x512xbf16>, vector<32x512xf32> -> vector<32x512xf32>
    %21 = arith.addf %19, %20 : vector<32x512xf32>
    %cst_21 = arith.constant dense<0.000000e+00> : vector<32x512xf32>
    %22 = tpu.matmul %11, %17, %cst_21 {dimension_numbers = #tpu.dot_dimension_numbers<[1], [0], [0], [1], [0, 0, 1, 1], [], []>} : vector<32x102xbf16>, vector<102x512xbf16>, vector<32x512xf32> -> vector<32x512xf32>
    %23 = arith.addf %21, %22 : vector<32x512xf32>
    %24 = vector.broadcast %18 : vector<1x512xf32> to vector<32x512xf32>
    %25 = arith.addf %23, %24 : vector<32x512xf32>
    %cst_22 = arith.constant 0.000000e+00 : f32
    %26 = vector.broadcast %cst_22 : f32 to vector<32x512xf32>
    %27 = arith.maximumf %25, %26 : vector<32x512xf32>
    %cst_23 = arith.constant dense<0.000000e+00> : vector<32x512xf32>
    %28 = tpu.matmul %2, %13, %cst_23 {dimension_numbers = #tpu.dot_dimension_numbers<[1], [0], [0], [1], [0, 0, 1, 1], [], []>} : vector<32x102xbf16>, vector<102x512xbf16>, vector<32x512xf32> -> vector<32x512xf32>
    %cst_24 = arith.constant dense<0.000000e+00> : vector<32x512xf32>
    %29 = tpu.matmul %11, %15, %cst_24 {dimension_numbers = #tpu.dot_dimension_numbers<[1], [0], [0], [1], [0, 0, 1, 1], [], []>} : vector<32x102xbf16>, vector<102x512xbf16>, vector<32x512xf32> -> vector<32x512xf32>
    %30 = arith.addf %28, %29 : vector<32x512xf32>
    %cst_25 = arith.constant dense<0.000000e+00> : vector<32x512xf32>
    %31 = tpu.matmul %5, %17, %cst_25 {dimension_numbers = #tpu.dot_dimension_numbers<[1], [0], [0], [1], [0, 0, 1, 1], [], []>} : vector<32x102xbf16>, vector<102x512xbf16>, vector<32x512xf32> -> vector<32x512xf32>
    %32 = arith.addf %30, %31 : vector<32x512xf32>
    %33 = vector.broadcast %18 : vector<1x512xf32> to vector<32x512xf32>
    %34 = arith.addf %32, %33 : vector<32x512xf32>
    %cst_26 = arith.constant 0.000000e+00 : f32
    %35 = vector.broadcast %cst_26 : f32 to vector<32x512xf32>
    %36 = arith.maximumf %34, %35 : vector<32x512xf32>
    %cst_27 = arith.constant 0.000000e+00 : f32
    %37 = vector.broadcast %cst_27 : f32 to vector<2x1x512xf32>
    %c0_28 = arith.constant 0 : index
    %c0_29 = arith.constant 0 : index
    %c0_30 = arith.constant 0 : index
    %38 = vector.load %arg13[%c0_28, %c0_29, %c0_30] : memref<2x17x512xf32, #tpu.memory_space<vmem>>, vector<2x1x512xf32>
    tpu.vector_store %arg13[%c0_28, %c0_29, %c0_30], %37 {strides = array<i32>} : memref<2x17x512xf32, #tpu.memory_space<vmem>>, vector<2x1x512xf32>,
    %39 = vector.shape_cast %36 : vector<32x512xf32> to vector<2x16x512xf32>
    %c0_31 = arith.constant 0 : index
    %c1_32 = arith.constant 1 : index
    %c0_33 = arith.constant 0 : index
    %40 = vector.load %arg13[%c0_31, %c1_32, %c0_33] : memref<2x17x512xf32, #tpu.memory_space<vmem>>, vector<2x16x512xf32>
    tpu.vector_store %arg13[%c0_31, %c1_32, %c0_33], %39 {strides = array<i32>} : memref<2x17x512xf32, #tpu.memory_space<vmem>>, vector<2x16x512xf32>,
    %c0_34 = arith.constant 0 : index
    %c0_35 = arith.constant 0 : index
    %c0_36 = arith.constant 0 : index
    %41 = vector.load %arg13[%c0_34, %c0_35, %c0_36] : memref<2x17x512xf32, #tpu.memory_space<vmem>>, vector<2x16x512xf32>
    %42 = vector.shape_cast %41 : vector<2x16x512xf32> to vector<32x512xf32>
    %43 = arith.truncf %42 : vector<32x512xf32> to vector<32x512xbf16>
    %c0_37 = arith.constant 0 : index
    %c0_38 = arith.constant 0 : index
    %c0_39 = arith.constant 0 : index
    %44 = vector.load %arg5[%c0_37, %c0_38, %c0_39] : memref<3x512x512xbf16, #tpu.memory_space<vmem>>, vector<1x512x512xbf16>
    %45 = vector.shape_cast %44 : vector<1x512x512xbf16> to vector<512x512xbf16>
    %cst_40 = arith.constant dense<0.000000e+00> : vector<32x512xf32>
    %46 = tpu.matmul %43, %45, %cst_40 {dimension_numbers = #tpu.dot_dimension_numbers<[1], [0], [0], [1], [0, 0, 1, 1], [], []>} : vector<32x512xbf16>, vector<512x512xbf16>, vector<32x512xf32> -> vector<32x512xf32>
    %47 = arith.truncf %27 : vector<32x512xf32> to vector<32x512xbf16>
    %c1_41 = arith.constant 1 : index
    %c0_42 = arith.constant 0 : index
    %c0_43 = arith.constant 0 : index
    %48 = vector.load %arg5[%c1_41, %c0_42, %c0_43] : memref<3x512x512xbf16, #tpu.memory_space<vmem>>, vector<1x512x512xbf16>
    %49 = vector.shape_cast %48 : vector<1x512x512xbf16> to vector<512x512xbf16>
    %cst_44 = arith.constant dense<0.000000e+00> : vector<32x512xf32>
    %50 = tpu.matmul %47, %49, %cst_44 {dimension_numbers = #tpu.dot_dimension_numbers<[1], [0], [0], [1], [0, 0, 1, 1], [], []>} : vector<32x512xbf16>, vector<512x512xbf16>, vector<32x512xf32> -> vector<32x512xf32>
    %51 = arith.addf %46, %50 : vector<32x512xf32>
    %52 = arith.truncf %36 : vector<32x512xf32> to vector<32x512xbf16>
    %c2_45 = arith.constant 2 : index
    %c0_46 = arith.constant 0 : index
    %c0_47 = arith.constant 0 : index
    %53 = vector.load %arg5[%c2_45, %c0_46, %c0_47] : memref<3x512x512xbf16, #tpu.memory_space<vmem>>, vector<1x512x512xbf16>
    %54 = vector.shape_cast %53 : vector<1x512x512xbf16> to vector<512x512xbf16>
    %cst_48 = arith.constant dense<0.000000e+00> : vector<32x512xf32>
    %55 = tpu.matmul %52, %54, %cst_48 {dimension_numbers = #tpu.dot_dimension_numbers<[1], [0], [0], [1], [0, 0, 1, 1], [], []>} : vector<32x512xbf16>, vector<512x512xbf16>, vector<32x512xf32> -> vector<32x512xf32>
    %56 = arith.addf %51, %55 : vector<32x512xf32>
    %c0_49 = arith.constant 0 : index
    %c0_50 = arith.constant 0 : index
    %57 = vector.load %arg6[%c0_49, %c0_50] : memref<1x512xf32, #tpu.memory_space<vmem>>, vector<1x512xf32>
    %58 = vector.broadcast %57 : vector<1x512xf32> to vector<32x512xf32>
    %59 = arith.addf %56, %58 : vector<32x512xf32>
    %cst_51 = arith.constant 0.000000e+00 : f32
    %60 = vector.broadcast %cst_51 : f32 to vector<32x512xf32>
    %61 = arith.maximumf %59, %60 : vector<32x512xf32>
    %62 = vector.shape_cast %61 : vector<32x512xf32> to vector<2x16x512xf32>
    %c0_52 = arith.constant 0 : index
    %c0_53 = arith.constant 0 : index
    %c0_54 = arith.constant 0 : index
    %63 = vector.load %arg11[%c0_52, %c0_53, %c0_54] : memref<2x16x512xf32, #tpu.memory_space<vmem>>, vector<2x16x512xf32>
    tpu.vector_store %arg11[%c0_52, %c0_53, %c0_54], %62 {strides = array<i32>} : memref<2x16x512xf32, #tpu.memory_space<vmem>>, vector<2x16x512xf32>,
    %cst_55 = arith.constant 0.000000e+00 : f32
    %64 = vector.broadcast %cst_55 : f32 to vector<2x1x512xf32>
    %c0_56 = arith.constant 0 : index
    %c0_57 = arith.constant 0 : index
    %c0_58 = arith.constant 0 : index
    %65 = vector.load %arg14[%c0_56, %c0_57, %c0_58] : memref<2x18x512xf32, #tpu.memory_space<vmem>>, vector<2x1x512xf32>
    tpu.vector_store %arg14[%c0_56, %c0_57, %c0_58], %64 {strides = array<i32>} : memref<2x18x512xf32, #tpu.memory_space<vmem>>, vector<2x1x512xf32>,
    %cst_59 = arith.constant 0.000000e+00 : f32
    %66 = vector.broadcast %cst_59 : f32 to vector<2x1x512xf32>
    %c0_60 = arith.constant 0 : index
    %c17 = arith.constant 17 : index
    %c0_61 = arith.constant 0 : index
    %67 = vector.load %arg14[%c0_60, %c17, %c0_61] : memref<2x18x512xf32, #tpu.memory_space<vmem>>, vector<2x1x512xf32>
    tpu.vector_store %arg14[%c0_60, %c17, %c0_61], %66 {strides = array<i32>} : memref<2x18x512xf32, #tpu.memory_space<vmem>>, vector<2x1x512xf32>,
    %68 = vector.shape_cast %61 : vector<32x512xf32> to vector<2x16x512xf32>
    %c0_62 = arith.constant 0 : index
    %c1_63 = arith.constant 1 : index
    %c0_64 = arith.constant 0 : index
    %69 = vector.load %arg14[%c0_62, %c1_63, %c0_64] : memref<2x18x512xf32, #tpu.memory_space<vmem>>, vector<2x16x512xf32>
    tpu.vector_store %arg14[%c0_62, %c1_63, %c0_64], %68 {strides = array<i32>} : memref<2x18x512xf32, #tpu.memory_space<vmem>>, vector<2x16x512xf32>,
    %c0_65 = arith.constant 0 : index
    %c0_66 = arith.constant 0 : index
    %c0_67 = arith.constant 0 : index
    %70 = vector.load %arg14[%c0_65, %c0_66, %c0_67] : memref<2x18x512xf32, #tpu.memory_space<vmem>>, vector<2x16x512xf32>
    %71 = vector.shape_cast %70 : vector<2x16x512xf32> to vector<32x512xf32>
    %72 = arith.truncf %71 : vector<32x512xf32> to vector<32x512xbf16>
    %c0_68 = arith.constant 0 : index
    %c2_69 = arith.constant 2 : index
    %c0_70 = arith.constant 0 : index
    %73 = vector.load %arg14[%c0_68, %c2_69, %c0_70] : memref<2x18x512xf32, #tpu.memory_space<vmem>>, vector<2x16x512xf32>
    %74 = vector.shape_cast %73 : vector<2x16x512xf32> to vector<32x512xf32>
    %75 = arith.truncf %74 : vector<32x512xf32> to vector<32x512xbf16>
    %c0_71 = arith.constant 0 : index
    %c0_72 = arith.constant 0 : index
    %c0_73 = arith.constant 0 : index
    %76 = vector.load %arg7[%c0_71, %c0_72, %c0_73] : memref<3x512x512xbf16, #tpu.memory_space<vmem>>, vector<1x512x512xbf16>
    %77 = vector.shape_cast %76 : vector<1x512x512xbf16> to vector<512x512xbf16>
    %cst_74 = arith.constant dense<0.000000e+00> : vector<32x512xf32>
    %78 = tpu.matmul %72, %77, %cst_74 {dimension_numbers = #tpu.dot_dimension_numbers<[1], [0], [0], [1], [0, 0, 1, 1], [], []>} : vector<32x512xbf16>, vector<512x512xbf16>, vector<32x512xf32> -> vector<32x512xf32>
    %79 = arith.truncf %61 : vector<32x512xf32> to vector<32x512xbf16>
    %c1_75 = arith.constant 1 : index
    %c0_76 = arith.constant 0 : index
    %c0_77 = arith.constant 0 : index
    %80 = vector.load %arg7[%c1_75, %c0_76, %c0_77] : memref<3x512x512xbf16, #tpu.memory_space<vmem>>, vector<1x512x512xbf16>
    %81 = vector.shape_cast %80 : vector<1x512x512xbf16> to vector<512x512xbf16>
    %cst_78 = arith.constant dense<0.000000e+00> : vector<32x512xf32>
    %82 = tpu.matmul %79, %81, %cst_78 {dimension_numbers = #tpu.dot_dimension_numbers<[1], [0], [0], [1], [0, 0, 1, 1], [], []>} : vector<32x512xbf16>, vector<512x512xbf16>, vector<32x512xf32> -> vector<32x512xf32>
    %83 = arith.addf %78, %82 : vector<32x512xf32>
    %c2_79 = arith.constant 2 : index
    %c0_80 = arith.constant 0 : index
    %c0_81 = arith.constant 0 : index
    %84 = vector.load %arg7[%c2_79, %c0_80, %c0_81] : memref<3x512x512xbf16, #tpu.memory_space<vmem>>, vector<1x512x512xbf16>
    %85 = vector.shape_cast %84 : vector<1x512x512xbf16> to vector<512x512xbf16>
    %cst_82 = arith.constant dense<0.000000e+00> : vector<32x512xf32>
    %86 = tpu.matmul %75, %85, %cst_82 {dimension_numbers = #tpu.dot_dimension_numbers<[1], [0], [0], [1], [0, 0, 1, 1], [], []>} : vector<32x512xbf16>, vector<512x512xbf16>, vector<32x512xf32> -> vector<32x512xf32>
    %87 = arith.addf %83, %86 : vector<32x512xf32>
    %c0_83 = arith.constant 0 : index
    %c0_84 = arith.constant 0 : index
    %88 = vector.load %arg8[%c0_83, %c0_84] : memref<1x512xf32, #tpu.memory_space<vmem>>, vector<1x512xf32>
    %89 = vector.broadcast %88 : vector<1x512xf32> to vector<32x512xf32>
    %90 = arith.addf %87, %89 : vector<32x512xf32>
    %cst_85 = arith.constant 0.000000e+00 : f32
    %91 = vector.broadcast %cst_85 : f32 to vector<32x512xf32>
    %92 = arith.maximumf %90, %91 : vector<32x512xf32>
    %93 = arith.truncf %92 : vector<32x512xf32> to vector<32x512xbf16>
    %c0_86 = arith.constant 0 : index
    %c0_87 = arith.constant 0 : index
    %94 = vector.load %arg9[%c0_86, %c0_87] : memref<512x256xbf16, #tpu.memory_space<vmem>>, vector<512x256xbf16>
    %cst_88 = arith.constant dense<0.000000e+00> : vector<32x256xf32>
    %95 = tpu.matmul %93, %94, %cst_88 {dimension_numbers = #tpu.dot_dimension_numbers<[1], [0], [0], [1], [0, 0, 1, 1], [], []>} : vector<32x512xbf16>, vector<512x256xbf16>, vector<32x256xf32> -> vector<32x256xf32>
    %c0_89 = arith.constant 0 : index
    %c0_90 = arith.constant 0 : index
    %96 = vector.load %arg10[%c0_89, %c0_90] : memref<1x256xf32, #tpu.memory_space<vmem>>, vector<1x256xf32>
    %97 = vector.broadcast %96 : vector<1x256xf32> to vector<32x256xf32>
    %98 = arith.addf %95, %97 : vector<32x256xf32>
    %99 = vector.shape_cast %98 : vector<32x256xf32> to vector<2x16x256xf32>
    %c0_91 = arith.constant 0 : index
    %c0_92 = arith.constant 0 : index
    %c0_93 = arith.constant 0 : index
    %100 = vector.load %arg12[%c0_91, %c0_92, %c0_93] : memref<2x16x256xf32, #tpu.memory_space<vmem>>, vector<2x16x256xf32>
    tpu.vector_store %arg12[%c0_91, %c0_92, %c0_93], %99 {strides = array<i32>} : memref<2x16x256xf32, #tpu.memory_space<vmem>>, vector<2x16x256xf32>,
    return
  }
  func.func @transform_0(%arg0: i32) -> (i32, i32, i32) {
    %c0_i32 = arith.constant 0 : i32
    %c0_i32_0 = arith.constant 0 : i32
    %c0_i32_1 = arith.constant 0 : i32
    %c0_i32_2 = arith.constant 0 : i32
    return %c0_i32, %c0_i32_0, %c0_i32_1 : i32, i32, i32
  }
  func.func @transform_1(%arg0: i32) -> (i32, i32, i32) {
    %c0_i32 = arith.constant 0 : i32
    %c0_i32_0 = arith.constant 0 : i32
    %c0_i32_1 = arith.constant 0 : i32
    %c0_i32_2 = arith.constant 0 : i32
    return %c0_i32, %c0_i32_0, %c0_i32_1 : i32, i32, i32
  }
  func.func @transform_2(%arg0: i32) -> (i32, i32, i32) {
    %c0_i32 = arith.constant 0 : i32
    %c0_i32_0 = arith.constant 0 : i32
    %c0_i32_1 = arith.constant 0 : i32
    %c0_i32_2 = arith.constant 0 : i32
    return %c0_i32, %c0_i32_0, %c0_i32_1 : i32, i32, i32
  }
  func.func @transform_3(%arg0: i32) -> (i32, i32) {
    %c0_i32 = arith.constant 0 : i32
    %c0_i32_0 = arith.constant 0 : i32
    %c0_i32_1 = arith.constant 0 : i32
    return %c0_i32, %c0_i32_0 : i32, i32
  }
  func.func @transform_4(%arg0: i32) -> (i32, i32, i32) {
    %c0_i32 = arith.constant 0 : i32
    %c0_i32_0 = arith.constant 0 : i32
    %c0_i32_1 = arith.constant 0 : i32
    %c0_i32_2 = arith.constant 0 : i32
    return %c0_i32, %c0_i32_0, %c0_i32_1 : i32, i32, i32
  }
  func.func @transform_5(%arg0: i32) -> (i32, i32) {
    %c0_i32 = arith.constant 0 : i32
    %c0_i32_0 = arith.constant 0 : i32
    %c0_i32_1 = arith.constant 0 : i32
    return %c0_i32, %c0_i32_0 : i32, i32
  }
  func.func @transform_6(%arg0: i32) -> (i32, i32, i32) {
    %c0_i32 = arith.constant 0 : i32
    %c0_i32_0 = arith.constant 0 : i32
    %c0_i32_1 = arith.constant 0 : i32
    %c0_i32_2 = arith.constant 0 : i32
    return %c0_i32, %c0_i32_0, %c0_i32_1 : i32, i32, i32
  }
  func.func @transform_7(%arg0: i32) -> (i32, i32) {
    %c0_i32 = arith.constant 0 : i32
    %c0_i32_0 = arith.constant 0 : i32
    %c0_i32_1 = arith.constant 0 : i32
    return %c0_i32, %c0_i32_0 : i32, i32
  }
  func.func @transform_8(%arg0: i32) -> (i32, i32) {
    %c0_i32 = arith.constant 0 : i32
    %c0_i32_0 = arith.constant 0 : i32
    %c0_i32_1 = arith.constant 0 : i32
    return %c0_i32, %c0_i32_0 : i32, i32
  }
  func.func @transform_9(%arg0: i32) -> (i32, i32) {
    %c0_i32 = arith.constant 0 : i32
    %c0_i32_0 = arith.constant 0 : i32
    %c0_i32_1 = arith.constant 0 : i32
    return %c0_i32, %c0_i32_0 : i32, i32
  }
  func.func @transform_10(%arg0: i32) -> (i32, i32, i32) {
    %c0_i32 = arith.constant 0 : i32
    %c0_i32_0 = arith.constant 0 : i32
    %c0_i32_1 = arith.constant 0 : i32
    %c0_i32_2 = arith.constant 0 : i32
    return %c0_i32, %c0_i32_0, %c0_i32_1 : i32, i32, i32
  }
  func.func @transform_11(%arg0: i32) -> (i32, i32, i32) {
    %c0_i32 = arith.constant 0 : i32
    %c0_i32_0 = arith.constant 0 : i32
    %c0_i32_1 = arith.constant 0 : i32
    %c0_i32_2 = arith.constant 0 : i32
    return %c0_i32, %c0_i32_0, %c0_i32_1 : i32, i32, i32
  }
}

module attributes {stable_mosaic.version = 11 : i64} {
  func.func @_roi_track_kernel(%arg0: i32, %arg1: memref<16x1xi32, #tpu.memory_space<vmem>>, %arg2: memref<512x32xf32, #tpu.memory_space<vmem>>, %arg3: memref<32x64xbf16, #tpu.memory_space<vmem>>, %arg4: memref<1x64xf32, #tpu.memory_space<vmem>>, %arg5: memref<64x64xbf16, #tpu.memory_space<vmem>>, %arg6: memref<1x64xf32, #tpu.memory_space<vmem>>, %arg7: memref<64x128xbf16, #tpu.memory_space<vmem>>, %arg8: memref<1x128xf32, #tpu.memory_space<vmem>>, %arg9: memref<128x128xbf16, #tpu.memory_space<vmem>>, %arg10: memref<16x128xf32, #tpu.memory_space<vmem>>) attributes {dimension_semantics = [#tpu.dimension_semantics<arbitrary>], iteration_bounds = array<i64: 1>, scalar_prefetch = 0 : i64, scratch_operands = 0 : i64, tpu.core_type = #tpu.core_type<tc>, window_params = [{pipeline_mode = #tpu.pipeline_mode<synchronous>, transform_indices = @transform_0, window_bounds = array<i64: 16, 1>}, {pipeline_mode = #tpu.pipeline_mode<synchronous>, transform_indices = @transform_1, window_bounds = array<i64: 512, 32>}, {pipeline_mode = #tpu.pipeline_mode<synchronous>, transform_indices = @transform_2, window_bounds = array<i64: 32, 64>}, {pipeline_mode = #tpu.pipeline_mode<synchronous>, transform_indices = @transform_3, window_bounds = array<i64: 1, 64>}, {pipeline_mode = #tpu.pipeline_mode<synchronous>, transform_indices = @transform_4, window_bounds = array<i64: 64, 64>}, {pipeline_mode = #tpu.pipeline_mode<synchronous>, transform_indices = @transform_5, window_bounds = array<i64: 1, 64>}, {pipeline_mode = #tpu.pipeline_mode<synchronous>, transform_indices = @transform_6, window_bounds = array<i64: 64, 128>}, {pipeline_mode = #tpu.pipeline_mode<synchronous>, transform_indices = @transform_7, window_bounds = array<i64: 1, 128>}, {pipeline_mode = #tpu.pipeline_mode<synchronous>, transform_indices = @transform_8, window_bounds = array<i64: 128, 128>}, {pipeline_mode = #tpu.pipeline_mode<synchronous>, transform_indices = @transform_9, window_bounds = array<i64: 16, 128>}]} {
    %c0 = arith.constant 0 : index
    %c0_0 = arith.constant 0 : index
    %0 = vector.load %arg1[%c0, %c0_0] : memref<16x1xi32, #tpu.memory_space<vmem>>, vector<16x1xi32>
    %1 = tpu.iota {dimensions = array<i32: 1>} : vector<16x512xi32>
    %2 = vector.broadcast %0 : vector<16x1xi32> to vector<16x512xi32>
    %3 = arith.cmpi eq, %1, %2 : vector<16x512xi32>
    %cst = arith.constant 1.000000e+00 : f32
    %cst_1 = arith.constant 0.000000e+00 : f32
    %4 = vector.broadcast %cst : f32 to vector<16x512xf32>
    %5 = vector.broadcast %cst_1 : f32 to vector<16x512xf32>
    %6 = arith.select %3, %4, %5 : vector<16x512xi1>, vector<16x512xf32>
    %7 = arith.truncf %6 : vector<16x512xf32> to vector<16x512xbf16>
    %c0_2 = arith.constant 0 : index
    %c0_3 = arith.constant 0 : index
    %8 = vector.load %arg2[%c0_2, %c0_3] : memref<512x32xf32, #tpu.memory_space<vmem>>, vector<512x32xf32>
    %9 = arith.truncf %8 : vector<512x32xf32> to vector<512x32xbf16>
    %cst_4 = arith.constant dense<0.000000e+00> : vector<16x32xf32>
    %10 = tpu.matmul %7, %9, %cst_4 {dimension_numbers = #tpu.dot_dimension_numbers<[1], [0], [0], [1], [0, 0, 1, 1], [], []>} : vector<16x512xbf16>, vector<512x32xbf16>, vector<16x32xf32> -> vector<16x32xf32>
    %11 = arith.truncf %10 : vector<16x32xf32> to vector<16x32xbf16>
    %c0_5 = arith.constant 0 : index
    %c0_6 = arith.constant 0 : index
    %12 = vector.load %arg3[%c0_5, %c0_6] : memref<32x64xbf16, #tpu.memory_space<vmem>>, vector<32x64xbf16>
    %cst_7 = arith.constant dense<0.000000e+00> : vector<16x64xf32>
    %13 = tpu.matmul %11, %12, %cst_7 {dimension_numbers = #tpu.dot_dimension_numbers<[1], [0], [0], [1], [0, 0, 1, 1], [], []>} : vector<16x32xbf16>, vector<32x64xbf16>, vector<16x64xf32> -> vector<16x64xf32>
    %c0_8 = arith.constant 0 : index
    %c0_9 = arith.constant 0 : index
    %14 = vector.load %arg4[%c0_8, %c0_9] : memref<1x64xf32, #tpu.memory_space<vmem>>, vector<1x64xf32>
    %15 = vector.broadcast %14 : vector<1x64xf32> to vector<16x64xf32>
    %16 = arith.addf %13, %15 : vector<16x64xf32>
    %cst_10 = arith.constant 0.000000e+00 : f32
    %17 = vector.broadcast %cst_10 : f32 to vector<16x64xf32>
    %18 = arith.maximumf %16, %17 : vector<16x64xf32>
    %19 = arith.truncf %18 : vector<16x64xf32> to vector<16x64xbf16>
    %c0_11 = arith.constant 0 : index
    %c0_12 = arith.constant 0 : index
    %20 = vector.load %arg5[%c0_11, %c0_12] : memref<64x64xbf16, #tpu.memory_space<vmem>>, vector<64x64xbf16>
    %cst_13 = arith.constant dense<0.000000e+00> : vector<16x64xf32>
    %21 = tpu.matmul %19, %20, %cst_13 {dimension_numbers = #tpu.dot_dimension_numbers<[1], [0], [0], [1], [0, 0, 1, 1], [], []>} : vector<16x64xbf16>, vector<64x64xbf16>, vector<16x64xf32> -> vector<16x64xf32>
    %c0_14 = arith.constant 0 : index
    %c0_15 = arith.constant 0 : index
    %22 = vector.load %arg6[%c0_14, %c0_15] : memref<1x64xf32, #tpu.memory_space<vmem>>, vector<1x64xf32>
    %23 = vector.broadcast %22 : vector<1x64xf32> to vector<16x64xf32>
    %24 = arith.addf %21, %23 : vector<16x64xf32>
    %cst_16 = arith.constant 0.000000e+00 : f32
    %25 = vector.broadcast %cst_16 : f32 to vector<16x64xf32>
    %26 = arith.maximumf %24, %25 : vector<16x64xf32>
    %27 = arith.truncf %26 : vector<16x64xf32> to vector<16x64xbf16>
    %c0_17 = arith.constant 0 : index
    %c0_18 = arith.constant 0 : index
    %28 = vector.load %arg7[%c0_17, %c0_18] : memref<64x128xbf16, #tpu.memory_space<vmem>>, vector<64x128xbf16>
    %cst_19 = arith.constant dense<0.000000e+00> : vector<16x128xf32>
    %29 = tpu.matmul %27, %28, %cst_19 {dimension_numbers = #tpu.dot_dimension_numbers<[1], [0], [0], [1], [0, 0, 1, 1], [], []>} : vector<16x64xbf16>, vector<64x128xbf16>, vector<16x128xf32> -> vector<16x128xf32>
    %c0_20 = arith.constant 0 : index
    %c0_21 = arith.constant 0 : index
    %30 = vector.load %arg8[%c0_20, %c0_21] : memref<1x128xf32, #tpu.memory_space<vmem>>, vector<1x128xf32>
    %31 = vector.broadcast %30 : vector<1x128xf32> to vector<16x128xf32>
    %32 = arith.addf %29, %31 : vector<16x128xf32>
    %33 = tpu.iota {dimensions = array<i32: 1>} : vector<16x128xi32>
    %c32_i32 = arith.constant 32 : i32
    %34 = vector.broadcast %c32_i32 : i32 to vector<16x128xi32>
    %35 = arith.cmpi slt, %33, %34 : vector<16x128xi32>
    %36 = arith.mulf %32, %32 : vector<16x128xf32>
    %cst_22 = arith.constant 0.000000e+00 : f32
    %37 = vector.broadcast %cst_22 : f32 to vector<16x128xf32>
    %38 = arith.select %35, %36, %37 : vector<16x128xi1>, vector<16x128xf32>
    %cst_23 = arith.constant dense<0.000000e+00> : vector<16xf32>
    %39 = vector.multi_reduction <add>, %38, %cst_23 [1] : vector<16x128xf32> to vector<16xf32>
    %40 = vector.shape_cast %39 : vector<16xf32> to vector<16x1xf32>
    %cst_24 = arith.constant 9.99999996E-13 : f32
    %41 = vector.broadcast %cst_24 : f32 to vector<16x1xf32>
    %42 = arith.addf %40, %41 : vector<16x1xf32>
    %43 = math.rsqrt %42 : vector<16x1xf32>
    %44 = vector.broadcast %43 : vector<16x1xf32> to vector<16x128xf32>
    %45 = arith.mulf %32, %44 : vector<16x128xf32>
    %cst_25 = arith.constant 0.000000e+00 : f32
    %46 = vector.broadcast %cst_25 : f32 to vector<16x128xf32>
    %47 = arith.select %35, %45, %46 : vector<16x128xi1>, vector<16x128xf32>
    %48 = arith.truncf %47 : vector<16x128xf32> to vector<16x128xbf16>
    %c0_26 = arith.constant 0 : index
    %c0_27 = arith.constant 0 : index
    %49 = vector.load %arg9[%c0_26, %c0_27] : memref<128x128xbf16, #tpu.memory_space<vmem>>, vector<128x128xbf16>
    %cst_28 = arith.constant dense<0.000000e+00> : vector<16x128xf32>
    %50 = tpu.matmul %48, %49, %cst_28 {dimension_numbers = #tpu.dot_dimension_numbers<[1], [0], [0], [1], [0, 0, 1, 1], [], []>} : vector<16x128xbf16>, vector<128x128xbf16>, vector<16x128xf32> -> vector<16x128xf32>
    %51 = arith.select %35, %47, %32 : vector<16x128xi1>, vector<16x128xf32>
    %52 = arith.addf %51, %50 : vector<16x128xf32>
    %c0_29 = arith.constant 0 : index
    %c0_30 = arith.constant 0 : index
    %53 = vector.load %arg10[%c0_29, %c0_30] : memref<16x128xf32, #tpu.memory_space<vmem>>, vector<16x128xf32>
    tpu.vector_store %arg10[%c0_29, %c0_30], %52 {strides = array<i32>} : memref<16x128xf32, #tpu.memory_space<vmem>>, vector<16x128xf32>,
    return
  }
  func.func @transform_0(%arg0: i32) -> (i32, i32) {
    %c0_i32 = arith.constant 0 : i32
    %c0_i32_0 = arith.constant 0 : i32
    %c0_i32_1 = arith.constant 0 : i32
    return %c0_i32, %c0_i32_0 : i32, i32
  }
  func.func @transform_1(%arg0: i32) -> (i32, i32) {
    %c0_i32 = arith.constant 0 : i32
    %c0_i32_0 = arith.constant 0 : i32
    %c0_i32_1 = arith.constant 0 : i32
    return %c0_i32, %c0_i32_0 : i32, i32
  }
  func.func @transform_2(%arg0: i32) -> (i32, i32) {
    %c0_i32 = arith.constant 0 : i32
    %c0_i32_0 = arith.constant 0 : i32
    %c0_i32_1 = arith.constant 0 : i32
    return %c0_i32, %c0_i32_0 : i32, i32
  }
  func.func @transform_3(%arg0: i32) -> (i32, i32) {
    %c0_i32 = arith.constant 0 : i32
    %c0_i32_0 = arith.constant 0 : i32
    %c0_i32_1 = arith.constant 0 : i32
    return %c0_i32, %c0_i32_0 : i32, i32
  }
  func.func @transform_4(%arg0: i32) -> (i32, i32) {
    %c0_i32 = arith.constant 0 : i32
    %c0_i32_0 = arith.constant 0 : i32
    %c0_i32_1 = arith.constant 0 : i32
    return %c0_i32, %c0_i32_0 : i32, i32
  }
  func.func @transform_5(%arg0: i32) -> (i32, i32) {
    %c0_i32 = arith.constant 0 : i32
    %c0_i32_0 = arith.constant 0 : i32
    %c0_i32_1 = arith.constant 0 : i32
    return %c0_i32, %c0_i32_0 : i32, i32
  }
  func.func @transform_6(%arg0: i32) -> (i32, i32) {
    %c0_i32 = arith.constant 0 : i32
    %c0_i32_0 = arith.constant 0 : i32
    %c0_i32_1 = arith.constant 0 : i32
    return %c0_i32, %c0_i32_0 : i32, i32
  }
  func.func @transform_7(%arg0: i32) -> (i32, i32) {
    %c0_i32 = arith.constant 0 : i32
    %c0_i32_0 = arith.constant 0 : i32
    %c0_i32_1 = arith.constant 0 : i32
    return %c0_i32, %c0_i32_0 : i32, i32
  }
  func.func @transform_8(%arg0: i32) -> (i32, i32) {
    %c0_i32 = arith.constant 0 : i32
    %c0_i32_0 = arith.constant 0 : i32
    %c0_i32_1 = arith.constant 0 : i32
    return %c0_i32, %c0_i32_0 : i32, i32
  }
  func.func @transform_9(%arg0: i32) -> (i32, i32) {
    %c0_i32 = arith.constant 0 : i32
    %c0_i32_0 = arith.constant 0 : i32
    %c0_i32_1 = arith.constant 0 : i32
    return %c0_i32, %c0_i32_0 : i32, i32
  }
}

</mosaic_0001>

<llo_original>
// kernel: tile.6
$region0: #{tile.6}
  #allocation2 [shape = 's32[1]{0}', space=sflag, size = 0x4, scoped, tag = 'scoped memory for tile.6']
  %s0 = inlined_call_operand.hbm [shape: f32[3], index: 0, kind: input, shape index: {}]
  %s1 = inlined_call_operand.vmem [shape: f32[34,3], index: 1, kind: output, shape index: {}]
  $region1: #{tile.6} parent=0
    #allocation0 [shape = 'u8[512]{0}', space=vmem, size = 0x400, scoped, tag = 'operand span for operand 0']
    #allocation1 [shape = 's32[1]{0}', space=sflag, size = 0x4, scoped, tag = 'scoped memory for tile.6']
    %2 = vsyncpa [#allocation1], 0
    // Predicated region
    $region2: #{tile.6} parent=1 // pred_check
      _
    $region3: #{tile.6} parent=1 // pred_check_branch
      %4 = sbr.rel (0) target = $region5
    $region4: #{tile.6} parent=1 // pred_region
      %s6 = ssub.s32 16, 16
      %7 = vsyncadd [#allocation1], %s6
      %s9 = sshll.u32 [#allocation0], 4
      %s10 = int_to_ptr.vmem [resolvable:$true] %s9
      %12 = dma.hbm_to_vmem [thread:$0]  %s0, 16, %s10, [#allocation1]
    $region5: #{tile.6} parent=1 // pred_fallthru
      _
    // Predicated region
    $region6: #{tile.6} parent=1 // pred_check
      _
    $region7: #{tile.6} parent=1 // pred_check_branch
      %14 = sbr.rel (0) target = $region9
    $region8: #{tile.6} parent=1 // pred_region
      %15 = dma.done [#allocation1], 16
    $region9: #{tile.6} parent=1 // pred_fallthru
      _
    %v16 = vld [vmem:[#allocation0] ss:$0 sm:$0xff]
    %17 = vst [vmem:[%s1] sm:$0xff] %v16
    %s18 = scalar_lea.vmem %s1, 8
    %19 = vst [vmem:[%s18] sm:$0xff] %v16
    %s20 = scalar_lea.vmem %s1, 16
    %21 = vst [vmem:[%s20] sm:$0xff] %v16
    %s22 = scalar_lea.vmem %s1, 24
    %23 = vst [vmem:[%s22] sm:$0xff] %v16
    %s24 = scalar_lea.vmem %s1, 32
    %25 = vst [vmem:[%s24] sm:$0xff] %v16
    %26 = vsyncpa [#allocation1], 1

// kernel: custom-call
$region0: #{custom-call}
  #allocation0 [shape = 'u32[8,128]{1,0}', space=vmem, size = 0x1000, scoped, tag = 'scratch']
  #allocation1 [shape = 'u32[8,128]{1,0}', space=vmem, size = 0x1000, scoped, tag = 'scratch']
  #allocation2 [shape = 'u32[8,128]{1,0}', space=vmem, size = 0x1000, scoped, tag = 'scratch']
  #allocation3 [shape = 'u32[8,128]{1,0}', space=vmem, size = 0x1000, scoped, tag = 'scratch']
  #allocation4 [shape = 'u32[8,128]{1,0}', space=vmem, size = 0x1000, scoped, tag = 'scratch']
  #allocation5 [shape = 'u32[8,128]{1,0}', space=vmem, size = 0x1000, scoped, tag = 'scratch']
  #allocation6 [shape = 'u32[8,128]{1,0}', space=vmem, size = 0x1000, scoped, tag = 'scratch']
  %s0 = inlined_call_operand.vmem [shape: f32[2,768], index: 0, kind: input, shape index: {}]
  %s1 = inlined_call_operand.hbm [shape: f32[2,8], index: 1, kind: output, shape index: {0}]
  %s2 = inlined_call_operand.vmem [shape: s32[2,8], index: 2, kind: output, shape index: {1}]
  %3 = xla_tuple %s1, %s2
  %4 = xla_tuple 2147483648, 2147483647
  $region1: #{custom-call} parent=0
    #allocation7 [shape = 'u8[4096]{0}', space=vmem, size = 0x1000, scoped, tag = 'operand span for operand 1']
    #allocation8 [shape = 'u8[1024]{0}', space=vmem, size = 0x400, scoped, tag = 'packed  for operand 1']
    #allocation9 [shape = 's32[1]{0}', space=sflag, size = 0x4, scoped, tag = 'scoped memory for custom-call']
    #allocation10 [shape = 'u8[4096]{0}', space=vmem, size = 0x1000, scoped, tag = 'operand span for operand 2']
    #allocation11 [shape = 'u8[1024]{0}', space=vmem, size = 0x400, scoped, tag = 'packed  for operand 2']
    #allocation12 [shape = 'f32[8,2]{1,0:T(8,128)}', space=vmem, size = 0x1000, scoped, tag = 'scoped memory for custom-call']
    #allocation13 [shape = 'f32[8,2]{1,0:T(8,128)}', space=vmem, size = 0x1000, scoped, tag = 'scoped memory for custom-call']
    #allocation14 [shape = 's32[8,2]{1,0:T(8,128)}', space=vmem, size = 0x1000, scoped, tag = 'scoped memory for custom-call']
    #allocation15 [shape = 's32[8,2]{1,0:T(8,128)}', space=vmem, size = 0x1000, scoped, tag = 'scoped memory for custom-call']
    %5 = vsyncpa [#allocation9], 0
    %6 = xla_tuple [#allocation7], [#allocation10]
    %7 = vst [vmem:[#allocation12] sm:$0xff] 2147483648
    %8 = vst [vmem:[#allocation14] sm:$0xff] 2147483647
    %9 = xla_tuple [#allocation12], [#allocation14]
    %10 = xla_tuple [#allocation13], [#allocation15]
    $region2: #{custom-call} parent=1
      #allocation16 [shape = 'u8[8192]{0}', space=vmem, size = 0x2000, scoped, tag = 'operand span for operand 0']
      #allocation17 [shape = 's32[2048]{0}', space=vmem, size = 0x2000, scoped, tag = 'scoped memory for custom-call']
      // Predicated region
      $region3: #{custom-call} parent=2 // pred_check
        _
      $region4: #{custom-call} parent=2 // pred_check_branch
        %12 = sbr.rel (0) target = $region6
      $region5: #{custom-call} parent=2 // pred_region
        // Predicated region
        $region7: #{custom-call} parent=5 // pred_check
          _
        $region8: #{custom-call} parent=5 // pred_check_branch
          %14 = sbr.rel (0) target = $region10
        $region9: #{custom-call} parent=5 // pred_region
          // Predicated region
          $region11: #{custom-call} parent=9 // pred_check
            _
          $region12: #{custom-call} parent=9 // pred_check_branch
            %16 = sbr.rel (0) target = $region14
          $region13: #{custom-call} parent=9 // pred_region
            %s17 = scalar_lea.vmem %s0, 8
            %s18 = scalar_lea.vmem [#allocation16], 8
            loop: start=0, step=1, limit=1
            $region15: #{custom-call} parent=13 // loop_pre_header
              _
            $region16: #{custom-call} parent=13 // loop_header
              %s20 = sphi 0, %s24
              %p21 = scmp.ge.s32.totalorder %s20, 1
              %s25 = sphi %s0, %s0
              %s26 = sphi [#allocation16], [#allocation16]
            $region17: #{custom-call} parent=13 // loop_header_branch
              %23 = sbr.rel (%p21) target = $region21
            $region18: #{custom-call} parent=13 // loop_body
              %v27 = vld [vmem:[%s25] sm:$0xff]
              %28 = vst [vmem:[%s26] sm:$0xff] %v27
            $region19: #{custom-call} parent=13 // loop_footer
              %s24 = sadd.s32 1, %s20
            $region20: #{custom-call} parent=13 // loop_footer_branch
              %19 = sbr.rel target = $region16
            $region21: #{custom-call} parent=13 // loop_exit
              _
            loop: start=0, step=1, limit=1
            $region22: #{custom-call} parent=13 // loop_pre_header
              _
            $region23: #{custom-call} parent=13 // loop_header
              %s31 = sphi 0, %s35
              %p32 = scmp.ge.s32.totalorder %s31, 1
              %s36 = sphi %s17, %s17
              %s37 = sphi %s18, %s18
            $region24: #{custom-call} parent=13 // loop_header_branch
              %34 = sbr.rel (%p32) target = $region28
            $region25: #{custom-call} parent=13 // loop_body
              %v38 = vld [vmem:[%s36] sm:$0xf]
              %39 = vst [vmem:[%s37] sm:$0xf] %v38
            $region26: #{custom-call} parent=13 // loop_footer
              %s35 = sadd.s32 1, %s31
            $region27: #{custom-call} parent=13 // loop_footer_branch
              %30 = sbr.rel target = $region23
            $region28: #{custom-call} parent=13 // loop_exit
              _
          $region14: #{custom-call} parent=9 // pred_fallthru
            _
        $region10: #{custom-call} parent=5 // pred_fallthru
          _
        %40 = vnop
      $region6: #{custom-call} parent=2 // pred_fallthru
        _
      // Predicated region
      $region29: #{custom-call} parent=2 // pred_check
        _
      $region30: #{custom-call} parent=2 // pred_check_branch
        %42 = sbr.rel (0) target = $region32
      $region31: #{custom-call} parent=2 // pred_region
        _
      $region32: #{custom-call} parent=2 // pred_fallthru
        _
      %v43 = vlaneseq
      %v44 = vand.u32 %v43, 127
      %v45 = vlaneseq
      %v46 = vshrl.u32 %v45, 7
      %v47 = vshrl.u32 %v46, 1
      %v48 = vand.u32 %v46, 1
      %v49 = vmul.u32 %v47, 128
      %v50 = vadd.s32 %v44, %v49
      %v52 = vld [vmem:[#allocation16] sm:$0xff]
      %vm53 = vcmp.lt.s32.totalorder %v52, 0
      %v54 = vsub.s32 2147483647, %v52
      %v55 = vsel %vm53, %v54, %v52
      %vm57 = vcmp.lt.s32.totalorder %v50, 768
      %v58 = vsel %vm57, %v55, 2147483648
      %59 = vst [vmem:[#allocation16] sm:$0xff] %v58
      %s60 = scalar_lea.vmem [#allocation16], 8
      %v61 = vld [vmem:[%s60] sm:$0xff]
      %vm62 = vcmp.lt.s32.totalorder %v61, 0
      %v63 = vsub.s32 2147483647, %v61
      %v64 = vsel %vm62, %v63, %v61
      %v65 = vadd.s32 %v50, 512
      %vm66 = vcmp.lt.s32.totalorder %v65, 768
      %v67 = vsel %vm66, %v64, 2147483648
      %68 = vst [vmem:[%s60] sm:$0xff] %v67
      %v69 = vlaneseq
      %v70 = vand.u32 %v69, 127
      %v71 = vlaneseq
      %v72 = vshrl.u32 %v71, 7
      %v73 = vshrl.u32 %v72, 1
      %v74 = vand.u32 %v72, 1
      %v75 = vmul.u32 %v73, 128
      %v76 = vadd.s32 %v70, %v75
      %79 = vst [vmem:[#allocation17] sm:$0xff] %v76
      %v80 = vadd.s32 %v76, 512
      %s81 = scalar_lea.vmem [#allocation17], 8
      %82 = vst [vmem:[%s81] sm:$0xff] %v80
      %83 = xla_tuple [#allocation16], [#allocation17]
      %84 = vst [vmem:[#allocation13] sm:$0xff] 2147483648
      %85 = vst [vmem:[#allocation15] sm:$0xff] 2147483647
      %86 = xla_tuple [#allocation13], [#allocation15]
      loop: start=0, step=1, limit=8
      $region33: #{custom-call} parent=2 // loop_pre_header
        _
      $region34: #{custom-call} parent=2 // loop_header
        %s88 = sphi 0, %s92
        %p89 = scmp.ge.s32.totalorder %s88, 8
      $region35: #{custom-call} parent=2 // loop_header_branch
        %91 = sbr.rel (%p89) target = $region39
      $region36: #{custom-call} parent=2 // loop_body
        %v93 = vld [vmem:[#allocation16] sm:$0xff]
        %v94 = vld [vmem:[#allocation17] sm:$0xff]
        %95 = xla_tuple %v93, %v94
        %s96 = scalar_lea.vmem [#allocation16], 8
        %v97 = vld [vmem:[%s96] sm:$0xff]
        %s98 = scalar_lea.vmem [#allocation17], 8
        %v99 = vld [vmem:[%s98] sm:$0xff]
        %100 = xla_tuple %v97, %v99
        %vm101 = vcmp.gt.s32.totalorder %v97, %v93
        %vm102 = vcmp.eq.s32.totalorder %v97, %v93
        %vm103 = vcmp.lt.s32.totalorder %v99, %v94
        %vm104 = vmand %vm102, %vm103
        %vm105 = vmor %vm101, %vm104
        %v106 = vsel %vm105, %v97, %v93
        %v107 = vsel %vm105, %v99, %v94
        %108 = xla_tuple %v106, %v107
        %v109 = vrot.slane %v106, 2
        %v110 = vrot.slane %v107, 2
        %111 = xla_tuple %v109, %v110
        %vm112 = vcmp.gt.s32.totalorder %v109, %v106
        %vm113 = vcmp.eq.s32.totalorder %v109, %v106
        %vm114 = vcmp.lt.s32.totalorder %v110, %v107
        %vm115 = vmand %vm113, %vm114
        %vm116 = vmor %vm112, %vm115
        %v117 = vsel %vm116, %v109, %v106
        %v118 = vsel %vm116, %v110, %v107
        %119 = xla_tuple %v117, %v118
        %v120 = vrot.slane %v117, 2
        %v121 = vrot.slane %v118, 2
        %122 = xla_tuple %v120, %v121
        %vm123 = vcmp.gt.s32.totalorder %v120, %v117
        %vm124 = vcmp.eq.s32.totalorder %v120, %v117
        %vm125 = vcmp.lt.s32.totalorder %v121, %v118
        %vm126 = vmand %vm124, %vm125
        %vm127 = vmor %vm123, %vm126
        %v128 = vsel %vm127, %v120, %v117
        %v129 = vsel %vm127, %v121, %v118
        %130 = xla_tuple %v128, %v129
        %v131 = vrot.slane %v128, 2
        %v132 = vrot.slane %v129, 2
        %133 = xla_tuple %v131, %v132
        %vm134 = vcmp.gt.s32.totalorder %v131, %v128
        %vm135 = vcmp.eq.s32.totalorder %v131, %v128
        %vm136 = vcmp.lt.s32.totalorder %v132, %v129
        %vm137 = vmand %vm135, %vm136
        %vm138 = vmor %vm134, %vm137
        %v139 = vsel %vm138, %v131, %v128
        %v140 = vsel %vm138, %v132, %v129
        %141 = xla_tuple %v139, %v140
        %142 = vxpose.xlu0.b32.start [1/16] %v139, 128
        %143 = vxpose.xlu0.b32.cont [2/16] %v139, 128
        %144 = vxpose.xlu0.b32.cont [3/16] %v139, 128
        %145 = vxpose.xlu0.b32.cont [4/16] %v139, 128
        %146 = vxpose.xlu0.b32.cont [5/16] %v139, 128
        %147 = vxpose.xlu0.b32.cont [6/16] %v139, 128
        %148 = vxpose.xlu0.b32.cont [7/16] %v139, 128
        %149 = vxpose.xlu0.b32.cont [8/16] %v139, 128
        %150 = vxpose.xlu0.b32.cont [9/16] %v139, 128
        %151 = vxpose.xlu0.b32.cont [10/16] %v139, 128
        %152 = vxpose.xlu0.b32.cont [11/16] %v139, 128
        %153 = vxpose.xlu0.b32.cont [12/16] %v139, 128
        %154 = vxpose.xlu0.b32.cont [13/16] %v139, 128
        %155 = vxpose.xlu0.b32.cont [14/16] %v139, 128
        %156 = vxpose.xlu0.b32.cont [15/16] %v139, 128
        %157 = vxpose.xlu0.b32.end [16/16] %v139, 128
        %v158 = vpop.trf.xlu0
        %v159 = vpop.trf.xlu0
        %v160 = vpop.trf.xlu0
        %v161 = vpop.trf.xlu0
        %v162 = vpop.trf.xlu0
        %v163 = vpop.trf.xlu0
        %v164 = vpop.trf.xlu0
        %v165 = vpop.trf.xlu0
        %v166 = vpop.trf.xlu0
        %v167 = vpop.trf.xlu0
        %v168 = vpop.trf.xlu0
        %v169 = vpop.trf.xlu0
        %v170 = vpop.trf.xlu0
        %v171 = vpop.trf.xlu0
        %v172 = vpop.trf.xlu0
        %v173 = vpop.trf.xlu0
        %174 = vxpose.xlu0.b32.start [1/16] %v140, 128
        %175 = vxpose.xlu0.b32.cont [2/16] %v140, 128
        %176 = vxpose.xlu0.b32.cont [3/16] %v140, 128
        %177 = vxpose.xlu0.b32.cont [4/16] %v140, 128
        %178 = vxpose.xlu0.b32.cont [5/16] %v140, 128
        %179 = vxpose.xlu0.b32.cont [6/16] %v140, 128
        %180 = vxpose.xlu0.b32.cont [7/16] %v140, 128
        %181 = vxpose.xlu0.b32.cont [8/16] %v140, 128
        %182 = vxpose.xlu0.b32.cont [9/16] %v140, 128
        %183 = vxpose.xlu0.b32.cont [10/16] %v140, 128
        %184 = vxpose.xlu0.b32.cont [11/16] %v140, 128
        %185 = vxpose.xlu0.b32.cont [12/16] %v140, 128
        %186 = vxpose.xlu0.b32.cont [13/16] %v140, 128
        %187 = vxpose.xlu0.b32.cont [14/16] %v140, 128
        %188 = vxpose.xlu0.b32.cont [15/16] %v140, 128
        %189 = vxpose.xlu0.b32.end [16/16] %v140, 128
        %v190 = vpop.trf.xlu0
        %v191 = vpop.trf.xlu0
        %v192 = vpop.trf.xlu0
        %v193 = vpop.trf.xlu0
        %v194 = vpop.trf.xlu0
        %v195 = vpop.trf.xlu0
        %v196 = vpop.trf.xlu0
        %v197 = vpop.trf.xlu0
        %v198 = vpop.trf.xlu0
        %v199 = vpop.trf.xlu0
        %v200 = vpop.trf.xlu0
        %v201 = vpop.trf.xlu0
        %v202 = vpop.trf.xlu0
        %v203 = vpop.trf.xlu0
        %v204 = vpop.trf.xlu0
        %v205 = vpop.trf.xlu0
        %206 = xla_tuple %v158, %v190
        %207 = xla_tuple %v159, %v191
        %vm208 = vcmp.gt.s32.totalorder %v159, %v158
        %vm209 = vcmp.eq.s32.totalorder %v159, %v158
        %vm210 = vcmp.lt.s32.totalorder %v191, %v190
        %vm211 = vmand %vm209, %vm210
        %vm212 = vmor %vm208, %vm211
        %v213 = vsel %vm212, %v159, %v158
        %v214 = vsel %vm212, %v191, %v190
        %215 = xla_tuple %v213, %v214
        %216 = xla_tuple %v160, %v192
        %vm217 = vcmp.gt.s32.totalorder %v160, %v213
        %vm218 = vcmp.eq.s32.totalorder %v160, %v213
        %vm219 = vcmp.lt.s32.totalorder %v192, %v214
        %vm220 = vmand %vm218, %vm219
        %vm221 = vmor %vm217, %vm220
        %v222 = vsel %vm221, %v160, %v213
        %v223 = vsel %vm221, %v192, %v214
        %224 = xla_tuple %v222, %v223
        %225 = xla_tuple %v161, %v193
        %vm226 = vcmp.gt.s32.totalorder %v161, %v222
        %vm227 = vcmp.eq.s32.totalorder %v161, %v222
        %vm228 = vcmp.lt.s32.totalorder %v193, %v223
        %vm229 = vmand %vm227, %vm228
        %vm230 = vmor %vm226, %vm229
        %v231 = vsel %vm230, %v161, %v222
        %v232 = vsel %vm230, %v193, %v223
        %233 = xla_tuple %v231, %v232
        %234 = xla_tuple %v162, %v194
        %vm235 = vcmp.gt.s32.totalorder %v162, %v231
        %vm236 = vcmp.eq.s32.totalorder %v162, %v231
        %vm237 = vcmp.lt.s32.totalorder %v194, %v232
        %vm238 = vmand %vm236, %vm237
        %vm239 = vmor %vm235, %vm238
        %v240 = vsel %vm239, %v162, %v231
        %v241 = vsel %vm239, %v194, %v232
        %242 = xla_tuple %v240, %v241
        %243 = xla_tuple %v163, %v195
        %vm244 = vcmp.gt.s32.totalorder %v163, %v240
        %vm245 = vcmp.eq.s32.totalorder %v163, %v240
        %vm246 = vcmp.lt.s32.totalorder %v195, %v241
        %vm247 = vmand %vm245, %vm246
        %vm248 = vmor %vm244, %vm247
        %v249 = vsel %vm248, %v163, %v240
        %v250 = vsel %vm248, %v195, %v241
        %251 = xla_tuple %v249, %v250
        %252 = xla_tuple %v164, %v196
        %vm253 = vcmp.gt.s32.totalorder %v164, %v249
        %vm254 = vcmp.eq.s32.totalorder %v164, %v249
        %vm255 = vcmp.lt.s32.totalorder %v196, %v250
        %vm256 = vmand %vm254, %vm255
        %vm257 = vmor %vm253, %vm256
        %v258 = vsel %vm257, %v164, %v249
        %v259 = vsel %vm257, %v196, %v250
        %260 = xla_tuple %v258, %v259
        %261 = xla_tuple %v165, %v197
        %vm262 = vcmp.gt.s32.totalorder %v165, %v258
        %vm263 = vcmp.eq.s32.totalorder %v165, %v258
        %vm264 = vcmp.lt.s32.totalorder %v197, %v259
        %vm265 = vmand %vm263, %vm264
        %vm266 = vmor %vm262, %vm265
        %v267 = vsel %vm266, %v165, %v258
        %v268 = vsel %vm266, %v197, %v259
        %269 = xla_tuple %v267, %v268
        %270 = xla_tuple %v166, %v198
        %vm271 = vcmp.gt.s32.totalorder %v166, %v267
        %vm272 = vcmp.eq.s32.totalorder %v166, %v267
        %vm273 = vcmp.lt.s32.totalorder %v198, %v268
        %vm274 = vmand %vm272, %vm273
        %vm275 = vmor %vm271, %vm274
        %v276 = vsel %vm275, %v166, %v267
        %v277 = vsel %vm275, %v198, %v268
        %278 = xla_tuple %v276, %v277
        %279 = xla_tuple %v167, %v199
        %vm280 = vcmp.gt.s32.totalorder %v167, %v276
        %vm281 = vcmp.eq.s32.totalorder %v167, %v276
        %vm282 = vcmp.lt.s32.totalorder %v199, %v277
        %vm283 = vmand %vm281, %vm282
        %vm284 = vmor %vm280, %vm283
        %v285 = vsel %vm284, %v167, %v276
        %v286 = vsel %vm284, %v199, %v277
        %287 = xla_tuple %v285, %v286
        %288 = xla_tuple %v168, %v200
        %vm289 = vcmp.gt.s32.totalorder %v168, %v285
        %vm290 = vcmp.eq.s32.totalorder %v168, %v285
        %vm291 = vcmp.lt.s32.totalorder %v200, %v286
        %vm292 = vmand %vm290, %vm291
        %vm293 = vmor %vm289, %vm292
        %v294 = vsel %vm293, %v168, %v285
        %v295 = vsel %vm293, %v200, %v286
        %296 = xla_tuple %v294, %v295
        %297 = xla_tuple %v169, %v201
        %vm298 = vcmp.gt.s32.totalorder %v169, %v294
        %vm299 = vcmp.eq.s32.totalorder %v169, %v294
        %vm300 = vcmp.lt.s32.totalorder %v201, %v295
        %vm301 = vmand %vm299, %vm300
        %vm302 = vmor %vm298, %vm301
        %v303 = vsel %vm302, %v169, %v294
        %v304 = vsel %vm302, %v201, %v295
        %305 = xla_tuple %v303, %v304
        %306 = xla_tuple %v170, %v202
        %vm307 = vcmp.gt.s32.totalorder %v170, %v303
        %vm308 = vcmp.eq.s32.totalorder %v170, %v303
        %vm309 = vcmp.lt.s32.totalorder %v202, %v304
        %vm310 = vmand %vm308, %vm309
        %vm311 = vmor %vm307, %vm310
        %v312 = vsel %vm311, %v170, %v303
        %v313 = vsel %vm311, %v202, %v304
        %314 = xla_tuple %v312, %v313
        %315 = xla_tuple %v171, %v203
        %vm316 = vcmp.gt.s32.totalorder %v171, %v312
        %vm317 = vcmp.eq.s32.totalorder %v171, %v312
        %vm318 = vcmp.lt.s32.totalorder %v203, %v313
        %vm319 = vmand %vm317, %vm318
        %vm320 = vmor %vm316, %vm319
        %v321 = vsel %vm320, %v171, %v312
        %v322 = vsel %vm320, %v203, %v313
        %323 = xla_tuple %v321, %v322
        %324 = xla_tuple %v172, %v204
        %vm325 = vcmp.gt.s32.totalorder %v172, %v321
        %vm326 = vcmp.eq.s32.totalorder %v172, %v321
        %vm327 = vcmp.lt.s32.totalorder %v204, %v322
        %vm328 = vmand %vm326, %vm327
        %vm329 = vmor %vm325, %vm328
        %v330 = vsel %vm329, %v172, %v321
        %v331 = vsel %vm329, %v204, %v322
        %332 = xla_tuple %v330, %v331
        %333 = xla_tuple %v173, %v205
        %vm334 = vcmp.gt.s32.totalorder %v173, %v330
        %vm335 = vcmp.eq.s32.totalorder %v173, %v330
        %vm336 = vcmp.lt.s32.totalorder %v205, %v331
        %vm337 = vmand %vm335, %vm336
        %vm338 = vmor %vm334, %vm337
        %v339 = vsel %vm338, %v173, %v330
        %v340 = vsel %vm338, %v205, %v331
        %341 = xla_tuple %v339, %v340
        %v342 = vrot.slane %v339, 1
        %v343 = vrot.slane %v340, 1
        %344 = xla_tuple %v342, %v343
        %vm345 = vcmp.gt.s32.totalorder %v342, %v339
        %vm346 = vcmp.eq.s32.totalorder %v342, %v339
        %vm347 = vcmp.lt.s32.totalorder %v343, %v340
        %vm348 = vmand %vm346, %vm347
        %vm349 = vmor %vm345, %vm348
        %v350 = vsel %vm349, %v342, %v339
        %v351 = vsel %vm349, %v343, %v340
        %352 = xla_tuple %v350, %v351
        %v353 = vrot.slane %v350, 1
        %v354 = vrot.slane %v351, 1
        %355 = xla_tuple %v353, %v354
        %vm356 = vcmp.gt.s32.totalorder %v353, %v350
        %vm357 = vcmp.eq.s32.totalorder %v353, %v350
        %vm358 = vcmp.lt.s32.totalorder %v354, %v351
        %vm359 = vmand %vm357, %vm358
        %vm360 = vmor %vm356, %vm359
        %v361 = vsel %vm360, %v353, %v350
        %v362 = vsel %vm360, %v354, %v351
        %363 = xla_tuple %v361, %v362
        %v364 = vrot.slane %v361, 1
        %v365 = vrot.slane %v362, 1
        %366 = xla_tuple %v364, %v365
        %vm367 = vcmp.gt.s32.totalorder %v364, %v361
        %vm368 = vcmp.eq.s32.totalorder %v364, %v361
        %vm369 = vcmp.lt.s32.totalorder %v365, %v362
        %vm370 = vmand %vm368, %vm369
        %vm371 = vmor %vm367, %vm370
        %v372 = vsel %vm371, %v364, %v361
        %v373 = vsel %vm371, %v365, %v362
        %374 = xla_tuple %v372, %v373
        %v375 = vrot.slane %v372, 1
        %v376 = vrot.slane %v373, 1
        %377 = xla_tuple %v375, %v376
        %vm378 = vcmp.gt.s32.totalorder %v375, %v372
        %vm379 = vcmp.eq.s32.totalorder %v375, %v372
        %vm380 = vcmp.lt.s32.totalorder %v376, %v373
        %vm381 = vmand %vm379, %vm380
        %vm382 = vmor %vm378, %vm381
        %v383 = vsel %vm382, %v375, %v372
        %v384 = vsel %vm382, %v376, %v373
        %385 = xla_tuple %v383, %v384
        %v386 = vrot.slane %v383, 1
        %v387 = vrot.slane %v384, 1
        %388 = xla_tuple %v386, %v387
        %vm389 = vcmp.gt.s32.totalorder %v386, %v383
        %vm390 = vcmp.eq.s32.totalorder %v386, %v383
        %vm391 = vcmp.lt.s32.totalorder %v387, %v384
        %vm392 = vmand %vm390, %vm391
        %vm393 = vmor %vm389, %vm392
        %v394 = vsel %vm393, %v386, %v383
        %v395 = vsel %vm393, %v387, %v384
        %396 = xla_tuple %v394, %v395
        %v397 = vrot.slane %v394, 1
        %v398 = vrot.slane %v395, 1
        %399 = xla_tuple %v397, %v398
        %vm400 = vcmp.gt.s32.totalorder %v397, %v394
        %vm401 = vcmp.eq.s32.totalorder %v397, %v394
        %vm402 = vcmp.lt.s32.totalorder %v398, %v395
        %vm403 = vmand %vm401, %vm402
        %vm404 = vmor %vm400, %vm403
        %v405 = vsel %vm404, %v397, %v394
        %v406 = vsel %vm404, %v398, %v395
        %407 = xla_tuple %v405, %v406
        %v408 = vrot.slane %v405, 1
        %v409 = vrot.slane %v406, 1
        %410 = xla_tuple %v408, %v409
        %vm411 = vcmp.gt.s32.totalorder %v408, %v405
        %vm412 = vcmp.eq.s32.totalorder %v408, %v405
        %vm413 = vcmp.lt.s32.totalorder %v409, %v406
        %vm414 = vmand %vm412, %vm413
        %vm415 = vmor %vm411, %vm414
        %v416 = vsel %vm415, %v408, %v405
        %v417 = vsel %vm415, %v409, %v406
        %418 = xla_tuple %v416, %v417
        %s419 = scalar_lea.vmem [#allocation13], %s88
        %420 = vst [vmem:[%s419] sm:$0x1] %v416
        %s421 = scalar_lea.vmem [#allocation15], %s88
        %422 = vst [vmem:[%s421] sm:$0x1] %v417
        %423 = xla_tuple %420, %422
        %424 = vxpose.xlu0.b32.start [1/16] %v417, 128
        %425 = vxpose.xlu0.b32.cont [2/16] 0.0, 128
        %426 = vxpose.xlu0.b32.cont [3/16] 0.0, 128
        %427 = vxpose.xlu0.b32.cont [4/16] 0.0, 128
        %428 = vxpose.xlu0.b32.cont [5/16] 0.0, 128
        %429 = vxpose.xlu0.b32.cont [6/16] 0.0, 128
        %430 = vxpose.xlu0.b32.cont [7/16] 0.0, 128
        %431 = vxpose.xlu0.b32.cont [8/16] 0.0, 128
        %432 = vxpose.xlu0.b32.cont [9/16] 0.0, 128
        %433 = vxpose.xlu0.b32.cont [10/16] 0.0, 128
        %434 = vxpose.xlu0.b32.cont [11/16] 0.0, 128
        %435 = vxpose.xlu0.b32.cont [12/16] 0.0, 128
        %436 = vxpose.xlu0.b32.cont [13/16] 0.0, 128
        %437 = vxpose.xlu0.b32.cont [14/16] 0.0, 128
        %438 = vxpose.xlu0.b32.cont [15/16] 0.0, 128
        %439 = vxpose.xlu0.b32.end [16/16] 0.0, 128
        %v440 = vpop.trf.xlu0
        %v441 = vpop.trf.xlu0
        %v442 = vpop.trf.xlu0
        %v443 = vpop.trf.xlu0
        %v444 = vpop.trf.xlu0
        %v445 = vpop.trf.xlu0
        %v446 = vpop.trf.xlu0
        %v447 = vpop.trf.xlu0
        %v448 = vpop.trf.xlu0
        %v449 = vpop.trf.xlu0
        %v450 = vpop.trf.xlu0
        %v451 = vpop.trf.xlu0
        %v452 = vpop.trf.xlu0
        %v453 = vpop.trf.xlu0
        %v454 = vpop.trf.xlu0
        %v455 = vpop.trf.xlu0
        %s456 = vtos %v440
        %s457 = sshrl.u32 %s456, 9
        %p458 = scmp.lt.s32.totalorder %s456, 0
        %s459 = ssub.s32 0, %s456
        %s460 = scalar_select %p458, %s459, %s456
        %s461 = sand.u32 %s460, 511
        %s462 = ssub.s32 0, %s461
        %s463 = scalar_select %p458, %s462, %s461
        %s464 = sshrl.u32 %s463, 7
        %s465 = smul.u32 %s464, 256
        %s466 = sand.u32 %s463, 127
        %s467 = sadd.s32 %s465, %s466
        %v468 = vlaneseq
        %v469 = vstv %s467
        %vm471 = vcmp.eq.s32.totalorder %v468, %v469
        %s472 = smul.addr %s457, 8
        %s473 = scalar_lea.vmem [#allocation16], %s472
        %474 = vst.msk [vmem:[%s473] sm:$0xff] %vm471, 2147483648
        %s475 = smul.addr %s457, 8
        %s476 = scalar_lea.vmem [#allocation17], %s475
        %477 = vst.msk [vmem:[%s476] sm:$0xff] %vm471, 2147483647
        %478 = xla_tuple %474, %477
        %v479 = vrot.slane %v440, 1
        %s480 = vtos %v479
        %s481 = sshrl.u32 %s480, 9
        %p482 = scmp.lt.s32.totalorder %s480, 0
        %s483 = ssub.s32 0, %s480
        %s484 = scalar_select %p482, %s483, %s480
        %s485 = sand.u32 %s484, 511
        %s486 = ssub.s32 0, %s485
        %s487 = scalar_select %p482, %s486, %s485
        %s488 = sshrl.u32 %s487, 7
        %s489 = smul.u32 %s488, 256
        %s490 = sand.u32 %s487, 127
        %s491 = sadd.s32 %s489, %s490
        %v492 = vlaneseq
        %v493 = vstv %s491
        %v494 = vadd.s32 %v493, 128
        %vm495 = vcmp.eq.s32.totalorder %v492, %v494
        %s496 = smul.addr %s481, 8
        %s497 = scalar_lea.vmem [#allocation16], %s496
        %498 = vst.msk [vmem:[%s497] sm:$0xff] %vm495, 2147483648
        %s499 = smul.addr %s481, 8
        %s500 = scalar_lea.vmem [#allocation17], %s499
        %501 = vst.msk [vmem:[%s500] sm:$0xff] %vm495, 2147483647
        %502 = xla_tuple %498, %501
        %v503 = vrot.slane %v479, 1
      $region37: #{custom-call} parent=2 // loop_footer
        %s92 = sadd.s32 1, %s88
      $region38: #{custom-call} parent=2 // loop_footer_branch
        %87 = sbr.rel target = $region34
      $region39: #{custom-call} parent=2 // loop_exit
        _
      %s504 = scalar_lea.vmem [#allocation13], 7
      %v505 = vld [vmem:[%s504] ss:$-1 sm:$0xff]
      %s506 = scalar_lea.vmem [#allocation13], 7
      %v507 = vld [vmem:[%s506] ss:$-1 sm:$0xff]
      %508 = vst [vmem:[#allocation13] sm:$0xff] %v507
      %509 = vst [vmem:[#allocation13] sm:$0xff] %v505
      %s510 = scalar_lea.vmem [#allocation15], 7
      %v511 = vld [vmem:[%s510] ss:$-1 sm:$0xff]
      %s512 = scalar_lea.vmem [#allocation15], 7
      %v513 = vld [vmem:[%s512] ss:$-1 sm:$0xff]
      %514 = vst [vmem:[#allocation15] sm:$0xff] %v513
      %515 = vst [vmem:[#allocation15] sm:$0xff] %v511
      %516 = xla_tuple %509, %515
      %v517 = vld [vmem:[#allocation12] sm:$0xff]
      %v518 = vld [vmem:[#allocation14] sm:$0xff]
      %519 = xla_tuple %v517, %v518
      %v520 = vld [vmem:[#allocation13] sm:$0xff]
      %v521 = vld [vmem:[#allocation15] sm:$0xff]
      %522 = xla_tuple %v520, %v521
      %vm523 = vcmp.gt.s32.totalorder %v517, %v520
      %vm524 = vcmp.eq.s32.totalorder %v517, %v520
      %vm525 = vcmp.lt.s32.totalorder %v518, %v521
      %vm526 = vmand %vm524, %vm525
      %vm527 = vmor %vm523, %vm526
      %v528 = vsel %vm527, %v517, %v520
      %529 = vst [vmem:[#allocation12] sm:$0xff] %v528
      %v530 = vsel %vm527, %v520, %v517
      %531 = vst [vmem:[#allocation13] sm:$0xff] %v530
      %v532 = vsel %vm527, %v518, %v521
      %533 = vst [vmem:[#allocation14] sm:$0xff] %v532
      %v534 = vsel %vm527, %v521, %v518
      %535 = vst [vmem:[#allocation15] sm:$0xff] %v534
      %536 = xla_tuple %531, %535
      %537 = xla_tuple [#allocation12], [#allocation14]
      %v538 = vld [vmem:[#allocation12] sm:$0xff]
      %v539 = vld [vmem:[#allocation14] sm:$0xff]
      %540 = xla_tuple %v538, %v539
      %v542 = vunpack.c.l.s4 839939668
      %v543 = vunpack.c.0.s8 %v542
      %v544 = vlaneseq
      %v545 = vshrl.u32 %v544, 7
      %v546 = vsub.s32 %v543, %v545
      %v547 = vrot.slane %v538, %v546
      %v549 = vunpack.c.l.s4 839939668
      %v550 = vunpack.c.0.s8 %v549
      %v551 = vlaneseq
      %v552 = vshrl.u32 %v551, 7
      %v553 = vsub.s32 %v550, %v552
      %v554 = vrot.slane %v539, %v553
      %555 = xla_tuple %v547, %v554
      %vm556 = vcmp.gt.s32.totalorder %v538, %v547
      %vm557 = vcmp.eq.s32.totalorder %v538, %v547
      %vm558 = vcmp.lt.s32.totalorder %v539, %v554
      %vm559 = vmand %vm557, %vm558
      %vm560 = vmor %vm556, %vm559
      %v561 = vlaneseq
      %v562 = vshrl.u32 %v561, 7
      %v563 = vand.u32 %v562, 4
      %vm564 = vcmp.ne.s32.totalorder %v563, 0
      %vm565 = vmxor %vm560, %vm564
      %v566 = vsel %vm565, %v538, %v547
      %v567 = vsel %vm565, %v539, %v554
      %568 = xla_tuple %v566, %v567
      %v570 = vunpack.c.l.s4 1417023538
      %v571 = vunpack.c.0.s8 %v570
      %v572 = vlaneseq
      %v573 = vshrl.u32 %v572, 7
      %v574 = vsub.s32 %v571, %v573
      %v575 = vrot.slane %v566, %v574
      %v577 = vunpack.c.l.s4 1417023538
      %v578 = vunpack.c.0.s8 %v577
      %v579 = vlaneseq
      %v580 = vshrl.u32 %v579, 7
      %v581 = vsub.s32 %v578, %v580
      %v582 = vrot.slane %v567, %v581
      %583 = xla_tuple %v575, %v582
      %vm584 = vcmp.gt.s32.totalorder %v566, %v575
      %vm585 = vcmp.eq.s32.totalorder %v566, %v575
      %vm586 = vcmp.lt.s32.totalorder %v567, %v582
      %vm587 = vmand %vm585, %vm586
      %vm588 = vmor %vm584, %vm587
      %v589 = vlaneseq
      %v590 = vshrl.u32 %v589, 7
      %v591 = vand.u32 %v590, 2
      %vm592 = vcmp.ne.s32.totalorder %v591, 0
      %vm593 = vmxor %vm588, %vm592
      %v594 = vsel %vm593, %v566, %v575
      %v595 = vsel %vm593, %v567, %v582
      %596 = xla_tuple %v594, %v595
      %v598 = vunpack.c.l.s4 1732584193
      %v599 = vunpack.c.0.s8 %v598
      %v600 = vlaneseq
      %v601 = vshrl.u32 %v600, 7
      %v602 = vsub.s32 %v599, %v601
      %v603 = vrot.slane %v594, %v602
      %v605 = vunpack.c.l.s4 1732584193
      %v606 = vunpack.c.0.s8 %v605
      %v607 = vlaneseq
      %v608 = vshrl.u32 %v607, 7
      %v609 = vsub.s32 %v606, %v608
      %v610 = vrot.slane %v595, %v609
      %611 = xla_tuple %v603, %v610
      %vm612 = vcmp.gt.s32.totalorder %v594, %v603
      %vm613 = vcmp.eq.s32.totalorder %v594, %v603
      %vm614 = vcmp.lt.s32.totalorder %v595, %v610
      %vm615 = vmand %vm613, %vm614
      %vm616 = vmor %vm612, %vm615
      %v617 = vlaneseq
      %v618 = vshrl.u32 %v617, 7
      %v619 = vand.u32 %v618, 1
      %vm620 = vcmp.ne.s32.totalorder %v619, 0
      %vm621 = vmxor %vm616, %vm620
      %v622 = vsel %vm621, %v594, %v603
      %v623 = vsel %vm621, %v595, %v610
      %624 = xla_tuple %v622, %v623
      %625 = vst [vmem:[#allocation12] sm:$0xff] %v622
      %626 = vst [vmem:[#allocation14] sm:$0xff] %v623
      %627 = xla_tuple %625, %626
      %v628 = vld [vmem:[#allocation12] sm:$0xff]
      %v629 = vld [vmem:[#allocation14] sm:$0xff]
      %630 = xla_tuple %v628, %v629
      %v632 = vunpack.c.l.s4 839939668
      %v633 = vunpack.c.0.s8 %v632
      %v634 = vlaneseq
      %v635 = vshrl.u32 %v634, 7
      %v636 = vsub.s32 %v633, %v635
      %v637 = vrot.slane %v628, %v636
      %v639 = vunpack.c.l.s4 839939668
      %v640 = vunpack.c.0.s8 %v639
      %v641 = vlaneseq
      %v642 = vshrl.u32 %v641, 7
      %v643 = vsub.s32 %v640, %v642
      %v644 = vrot.slane %v629, %v643
      %645 = xla_tuple %v637, %v644
      %vm646 = vcmp.gt.s32.totalorder %v628, %v637
      %vm647 = vcmp.eq.s32.totalorder %v628, %v637
      %vm648 = vcmp.lt.s32.totalorder %v629, %v644
      %vm649 = vmand %vm647, %vm648
      %vm650 = vmor %vm646, %vm649
      %v651 = vlaneseq
      %v652 = vshrl.u32 %v651, 7
      %v653 = vand.u32 %v652, 4
      %vm654 = vcmp.ne.s32.totalorder %v653, 0
      %vm655 = vmxor %vm650, %vm654
      %v656 = vsel %vm655, %v628, %v637
      %v657 = vsel %vm655, %v629, %v644
      %658 = xla_tuple %v656, %v657
      %v660 = vunpack.c.l.s4 1417023538
      %v661 = vunpack.c.0.s8 %v660
      %v662 = vlaneseq
      %v663 = vshrl.u32 %v662, 7
      %v664 = vsub.s32 %v661, %v663
      %v665 = vrot.slane %v656, %v664
      %v667 = vunpack.c.l.s4 1417023538
      %v668 = vunpack.c.0.s8 %v667
      %v669 = vlaneseq
      %v670 = vshrl.u32 %v669, 7
      %v671 = vsub.s32 %v668, %v670
      %v672 = vrot.slane %v657, %v671
      %673 = xla_tuple %v665, %v672
      %vm674 = vcmp.gt.s32.totalorder %v656, %v665
      %vm675 = vcmp.eq.s32.totalorder %v656, %v665
      %vm676 = vcmp.lt.s32.totalorder %v657, %v672
      %vm677 = vmand %vm675, %vm676
      %vm678 = vmor %vm674, %vm677
      %v679 = vlaneseq
      %v680 = vshrl.u32 %v679, 7
      %v681 = vand.u32 %v680, 2
      %vm682 = vcmp.ne.s32.totalorder %v681, 0
      %vm683 = vmxor %vm678, %vm682
      %v684 = vsel %vm683, %v656, %v665
      %v685 = vsel %vm683, %v657, %v672
      %686 = xla_tuple %v684, %v685
      %v688 = vunpack.c.l.s4 1732584193
      %v689 = vunpack.c.0.s8 %v688
      %v690 = vlaneseq
      %v691 = vshrl.u32 %v690, 7
      %v692 = vsub.s32 %v689, %v691
      %v693 = vrot.slane %v684, %v692
      %v695 = vunpack.c.l.s4 1732584193
      %v696 = vunpack.c.0.s8 %v695
      %v697 = vlaneseq
      %v698 = vshrl.u32 %v697, 7
      %v699 = vsub.s32 %v696, %v698
      %v700 = vrot.slane %v685, %v699
      %701 = xla_tuple %v693, %v700
      %vm702 = vcmp.gt.s32.totalorder %v684, %v693
      %vm703 = vcmp.eq.s32.totalorder %v684, %v693
      %vm704 = vcmp.lt.s32.totalorder %v685, %v700
      %vm705 = vmand %vm703, %vm704
      %vm706 = vmor %vm702, %vm705
      %v707 = vlaneseq
      %v708 = vshrl.u32 %v707, 7
      %v709 = vand.u32 %v708, 1
      %vm710 = vcmp.ne.s32.totalorder %v709, 0
      %vm711 = vmxor %vm706, %vm710
      %v712 = vsel %vm711, %v684, %v693
      %v713 = vsel %vm711, %v685, %v700
      %714 = xla_tuple %v712, %v713
      %715 = vst [vmem:[#allocation12] sm:$0xff] %v712
      %716 = vst [vmem:[#allocation14] sm:$0xff] %v713
      %717 = xla_tuple %715, %716
      %718 = xla_tuple [#allocation13], [#allocation15]
      %v719 = vld [vmem:[#allocation13] sm:$0xff]
      %v720 = vld [vmem:[#allocation15] sm:$0xff]
      %721 = xla_tuple %v719, %v720
      %v723 = vunpack.c.l.s4 839939668
      %v724 = vunpack.c.0.s8 %v723
      %v725 = vlaneseq
      %v726 = vshrl.u32 %v725, 7
      %v727 = vsub.s32 %v724, %v726
      %v728 = vrot.slane %v719, %v727
      %v730 = vunpack.c.l.s4 839939668
      %v731 = vunpack.c.0.s8 %v730
      %v732 = vlaneseq
      %v733 = vshrl.u32 %v732, 7
      %v734 = vsub.s32 %v731, %v733
      %v735 = vrot.slane %v720, %v734
      %736 = xla_tuple %v728, %v735
      %vm737 = vcmp.gt.s32.totalorder %v719, %v728
      %vm738 = vcmp.eq.s32.totalorder %v719, %v728
      %vm739 = vcmp.lt.s32.totalorder %v720, %v735
      %vm740 = vmand %vm738, %vm739
      %vm741 = vmor %vm737, %vm740
      %v742 = vlaneseq
      %v743 = vshrl.u32 %v742, 7
      %v744 = vand.u32 %v743, 4
      %vm745 = vcmp.ne.s32.totalorder %v744, 0
      %vm746 = vmxor %vm741, %vm745
      %v747 = vsel %vm746, %v719, %v728
      %v748 = vsel %vm746, %v720, %v735
      %749 = xla_tuple %v747, %v748
      %v751 = vunpack.c.l.s4 1417023538
      %v752 = vunpack.c.0.s8 %v751
      %v753 = vlaneseq
      %v754 = vshrl.u32 %v753, 7
      %v755 = vsub.s32 %v752, %v754
      %v756 = vrot.slane %v747, %v755
      %v758 = vunpack.c.l.s4 1417023538
      %v759 = vunpack.c.0.s8 %v758
      %v760 = vlaneseq
      %v761 = vshrl.u32 %v760, 7
      %v762 = vsub.s32 %v759, %v761
      %v763 = vrot.slane %v748, %v762
      %764 = xla_tuple %v756, %v763
      %vm765 = vcmp.gt.s32.totalorder %v747, %v756
      %vm766 = vcmp.eq.s32.totalorder %v747, %v756
      %vm767 = vcmp.lt.s32.totalorder %v748, %v763
      %vm768 = vmand %vm766, %vm767
      %vm769 = vmor %vm765, %vm768
      %v770 = vlaneseq
      %v771 = vshrl.u32 %v770, 7
      %v772 = vand.u32 %v771, 2
      %vm773 = vcmp.ne.s32.totalorder %v772, 0
      %vm774 = vmxor %vm769, %vm773
      %v775 = vsel %vm774, %v747, %v756
      %v776 = vsel %vm774, %v748, %v763
      %777 = xla_tuple %v775, %v776
      %v779 = vunpack.c.l.s4 1732584193
      %v780 = vunpack.c.0.s8 %v779
      %v781 = vlaneseq
      %v782 = vshrl.u32 %v781, 7
      %v783 = vsub.s32 %v780, %v782
      %v784 = vrot.slane %v775, %v783
      %v786 = vunpack.c.l.s4 1732584193
      %v787 = vunpack.c.0.s8 %v786
      %v788 = vlaneseq
      %v789 = vshrl.u32 %v788, 7
      %v790 = vsub.s32 %v787, %v789
      %v791 = vrot.slane %v776, %v790
      %792 = xla_tuple %v784, %v791
      %vm793 = vcmp.gt.s32.totalorder %v775, %v784
      %vm794 = vcmp.eq.s32.totalorder %v775, %v784
      %vm795 = vcmp.lt.s32.totalorder %v776, %v791
      %vm796 = vmand %vm794, %vm795
      %vm797 = vmor %vm793, %vm796
      %v798 = vlaneseq
      %v799 = vshrl.u32 %v798, 7
      %v800 = vand.u32 %v799, 1
      %vm801 = vcmp.ne.s32.totalorder %v800, 0
      %vm802 = vmxor %vm797, %vm801
      %v803 = vsel %vm802, %v775, %v784
      %v804 = vsel %vm802, %v776, %v791
      %805 = xla_tuple %v803, %v804
      %806 = vst [vmem:[#allocation13] sm:$0xff] %v803
      %807 = vst [vmem:[#allocation15] sm:$0xff] %v804
      %808 = xla_tuple %806, %807
      %v809 = vld [vmem:[#allocation13] sm:$0xff]
      %v810 = vld [vmem:[#allocation15] sm:$0xff]
      %811 = xla_tuple %v809, %v810
      %v813 = vunpack.c.l.s4 839939668
      %v814 = vunpack.c.0.s8 %v813
      %v815 = vlaneseq
      %v816 = vshrl.u32 %v815, 7
      %v817 = vsub.s32 %v814, %v816
      %v818 = vrot.slane %v809, %v817
      %v820 = vunpack.c.l.s4 839939668
      %v821 = vunpack.c.0.s8 %v820
      %v822 = vlaneseq
      %v823 = vshrl.u32 %v822, 7
      %v824 = vsub.s32 %v821, %v823
      %v825 = vrot.slane %v810, %v824
      %826 = xla_tuple %v818, %v825
      %vm827 = vcmp.gt.s32.totalorder %v809, %v818
      %vm828 = vcmp.eq.s32.totalorder %v809, %v818
      %vm829 = vcmp.lt.s32.totalorder %v810, %v825
      %vm830 = vmand %vm828, %vm829
      %vm831 = vmor %vm827, %vm830
      %v832 = vlaneseq
      %v833 = vshrl.u32 %v832, 7
      %v834 = vand.u32 %v833, 4
      %vm835 = vcmp.ne.s32.totalorder %v834, 0
      %vm836 = vmxor %vm831, %vm835
      %v837 = vsel %vm836, %v809, %v818
      %v838 = vsel %vm836, %v810, %v825
      %839 = xla_tuple %v837, %v838
      %v841 = vunpack.c.l.s4 1417023538
      %v842 = vunpack.c.0.s8 %v841
      %v843 = vlaneseq
      %v844 = vshrl.u32 %v843, 7
      %v845 = vsub.s32 %v842, %v844
      %v846 = vrot.slane %v837, %v845
      %v848 = vunpack.c.l.s4 1417023538
      %v849 = vunpack.c.0.s8 %v848
      %v850 = vlaneseq
      %v851 = vshrl.u32 %v850, 7
      %v852 = vsub.s32 %v849, %v851
      %v853 = vrot.slane %v838, %v852
      %854 = xla_tuple %v846, %v853
      %vm855 = vcmp.gt.s32.totalorder %v837, %v846
      %vm856 = vcmp.eq.s32.totalorder %v837, %v846
      %vm857 = vcmp.lt.s32.totalorder %v838, %v853
      %vm858 = vmand %vm856, %vm857
      %vm859 = vmor %vm855, %vm858
      %v860 = vlaneseq
      %v861 = vshrl.u32 %v860, 7
      %v862 = vand.u32 %v861, 2
      %vm863 = vcmp.ne.s32.totalorder %v862, 0
      %vm864 = vmxor %vm859, %vm863
      %v865 = vsel %vm864, %v837, %v846
      %v866 = vsel %vm864, %v838, %v853
      %867 = xla_tuple %v865, %v866
      %v869 = vunpack.c.l.s4 1732584193
      %v870 = vunpack.c.0.s8 %v869
      %v871 = vlaneseq
      %v872 = vshrl.u32 %v871, 7
      %v873 = vsub.s32 %v870, %v872
      %v874 = vrot.slane %v865, %v873
      %v876 = vunpack.c.l.s4 1732584193
      %v877 = vunpack.c.0.s8 %v876
      %v878 = vlaneseq
      %v879 = vshrl.u32 %v878, 7
      %v880 = vsub.s32 %v877, %v879
      %v881 = vrot.slane %v866, %v880
      %882 = xla_tuple %v874, %v881
      %vm883 = vcmp.gt.s32.totalorder %v865, %v874
      %vm884 = vcmp.eq.s32.totalorder %v865, %v874
      %vm885 = vcmp.lt.s32.totalorder %v866, %v881
      %vm886 = vmand %vm884, %vm885
      %vm887 = vmor %vm883, %vm886
      %v888 = vlaneseq
      %v889 = vshrl.u32 %v888, 7
      %v890 = vand.u32 %v889, 1
      %vm891 = vcmp.ne.s32.totalorder %v890, 0
      %vm892 = vmxor %vm887, %vm891
      %v893 = vsel %vm892, %v865, %v874
      %v894 = vsel %vm892, %v866, %v881
      %895 = xla_tuple %v893, %v894
      %896 = vst [vmem:[#allocation13] sm:$0xff] %v893
      %897 = vst [vmem:[#allocation15] sm:$0xff] %v894
      %898 = xla_tuple %896, %897
    %v899 = vld [vmem:[#allocation12] sm:$0xff]
    %vm900 = vcmp.lt.s32.totalorder %v899, 0
    %v901 = vsub.s32 2147483647, %v899
    %v902 = vsel %vm900, %v901, %v899
    %903 = vst [vmem:[#allocation12] sm:$0xff] %v902
    %v904 = vld [vmem:[#allocation12] sm:$0xff]
    %905 = vxpose.xlu0.b32.start.end [1/1] (short) %v904, 128
    %v906 = vpop.trf.xlu0
    %v907 = vpop.trf.xlu0
    %v908 = vpop.trf.xlu0
    %v909 = vpop.trf.xlu0
    %v910 = vpop.trf.xlu0
    %v911 = vpop.trf.xlu0
    %v912 = vpop.trf.xlu0
    %v913 = vpop.trf.xlu0
    %v914 = vpop.trf.xlu0
    %v915 = vpop.trf.xlu0
    %v916 = vpop.trf.xlu0
    %v917 = vpop.trf.xlu0
    %v918 = vpop.trf.xlu0
    %v919 = vpop.trf.xlu0
    %v920 = vpop.trf.xlu0
    %v921 = vpop.trf.xlu0
    %922 = vst [vmem:[#allocation7] sm:$0xff] %v906
    %v923 = vld [vmem:[#allocation14] sm:$0xff]
    %924 = vxpose.xlu0.b32.start.end [1/1] (short) %v923, 128
    %v925 = vpop.trf.xlu0
    %v926 = vpop.trf.xlu0
    %v927 = vpop.trf.xlu0
    %v928 = vpop.trf.xlu0
    %v929 = vpop.trf.xlu0
    %v930 = vpop.trf.xlu0
    %v931 = vpop.trf.xlu0
    %v932 = vpop.trf.xlu0
    %v933 = vpop.trf.xlu0
    %v934 = vpop.trf.xlu0
    %v935 = vpop.trf.xlu0
    %v936 = vpop.trf.xlu0
    %v937 = vpop.trf.xlu0
    %v938 = vpop.trf.xlu0
    %v939 = vpop.trf.xlu0
    %v940 = vpop.trf.xlu0
    %941 = vst [vmem:[#allocation10] sm:$0xff] %v925
    %s943 = sshllo.u32 0, 2
    %v945 = vld [vmem:[#allocation7] sm:%s943]
    %s946 = sshllo.u32 0, 2
    %947 = vst [vmem:[#allocation8] sm:%s946] %v945
    %s949 = sshllo.u32 0, 2
    %v951 = vld [vmem:[#allocation10] sm:%s949]
    %s952 = sshllo.u32 0, 2
    %953 = vst [vmem:[#allocation11] sm:%s952] %v951
    %s955 = ssub.s32 32, 32
    %956 = vsyncadd [#allocation9], %s955
    %s958 = sshll.u32 [#allocation8], 4
    %s959 = int_to_ptr.vmem [resolvable:$true] %s958
    %961 = dma.vmem_to_hbm [thread:$0]  %s959, 32, %s1, [#allocation9]
    // Predicated region
    $region40: #{custom-call} parent=1 // pred_check
      _
    $region41: #{custom-call} parent=1 // pred_check_branch
      %963 = sbr.rel (0) target = $region43
    $region42: #{custom-call} parent=1 // pred_region
      // Predicated region
      $region44: #{custom-call} parent=42 // pred_check
        _
      $region45: #{custom-call} parent=42 // pred_check_branch
        %965 = sbr.rel target = $region47
      $region46: #{custom-call} parent=42 // pred_region
        // Predicated region
        $region59: #{custom-call} parent=46 // pred_check
          _
        $region60: #{custom-call} parent=46 // pred_check_branch
          %980 = sbr.rel (0) target = $region62
        $region61: #{custom-call} parent=46 // pred_region
          loop: start=0, step=1, limit=1
          $region63: #{custom-call} parent=61 // loop_pre_header
            _
          $region64: #{custom-call} parent=61 // loop_header
            %s983 = sphi 0, %s987
            %p984 = scmp.ge.s32.totalorder %s983, 1
            %s988 = sphi [#allocation11], [#allocation11]
            %s989 = sphi %s2, %s2
          $region65: #{custom-call} parent=61 // loop_header_branch
            %986 = sbr.rel (%p984) target = $region69
          $region66: #{custom-call} parent=61 // loop_body
            %v990 = vld [vmem:[%s988] sm:$0x3]
            %991 = vst [vmem:[%s989] sm:$0x3] %v990
          $region67: #{custom-call} parent=61 // loop_footer
            %s987 = sadd.s32 1, %s983
          $region68: #{custom-call} parent=61 // loop_footer_branch
            %982 = sbr.rel target = $region64
          $region69: #{custom-call} parent=61 // loop_exit
            _
        $region62: #{custom-call} parent=46 // pred_fallthru
          _
      $region47: #{custom-call} parent=42 // pred_fallthru
        _
      // Predicated region
      $region48: #{custom-call} parent=42 // pred_check
        _
      $region49: #{custom-call} parent=42 // pred_check_branch
        %967 = sbr.rel (0) target = $region51
      $region50: #{custom-call} parent=42 // pred_region
        loop: start=0, step=1, limit=1
        $region52: #{custom-call} parent=50 // loop_pre_header
          _
        $region53: #{custom-call} parent=50 // loop_header
          %s970 = sphi 0, %s974
          %p971 = scmp.ge.s32.totalorder %s970, 1
          %s975 = sphi [#allocation11], [#allocation11]
          %s976 = sphi %s2, %s2
        $region54: #{custom-call} parent=50 // loop_header_branch
          %973 = sbr.rel (%p971) target = $region58
        $region55: #{custom-call} parent=50 // loop_body
          %v977 = vld [vmem:[%s975] sm:$0x3]
          %978 = vst [vmem:[%s976] sm:$0x3] %v977
        $region56: #{custom-call} parent=50 // loop_footer
          %s974 = sadd.s32 1, %s970
        $region57: #{custom-call} parent=50 // loop_footer_branch
          %969 = sbr.rel target = $region53
        $region58: #{custom-call} parent=50 // loop_exit
          _
      $region51: #{custom-call} parent=42 // pred_fallthru
        _
    $region43: #{custom-call} parent=1 // pred_fallthru
      _
    %992 = vnop
    %993 = dma.done [#allocation9], 32
    %994 = vsyncpa [#allocation9], 1

// kernel: squeeze.37
$region0: #{squeeze.37}
  %s0 = inlined_call_operand.vmem [shape: f32[16], index: 0, kind: input, shape index: {}]
  %s1 = inlined_call_operand.hbm [shape: f32[2,8], index: 1, kind: output, shape index: {}]
  $region1: #{squeeze.37} parent=0
    #allocation0 [shape = 'u8[1024]{0}', space=vmem, size = 0x400, scoped, tag = 'operand span for operand 1']
    #allocation1 [shape = 's32[1]{0}', space=sflag, size = 0x4, scoped, tag = 'scoped memory for squeeze.37']
    #allocation2 [shape = 'u8[4096]{0}', space=vmem, size = 0x1000, scoped, tag = 'scoped mem for output reshape']
    #allocation3 [shape = 'u8[4096]{0}', space=vmem, size = 0x1000, scoped, tag = 'scoped mem for input reshape']
    %2 = vsyncpa [#allocation1], 0
    %s4 = sshllo.u32 0, 1
    %v5 = vld [vmem:[%s0] sm:%s4]
    %6 = vst [vmem:[#allocation3] sm:%s4] %v5
    %v7 = vld [vmem:[#allocation3] sm:$0x1]
    %vm8 = vcmask 64512
    %9 = vst.msk [vmem:[#allocation2] sm:$0x1] %vm8, %v7
    %v10 = vld [vmem:[#allocation3] sm:$0x1]
    %11 = vrot.lane.b32.xlu0 %v10, 120
    %v12 = vpop.permute.xlu0 %11
    %vm13 = vcmask 64512
    %s14 = scalar_lea.vmem [#allocation2], 1
    %15 = vst.msk [vmem:[%s14] sm:$0x1] %vm13, %v12
    %s17 = sshllo.u32 0, 2
    %v19 = vld [vmem:[#allocation2] sm:%s17]
    %s20 = sshllo.u32 0, 2
    %21 = vst [vmem:[#allocation0] sm:%s20] %v19
    %s23 = ssub.s32 32, 32
    %24 = vsyncadd [#allocation1], %s23
    %s26 = sshll.u32 [#allocation0], 4
    %s27 = int_to_ptr.vmem [resolvable:$true] %s26
    %29 = dma.vmem_to_hbm [thread:$0]  %s27, 32, %s1, [#allocation1]
    %30 = dma.done [#allocation1], 32
    %31 = vsyncpa [#allocation1], 1

// kernel: _forward_core.3
$region0: #{_forward_core.3}
  #allocation0 [shape = 'u32[]', space=smem, size = 0x4, offset = 0x4, fixed_abs, tag = 'smem constant byte address 0x4 - core index']
  #allocation1 [shape = 'u32[144,128]{1,0:T(1,128)}', space=vmem, size = 0x12000, scoped, tag = 'internal scratch']
  %s0 = inlined_call_operand.vmem [shape: s32[16,1], index: 0, kind: input, shape index: {}]
  %s1 = inlined_call_operand.vmem [shape: f32[512,32], index: 1, kind: input, shape index: {}]
  %s2 = inlined_call_operand.vmem [shape: bf16[32,64], index: 2, kind: input, shape index: {}]
  %s3 = inlined_call_operand.vmem [shape: f32[1,64], index: 3, kind: input, shape index: {}, may-alias: {3,5}]
  %s4 = inlined_call_operand.vmem [shape: bf16[64,64], index: 4, kind: input, shape index: {}]
  %s5 = inlined_call_operand.vmem [shape: f32[1,64], index: 5, kind: input, shape index: {}, may-alias: {3,5}]
  %s6 = inlined_call_operand.vmem [shape: bf16[64,128], index: 6, kind: input, shape index: {}]
  %s7 = inlined_call_operand.vmem [shape: f32[1,128], index: 7, kind: input, shape index: {}]
  %s8 = inlined_call_operand.vmem [shape: bf16[128,128], index: 8, kind: input, shape index: {}]
  %s9 = inlined_call_operand.vmem [shape: f32[16,128], index: 9, kind: output, shape index: {}]
  %s10 = sld [smem:[#allocation0]]
  $region46: #{_forward_core.3} parent=0
    _
  %s12 = ssub.s32 1, %s10
  %s13 = scalar_select 0, %s12, %s10
  // Predicated region
  $region2: #{_forward_core.3} parent=0 // pred_check
    _
  $region3: #{_forward_core.3} parent=0 // pred_check_branch
    %15 = sbr.rel (0) target = $region5
  $region4: #{_forward_core.3} parent=0 // pred_region
    _
  $region5: #{_forward_core.3} parent=0 // pred_fallthru
    _
  // Predicated region
  $region6: #{_forward_core.3} parent=0 // pred_check
    _
  $region7: #{_forward_core.3} parent=0 // pred_check_branch
    %17 = sbr.rel (0) target = $region9
  $region8: #{_forward_core.3} parent=0 // pred_region
    _
  $region9: #{_forward_core.3} parent=0 // pred_fallthru
    _
  // Predicated region
  $region10: #{_forward_core.3} parent=0 // pred_check
    _
  $region11: #{_forward_core.3} parent=0 // pred_check_branch
    %19 = sbr.rel (0) target = $region13
  $region12: #{_forward_core.3} parent=0 // pred_region
    _
  $region13: #{_forward_core.3} parent=0 // pred_fallthru
    _
  // Predicated region
  $region14: #{_forward_core.3} parent=0 // pred_check
    _
  $region15: #{_forward_core.3} parent=0 // pred_check_branch
    %21 = sbr.rel (0) target = $region17
  $region16: #{_forward_core.3} parent=0 // pred_region
    _
  $region17: #{_forward_core.3} parent=0 // pred_fallthru
    _
  // Predicated region
  $region18: #{_forward_core.3} parent=0 // pred_check
    _
  $region19: #{_forward_core.3} parent=0 // pred_check_branch
    %23 = sbr.rel (0) target = $region21
  $region20: #{_forward_core.3} parent=0 // pred_region
    _
  $region21: #{_forward_core.3} parent=0 // pred_fallthru
    _
  // Predicated region
  $region22: #{_forward_core.3} parent=0 // pred_check
    _
  $region23: #{_forward_core.3} parent=0 // pred_check_branch
    %25 = sbr.rel (0) target = $region25
  $region24: #{_forward_core.3} parent=0 // pred_region
    _
  $region25: #{_forward_core.3} parent=0 // pred_fallthru
    _
  // Predicated region
  $region26: #{_forward_core.3} parent=0 // pred_check
    _
  $region27: #{_forward_core.3} parent=0 // pred_check_branch
    %27 = sbr.rel (0) target = $region29
  $region28: #{_forward_core.3} parent=0 // pred_region
    _
  $region29: #{_forward_core.3} parent=0 // pred_fallthru
    _
  // Predicated region
  $region30: #{_forward_core.3} parent=0 // pred_check
    _
  $region31: #{_forward_core.3} parent=0 // pred_check_branch
    %29 = sbr.rel (0) target = $region33
  $region32: #{_forward_core.3} parent=0 // pred_region
    _
  $region33: #{_forward_core.3} parent=0 // pred_fallthru
    _
  // Predicated region
  $region34: #{_forward_core.3} parent=0 // pred_check
    _
  $region35: #{_forward_core.3} parent=0 // pred_check_branch
    %31 = sbr.rel (0) target = $region37
  $region36: #{_forward_core.3} parent=0 // pred_region
    _
  $region37: #{_forward_core.3} parent=0 // pred_fallthru
    _
  %v33 = vld [vmem:[%s0] sm:$0xff]
  %v34 = vld [vmem:[%s0 + $0x8] sm:$0xff]
  %v35 = vlaneseq
  %v36 = vand.u32 %v35, 127
  %v37 = vadd.s32 %v36, 128
  %v38 = vadd.s32 %v36, 256
  %v39 = vadd.s32 %v36, 384
  %40 = vset.pattern.permute.xlu0 0
  %41 = vperm.xlu0 %40, %v33
  %v42 = vpop.permute.xlu0 %41
  %43 = vset.pattern.permute.xlu0 0
  %44 = vperm.xlu0 %43, %v34
  %v45 = vpop.permute.xlu0 %44
  %vm46 = vcmp.eq.s32.totalorder %v36, %v42
  %vm47 = vcmp.eq.s32.totalorder %v37, %v42
  %vm48 = vcmp.eq.s32.totalorder %v38, %v42
  %vm49 = vcmp.eq.s32.totalorder %v39, %v42
  %vm50 = vcmp.eq.s32.totalorder %v36, %v45
  %vm51 = vcmp.eq.s32.totalorder %v37, %v45
  %vm52 = vcmp.eq.s32.totalorder %v38, %v45
  %vm53 = vcmp.eq.s32.totalorder %v39, %v45
  %v54 = vsel %vm46, 1.0, 0.0
  %v55 = vsel %vm47, 1.0, 0.0
  %v56 = vsel %vm48, 1.0, 0.0
  %v57 = vsel %vm49, 1.0, 0.0
  %v58 = vsel %vm50, 1.0, 0.0
  %v59 = vsel %vm51, 1.0, 0.0
  %v60 = vsel %vm52, 1.0, 0.0
  %v61 = vsel %vm53, 1.0, 0.0
  %v62 = vpack.c.bf16 %v58, %v54
  %v63 = vpack.c.bf16 %v59, %v55
  %v64 = vpack.c.bf16 %v60, %v56
  %v65 = vpack.c.bf16 %v61, %v57
  %v66 = vld [vmem:[%s1] sm:$0xff]
  %v67 = vld [vmem:[%s1 + $0x8] sm:$0xff]
  %v68 = vld [vmem:[%s1 + $0x10] sm:$0xff]
  %v69 = vld [vmem:[%s1 + $0x18] sm:$0xff]
  %v70 = vld [vmem:[%s1 + $0x20] sm:$0xff]
  %v71 = vld [vmem:[%s1 + $0x28] sm:$0xff]
  %v72 = vld [vmem:[%s1 + $0x30] sm:$0xff]
  %v73 = vld [vmem:[%s1 + $0x38] sm:$0xff]
  %v74 = vld [vmem:[%s1 + $0x40] sm:$0xff]
  %v75 = vld [vmem:[%s1 + $0x48] sm:$0xff]
  %v76 = vld [vmem:[%s1 + $0x50] sm:$0xff]
  %v77 = vld [vmem:[%s1 + $0x58] sm:$0xff]
  %v78 = vld [vmem:[%s1 + $0x60] sm:$0xff]
  %v79 = vld [vmem:[%s1 + $0x68] sm:$0xff]
  %v80 = vld [vmem:[%s1 + $0x70] sm:$0xff]
  %v81 = vld [vmem:[%s1 + $0x78] sm:$0xff]
  %v82 = vld [vmem:[%s1 + $0x80] sm:$0xff]
  %v83 = vld [vmem:[%s1 + $0x88] sm:$0xff]
  %v84 = vld [vmem:[%s1 + $0x90] sm:$0xff]
  %v85 = vld [vmem:[%s1 + $0x98] sm:$0xff]
  %v86 = vld [vmem:[%s1 + $0xa0] sm:$0xff]
  %v87 = vld [vmem:[%s1 + $0xa8] sm:$0xff]
  %v88 = vld [vmem:[%s1 + $0xb0] sm:$0xff]
  %v89 = vld [vmem:[%s1 + $0xb8] sm:$0xff]
  %v90 = vld [vmem:[%s1 + $0xc0] sm:$0xff]
  %v91 = vld [vmem:[%s1 + $0xc8] sm:$0xff]
  %v92 = vld [vmem:[%s1 + $0xd0] sm:$0xff]
  %v93 = vld [vmem:[%s1 + $0xd8] sm:$0xff]
  %v94 = vld [vmem:[%s1 + $0xe0] sm:$0xff]
  %v95 = vld [vmem:[%s1 + $0xe8] sm:$0xff]
  %v96 = vld [vmem:[%s1 + $0xf0] sm:$0xff]
  %v97 = vld [vmem:[%s1 + $0xf8] sm:$0xff]
  %v98 = vld [vmem:[%s1 + $0x100] sm:$0xff]
  %v99 = vld [vmem:[%s1 + $0x108] sm:$0xff]
  %v100 = vld [vmem:[%s1 + $0x110] sm:$0xff]
  %v101 = vld [vmem:[%s1 + $0x118] sm:$0xff]
  %v102 = vld [vmem:[%s1 + $0x120] sm:$0xff]
  %v103 = vld [vmem:[%s1 + $0x128] sm:$0xff]
  %v104 = vld [vmem:[%s1 + $0x130] sm:$0xff]
  %v105 = vld [vmem:[%s1 + $0x138] sm:$0xff]
  %v106 = vld [vmem:[%s1 + $0x140] sm:$0xff]
  %v107 = vld [vmem:[%s1 + $0x148] sm:$0xff]
  %v108 = vld [vmem:[%s1 + $0x150] sm:$0xff]
  %v109 = vld [vmem:[%s1 + $0x158] sm:$0xff]
  %v110 = vld [vmem:[%s1 + $0x160] sm:$0xff]
  %v111 = vld [vmem:[%s1 + $0x168] sm:$0xff]
  %v112 = vld [vmem:[%s1 + $0x170] sm:$0xff]
  %v113 = vld [vmem:[%s1 + $0x178] sm:$0xff]
  %v114 = vld [vmem:[%s1 + $0x180] sm:$0xff]
  %v115 = vld [vmem:[%s1 + $0x188] sm:$0xff]
  %v116 = vld [vmem:[%s1 + $0x190] sm:$0xff]
  %v117 = vld [vmem:[%s1 + $0x198] sm:$0xff]
  %v118 = vld [vmem:[%s1 + $0x1a0] sm:$0xff]
  %v119 = vld [vmem:[%s1 + $0x1a8] sm:$0xff]
  %v120 = vld [vmem:[%s1 + $0x1b0] sm:$0xff]
  %v121 = vld [vmem:[%s1 + $0x1b8] sm:$0xff]
  %v122 = vld [vmem:[%s1 + $0x1c0] sm:$0xff]
  %v123 = vld [vmem:[%s1 + $0x1c8] sm:$0xff]
  %v124 = vld [vmem:[%s1 + $0x1d0] sm:$0xff]
  %v125 = vld [vmem:[%s1 + $0x1d8] sm:$0xff]
  %v126 = vld [vmem:[%s1 + $0x1e0] sm:$0xff]
  %v127 = vld [vmem:[%s1 + $0x1e8] sm:$0xff]
  %v128 = vld [vmem:[%s1 + $0x1f0] sm:$0xff]
  %v129 = vld [vmem:[%s1 + $0x1f8] sm:$0xff]
  %v130 = vpack.c.bf16 %v67, %v66
  %v131 = vpack.c.bf16 %v69, %v68
  %v132 = vpack.c.bf16 %v71, %v70
  %v133 = vpack.c.bf16 %v73, %v72
  %v134 = vpack.c.bf16 %v75, %v74
  %v135 = vpack.c.bf16 %v77, %v76
  %v136 = vpack.c.bf16 %v79, %v78
  %v137 = vpack.c.bf16 %v81, %v80
  %v138 = vpack.c.bf16 %v83, %v82
  %v139 = vpack.c.bf16 %v85, %v84
  %v140 = vpack.c.bf16 %v87, %v86
  %v141 = vpack.c.bf16 %v89, %v88
  %v142 = vpack.c.bf16 %v91, %v90
  %v143 = vpack.c.bf16 %v93, %v92
  %v144 = vpack.c.bf16 %v95, %v94
  %v145 = vpack.c.bf16 %v97, %v96
  %v146 = vpack.c.bf16 %v99, %v98
  %v147 = vpack.c.bf16 %v101, %v100
  %v148 = vpack.c.bf16 %v103, %v102
  %v149 = vpack.c.bf16 %v105, %v104
  %v150 = vpack.c.bf16 %v107, %v106
  %v151 = vpack.c.bf16 %v109, %v108
  %v152 = vpack.c.bf16 %v111, %v110
  %v153 = vpack.c.bf16 %v113, %v112
  %v154 = vpack.c.bf16 %v115, %v114
  %v155 = vpack.c.bf16 %v117, %v116
  %v156 = vpack.c.bf16 %v119, %v118
  %v157 = vpack.c.bf16 %v121, %v120
  %v158 = vpack.c.bf16 %v123, %v122
  %v159 = vpack.c.bf16 %v125, %v124
  %v160 = vpack.c.bf16 %v127, %v126
  %v161 = vpack.c.bf16 %v129, %v128
  %162 = vmatprep.subr.bf16.mxu0 0
  %163 = vmatpush1.bf16.msra.mxu0 %v130
  %164 = vmatprep.subr.bf16.mxu0 0
  %165 = vmatpush1.bf16.msra.mxu0 %v131
  %166 = vmatprep.subr.bf16.mxu0 0
  %167 = vmatpush1.bf16.msra.mxu0 %v132
  %168 = vmatprep.subr.bf16.mxu0 0
  %169 = vmatpush1.bf16.msra.mxu0 %v133
  %170 = vmatprep.subr.bf16.mxu0 0
  %171 = vmatpush1.bf16.msra.mxu0 %v134
  %172 = vmatprep.subr.bf16.mxu0 0
  %173 = vmatpush1.bf16.msra.mxu0 %v135
  %174 = vmatprep.subr.bf16.mxu0 0
  %175 = vmatpush1.bf16.msra.mxu0 %v136
  %176 = vmatprep.subr.bf16.mxu0 0
  %177 = vmatpush1.bf16.msra.mxu0 %v137
  %178 = vmatprep.subr.bf16.mxu0 0
  %179 = vmatpush1.bf16.msra.mxu0 %v138
  %180 = vmatprep.subr.bf16.mxu0 0
  %181 = vmatpush1.bf16.msra.mxu0 %v139
  %182 = vmatprep.subr.bf16.mxu0 0
  %183 = vmatpush1.bf16.msra.mxu0 %v140
  %184 = vmatprep.subr.bf16.mxu0 0
  %185 = vmatpush1.bf16.msra.mxu0 %v141
  %186 = vmatprep.subr.bf16.mxu0 0
  %187 = vmatpush1.bf16.msra.mxu0 %v142
  %188 = vmatprep.subr.bf16.mxu0 0
  %189 = vmatpush1.bf16.msra.mxu0 %v143
  %190 = vmatprep.subr.bf16.mxu0 0
  %191 = vmatpush1.bf16.msra.mxu0 %v144
  %192 = vmatprep.subr.bf16.mxu0 0
  %193 = vmatpush1.bf16.msra.mxu0 %v145
  %194 = vmatprep.mubr.bf16.mxu0 %v63
  %195 = vmatmul.mubr.bf16.gmra.mrb[0].mxu0 %v62
  %v196 = vpop.f32.mrb[0].mxu0
  %v197 = vadd.f32 0.0, %v196
  %v198 = vpop.f32.mrb[0].mxu0
  %v199 = vpop.f32.mrb[0].mxu0
  %v200 = vadd.f32 0.0, %v199
  %v201 = vpop.f32.mrb[0].mxu0
  %202 = vdwg.mxu0
  %203 = vmatprep.subr.bf16.mxu0 0
  %204 = vmatpush1.bf16.msra.mxu0 %v146
  %205 = vmatprep.subr.bf16.mxu0 0
  %206 = vmatpush1.bf16.msra.mxu0 %v147
  %207 = vmatprep.subr.bf16.mxu0 0
  %208 = vmatpush1.bf16.msra.mxu0 %v148
  %209 = vmatprep.subr.bf16.mxu0 0
  %210 = vmatpush1.bf16.msra.mxu0 %v149
  %211 = vmatprep.subr.bf16.mxu0 0
  %212 = vmatpush1.bf16.msra.mxu0 %v150
  %213 = vmatprep.subr.bf16.mxu0 0
  %214 = vmatpush1.bf16.msra.mxu0 %v151
  %215 = vmatprep.subr.bf16.mxu0 0
  %216 = vmatpush1.bf16.msra.mxu0 %v152
  %217 = vmatprep.subr.bf16.mxu0 0
  %218 = vmatpush1.bf16.msra.mxu0 %v153
  %219 = vmatprep.subr.bf16.mxu0 0
  %220 = vmatpush1.bf16.msra.mxu0 %v154
  %221 = vmatprep.subr.bf16.mxu0 0
  %222 = vmatpush1.bf16.msra.mxu0 %v155
  %223 = vmatprep.subr.bf16.mxu0 0
  %224 = vmatpush1.bf16.msra.mxu0 %v156
  %225 = vmatprep.subr.bf16.mxu0 0
  %226 = vmatpush1.bf16.msra.mxu0 %v157
  %227 = vmatprep.subr.bf16.mxu0 0
  %228 = vmatpush1.bf16.msra.mxu0 %v158
  %229 = vmatprep.subr.bf16.mxu0 0
  %230 = vmatpush1.bf16.msra.mxu0 %v159
  %231 = vmatprep.subr.bf16.mxu0 0
  %232 = vmatpush1.bf16.msra.mxu0 %v160
  %233 = vmatprep.subr.bf16.mxu0 0
  %234 = vmatpush1.bf16.msra.mxu0 %v161
  %235 = vmatprep.mubr.bf16.mxu0 %v65
  %236 = vmatmul.mubr.bf16.gmra.mrb[0].mxu0 %v64
  %v237 = vpop.f32.mrb[0].mxu0
  %v238 = vadd.f32 %v197, %v237
  %v239 = vpop.f32.mrb[0].mxu0
  %v240 = vpop.f32.mrb[0].mxu0
  %v241 = vadd.f32 %v200, %v240
  %v242 = vpop.f32.mrb[0].mxu0
  %243 = vdwg.mxu0
  %v244 = vpack.c.bf16 %v241, %v238
  %v245 = vld [vmem:[%s2] sm:$0xf]
  %v246 = vld [vmem:[%s2 + $0x4] sm:$0xf]
  %v247 = vld [vmem:[%s2 + $0x8] sm:$0xf]
  %v248 = vld [vmem:[%s2 + $0xc] sm:$0xf]
  %v249 = vld [vmem:[%s3] sm:$0x1]
  %v251 = vlaneseq
  %v252 = vshrl.u32 %v251, 7
  %v253 = vsub.s32 0, %v252
  %v254 = vrot.slane %v249, %v253
  %v260 = vunpack.c.l.b16 %v245
  %v261 = vunpack.c.l.b16 %v246
  %v262 = vunpack.c.l.b16 %v247
  %v263 = vunpack.c.l.b16 %v248
  %v264 = vpack.c.b16 %v261, %v260
  %v265 = vpack.c.b16 %v263, %v262
  %vm268 = vcmask 261120
  %v270 = vsel %vm268, %v244, 0
  %272 = vmatprep.subr.bf16.mxu0 0
  %273 = vmatpush1.bf16.msra.mxu0 %v264
  %274 = vmatprep.subr.bf16.mxu0 0
  %275 = vmatpush1.bf16.msra.mxu0 %v265
  %276 = vmatprep.subr.bf16.mxu0 0
  %277 = vmatpush1.bf16.msra.mxu0 0
  %278 = vmatprep.subr.bf16.mxu0 0
  %279 = vmatpush1.bf16.msra.mxu0 0
  %280 = vmatprep.subr.bf16.mxu0 0
  %281 = vmatpush1.bf16.msra.mxu0 0
  %282 = vmatprep.subr.bf16.mxu0 0
  %283 = vmatpush1.bf16.msra.mxu0 0
  %284 = vmatprep.subr.bf16.mxu0 0
  %285 = vmatpush1.bf16.msra.mxu0 0
  %286 = vmatprep.subr.bf16.mxu0 0
  %287 = vmatpush1.bf16.msra.mxu0 0
  %288 = vmatprep.subr.bf16.mxu0 0
  %289 = vmatpush1.bf16.msra.mxu0 0
  %290 = vmatprep.subr.bf16.mxu0 0
  %291 = vmatpush1.bf16.msra.mxu0 0
  %292 = vmatprep.subr.bf16.mxu0 0
  %293 = vmatpush1.bf16.msra.mxu0 0
  %294 = vmatprep.subr.bf16.mxu0 0
  %295 = vmatpush1.bf16.msra.mxu0 0
  %296 = vmatprep.subr.bf16.mxu0 0
  %297 = vmatpush1.bf16.msra.mxu0 0
  %298 = vmatprep.subr.bf16.mxu0 0
  %299 = vmatpush1.bf16.msra.mxu0 0
  %300 = vmatprep.subr.bf16.mxu0 0
  %301 = vmatpush1.bf16.msra.mxu0 0
  %302 = vmatprep.subr.bf16.mxu0 0
  %303 = vmatpush1.bf16.msra.mxu0 0
  %304 = vmatprep.mubr.bf16.mxu0 0
  %305 = vmatmul.mubr.bf16.gmra.mrb[0].mxu0 %v270
  %v306 = vpop.f32.mrb[0].mxu0
  %v307 = vadd.f32 %v254, %v306
  %v308 = vpop.f32.mrb[0].mxu0
  %v309 = vpop.f32.mrb[0].mxu0
  %v310 = vadd.f32 %v254, %v309
  %v311 = vpop.f32.mrb[0].mxu0
  %312 = vdwg.mxu0
  %v313 = vmax.f32 %v307, 0.0
  %v314 = vmax.f32 %v310, 0.0
  %v315 = vpack.c.bf16 %v314, %v313
  %v316 = vld [vmem:[%s4] sm:$0xf]
  %v317 = vld [vmem:[%s4 + $0x4] sm:$0xf]
  %v318 = vld [vmem:[%s4 + $0x8] sm:$0xf]
  %v319 = vld [vmem:[%s4 + $0xc] sm:$0xf]
  %v320 = vld [vmem:[%s4 + $0x10] sm:$0xf]
  %v321 = vld [vmem:[%s4 + $0x14] sm:$0xf]
  %v322 = vld [vmem:[%s4 + $0x18] sm:$0xf]
  %v323 = vld [vmem:[%s4 + $0x1c] sm:$0xf]
  %v324 = vld [vmem:[%s5] sm:$0x1]
  %v326 = vlaneseq
  %v327 = vshrl.u32 %v326, 7
  %v328 = vsub.s32 0, %v327
  %v329 = vrot.slane %v324, %v328
  %v339 = vunpack.c.l.b16 %v316
  %v340 = vunpack.c.l.b16 %v317
  %v341 = vunpack.c.l.b16 %v318
  %v342 = vunpack.c.l.b16 %v319
  %v343 = vunpack.c.l.b16 %v320
  %v344 = vunpack.c.l.b16 %v321
  %v345 = vunpack.c.l.b16 %v322
  %v346 = vunpack.c.l.b16 %v323
  %v347 = vpack.c.b16 %v340, %v339
  %v348 = vpack.c.b16 %v342, %v341
  %v349 = vpack.c.b16 %v344, %v343
  %v350 = vpack.c.b16 %v346, %v345
  %vm355 = vcmask 523264
  %v357 = vsel %vm355, %v315, 0
  %359 = vmatprep.subr.bf16.mxu0 0
  %360 = vmatpush1.bf16.msra.mxu0 %v347
  %361 = vmatprep.subr.bf16.mxu0 0
  %362 = vmatpush1.bf16.msra.mxu0 %v348
  %363 = vmatprep.subr.bf16.mxu0 0
  %364 = vmatpush1.bf16.msra.mxu0 %v349
  %365 = vmatprep.subr.bf16.mxu0 0
  %366 = vmatpush1.bf16.msra.mxu0 %v350
  %367 = vmatprep.subr.bf16.mxu0 0
  %368 = vmatpush1.bf16.msra.mxu0 0
  %369 = vmatprep.subr.bf16.mxu0 0
  %370 = vmatpush1.bf16.msra.mxu0 0
  %371 = vmatprep.subr.bf16.mxu0 0
  %372 = vmatpush1.bf16.msra.mxu0 0
  %373 = vmatprep.subr.bf16.mxu0 0
  %374 = vmatpush1.bf16.msra.mxu0 0
  %375 = vmatprep.subr.bf16.mxu0 0
  %376 = vmatpush1.bf16.msra.mxu0 0
  %377 = vmatprep.subr.bf16.mxu0 0
  %378 = vmatpush1.bf16.msra.mxu0 0
  %379 = vmatprep.subr.bf16.mxu0 0
  %380 = vmatpush1.bf16.msra.mxu0 0
  %381 = vmatprep.subr.bf16.mxu0 0
  %382 = vmatpush1.bf16.msra.mxu0 0
  %383 = vmatprep.subr.bf16.mxu0 0
  %384 = vmatpush1.bf16.msra.mxu0 0
  %385 = vmatprep.subr.bf16.mxu0 0
  %386 = vmatpush1.bf16.msra.mxu0 0
  %387 = vmatprep.subr.bf16.mxu0 0
  %388 = vmatpush1.bf16.msra.mxu0 0
  %389 = vmatprep.subr.bf16.mxu0 0
  %390 = vmatpush1.bf16.msra.mxu0 0
  %391 = vmatprep.mubr.bf16.mxu0 0
  %392 = vmatmul.mubr.bf16.gmra.mrb[0].mxu0 %v357
  %v393 = vpop.f32.mrb[0].mxu0
  %v394 = vadd.f32 %v329, %v393
  %v395 = vpop.f32.mrb[0].mxu0
  %v396 = vpop.f32.mrb[0].mxu0
  %v397 = vadd.f32 %v329, %v396
  %v398 = vpop.f32.mrb[0].mxu0
  %399 = vdwg.mxu0
  %v400 = vmax.f32 %v394, 0.0
  %v401 = vmax.f32 %v397, 0.0
  %v402 = vpack.c.bf16 %v401, %v400
  %v403 = vld [vmem:[%s6] sm:$0xf]
  %v404 = vld [vmem:[%s6 + $0x4] sm:$0xf]
  %v405 = vld [vmem:[%s6 + $0x8] sm:$0xf]
  %v406 = vld [vmem:[%s6 + $0xc] sm:$0xf]
  %v407 = vld [vmem:[%s6 + $0x10] sm:$0xf]
  %v408 = vld [vmem:[%s6 + $0x14] sm:$0xf]
  %v409 = vld [vmem:[%s6 + $0x18] sm:$0xf]
  %v410 = vld [vmem:[%s6 + $0x1c] sm:$0xf]
  %v411 = vld [vmem:[%s7] sm:$0x1]
  %v413 = vlaneseq
  %v414 = vshrl.u32 %v413, 7
  %v415 = vsub.s32 0, %v414
  %v416 = vrot.slane %v411, %v415
  %v426 = vunpack.c.l.b16 %v403
  %v427 = vunpack.c.l.b16 %v404
  %v428 = vunpack.c.l.b16 %v405
  %v429 = vunpack.c.l.b16 %v406
  %v430 = vunpack.c.l.b16 %v407
  %v431 = vunpack.c.l.b16 %v408
  %v432 = vunpack.c.l.b16 %v409
  %v433 = vunpack.c.l.b16 %v410
  %v434 = vpack.c.b16 %v427, %v426
  %v435 = vpack.c.b16 %v429, %v428
  %v436 = vpack.c.b16 %v431, %v430
  %v437 = vpack.c.b16 %v433, %v432
  %v443 = vsel %vm355, %v402, 0
  %445 = vmatprep.subr.bf16.mxu0 0
  %446 = vmatpush1.bf16.msra.mxu0 %v434
  %447 = vmatprep.subr.bf16.mxu0 0
  %448 = vmatpush1.bf16.msra.mxu0 %v435
  %449 = vmatprep.subr.bf16.mxu0 0
  %450 = vmatpush1.bf16.msra.mxu0 %v436
  %451 = vmatprep.subr.bf16.mxu0 0
  %452 = vmatpush1.bf16.msra.mxu0 %v437
  %453 = vmatprep.subr.bf16.mxu0 0
  %454 = vmatpush1.bf16.msra.mxu0 0
  %455 = vmatprep.subr.bf16.mxu0 0
  %456 = vmatpush1.bf16.msra.mxu0 0
  %457 = vmatprep.subr.bf16.mxu0 0
  %458 = vmatpush1.bf16.msra.mxu0 0
  %459 = vmatprep.subr.bf16.mxu0 0
  %460 = vmatpush1.bf16.msra.mxu0 0
  %461 = vmatprep.subr.bf16.mxu0 0
  %462 = vmatpush1.bf16.msra.mxu0 0
  %463 = vmatprep.subr.bf16.mxu0 0
  %464 = vmatpush1.bf16.msra.mxu0 0
  %465 = vmatprep.subr.bf16.mxu0 0
  %466 = vmatpush1.bf16.msra.mxu0 0
  %467 = vmatprep.subr.bf16.mxu0 0
  %468 = vmatpush1.bf16.msra.mxu0 0
  %469 = vmatprep.subr.bf16.mxu0 0
  %470 = vmatpush1.bf16.msra.mxu0 0
  %471 = vmatprep.subr.bf16.mxu0 0
  %472 = vmatpush1.bf16.msra.mxu0 0
  %473 = vmatprep.subr.bf16.mxu0 0
  %474 = vmatpush1.bf16.msra.mxu0 0
  %475 = vmatprep.subr.bf16.mxu0 0
  %476 = vmatpush1.bf16.msra.mxu0 0
  %477 = vmatprep.mubr.bf16.mxu0 0
  %478 = vmatmul.mubr.bf16.gmra.mrb[0].mxu0 %v443
  %v479 = vpop.f32.mrb[0].mxu0
  %v480 = vadd.f32 %v416, %v479
  %v481 = vpop.f32.mrb[0].mxu0
  %v482 = vpop.f32.mrb[0].mxu0
  %v483 = vadd.f32 %v416, %v482
  %v484 = vpop.f32.mrb[0].mxu0
  %485 = vdwg.mxu0
  %vm486 = vcmp.lt.s32.totalorder %v36, 32
  %v487 = vmul.f32 %v480, %v480
  %v488 = vmul.f32 %v483, %v483
  %v489 = vsel %vm486, %v487, 0.0
  %v490 = vsel %vm486, %v488, 0.0
  %491 = vadd.xlane.f32.xlu0 %v489
  %v492 = vpop.xlane.xlu0 %491
  %493 = vadd.xlane.f32.xlu0 %v490
  %v494 = vpop.xlane.xlu0 %493
  %v495 = vadd.f32 %v492, 1e-12
  %v496 = vadd.f32 %v494, 1e-12
  %v497 = vrsqrt.pop %v495
  %v498 = vrsqrt.pop %v496
  %v499 = vmul.f32 %v480, %v497
  %v500 = vmul.f32 %v483, %v498
  %v501 = vsel %vm486, %v499, 0.0
  %v502 = vsel %vm486, %v500, 0.0
  %v503 = vpack.c.bf16 %v502, %v501
  %v504 = vld [vmem:[%s8] sm:$0xf]
  %v505 = vld [vmem:[%s8 + $0x4] sm:$0xf]
  %v506 = vld [vmem:[%s8 + $0x8] sm:$0xf]
  %v507 = vld [vmem:[%s8 + $0xc] sm:$0xf]
  %v508 = vld [vmem:[%s8 + $0x10] sm:$0xf]
  %v509 = vld [vmem:[%s8 + $0x14] sm:$0xf]
  %v510 = vld [vmem:[%s8 + $0x18] sm:$0xf]
  %v511 = vld [vmem:[%s8 + $0x1c] sm:$0xf]
  %v512 = vld [vmem:[%s8 + $0x20] sm:$0xf]
  %v513 = vld [vmem:[%s8 + $0x24] sm:$0xf]
  %v514 = vld [vmem:[%s8 + $0x28] sm:$0xf]
  %v515 = vld [vmem:[%s8 + $0x2c] sm:$0xf]
  %v516 = vld [vmem:[%s8 + $0x30] sm:$0xf]
  %v517 = vld [vmem:[%s8 + $0x34] sm:$0xf]
  %v518 = vld [vmem:[%s8 + $0x38] sm:$0xf]
  %v519 = vld [vmem:[%s8 + $0x3c] sm:$0xf]
  %v536 = vunpack.c.l.b16 %v504
  %v537 = vunpack.c.l.b16 %v505
  %v538 = vunpack.c.l.b16 %v506
  %v539 = vunpack.c.l.b16 %v507
  %v540 = vunpack.c.l.b16 %v508
  %v541 = vunpack.c.l.b16 %v509
  %v542 = vunpack.c.l.b16 %v510
  %v543 = vunpack.c.l.b16 %v511
  %v544 = vunpack.c.l.b16 %v512
  %v545 = vunpack.c.l.b16 %v513
  %v546 = vunpack.c.l.b16 %v514
  %v547 = vunpack.c.l.b16 %v515
  %v548 = vunpack.c.l.b16 %v516
  %v549 = vunpack.c.l.b16 %v517
  %v550 = vunpack.c.l.b16 %v518
  %v551 = vunpack.c.l.b16 %v519
  %v552 = vpack.c.b16 %v537, %v536
  %v553 = vpack.c.b16 %v539, %v538
  %v554 = vpack.c.b16 %v541, %v540
  %v555 = vpack.c.b16 %v543, %v542
  %v556 = vpack.c.b16 %v545, %v544
  %v557 = vpack.c.b16 %v547, %v546
  %v558 = vpack.c.b16 %v549, %v548
  %v559 = vpack.c.b16 %v551, %v550
  %568 = vmatprep.subr.bf16.mxu0 0
  %569 = vmatpush1.bf16.msra.mxu0 %v552
  %570 = vmatprep.subr.bf16.mxu0 0
  %571 = vmatpush1.bf16.msra.mxu0 %v553
  %572 = vmatprep.subr.bf16.mxu0 0
  %573 = vmatpush1.bf16.msra.mxu0 %v554
  %574 = vmatprep.subr.bf16.mxu0 0
  %575 = vmatpush1.bf16.msra.mxu0 %v555
  %576 = vmatprep.subr.bf16.mxu0 0
  %577 = vmatpush1.bf16.msra.mxu0 %v556
  %578 = vmatprep.subr.bf16.mxu0 0
  %579 = vmatpush1.bf16.msra.mxu0 %v557
  %580 = vmatprep.subr.bf16.mxu0 0
  %581 = vmatpush1.bf16.msra.mxu0 %v558
  %582 = vmatprep.subr.bf16.mxu0 0
  %583 = vmatpush1.bf16.msra.mxu0 %v559
  %584 = vmatprep.subr.bf16.mxu0 0
  %585 = vmatpush1.bf16.msra.mxu0 0
  %586 = vmatprep.subr.bf16.mxu0 0
  %587 = vmatpush1.bf16.msra.mxu0 0
  %588 = vmatprep.subr.bf16.mxu0 0
  %589 = vmatpush1.bf16.msra.mxu0 0
  %590 = vmatprep.subr.bf16.mxu0 0
  %591 = vmatpush1.bf16.msra.mxu0 0
  %592 = vmatprep.subr.bf16.mxu0 0
  %593 = vmatpush1.bf16.msra.mxu0 0
  %594 = vmatprep.subr.bf16.mxu0 0
  %595 = vmatpush1.bf16.msra.mxu0 0
  %596 = vmatprep.subr.bf16.mxu0 0
  %597 = vmatpush1.bf16.msra.mxu0 0
  %598 = vmatprep.subr.bf16.mxu0 0
  %599 = vmatpush1.bf16.msra.mxu0 0
  %600 = vmatprep.mubr.bf16.mxu0 0
  %601 = vmatmul.mubr.bf16.gmra.mrb[0].mxu0 %v503
  %v602 = vpop.f32.mrb[0].mxu0
  %v603 = vadd.f32 0.0, %v602
  %v604 = vpop.f32.mrb[0].mxu0
  %v605 = vpop.f32.mrb[0].mxu0
  %v606 = vadd.f32 0.0, %v605
  %v607 = vpop.f32.mrb[0].mxu0
  %608 = vdwg.mxu0
  %v609 = vsel %vm486, %v499, %v480
  %v610 = vsel %vm486, %v500, %v483
  %v611 = vadd.f32 %v609, %v603
  %v612 = vadd.f32 %v610, %v606
  %613 = vst [vmem:[%s9] sm:$0xff] %v611
  %614 = vst [vmem:[%s9 + $0x8] sm:$0xff] %v612
  // Predicated region
  $region38: #{_forward_core.3} parent=0 // pred_check
    _
  $region39: #{_forward_core.3} parent=0 // pred_check_branch
    %616 = sbr.rel (0) target = $region41
  $region40: #{_forward_core.3} parent=0 // pred_region
    _
  $region41: #{_forward_core.3} parent=0 // pred_fallthru
    _
  // Predicated region
  $region42: #{_forward_core.3} parent=0 // pred_check
    _
  $region43: #{_forward_core.3} parent=0 // pred_check_branch
    %618 = sbr.rel (0) target = $region45
  $region44: #{_forward_core.3} parent=0 // pred_region
    _
  $region45: #{_forward_core.3} parent=0 // pred_fallthru
    _

// kernel: _forward_core.2
$region0: #{_forward_core.2}
  #allocation0 [shape = 'u32[]', space=smem, size = 0x4, offset = 0x4, fixed_abs, tag = 'smem constant byte address 0x4 - core index']
  #allocation1 [shape = 'u32[144,128]{1,0:T(1,128)}', space=vmem, size = 0x12000, scoped, tag = 'internal scratch']
  #allocation2 [shape = 'f32[2,17,512]{2,1,0:T(8,128)}', space=vmem, size = 0x18000, scoped, tag = 'scratch operand']
  #allocation3 [shape = 'f32[2,18,512]{2,1,0:T(8,128)}', space=vmem, size = 0x18000, scoped, tag = 'scratch operand']
  %s0 = inlined_call_operand.vmem [shape: f32[2,17,102], index: 0, kind: input, shape index: {}]
  %s1 = inlined_call_operand.vmem [shape: f32[2,17,102], index: 1, kind: input, shape index: {}]
  %s2 = inlined_call_operand.vmem [shape: bf16[3,102,512], index: 2, kind: input, shape index: {}]
  %s3 = inlined_call_operand.vmem [shape: f32[1,512], index: 3, kind: input, shape index: {}]
  %s4 = inlined_call_operand.vmem [shape: bf16[3,512,512], index: 4, kind: input, shape index: {}]
  %s5 = inlined_call_operand.vmem [shape: f32[1,512], index: 5, kind: input, shape index: {}, may-alias: {5,7}]
  %s6 = inlined_call_operand.vmem [shape: bf16[3,512,512], index: 6, kind: input, shape index: {}]
  %s7 = inlined_call_operand.vmem [shape: f32[1,512], index: 7, kind: input, shape index: {}, may-alias: {5,7}]
  %s8 = inlined_call_operand.vmem [shape: bf16[512,256], index: 8, kind: input, shape index: {}]
  %s9 = inlined_call_operand.vmem [shape: f32[1,256], index: 9, kind: input, shape index: {}]
  %s10 = inlined_call_operand.vmem [shape: f32[2,16,512], index: 10, kind: output, shape index: {0}]
  %s11 = inlined_call_operand.vmem [shape: f32[2,16,256], index: 11, kind: output, shape index: {1}]
  %12 = xla_tuple %s10, %s11
  %s13 = sld [smem:[#allocation0]]
  $region58: #{_forward_core.2} parent=0
    _
  %s15 = ssub.s32 1, %s13
  %s16 = scalar_select 0, %s15, %s13
  // Predicated region
  $region2: #{_forward_core.2} parent=0 // pred_check
    _
  $region3: #{_forward_core.2} parent=0 // pred_check_branch
    %18 = sbr.rel (0) target = $region5
  $region4: #{_forward_core.2} parent=0 // pred_region
    _
  $region5: #{_forward_core.2} parent=0 // pred_fallthru
    _
  // Predicated region
  $region6: #{_forward_core.2} parent=0 // pred_check
    _
  $region7: #{_forward_core.2} parent=0 // pred_check_branch
    %20 = sbr.rel (0) target = $region9
  $region8: #{_forward_core.2} parent=0 // pred_region
    _
  $region9: #{_forward_core.2} parent=0 // pred_fallthru
    _
  // Predicated region
  $region10: #{_forward_core.2} parent=0 // pred_check
    _
  $region11: #{_forward_core.2} parent=0 // pred_check_branch
    %22 = sbr.rel (0) target = $region13
  $region12: #{_forward_core.2} parent=0 // pred_region
    _
  $region13: #{_forward_core.2} parent=0 // pred_fallthru
    _
  // Predicated region
  $region14: #{_forward_core.2} parent=0 // pred_check
    _
  $region15: #{_forward_core.2} parent=0 // pred_check_branch
    %24 = sbr.rel (0) target = $region17
  $region16: #{_forward_core.2} parent=0 // pred_region
    _
  $region17: #{_forward_core.2} parent=0 // pred_fallthru
    _
  // Predicated region
  $region18: #{_forward_core.2} parent=0 // pred_check
    _
  $region19: #{_forward_core.2} parent=0 // pred_check_branch
    %26 = sbr.rel (0) target = $region21
  $region20: #{_forward_core.2} parent=0 // pred_region
    _
  $region21: #{_forward_core.2} parent=0 // pred_fallthru
    _
  // Predicated region
  $region22: #{_forward_core.2} parent=0 // pred_check
    _
  $region23: #{_forward_core.2} parent=0 // pred_check_branch
    %28 = sbr.rel (0) target = $region25
  $region24: #{_forward_core.2} parent=0 // pred_region
    _
  $region25: #{_forward_core.2} parent=0 // pred_fallthru
    _
  // Predicated region
  $region26: #{_forward_core.2} parent=0 // pred_check
    _
  $region27: #{_forward_core.2} parent=0 // pred_check_branch
    %30 = sbr.rel (0) target = $region29
  $region28: #{_forward_core.2} parent=0 // pred_region
    _
  $region29: #{_forward_core.2} parent=0 // pred_fallthru
    _
  // Predicated region
  $region30: #{_forward_core.2} parent=0 // pred_check
    _
  $region31: #{_forward_core.2} parent=0 // pred_check_branch
    %32 = sbr.rel (0) target = $region33
  $region32: #{_forward_core.2} parent=0 // pred_region
    _
  $region33: #{_forward_core.2} parent=0 // pred_fallthru
    _
  // Predicated region
  $region34: #{_forward_core.2} parent=0 // pred_check
    _
  $region35: #{_forward_core.2} parent=0 // pred_check_branch
    %34 = sbr.rel (0) target = $region37
  $region36: #{_forward_core.2} parent=0 // pred_region
    _
  $region37: #{_forward_core.2} parent=0 // pred_fallthru
    _
  // Predicated region
  $region38: #{_forward_core.2} parent=0 // pred_check
    _
  $region39: #{_forward_core.2} parent=0 // pred_check_branch
    %36 = sbr.rel (0) target = $region41
  $region40: #{_forward_core.2} parent=0 // pred_region
    _
  $region41: #{_forward_core.2} parent=0 // pred_fallthru
    _
  %v38 = vld [vmem:[%s0] sm:$0xff]
  %v39 = vld [vmem:[%s0 + $0x8] sm:$0xff]
  %v40 = vld [vmem:[%s0 + $0x18] sm:$0xff]
  %v41 = vld [vmem:[%s0 + $0x20] sm:$0xff]
  %v42 = vpack.c.bf16 %v39, %v38
  %v43 = vpack.c.bf16 %v41, %v40
  %v44 = vld [vmem:[%s0 + $0x1] sm:$0xff]
  %v45 = vld [vmem:[%s0 + $0x9] sm:$0xff]
  %v46 = vld [vmem:[%s0 + $0x19] sm:$0xff]
  %v47 = vld [vmem:[%s0 + $0x21] sm:$0xff]
  %v48 = vpack.c.bf16 %v45, %v44
  %v49 = vpack.c.bf16 %v47, %v46
  %v50 = vld [vmem:[%s1] sm:$0xff]
  %v51 = vld [vmem:[%s1 + $0x8] sm:$0xff]
  %v52 = vld [vmem:[%s1 + $0x18] sm:$0xff]
  %v53 = vld [vmem:[%s1 + $0x20] sm:$0xff]
  %v54 = vpack.c.bf16 %v51, %v50
  %v55 = vpack.c.bf16 %v53, %v52
  %v56 = vld [vmem:[%s1 + $0x1] sm:$0xff]
  %v57 = vld [vmem:[%s1 + $0x9] sm:$0xff]
  %v58 = vld [vmem:[%s1 + $0x19] sm:$0xff]
  %v59 = vld [vmem:[%s1 + $0x21] sm:$0xff]
  %v60 = vpack.c.bf16 %v57, %v56
  %v61 = vpack.c.bf16 %v59, %v58
  %v62 = vld [vmem:[%s2] sm:$0xff]
  %v63 = vld [vmem:[%s2 + $0x8] sm:$0xff]
  %v64 = vld [vmem:[%s2 + $0x10] sm:$0xff]
  %v65 = vld [vmem:[%s2 + $0x18] sm:$0xff]
  %v66 = vld [vmem:[%s2 + $0x20] sm:$0xff]
  %v67 = vld [vmem:[%s2 + $0x28] sm:$0xff]
  %v68 = vld [vmem:[%s2 + $0x30] sm:$0xff]
  %v69 = vld [vmem:[%s2 + $0x38] sm:$0xff]
  %v70 = vld [vmem:[%s2 + $0x40] sm:$0xff]
  %v71 = vld [vmem:[%s2 + $0x48] sm:$0xff]
  %v72 = vld [vmem:[%s2 + $0x50] sm:$0xff]
  %v73 = vld [vmem:[%s2 + $0x58] sm:$0xff]
  %v74 = vld [vmem:[%s2 + $0x60] sm:$0xff]
  %v75 = vld [vmem:[%s2 + $0x68] sm:$0xff]
  %v76 = vld [vmem:[%s2 + $0x70] sm:$0xff]
  %v77 = vld [vmem:[%s2 + $0x78] sm:$0xff]
  %v78 = vld [vmem:[%s2 + $0x80] sm:$0xff]
  %v79 = vld [vmem:[%s2 + $0x88] sm:$0xff]
  %v80 = vld [vmem:[%s2 + $0x90] sm:$0xff]
  %v81 = vld [vmem:[%s2 + $0x98] sm:$0xff]
  %v82 = vld [vmem:[%s2 + $0xa0] sm:$0xff]
  %v83 = vld [vmem:[%s2 + $0xa8] sm:$0xff]
  %v84 = vld [vmem:[%s2 + $0xb0] sm:$0xff]
  %v85 = vld [vmem:[%s2 + $0xb8] sm:$0xff]
  %v86 = vld [vmem:[%s2 + $0xc0] sm:$0x77]
  %v87 = vld [vmem:[%s2 + $0xc8] sm:$0x77]
  %s88 = scalar_lea.vmem %s2, 208
  %v89 = vld [vmem:[%s88] sm:$0xff]
  %v90 = vld [vmem:[%s88 + $0x8] sm:$0xff]
  %v91 = vld [vmem:[%s88 + $0x10] sm:$0xff]
  %v92 = vld [vmem:[%s88 + $0x18] sm:$0xff]
  %v93 = vld [vmem:[%s88 + $0x20] sm:$0xff]
  %v94 = vld [vmem:[%s88 + $0x28] sm:$0xff]
  %v95 = vld [vmem:[%s88 + $0x30] sm:$0xff]
  %v96 = vld [vmem:[%s88 + $0x38] sm:$0xff]
  %v97 = vld [vmem:[%s88 + $0x40] sm:$0xff]
  %v98 = vld [vmem:[%s88 + $0x48] sm:$0xff]
  %v99 = vld [vmem:[%s88 + $0x50] sm:$0xff]
  %v100 = vld [vmem:[%s88 + $0x58] sm:$0xff]
  %v101 = vld [vmem:[%s88 + $0x60] sm:$0xff]
  %v102 = vld [vmem:[%s88 + $0x68] sm:$0xff]
  %v103 = vld [vmem:[%s88 + $0x70] sm:$0xff]
  %v104 = vld [vmem:[%s88 + $0x78] sm:$0xff]
  %v105 = vld [vmem:[%s88 + $0x80] sm:$0xff]
  %v106 = vld [vmem:[%s88 + $0x88] sm:$0xff]
  %v107 = vld [vmem:[%s88 + $0x90] sm:$0xff]
  %v108 = vld [vmem:[%s88 + $0x98] sm:$0xff]
  %v109 = vld [vmem:[%s88 + $0xa0] sm:$0xff]
  %v110 = vld [vmem:[%s88 + $0xa8] sm:$0xff]
  %v111 = vld [vmem:[%s88 + $0xb0] sm:$0xff]
  %v112 = vld [vmem:[%s88 + $0xb8] sm:$0xff]
  %v113 = vld [vmem:[%s88 + $0xc0] sm:$0x77]
  %v114 = vld [vmem:[%s88 + $0xc8] sm:$0x77]
  %s115 = scalar_lea.vmem %s2, 416
  %v116 = vld [vmem:[%s115] sm:$0xff]
  %v117 = vld [vmem:[%s115 + $0x8] sm:$0xff]
  %v118 = vld [vmem:[%s115 + $0x10] sm:$0xff]
  %v119 = vld [vmem:[%s115 + $0x18] sm:$0xff]
  %v120 = vld [vmem:[%s115 + $0x20] sm:$0xff]
  %v121 = vld [vmem:[%s115 + $0x28] sm:$0xff]
  %v122 = vld [vmem:[%s115 + $0x30] sm:$0xff]
  %v123 = vld [vmem:[%s115 + $0x38] sm:$0xff]
  %v124 = vld [vmem:[%s115 + $0x40] sm:$0xff]
  %v125 = vld [vmem:[%s115 + $0x48] sm:$0xff]
  %v126 = vld [vmem:[%s115 + $0x50] sm:$0xff]
  %v127 = vld [vmem:[%s115 + $0x58] sm:$0xff]
  %v128 = vld [vmem:[%s115 + $0x60] sm:$0xff]
  %v129 = vld [vmem:[%s115 + $0x68] sm:$0xff]
  %v130 = vld [vmem:[%s115 + $0x70] sm:$0xff]
  %v131 = vld [vmem:[%s115 + $0x78] sm:$0xff]
  %v132 = vld [vmem:[%s115 + $0x80] sm:$0xff]
  %v133 = vld [vmem:[%s115 + $0x88] sm:$0xff]
  %v134 = vld [vmem:[%s115 + $0x90] sm:$0xff]
  %v135 = vld [vmem:[%s115 + $0x98] sm:$0xff]
  %v136 = vld [vmem:[%s115 + $0xa0] sm:$0xff]
  %v137 = vld [vmem:[%s115 + $0xa8] sm:$0xff]
  %v138 = vld [vmem:[%s115 + $0xb0] sm:$0xff]
  %v139 = vld [vmem:[%s115 + $0xb8] sm:$0xff]
  %v140 = vld [vmem:[%s115 + $0xc0] sm:$0x77]
  %v141 = vld [vmem:[%s115 + $0xc8] sm:$0x77]
  %v142 = vld [vmem:[%s3] sm:$0xf]
  %v169 = vunpack.c.l.b16 %v89
  %v170 = vunpack.c.h.b16 %v89
  %v171 = vunpack.c.l.b16 %v90
  %v172 = vunpack.c.h.b16 %v90
  %v173 = vunpack.c.l.b16 %v91
  %v174 = vunpack.c.h.b16 %v91
  %v175 = vunpack.c.l.b16 %v92
  %v176 = vunpack.c.h.b16 %v92
  %v177 = vunpack.c.l.b16 %v93
  %v178 = vunpack.c.h.b16 %v93
  %v179 = vunpack.c.l.b16 %v94
  %v180 = vunpack.c.h.b16 %v94
  %v181 = vunpack.c.l.b16 %v95
  %v182 = vunpack.c.h.b16 %v95
  %v183 = vunpack.c.l.b16 %v96
  %v184 = vunpack.c.h.b16 %v96
  %v185 = vunpack.c.l.b16 %v97
  %v186 = vunpack.c.h.b16 %v97
  %v187 = vunpack.c.l.b16 %v98
  %v188 = vunpack.c.h.b16 %v98
  %v189 = vunpack.c.l.b16 %v99
  %v190 = vunpack.c.h.b16 %v99
  %v191 = vunpack.c.l.b16 %v100
  %v192 = vunpack.c.h.b16 %v100
  %v193 = vunpack.c.l.b16 %v101
  %v194 = vunpack.c.h.b16 %v101
  %v195 = vunpack.c.l.b16 %v102
  %v196 = vunpack.c.h.b16 %v102
  %v197 = vunpack.c.l.b16 %v103
  %v198 = vunpack.c.h.b16 %v103
  %v199 = vunpack.c.l.b16 %v104
  %v200 = vunpack.c.h.b16 %v104
  %v201 = vunpack.c.l.b16 %v105
  %v202 = vunpack.c.h.b16 %v105
  %v203 = vunpack.c.l.b16 %v106
  %v204 = vunpack.c.h.b16 %v106
  %v205 = vunpack.c.l.b16 %v107
  %v206 = vunpack.c.h.b16 %v107
  %v207 = vunpack.c.l.b16 %v108
  %v208 = vunpack.c.h.b16 %v108
  %v209 = vunpack.c.l.b16 %v109
  %v210 = vunpack.c.h.b16 %v109
  %v211 = vunpack.c.l.b16 %v110
  %v212 = vunpack.c.h.b16 %v110
  %v213 = vunpack.c.l.b16 %v111
  %v214 = vunpack.c.h.b16 %v111
  %v215 = vunpack.c.l.b16 %v112
  %v216 = vunpack.c.h.b16 %v112
  %v217 = vunpack.c.l.b16 %v113
  %v218 = vunpack.c.h.b16 %v113
  %v219 = vunpack.c.l.b16 %v114
  %v220 = vunpack.c.h.b16 %v114
  %v221 = vpack.c.b16 %v173, %v169
  %v222 = vpack.c.b16 %v174, %v170
  %v223 = vpack.c.b16 %v175, %v171
  %v224 = vpack.c.b16 %v176, %v172
  %v225 = vpack.c.b16 %v181, %v177
  %v226 = vpack.c.b16 %v182, %v178
  %v227 = vpack.c.b16 %v183, %v179
  %v228 = vpack.c.b16 %v184, %v180
  %v229 = vpack.c.b16 %v189, %v185
  %v230 = vpack.c.b16 %v190, %v186
  %v231 = vpack.c.b16 %v191, %v187
  %v232 = vpack.c.b16 %v192, %v188
  %v233 = vpack.c.b16 %v197, %v193
  %v234 = vpack.c.b16 %v198, %v194
  %v235 = vpack.c.b16 %v199, %v195
  %v236 = vpack.c.b16 %v200, %v196
  %v237 = vpack.c.b16 %v205, %v201
  %v238 = vpack.c.b16 %v206, %v202
  %v239 = vpack.c.b16 %v207, %v203
  %v240 = vpack.c.b16 %v208, %v204
  %v241 = vpack.c.b16 %v213, %v209
  %v242 = vpack.c.b16 %v214, %v210
  %v243 = vpack.c.b16 %v215, %v211
  %v244 = vpack.c.b16 %v216, %v212
  %v245 = vpack.c.b16 %v217, %v217
  %v246 = vpack.c.b16 %v218, %v218
  %v247 = vpack.c.b16 %v219, %v219
  %v248 = vpack.c.b16 %v220, %v220
  %vm273 = vcmask 834560
  %v275 = vsel %vm273, %v42, 0
  %v278 = vsel %vm273, %v43, 0
  %vm280 = vcmask 1042432
  %v282 = vsel %vm280, %v245, 0
  %v285 = vsel %vm280, %v246, 0
  %v288 = vsel %vm280, %v247, 0
  %v291 = vsel %vm280, %v248, 0
  %293 = vmatprep.subr.bf16.mxu0 %v222
  %294 = vmatpush1.bf16.msra.mxu0 %v221
  %295 = vmatprep.subr.bf16.mxu0 %v226
  %296 = vmatpush1.bf16.msra.mxu0 %v225
  %297 = vmatprep.subr.bf16.mxu0 %v230
  %298 = vmatpush1.bf16.msra.mxu0 %v229
  %299 = vmatprep.subr.bf16.mxu0 %v234
  %300 = vmatpush1.bf16.msra.mxu0 %v233
  %301 = vmatprep.subr.bf16.mxu0 %v238
  %302 = vmatpush1.bf16.msra.mxu0 %v237
  %303 = vmatprep.subr.bf16.mxu0 %v242
  %304 = vmatpush1.bf16.msra.mxu0 %v241
  %305 = vmatprep.subr.bf16.mxu0 %v285
  %306 = vmatpush1.bf16.msra.mxu0 %v282
  %307 = vmatprep.subr.bf16.mxu0 0
  %308 = vmatpush1.bf16.msra.mxu0 0
  %309 = vmatprep.subr.bf16.mxu0 0
  %310 = vmatpush1.bf16.msra.mxu0 0
  %311 = vmatprep.subr.bf16.mxu0 0
  %312 = vmatpush1.bf16.msra.mxu0 0
  %313 = vmatprep.subr.bf16.mxu0 0
  %314 = vmatpush1.bf16.msra.mxu0 0
  %315 = vmatprep.subr.bf16.mxu0 0
  %316 = vmatpush1.bf16.msra.mxu0 0
  %317 = vmatprep.subr.bf16.mxu0 0
  %318 = vmatpush1.bf16.msra.mxu0 0
  %319 = vmatprep.subr.bf16.mxu0 0
  %320 = vmatpush1.bf16.msra.mxu0 0
  %321 = vmatprep.subr.bf16.mxu0 0
  %322 = vmatpush1.bf16.msra.mxu0 0
  %323 = vmatprep.subr.bf16.mxu0 0
  %324 = vmatpush1.bf16.msra.mxu0 0
  %325 = vmatprep.mubr.bf16.mxu0 0
  %326 = vmatmul.mubr.bf16.gmra.mrb[0].mxu0 %v275
  %v327 = vpop.f32.mrb[0].mxu0
  %v328 = vadd.f32 0.0, %v327
  %v329 = vpop.f32.mrb[0].mxu0
  %v330 = vadd.f32 0.0, %v329
  %v331 = vpop.f32.mrb[0].mxu0
  %v332 = vadd.f32 0.0, %v331
  %v333 = vpop.f32.mrb[0].mxu0
  %v334 = vadd.f32 0.0, %v333
  %335 = vmatprep.mubr.bf16.mxu0 0
  %336 = vmatmul.mubr.bf16.gmra.mrb[0].mxu0 %v278
  %v337 = vpop.f32.mrb[0].mxu0
  %v338 = vadd.f32 0.0, %v337
  %v339 = vpop.f32.mrb[0].mxu0
  %v340 = vadd.f32 0.0, %v339
  %v341 = vpop.f32.mrb[0].mxu0
  %v342 = vadd.f32 0.0, %v341
  %v343 = vpop.f32.mrb[0].mxu0
  %v344 = vadd.f32 0.0, %v343
  %345 = vdwg.mxu0
  %346 = vmatprep.subr.bf16.mxu0 %v224
  %347 = vmatpush1.bf16.msra.mxu0 %v223
  %348 = vmatprep.subr.bf16.mxu0 %v228
  %349 = vmatpush1.bf16.msra.mxu0 %v227
  %350 = vmatprep.subr.bf16.mxu0 %v232
  %351 = vmatpush1.bf16.msra.mxu0 %v231
  %352 = vmatprep.subr.bf16.mxu0 %v236
  %353 = vmatpush1.bf16.msra.mxu0 %v235
  %354 = vmatprep.subr.bf16.mxu0 %v240
  %355 = vmatpush1.bf16.msra.mxu0 %v239
  %356 = vmatprep.subr.bf16.mxu0 %v244
  %357 = vmatpush1.bf16.msra.mxu0 %v243
  %358 = vmatprep.subr.bf16.mxu0 %v291
  %359 = vmatpush1.bf16.msra.mxu0 %v288
  %360 = vmatprep.subr.bf16.mxu0 0
  %361 = vmatpush1.bf16.msra.mxu0 0
  %362 = vmatprep.subr.bf16.mxu0 0
  %363 = vmatpush1.bf16.msra.mxu0 0
  %364 = vmatprep.subr.bf16.mxu0 0
  %365 = vmatpush1.bf16.msra.mxu0 0
  %366 = vmatprep.subr.bf16.mxu0 0
  %367 = vmatpush1.bf16.msra.mxu0 0
  %368 = vmatprep.subr.bf16.mxu0 0
  %369 = vmatpush1.bf16.msra.mxu0 0
  %370 = vmatprep.subr.bf16.mxu0 0
  %371 = vmatpush1.bf16.msra.mxu0 0
  %372 = vmatprep.subr.bf16.mxu0 0
  %373 = vmatpush1.bf16.msra.mxu0 0
  %374 = vmatprep.subr.bf16.mxu0 0
  %375 = vmatpush1.bf16.msra.mxu0 0
  %376 = vmatprep.subr.bf16.mxu0 0
  %377 = vmatpush1.bf16.msra.mxu0 0
  %378 = vmatprep.mubr.bf16.mxu0 0
  %379 = vmatmul.mubr.bf16.gmra.mrb[0].mxu0 %v275
  %v380 = vpop.f32.mrb[0].mxu0
  %v381 = vadd.f32 0.0, %v380
  %v382 = vpop.f32.mrb[0].mxu0
  %v383 = vadd.f32 0.0, %v382
  %v384 = vpop.f32.mrb[0].mxu0
  %v385 = vadd.f32 0.0, %v384
  %v386 = vpop.f32.mrb[0].mxu0
  %v387 = vadd.f32 0.0, %v386
  %388 = vmatprep.mubr.bf16.mxu0 0
  %389 = vmatmul.mubr.bf16.gmra.mrb[0].mxu0 %v278
  %v390 = vpop.f32.mrb[0].mxu0
  %v391 = vadd.f32 0.0, %v390
  %v392 = vpop.f32.mrb[0].mxu0
  %v393 = vadd.f32 0.0, %v392
  %v394 = vpop.f32.mrb[0].mxu0
  %v395 = vadd.f32 0.0, %v394
  %v396 = vpop.f32.mrb[0].mxu0
  %v397 = vadd.f32 0.0, %v396
  %398 = vdwg.mxu0
  %v425 = vunpack.c.l.b16 %v62
  %v426 = vunpack.c.h.b16 %v62
  %v427 = vunpack.c.l.b16 %v63
  %v428 = vunpack.c.h.b16 %v63
  %v429 = vunpack.c.l.b16 %v64
  %v430 = vunpack.c.h.b16 %v64
  %v431 = vunpack.c.l.b16 %v65
  %v432 = vunpack.c.h.b16 %v65
  %v433 = vunpack.c.l.b16 %v66
  %v434 = vunpack.c.h.b16 %v66
  %v435 = vunpack.c.l.b16 %v67
  %v436 = vunpack.c.h.b16 %v67
  %v437 = vunpack.c.l.b16 %v68
  %v438 = vunpack.c.h.b16 %v68
  %v439 = vunpack.c.l.b16 %v69
  %v440 = vunpack.c.h.b16 %v69
  %v441 = vunpack.c.l.b16 %v70
  %v442 = vunpack.c.h.b16 %v70
  %v443 = vunpack.c.l.b16 %v71
  %v444 = vunpack.c.h.b16 %v71
  %v445 = vunpack.c.l.b16 %v72
  %v446 = vunpack.c.h.b16 %v72
  %v447 = vunpack.c.l.b16 %v73
  %v448 = vunpack.c.h.b16 %v73
  %v449 = vunpack.c.l.b16 %v74
  %v450 = vunpack.c.h.b16 %v74
  %v451 = vunpack.c.l.b16 %v75
  %v452 = vunpack.c.h.b16 %v75
  %v453 = vunpack.c.l.b16 %v76
  %v454 = vunpack.c.h.b16 %v76
  %v455 = vunpack.c.l.b16 %v77
  %v456 = vunpack.c.h.b16 %v77
  %v457 = vunpack.c.l.b16 %v78
  %v458 = vunpack.c.h.b16 %v78
  %v459 = vunpack.c.l.b16 %v79
  %v460 = vunpack.c.h.b16 %v79
  %v461 = vunpack.c.l.b16 %v80
  %v462 = vunpack.c.h.b16 %v80
  %v463 = vunpack.c.l.b16 %v81
  %v464 = vunpack.c.h.b16 %v81
  %v465 = vunpack.c.l.b16 %v82
  %v466 = vunpack.c.h.b16 %v82
  %v467 = vunpack.c.l.b16 %v83
  %v468 = vunpack.c.h.b16 %v83
  %v469 = vunpack.c.l.b16 %v84
  %v470 = vunpack.c.h.b16 %v84
  %v471 = vunpack.c.l.b16 %v85
  %v472 = vunpack.c.h.b16 %v85
  %v473 = vunpack.c.l.b16 %v86
  %v474 = vunpack.c.h.b16 %v86
  %v475 = vunpack.c.l.b16 %v87
  %v476 = vunpack.c.h.b16 %v87
  %v477 = vpack.c.b16 %v429, %v425
  %v478 = vpack.c.b16 %v430, %v426
  %v479 = vpack.c.b16 %v431, %v427
  %v480 = vpack.c.b16 %v432, %v428
  %v481 = vpack.c.b16 %v437, %v433
  %v482 = vpack.c.b16 %v438, %v434
  %v483 = vpack.c.b16 %v439, %v435
  %v484 = vpack.c.b16 %v440, %v436
  %v485 = vpack.c.b16 %v445, %v441
  %v486 = vpack.c.b16 %v446, %v442
  %v487 = vpack.c.b16 %v447, %v443
  %v488 = vpack.c.b16 %v448, %v444
  %v489 = vpack.c.b16 %v453, %v449
  %v490 = vpack.c.b16 %v454, %v450
  %v491 = vpack.c.b16 %v455, %v451
  %v492 = vpack.c.b16 %v456, %v452
  %v493 = vpack.c.b16 %v461, %v457
  %v494 = vpack.c.b16 %v462, %v458
  %v495 = vpack.c.b16 %v463, %v459
  %v496 = vpack.c.b16 %v464, %v460
  %v497 = vpack.c.b16 %v469, %v465
  %v498 = vpack.c.b16 %v470, %v466
  %v499 = vpack.c.b16 %v471, %v467
  %v500 = vpack.c.b16 %v472, %v468
  %v501 = vpack.c.b16 %v473, %v473
  %v502 = vpack.c.b16 %v474, %v474
  %v503 = vpack.c.b16 %v475, %v475
  %v504 = vpack.c.b16 %v476, %v476
  %v530 = vsel %vm273, %v54, 0
  %v533 = vsel %vm273, %v55, 0
  %v536 = vsel %vm280, %v501, 0
  %v539 = vsel %vm280, %v502, 0
  %v542 = vsel %vm280, %v503, 0
  %v545 = vsel %vm280, %v504, 0
  %547 = vmatprep.subr.bf16.mxu0 %v478
  %548 = vmatpush1.bf16.msra.mxu0 %v477
  %549 = vmatprep.subr.bf16.mxu0 %v482
  %550 = vmatpush1.bf16.msra.mxu0 %v481
  %551 = vmatprep.subr.bf16.mxu0 %v486
  %552 = vmatpush1.bf16.msra.mxu0 %v485
  %553 = vmatprep.subr.bf16.mxu0 %v490
  %554 = vmatpush1.bf16.msra.mxu0 %v489
  %555 = vmatprep.subr.bf16.mxu0 %v494
  %556 = vmatpush1.bf16.msra.mxu0 %v493
  %557 = vmatprep.subr.bf16.mxu0 %v498
  %558 = vmatpush1.bf16.msra.mxu0 %v497
  %559 = vmatprep.subr.bf16.mxu0 %v539
  %560 = vmatpush1.bf16.msra.mxu0 %v536
  %561 = vmatprep.subr.bf16.mxu0 0
  %562 = vmatpush1.bf16.msra.mxu0 0
  %563 = vmatprep.subr.bf16.mxu0 0
  %564 = vmatpush1.bf16.msra.mxu0 0
  %565 = vmatprep.subr.bf16.mxu0 0
  %566 = vmatpush1.bf16.msra.mxu0 0
  %567 = vmatprep.subr.bf16.mxu0 0
  %568 = vmatpush1.bf16.msra.mxu0 0
  %569 = vmatprep.subr.bf16.mxu0 0
  %570 = vmatpush1.bf16.msra.mxu0 0
  %571 = vmatprep.subr.bf16.mxu0 0
  %572 = vmatpush1.bf16.msra.mxu0 0
  %573 = vmatprep.subr.bf16.mxu0 0
  %574 = vmatpush1.bf16.msra.mxu0 0
  %575 = vmatprep.subr.bf16.mxu0 0
  %576 = vmatpush1.bf16.msra.mxu0 0
  %577 = vmatprep.subr.bf16.mxu0 0
  %578 = vmatpush1.bf16.msra.mxu0 0
  %579 = vmatprep.mubr.bf16.mxu0 0
  %580 = vmatmul.mubr.bf16.gmra.mrb[0].mxu0 %v530
  %v581 = vpop.f32.mrb[0].mxu0
  %v582 = vadd.f32 %v328, %v581
  %v583 = vpop.f32.mrb[0].mxu0
  %v584 = vadd.f32 %v330, %v583
  %v585 = vpop.f32.mrb[0].mxu0
  %v586 = vadd.f32 %v332, %v585
  %v587 = vpop.f32.mrb[0].mxu0
  %v588 = vadd.f32 %v334, %v587
  %589 = vmatprep.mubr.bf16.mxu0 0
  %590 = vmatmul.mubr.bf16.gmra.mrb[0].mxu0 %v533
  %v591 = vpop.f32.mrb[0].mxu0
  %v592 = vadd.f32 %v338, %v591
  %v593 = vpop.f32.mrb[0].mxu0
  %v594 = vadd.f32 %v340, %v593
  %v595 = vpop.f32.mrb[0].mxu0
  %v596 = vadd.f32 %v342, %v595
  %v597 = vpop.f32.mrb[0].mxu0
  %v598 = vadd.f32 %v344, %v597
  %599 = vdwg.mxu0
  %600 = vmatprep.subr.bf16.mxu0 %v480
  %601 = vmatpush1.bf16.msra.mxu0 %v479
  %602 = vmatprep.subr.bf16.mxu0 %v484
  %603 = vmatpush1.bf16.msra.mxu0 %v483
  %604 = vmatprep.subr.bf16.mxu0 %v488
  %605 = vmatpush1.bf16.msra.mxu0 %v487
  %606 = vmatprep.subr.bf16.mxu0 %v492
  %607 = vmatpush1.bf16.msra.mxu0 %v491
  %608 = vmatprep.subr.bf16.mxu0 %v496
  %609 = vmatpush1.bf16.msra.mxu0 %v495
  %610 = vmatprep.subr.bf16.mxu0 %v500
  %611 = vmatpush1.bf16.msra.mxu0 %v499
  %612 = vmatprep.subr.bf16.mxu0 %v545
  %613 = vmatpush1.bf16.msra.mxu0 %v542
  %614 = vmatprep.subr.bf16.mxu0 0
  %615 = vmatpush1.bf16.msra.mxu0 0
  %616 = vmatprep.subr.bf16.mxu0 0
  %617 = vmatpush1.bf16.msra.mxu0 0
  %618 = vmatprep.subr.bf16.mxu0 0
  %619 = vmatpush1.bf16.msra.mxu0 0
  %620 = vmatprep.subr.bf16.mxu0 0
  %621 = vmatpush1.bf16.msra.mxu0 0
  %622 = vmatprep.subr.bf16.mxu0 0
  %623 = vmatpush1.bf16.msra.mxu0 0
  %624 = vmatprep.subr.bf16.mxu0 0
  %625 = vmatpush1.bf16.msra.mxu0 0
  %626 = vmatprep.subr.bf16.mxu0 0
  %627 = vmatpush1.bf16.msra.mxu0 0
  %628 = vmatprep.subr.bf16.mxu0 0
  %629 = vmatpush1.bf16.msra.mxu0 0
  %630 = vmatprep.subr.bf16.mxu0 0
  %631 = vmatpush1.bf16.msra.mxu0 0
  %632 = vmatprep.mubr.bf16.mxu0 0
  %633 = vmatmul.mubr.bf16.gmra.mrb[0].mxu0 %v530
  %v634 = vpop.f32.mrb[0].mxu0
  %v635 = vadd.f32 %v381, %v634
  %v636 = vpop.f32.mrb[0].mxu0
  %v637 = vadd.f32 %v383, %v636
  %v638 = vpop.f32.mrb[0].mxu0
  %v639 = vadd.f32 %v385, %v638
  %v640 = vpop.f32.mrb[0].mxu0
  %v641 = vadd.f32 %v387, %v640
  %642 = vmatprep.mubr.bf16.mxu0 0
  %643 = vmatmul.mubr.bf16.gmra.mrb[0].mxu0 %v533
  %v644 = vpop.f32.mrb[0].mxu0
  %v645 = vadd.f32 %v391, %v644
  %v646 = vpop.f32.mrb[0].mxu0
  %v647 = vadd.f32 %v393, %v646
  %v648 = vpop.f32.mrb[0].mxu0
  %v649 = vadd.f32 %v395, %v648
  %v650 = vpop.f32.mrb[0].mxu0
  %v651 = vadd.f32 %v397, %v650
  %652 = vdwg.mxu0
  %v679 = vunpack.c.l.b16 %v116
  %v680 = vunpack.c.h.b16 %v116
  %v681 = vunpack.c.l.b16 %v117
  %v682 = vunpack.c.h.b16 %v117
  %v683 = vunpack.c.l.b16 %v118
  %v684 = vunpack.c.h.b16 %v118
  %v685 = vunpack.c.l.b16 %v119
  %v686 = vunpack.c.h.b16 %v119
  %v687 = vunpack.c.l.b16 %v120
  %v688 = vunpack.c.h.b16 %v120
  %v689 = vunpack.c.l.b16 %v121
  %v690 = vunpack.c.h.b16 %v121
  %v691 = vunpack.c.l.b16 %v122
  %v692 = vunpack.c.h.b16 %v122
  %v693 = vunpack.c.l.b16 %v123
  %v694 = vunpack.c.h.b16 %v123
  %v695 = vunpack.c.l.b16 %v124
  %v696 = vunpack.c.h.b16 %v124
  %v697 = vunpack.c.l.b16 %v125
  %v698 = vunpack.c.h.b16 %v125
  %v699 = vunpack.c.l.b16 %v126
  %v700 = vunpack.c.h.b16 %v126
  %v701 = vunpack.c.l.b16 %v127
  %v702 = vunpack.c.h.b16 %v127
  %v703 = vunpack.c.l.b16 %v128
  %v704 = vunpack.c.h.b16 %v128
  %v705 = vunpack.c.l.b16 %v129
  %v706 = vunpack.c.h.b16 %v129
  %v707 = vunpack.c.l.b16 %v130
  %v708 = vunpack.c.h.b16 %v130
  %v709 = vunpack.c.l.b16 %v131
  %v710 = vunpack.c.h.b16 %v131
  %v711 = vunpack.c.l.b16 %v132
  %v712 = vunpack.c.h.b16 %v132
  %v713 = vunpack.c.l.b16 %v133
  %v714 = vunpack.c.h.b16 %v133
  %v715 = vunpack.c.l.b16 %v134
  %v716 = vunpack.c.h.b16 %v134
  %v717 = vunpack.c.l.b16 %v135
  %v718 = vunpack.c.h.b16 %v135
  %v719 = vunpack.c.l.b16 %v136
  %v720 = vunpack.c.h.b16 %v136
  %v721 = vunpack.c.l.b16 %v137
  %v722 = vunpack.c.h.b16 %v137
  %v723 = vunpack.c.l.b16 %v138
  %v724 = vunpack.c.h.b16 %v138
  %v725 = vunpack.c.l.b16 %v139
  %v726 = vunpack.c.h.b16 %v139
  %v727 = vunpack.c.l.b16 %v140
  %v728 = vunpack.c.h.b16 %v140
  %v729 = vunpack.c.l.b16 %v141
  %v730 = vunpack.c.h.b16 %v141
  %v731 = vpack.c.b16 %v683, %v679
  %v732 = vpack.c.b16 %v684, %v680
  %v733 = vpack.c.b16 %v685, %v681
  %v734 = vpack.c.b16 %v686, %v682
  %v735 = vpack.c.b16 %v691, %v687
  %v736 = vpack.c.b16 %v692, %v688
  %v737 = vpack.c.b16 %v693, %v689
  %v738 = vpack.c.b16 %v694, %v690
  %v739 = vpack.c.b16 %v699, %v695
  %v740 = vpack.c.b16 %v700, %v696
  %v741 = vpack.c.b16 %v701, %v697
  %v742 = vpack.c.b16 %v702, %v698
  %v743 = vpack.c.b16 %v707, %v703
  %v744 = vpack.c.b16 %v708, %v704
  %v745 = vpack.c.b16 %v709, %v705
  %v746 = vpack.c.b16 %v710, %v706
  %v747 = vpack.c.b16 %v715, %v711
  %v748 = vpack.c.b16 %v716, %v712
  %v749 = vpack.c.b16 %v717, %v713
  %v750 = vpack.c.b16 %v718, %v714
  %v751 = vpack.c.b16 %v723, %v719
  %v752 = vpack.c.b16 %v724, %v720
  %v753 = vpack.c.b16 %v725, %v721
  %v754 = vpack.c.b16 %v726, %v722
  %v755 = vpack.c.b16 %v727, %v727
  %v756 = vpack.c.b16 %v728, %v728
  %v757 = vpack.c.b16 %v729, %v729
  %v758 = vpack.c.b16 %v730, %v730
  %v784 = vsel %vm273, %v60, 0
  %v787 = vsel %vm273, %v61, 0
  %v790 = vsel %vm280, %v755, 0
  %v793 = vsel %vm280, %v756, 0
  %v796 = vsel %vm280, %v757, 0
  %v799 = vsel %vm280, %v758, 0
  %801 = vmatprep.subr.bf16.mxu0 %v732
  %802 = vmatpush1.bf16.msra.mxu0 %v731
  %803 = vmatprep.subr.bf16.mxu0 %v736
  %804 = vmatpush1.bf16.msra.mxu0 %v735
  %805 = vmatprep.subr.bf16.mxu0 %v740
  %806 = vmatpush1.bf16.msra.mxu0 %v739
  %807 = vmatprep.subr.bf16.mxu0 %v744
  %808 = vmatpush1.bf16.msra.mxu0 %v743
  %809 = vmatprep.subr.bf16.mxu0 %v748
  %810 = vmatpush1.bf16.msra.mxu0 %v747
  %811 = vmatprep.subr.bf16.mxu0 %v752
  %812 = vmatpush1.bf16.msra.mxu0 %v751
  %813 = vmatprep.subr.bf16.mxu0 %v793
  %814 = vmatpush1.bf16.msra.mxu0 %v790
  %815 = vmatprep.subr.bf16.mxu0 0
  %816 = vmatpush1.bf16.msra.mxu0 0
  %817 = vmatprep.subr.bf16.mxu0 0
  %818 = vmatpush1.bf16.msra.mxu0 0
  %819 = vmatprep.subr.bf16.mxu0 0
  %820 = vmatpush1.bf16.msra.mxu0 0
  %821 = vmatprep.subr.bf16.mxu0 0
  %822 = vmatpush1.bf16.msra.mxu0 0
  %823 = vmatprep.subr.bf16.mxu0 0
  %824 = vmatpush1.bf16.msra.mxu0 0
  %825 = vmatprep.subr.bf16.mxu0 0
  %826 = vmatpush1.bf16.msra.mxu0 0
  %827 = vmatprep.subr.bf16.mxu0 0
  %828 = vmatpush1.bf16.msra.mxu0 0
  %829 = vmatprep.subr.bf16.mxu0 0
  %830 = vmatpush1.bf16.msra.mxu0 0
  %831 = vmatprep.subr.bf16.mxu0 0
  %832 = vmatpush1.bf16.msra.mxu0 0
  %833 = vmatprep.mubr.bf16.mxu0 0
  %834 = vmatmul.mubr.bf16.gmra.mrb[0].mxu0 %v784
  %v835 = vpop.f32.mrb[0].mxu0
  %v836 = vadd.f32 0.0, %v835
  %v837 = vpop.f32.mrb[0].mxu0
  %v838 = vadd.f32 0.0, %v837
  %v839 = vpop.f32.mrb[0].mxu0
  %v840 = vadd.f32 0.0, %v839
  %v841 = vpop.f32.mrb[0].mxu0
  %v842 = vadd.f32 0.0, %v841
  %843 = vmatprep.mubr.bf16.mxu0 0
  %844 = vmatmul.mubr.bf16.gmra.mrb[0].mxu0 %v787
  %v845 = vpop.f32.mrb[0].mxu0
  %v846 = vadd.f32 0.0, %v845
  %v847 = vpop.f32.mrb[0].mxu0
  %v848 = vadd.f32 0.0, %v847
  %v849 = vpop.f32.mrb[0].mxu0
  %v850 = vadd.f32 0.0, %v849
  %v851 = vpop.f32.mrb[0].mxu0
  %v852 = vadd.f32 0.0, %v851
  %853 = vdwg.mxu0
  %854 = vmatprep.subr.bf16.mxu0 %v734
  %855 = vmatpush1.bf16.msra.mxu0 %v733
  %856 = vmatprep.subr.bf16.mxu0 %v738
  %857 = vmatpush1.bf16.msra.mxu0 %v737
  %858 = vmatprep.subr.bf16.mxu0 %v742
  %859 = vmatpush1.bf16.msra.mxu0 %v741
  %860 = vmatprep.subr.bf16.mxu0 %v746
  %861 = vmatpush1.bf16.msra.mxu0 %v745
  %862 = vmatprep.subr.bf16.mxu0 %v750
  %863 = vmatpush1.bf16.msra.mxu0 %v749
  %864 = vmatprep.subr.bf16.mxu0 %v754
  %865 = vmatpush1.bf16.msra.mxu0 %v753
  %866 = vmatprep.subr.bf16.mxu0 %v799
  %867 = vmatpush1.bf16.msra.mxu0 %v796
  %868 = vmatprep.subr.bf16.mxu0 0
  %869 = vmatpush1.bf16.msra.mxu0 0
  %870 = vmatprep.subr.bf16.mxu0 0
  %871 = vmatpush1.bf16.msra.mxu0 0
  %872 = vmatprep.subr.bf16.mxu0 0
  %873 = vmatpush1.bf16.msra.mxu0 0
  %874 = vmatprep.subr.bf16.mxu0 0
  %875 = vmatpush1.bf16.msra.mxu0 0
  %876 = vmatprep.subr.bf16.mxu0 0
  %877 = vmatpush1.bf16.msra.mxu0 0
  %878 = vmatprep.subr.bf16.mxu0 0
  %879 = vmatpush1.bf16.msra.mxu0 0
  %880 = vmatprep.subr.bf16.mxu0 0
  %881 = vmatpush1.bf16.msra.mxu0 0
  %882 = vmatprep.subr.bf16.mxu0 0
  %883 = vmatpush1.bf16.msra.mxu0 0
  %884 = vmatprep.subr.bf16.mxu0 0
  %885 = vmatpush1.bf16.msra.mxu0 0
  %886 = vmatprep.mubr.bf16.mxu0 0
  %887 = vmatmul.mubr.bf16.gmra.mrb[0].mxu0 %v784
  %v888 = vpop.f32.mrb[0].mxu0
  %v889 = vadd.f32 0.0, %v888
  %v890 = vpop.f32.mrb[0].mxu0
  %v891 = vadd.f32 0.0, %v890
  %v892 = vpop.f32.mrb[0].mxu0
  %v893 = vadd.f32 0.0, %v892
  %v894 = vpop.f32.mrb[0].mxu0
  %v895 = vadd.f32 0.0, %v894
  %896 = vmatprep.mubr.bf16.mxu0 0
  %897 = vmatmul.mubr.bf16.gmra.mrb[0].mxu0 %v787
  %v898 = vpop.f32.mrb[0].mxu0
  %v899 = vadd.f32 0.0, %v898
  %v900 = vpop.f32.mrb[0].mxu0
  %v901 = vadd.f32 0.0, %v900
  %v902 = vpop.f32.mrb[0].mxu0
  %v903 = vadd.f32 0.0, %v902
  %v904 = vpop.f32.mrb[0].mxu0
  %v905 = vadd.f32 0.0, %v904
  %906 = vdwg.mxu0
  %v907 = vadd.f32 %v582, %v836
  %v908 = vadd.f32 %v584, %v838
  %v909 = vadd.f32 %v635, %v889
  %v910 = vadd.f32 %v637, %v891
  %v911 = vadd.f32 %v586, %v840
  %v912 = vadd.f32 %v588, %v842
  %v913 = vadd.f32 %v639, %v893
  %v914 = vadd.f32 %v641, %v895
  %v915 = vadd.f32 %v592, %v846
  %v916 = vadd.f32 %v594, %v848
  %v917 = vadd.f32 %v645, %v899
  %v918 = vadd.f32 %v647, %v901
  %v919 = vadd.f32 %v596, %v850
  %v920 = vadd.f32 %v598, %v852
  %v921 = vadd.f32 %v649, %v903
  %v922 = vadd.f32 %v651, %v905
  %v924 = vlaneseq
  %v925 = vshrl.u32 %v924, 7
  %v926 = vsub.s32 0, %v925
  %v927 = vrot.slane %v142, %v926
  %v928 = vlaneseq
  %v929 = vshrl.u32 %v928, 7
  %v930 = vsub.s32 1, %v929
  %v931 = vrot.slane %v142, %v930
  %v932 = vlaneseq
  %v933 = vshrl.u32 %v932, 7
  %v934 = vsub.s32 2, %v933
  %v935 = vrot.slane %v142, %v934
  %v936 = vlaneseq
  %v937 = vshrl.u32 %v936, 7
  %v938 = vsub.s32 3, %v937
  %v939 = vrot.slane %v142, %v938
  %v944 = vadd.f32 %v907, %v927
  %v945 = vadd.f32 %v908, %v931
  %v946 = vadd.f32 %v909, %v935
  %v947 = vadd.f32 %v910, %v939
  %v948 = vadd.f32 %v911, %v927
  %v949 = vadd.f32 %v912, %v931
  %v950 = vadd.f32 %v913, %v935
  %v951 = vadd.f32 %v914, %v939
  %v952 = vadd.f32 %v915, %v927
  %v953 = vadd.f32 %v916, %v931
  %v954 = vadd.f32 %v917, %v935
  %v955 = vadd.f32 %v918, %v939
  %v956 = vadd.f32 %v919, %v927
  %v957 = vadd.f32 %v920, %v931
  %v958 = vadd.f32 %v921, %v935
  %v959 = vadd.f32 %v922, %v939
  %v960 = vmax.f32 %v944, 0.0
  %v961 = vmax.f32 %v945, 0.0
  %v962 = vmax.f32 %v946, 0.0
  %v963 = vmax.f32 %v947, 0.0
  %v964 = vmax.f32 %v948, 0.0
  %v965 = vmax.f32 %v949, 0.0
  %v966 = vmax.f32 %v950, 0.0
  %v967 = vmax.f32 %v951, 0.0
  %v968 = vmax.f32 %v952, 0.0
  %v969 = vmax.f32 %v953, 0.0
  %v970 = vmax.f32 %v954, 0.0
  %v971 = vmax.f32 %v955, 0.0
  %v972 = vmax.f32 %v956, 0.0
  %v973 = vmax.f32 %v957, 0.0
  %v974 = vmax.f32 %v958, 0.0
  %v975 = vmax.f32 %v959, 0.0
  %976 = vmatprep.subr.bf16.mxu0 %v222
  %977 = vmatpush1.bf16.msra.mxu0 %v221
  %978 = vmatprep.subr.bf16.mxu0 %v226
  %979 = vmatpush1.bf16.msra.mxu0 %v225
  %980 = vmatprep.subr.bf16.mxu0 %v230
  %981 = vmatpush1.bf16.msra.mxu0 %v229
  %982 = vmatprep.subr.bf16.mxu0 %v234
  %983 = vmatpush1.bf16.msra.mxu0 %v233
  %984 = vmatprep.subr.bf16.mxu0 %v238
  %985 = vmatpush1.bf16.msra.mxu0 %v237
  %986 = vmatprep.subr.bf16.mxu0 %v242
  %987 = vmatpush1.bf16.msra.mxu0 %v241
  %988 = vmatprep.subr.bf16.mxu0 %v285
  %989 = vmatpush1.bf16.msra.mxu0 %v282
  %990 = vmatprep.subr.bf16.mxu0 0
  %991 = vmatpush1.bf16.msra.mxu0 0
  %992 = vmatprep.subr.bf16.mxu0 0
  %993 = vmatpush1.bf16.msra.mxu0 0
  %994 = vmatprep.subr.bf16.mxu0 0
  %995 = vmatpush1.bf16.msra.mxu0 0
  %996 = vmatprep.subr.bf16.mxu0 0
  %997 = vmatpush1.bf16.msra.mxu0 0
  %998 = vmatprep.subr.bf16.mxu0 0
  %999 = vmatpush1.bf16.msra.mxu0 0
  %1000 = vmatprep.subr.bf16.mxu0 0
  %1001 = vmatpush1.bf16.msra.mxu0 0
  %1002 = vmatprep.subr.bf16.mxu0 0
  %1003 = vmatpush1.bf16.msra.mxu0 0
  %1004 = vmatprep.subr.bf16.mxu0 0
  %1005 = vmatpush1.bf16.msra.mxu0 0
  %1006 = vmatprep.subr.bf16.mxu0 0
  %1007 = vmatpush1.bf16.msra.mxu0 0
  %1008 = vmatprep.mubr.bf16.mxu0 0
  %1009 = vmatmul.mubr.bf16.gmra.mrb[0].mxu0 %v784
  %v1010 = vpop.f32.mrb[0].mxu0
  %v1011 = vadd.f32 0.0, %v1010
  %v1012 = vpop.f32.mrb[0].mxu0
  %v1013 = vadd.f32 0.0, %v1012
  %v1014 = vpop.f32.mrb[0].mxu0
  %v1015 = vadd.f32 0.0, %v1014
  %v1016 = vpop.f32.mrb[0].mxu0
  %v1017 = vadd.f32 0.0, %v1016
  %1018 = vmatprep.mubr.bf16.mxu0 0
  %1019 = vmatmul.mubr.bf16.gmra.mrb[0].mxu0 %v787
  %v1020 = vpop.f32.mrb[0].mxu0
  %v1021 = vadd.f32 0.0, %v1020
  %v1022 = vpop.f32.mrb[0].mxu0
  %v1023 = vadd.f32 0.0, %v1022
  %v1024 = vpop.f32.mrb[0].mxu0
  %v1025 = vadd.f32 0.0, %v1024
  %v1026 = vpop.f32.mrb[0].mxu0
  %v1027 = vadd.f32 0.0, %v1026
  %1028 = vdwg.mxu0
  %1029 = vmatprep.subr.bf16.mxu0 %v224
  %1030 = vmatpush1.bf16.msra.mxu0 %v223
  %1031 = vmatprep.subr.bf16.mxu0 %v228
  %1032 = vmatpush1.bf16.msra.mxu0 %v227
  %1033 = vmatprep.subr.bf16.mxu0 %v232
  %1034 = vmatpush1.bf16.msra.mxu0 %v231
  %1035 = vmatprep.subr.bf16.mxu0 %v236
  %1036 = vmatpush1.bf16.msra.mxu0 %v235
  %1037 = vmatprep.subr.bf16.mxu0 %v240
  %1038 = vmatpush1.bf16.msra.mxu0 %v239
  %1039 = vmatprep.subr.bf16.mxu0 %v244
  %1040 = vmatpush1.bf16.msra.mxu0 %v243
  %1041 = vmatprep.subr.bf16.mxu0 %v291
  %1042 = vmatpush1.bf16.msra.mxu0 %v288
  %1043 = vmatprep.subr.bf16.mxu0 0
  %1044 = vmatpush1.bf16.msra.mxu0 0
  %1045 = vmatprep.subr.bf16.mxu0 0
  %1046 = vmatpush1.bf16.msra.mxu0 0
  %1047 = vmatprep.subr.bf16.mxu0 0
  %1048 = vmatpush1.bf16.msra.mxu0 0
  %1049 = vmatprep.subr.bf16.mxu0 0
  %1050 = vmatpush1.bf16.msra.mxu0 0
  %1051 = vmatprep.subr.bf16.mxu0 0
  %1052 = vmatpush1.bf16.msra.mxu0 0
  %1053 = vmatprep.subr.bf16.mxu0 0
  %1054 = vmatpush1.bf16.msra.mxu0 0
  %1055 = vmatprep.subr.bf16.mxu0 0
  %1056 = vmatpush1.bf16.msra.mxu0 0
  %1057 = vmatprep.subr.bf16.mxu0 0
  %1058 = vmatpush1.bf16.msra.mxu0 0
  %1059 = vmatprep.subr.bf16.mxu0 0
  %1060 = vmatpush1.bf16.msra.mxu0 0
  %1061 = vmatprep.mubr.bf16.mxu0 0
  %1062 = vmatmul.mubr.bf16.gmra.mrb[0].mxu0 %v784
  %v1063 = vpop.f32.mrb[0].mxu0
  %v1064 = vadd.f32 0.0, %v1063
  %v1065 = vpop.f32.mrb[0].mxu0
  %v1066 = vadd.f32 0.0, %v1065
  %v1067 = vpop.f32.mrb[0].mxu0
  %v1068 = vadd.f32 0.0, %v1067
  %v1069 = vpop.f32.mrb[0].mxu0
  %v1070 = vadd.f32 0.0, %v1069
  %1071 = vmatprep.mubr.bf16.mxu0 0
  %1072 = vmatmul.mubr.bf16.gmra.mrb[0].mxu0 %v787
  %v1073 = vpop.f32.mrb[0].mxu0
  %v1074 = vadd.f32 0.0, %v1073
  %v1075 = vpop.f32.mrb[0].mxu0
  %v1076 = vadd.f32 0.0, %v1075
  %v1077 = vpop.f32.mrb[0].mxu0
  %v1078 = vadd.f32 0.0, %v1077
  %v1079 = vpop.f32.mrb[0].mxu0
  %v1080 = vadd.f32 0.0, %v1079
  %1081 = vdwg.mxu0
  %1082 = vmatprep.subr.bf16.mxu0 %v478
  %1083 = vmatpush1.bf16.msra.mxu0 %v477
  %1084 = vmatprep.subr.bf16.mxu0 %v482
  %1085 = vmatpush1.bf16.msra.mxu0 %v481
  %1086 = vmatprep.subr.bf16.mxu0 %v486
  %1087 = vmatpush1.bf16.msra.mxu0 %v485
  %1088 = vmatprep.subr.bf16.mxu0 %v490
  %1089 = vmatpush1.bf16.msra.mxu0 %v489
  %1090 = vmatprep.subr.bf16.mxu0 %v494
  %1091 = vmatpush1.bf16.msra.mxu0 %v493
  %1092 = vmatprep.subr.bf16.mxu0 %v498
  %1093 = vmatpush1.bf16.msra.mxu0 %v497
  %1094 = vmatprep.subr.bf16.mxu0 %v539
  %1095 = vmatpush1.bf16.msra.mxu0 %v536
  %1096 = vmatprep.subr.bf16.mxu0 0
  %1097 = vmatpush1.bf16.msra.mxu0 0
  %1098 = vmatprep.subr.bf16.mxu0 0
  %1099 = vmatpush1.bf16.msra.mxu0 0
  %1100 = vmatprep.subr.bf16.mxu0 0
  %1101 = vmatpush1.bf16.msra.mxu0 0
  %1102 = vmatprep.subr.bf16.mxu0 0
  %1103 = vmatpush1.bf16.msra.mxu0 0
  %1104 = vmatprep.subr.bf16.mxu0 0
  %1105 = vmatpush1.bf16.msra.mxu0 0
  %1106 = vmatprep.subr.bf16.mxu0 0
  %1107 = vmatpush1.bf16.msra.mxu0 0
  %1108 = vmatprep.subr.bf16.mxu0 0
  %1109 = vmatpush1.bf16.msra.mxu0 0
  %1110 = vmatprep.subr.bf16.mxu0 0
  %1111 = vmatpush1.bf16.msra.mxu0 0
  %1112 = vmatprep.subr.bf16.mxu0 0
  %1113 = vmatpush1.bf16.msra.mxu0 0
  %1114 = vmatprep.mubr.bf16.mxu0 0
  %1115 = vmatmul.mubr.bf16.gmra.mrb[0].mxu0 %v275
  %v1116 = vpop.f32.mrb[0].mxu0
  %v1117 = vadd.f32 %v1011, %v1116
  %v1118 = vpop.f32.mrb[0].mxu0
  %v1119 = vadd.f32 %v1013, %v1118
  %v1120 = vpop.f32.mrb[0].mxu0
  %v1121 = vadd.f32 %v1015, %v1120
  %v1122 = vpop.f32.mrb[0].mxu0
  %v1123 = vadd.f32 %v1017, %v1122
  %1124 = vmatprep.mubr.bf16.mxu0 0
  %1125 = vmatmul.mubr.bf16.gmra.mrb[0].mxu0 %v278
  %v1126 = vpop.f32.mrb[0].mxu0
  %v1127 = vadd.f32 %v1021, %v1126
  %v1128 = vpop.f32.mrb[0].mxu0
  %v1129 = vadd.f32 %v1023, %v1128
  %v1130 = vpop.f32.mrb[0].mxu0
  %v1131 = vadd.f32 %v1025, %v1130
  %v1132 = vpop.f32.mrb[0].mxu0
  %v1133 = vadd.f32 %v1027, %v1132
  %1134 = vdwg.mxu0
  %1135 = vmatprep.subr.bf16.mxu0 %v480
  %1136 = vmatpush1.bf16.msra.mxu0 %v479
  %1137 = vmatprep.subr.bf16.mxu0 %v484
  %1138 = vmatpush1.bf16.msra.mxu0 %v483
  %1139 = vmatprep.subr.bf16.mxu0 %v488
  %1140 = vmatpush1.bf16.msra.mxu0 %v487
  %1141 = vmatprep.subr.bf16.mxu0 %v492
  %1142 = vmatpush1.bf16.msra.mxu0 %v491
  %1143 = vmatprep.subr.bf16.mxu0 %v496
  %1144 = vmatpush1.bf16.msra.mxu0 %v495
  %1145 = vmatprep.subr.bf16.mxu0 %v500
  %1146 = vmatpush1.bf16.msra.mxu0 %v499
  %1147 = vmatprep.subr.bf16.mxu0 %v545
  %1148 = vmatpush1.bf16.msra.mxu0 %v542
  %1149 = vmatprep.subr.bf16.mxu0 0
  %1150 = vmatpush1.bf16.msra.mxu0 0
  %1151 = vmatprep.subr.bf16.mxu0 0
  %1152 = vmatpush1.bf16.msra.mxu0 0
  %1153 = vmatprep.subr.bf16.mxu0 0
  %1154 = vmatpush1.bf16.msra.mxu0 0
  %1155 = vmatprep.subr.bf16.mxu0 0
  %1156 = vmatpush1.bf16.msra.mxu0 0
  %1157 = vmatprep.subr.bf16.mxu0 0
  %1158 = vmatpush1.bf16.msra.mxu0 0
  %1159 = vmatprep.subr.bf16.mxu0 0
  %1160 = vmatpush1.bf16.msra.mxu0 0
  %1161 = vmatprep.subr.bf16.mxu0 0
  %1162 = vmatpush1.bf16.msra.mxu0 0
  %1163 = vmatprep.subr.bf16.mxu0 0
  %1164 = vmatpush1.bf16.msra.mxu0 0
  %1165 = vmatprep.subr.bf16.mxu0 0
  %1166 = vmatpush1.bf16.msra.mxu0 0
  %1167 = vmatprep.mubr.bf16.mxu0 0
  %1168 = vmatmul.mubr.bf16.gmra.mrb[0].mxu0 %v275
  %v1169 = vpop.f32.mrb[0].mxu0
  %v1170 = vadd.f32 %v1064, %v1169
  %v1171 = vpop.f32.mrb[0].mxu0
  %v1172 = vadd.f32 %v1066, %v1171
  %v1173 = vpop.f32.mrb[0].mxu0
  %v1174 = vadd.f32 %v1068, %v1173
  %v1175 = vpop.f32.mrb[0].mxu0
  %v1176 = vadd.f32 %v1070, %v1175
  %1177 = vmatprep.mubr.bf16.mxu0 0
  %1178 = vmatmul.mubr.bf16.gmra.mrb[0].mxu0 %v278
  %v1179 = vpop.f32.mrb[0].mxu0
  %v1180 = vadd.f32 %v1074, %v1179
  %v1181 = vpop.f32.mrb[0].mxu0
  %v1182 = vadd.f32 %v1076, %v1181
  %v1183 = vpop.f32.mrb[0].mxu0
  %v1184 = vadd.f32 %v1078, %v1183
  %v1185 = vpop.f32.mrb[0].mxu0
  %v1186 = vadd.f32 %v1080, %v1185
  %1187 = vdwg.mxu0
  %v1189 = vsel %vm273, %v48, 0
  %v1192 = vsel %vm273, %v49, 0
  %1194 = vmatprep.subr.bf16.mxu0 %v732
  %1195 = vmatpush1.bf16.msra.mxu0 %v731
  %1196 = vmatprep.subr.bf16.mxu0 %v736
  %1197 = vmatpush1.bf16.msra.mxu0 %v735
  %1198 = vmatprep.subr.bf16.mxu0 %v740
  %1199 = vmatpush1.bf16.msra.mxu0 %v739
  %1200 = vmatprep.subr.bf16.mxu0 %v744
  %1201 = vmatpush1.bf16.msra.mxu0 %v743
  %1202 = vmatprep.subr.bf16.mxu0 %v748
  %1203 = vmatpush1.bf16.msra.mxu0 %v747
  %1204 = vmatprep.subr.bf16.mxu0 %v752
  %1205 = vmatpush1.bf16.msra.mxu0 %v751
  %1206 = vmatprep.subr.bf16.mxu0 %v793
  %1207 = vmatpush1.bf16.msra.mxu0 %v790
  %1208 = vmatprep.subr.bf16.mxu0 0
  %1209 = vmatpush1.bf16.msra.mxu0 0
  %1210 = vmatprep.subr.bf16.mxu0 0
  %1211 = vmatpush1.bf16.msra.mxu0 0
  %1212 = vmatprep.subr.bf16.mxu0 0
  %1213 = vmatpush1.bf16.msra.mxu0 0
  %1214 = vmatprep.subr.bf16.mxu0 0
  %1215 = vmatpush1.bf16.msra.mxu0 0
  %1216 = vmatprep.subr.bf16.mxu0 0
  %1217 = vmatpush1.bf16.msra.mxu0 0
  %1218 = vmatprep.subr.bf16.mxu0 0
  %1219 = vmatpush1.bf16.msra.mxu0 0
  %1220 = vmatprep.subr.bf16.mxu0 0
  %1221 = vmatpush1.bf16.msra.mxu0 0
  %1222 = vmatprep.subr.bf16.mxu0 0
  %1223 = vmatpush1.bf16.msra.mxu0 0
  %1224 = vmatprep.subr.bf16.mxu0 0
  %1225 = vmatpush1.bf16.msra.mxu0 0
  %1226 = vmatprep.mubr.bf16.mxu0 0
  %1227 = vmatmul.mubr.bf16.gmra.mrb[0].mxu0 %v1189
  %v1228 = vpop.f32.mrb[0].mxu0
  %v1229 = vadd.f32 0.0, %v1228
  %v1230 = vpop.f32.mrb[0].mxu0
  %v1231 = vadd.f32 0.0, %v1230
  %v1232 = vpop.f32.mrb[0].mxu0
  %v1233 = vadd.f32 0.0, %v1232
  %v1234 = vpop.f32.mrb[0].mxu0
  %v1235 = vadd.f32 0.0, %v1234
  %1236 = vmatprep.mubr.bf16.mxu0 0
  %1237 = vmatmul.mubr.bf16.gmra.mrb[0].mxu0 %v1192
  %v1238 = vpop.f32.mrb[0].mxu0
  %v1239 = vadd.f32 0.0, %v1238
  %v1240 = vpop.f32.mrb[0].mxu0
  %v1241 = vadd.f32 0.0, %v1240
  %v1242 = vpop.f32.mrb[0].mxu0
  %v1243 = vadd.f32 0.0, %v1242
  %v1244 = vpop.f32.mrb[0].mxu0
  %v1245 = vadd.f32 0.0, %v1244
  %1246 = vdwg.mxu0
  %1247 = vmatprep.subr.bf16.mxu0 %v734
  %1248 = vmatpush1.bf16.msra.mxu0 %v733
  %1249 = vmatprep.subr.bf16.mxu0 %v738
  %1250 = vmatpush1.bf16.msra.mxu0 %v737
  %1251 = vmatprep.subr.bf16.mxu0 %v742
  %1252 = vmatpush1.bf16.msra.mxu0 %v741
  %1253 = vmatprep.subr.bf16.mxu0 %v746
  %1254 = vmatpush1.bf16.msra.mxu0 %v745
  %1255 = vmatprep.subr.bf16.mxu0 %v750
  %1256 = vmatpush1.bf16.msra.mxu0 %v749
  %1257 = vmatprep.subr.bf16.mxu0 %v754
  %1258 = vmatpush1.bf16.msra.mxu0 %v753
  %1259 = vmatprep.subr.bf16.mxu0 %v799
  %1260 = vmatpush1.bf16.msra.mxu0 %v796
  %1261 = vmatprep.subr.bf16.mxu0 0
  %1262 = vmatpush1.bf16.msra.mxu0 0
  %1263 = vmatprep.subr.bf16.mxu0 0
  %1264 = vmatpush1.bf16.msra.mxu0 0
  %1265 = vmatprep.subr.bf16.mxu0 0
  %1266 = vmatpush1.bf16.msra.mxu0 0
  %1267 = vmatprep.subr.bf16.mxu0 0
  %1268 = vmatpush1.bf16.msra.mxu0 0
  %1269 = vmatprep.subr.bf16.mxu0 0
  %1270 = vmatpush1.bf16.msra.mxu0 0
  %1271 = vmatprep.subr.bf16.mxu0 0
  %1272 = vmatpush1.bf16.msra.mxu0 0
  %1273 = vmatprep.subr.bf16.mxu0 0
  %1274 = vmatpush1.bf16.msra.mxu0 0
  %1275 = vmatprep.subr.bf16.mxu0 0
  %1276 = vmatpush1.bf16.msra.mxu0 0
  %1277 = vmatprep.subr.bf16.mxu0 0
  %1278 = vmatpush1.bf16.msra.mxu0 0
  %1279 = vmatprep.mubr.bf16.mxu0 0
  %1280 = vmatmul.mubr.bf16.gmra.mrb[0].mxu0 %v1189
  %v1281 = vpop.f32.mrb[0].mxu0
  %v1282 = vadd.f32 0.0, %v1281
  %v1283 = vpop.f32.mrb[0].mxu0
  %v1284 = vadd.f32 0.0, %v1283
  %v1285 = vpop.f32.mrb[0].mxu0
  %v1286 = vadd.f32 0.0, %v1285
  %v1287 = vpop.f32.mrb[0].mxu0
  %v1288 = vadd.f32 0.0, %v1287
  %1289 = vmatprep.mubr.bf16.mxu0 0
  %1290 = vmatmul.mubr.bf16.gmra.mrb[0].mxu0 %v1192
  %v1291 = vpop.f32.mrb[0].mxu0
  %v1292 = vadd.f32 0.0, %v1291
  %v1293 = vpop.f32.mrb[0].mxu0
  %v1294 = vadd.f32 0.0, %v1293
  %v1295 = vpop.f32.mrb[0].mxu0
  %v1296 = vadd.f32 0.0, %v1295
  %v1297 = vpop.f32.mrb[0].mxu0
  %v1298 = vadd.f32 0.0, %v1297
  %1299 = vdwg.mxu0
  %v1300 = vadd.f32 %v1117, %v1229
  %v1301 = vadd.f32 %v1119, %v1231
  %v1302 = vadd.f32 %v1170, %v1282
  %v1303 = vadd.f32 %v1172, %v1284
  %v1304 = vadd.f32 %v1121, %v1233
  %v1305 = vadd.f32 %v1123, %v1235
  %v1306 = vadd.f32 %v1174, %v1286
  %v1307 = vadd.f32 %v1176, %v1288
  %v1308 = vadd.f32 %v1127, %v1239
  %v1309 = vadd.f32 %v1129, %v1241
  %v1310 = vadd.f32 %v1180, %v1292
  %v1311 = vadd.f32 %v1182, %v1294
  %v1312 = vadd.f32 %v1131, %v1243
  %v1313 = vadd.f32 %v1133, %v1245
  %v1314 = vadd.f32 %v1184, %v1296
  %v1315 = vadd.f32 %v1186, %v1298
  %v1316 = vadd.f32 %v1300, %v927
  %v1317 = vadd.f32 %v1301, %v931
  %v1318 = vadd.f32 %v1302, %v935
  %v1319 = vadd.f32 %v1303, %v939
  %v1320 = vadd.f32 %v1304, %v927
  %v1321 = vadd.f32 %v1305, %v931
  %v1322 = vadd.f32 %v1306, %v935
  %v1323 = vadd.f32 %v1307, %v939
  %v1324 = vadd.f32 %v1308, %v927
  %v1325 = vadd.f32 %v1309, %v931
  %v1326 = vadd.f32 %v1310, %v935
  %v1327 = vadd.f32 %v1311, %v939
  %v1328 = vadd.f32 %v1312, %v927
  %v1329 = vadd.f32 %v1313, %v931
  %v1330 = vadd.f32 %v1314, %v935
  %v1331 = vadd.f32 %v1315, %v939
  %v1332 = vmax.f32 %v1316, 0.0
  %v1333 = vmax.f32 %v1317, 0.0
  %v1334 = vmax.f32 %v1318, 0.0
  %v1335 = vmax.f32 %v1319, 0.0
  %v1336 = vmax.f32 %v1320, 0.0
  %v1337 = vmax.f32 %v1321, 0.0
  %v1338 = vmax.f32 %v1322, 0.0
  %v1339 = vmax.f32 %v1323, 0.0
  %v1340 = vmax.f32 %v1324, 0.0
  %v1341 = vmax.f32 %v1325, 0.0
  %v1342 = vmax.f32 %v1326, 0.0
  %v1343 = vmax.f32 %v1327, 0.0
  %v1344 = vmax.f32 %v1328, 0.0
  %v1345 = vmax.f32 %v1329, 0.0
  %v1346 = vmax.f32 %v1330, 0.0
  %v1347 = vmax.f32 %v1331, 0.0
  %v1348 = vlaneseq
  %vm1349 = vcmp.ge.s32.totalorder %v1348, 0
  %vm1350 = vcmp.lt.s32.totalorder %v1348, 512
  %vm1351 = vmand %vm1349, %vm1350
  %1352 = vst.msk [vmem:[#allocation2] ss:$8 sm:$0xf] %vm1351, 0.0
  %1353 = vst.msk [vmem:[#allocation2] ss:$8 sm:$0x0] %vm1351, 0.0
  %s1354 = scalar_lea.vmem [#allocation2], 96
  %1355 = vst.msk [vmem:[%s1354] ss:$8 sm:$0xf] %vm1351, 0.0
  %1356 = vst.msk [vmem:[%s1354] ss:$8 sm:$0x0] %vm1351, 0.0
  %vm1373 = vcmask 1040384
  %v1374 = vrot.slane %v1332, 7
  %v1375 = vrot.slane %v1333, 7
  %v1376 = vrot.slane %v1334, 7
  %v1377 = vrot.slane %v1335, 7
  %v1378 = vrot.slane %v1336, 7
  %v1379 = vsel %vm1373, %v1374, %v1378
  %v1380 = vrot.slane %v1337, 7
  %v1381 = vsel %vm1373, %v1375, %v1380
  %v1382 = vrot.slane %v1338, 7
  %v1383 = vsel %vm1373, %v1376, %v1382
  %v1384 = vrot.slane %v1339, 7
  %v1385 = vsel %vm1373, %v1377, %v1384
  %v1386 = vrot.slane %v1340, 7
  %v1387 = vrot.slane %v1341, 7
  %v1388 = vrot.slane %v1342, 7
  %v1389 = vrot.slane %v1343, 7
  %v1390 = vrot.slane %v1344, 7
  %v1391 = vsel %vm1373, %v1386, %v1390
  %v1392 = vrot.slane %v1345, 7
  %v1393 = vsel %vm1373, %v1387, %v1392
  %v1394 = vrot.slane %v1346, 7
  %v1395 = vsel %vm1373, %v1388, %v1394
  %v1396 = vrot.slane %v1347, 7
  %v1397 = vsel %vm1373, %v1389, %v1396
  %1422 = vst [vmem:[#allocation2] sm:$0xfe] %v1374
  %1423 = vst [vmem:[#allocation2 + $0x8] sm:$0xfe] %v1375
  %1424 = vst [vmem:[#allocation2 + $0x10] sm:$0xfe] %v1376
  %1425 = vst [vmem:[#allocation2 + $0x18] sm:$0xfe] %v1377
  %1426 = vst [vmem:[#allocation2 + $0x20] sm:$0xff] %v1379
  %1427 = vst [vmem:[#allocation2 + $0x28] sm:$0xff] %v1381
  %1428 = vst [vmem:[#allocation2 + $0x30] sm:$0xff] %v1383
  %1429 = vst [vmem:[#allocation2 + $0x38] sm:$0xff] %v1385
  %1430 = vst [vmem:[#allocation2 + $0x40] sm:$0x1] %v1378
  %1431 = vst [vmem:[#allocation2 + $0x48] sm:$0x1] %v1380
  %1432 = vst [vmem:[#allocation2 + $0x50] sm:$0x1] %v1382
  %1433 = vst [vmem:[#allocation2 + $0x58] sm:$0x1] %v1384
  %1434 = vst [vmem:[#allocation2 + $0x60] sm:$0xfe] %v1386
  %1435 = vst [vmem:[#allocation2 + $0x68] sm:$0xfe] %v1387
  %1436 = vst [vmem:[#allocation2 + $0x70] sm:$0xfe] %v1388
  %1437 = vst [vmem:[#allocation2 + $0x78] sm:$0xfe] %v1389
  %1438 = vst [vmem:[#allocation2 + $0x80] sm:$0xff] %v1391
  %1439 = vst [vmem:[#allocation2 + $0x88] sm:$0xff] %v1393
  %1440 = vst [vmem:[#allocation2 + $0x90] sm:$0xff] %v1395
  %1441 = vst [vmem:[#allocation2 + $0x98] sm:$0xff] %v1397
  %1442 = vst [vmem:[#allocation2 + $0xa0] sm:$0x1] %v1390
  %1443 = vst [vmem:[#allocation2 + $0xa8] sm:$0x1] %v1392
  %1444 = vst [vmem:[#allocation2 + $0xb0] sm:$0x1] %v1394
  %1445 = vst [vmem:[#allocation2 + $0xb8] sm:$0x1] %v1396
  %v1446 = vld [vmem:[#allocation2] sm:$0xff]
  %v1447 = vld [vmem:[#allocation2 + $0x8] sm:$0xff]
  %v1448 = vld [vmem:[#allocation2 + $0x10] sm:$0xff]
  %v1449 = vld [vmem:[#allocation2 + $0x18] sm:$0xff]
  %v1450 = vld [vmem:[#allocation2 + $0x20] sm:$0xff]
  %v1451 = vld [vmem:[#allocation2 + $0x28] sm:$0xff]
  %v1452 = vld [vmem:[#allocation2 + $0x30] sm:$0xff]
  %v1453 = vld [vmem:[#allocation2 + $0x38] sm:$0xff]
  %v1454 = vld [vmem:[#allocation2 + $0x60] sm:$0xff]
  %v1455 = vld [vmem:[#allocation2 + $0x68] sm:$0xff]
  %v1456 = vld [vmem:[#allocation2 + $0x70] sm:$0xff]
  %v1457 = vld [vmem:[#allocation2 + $0x78] sm:$0xff]
  %v1458 = vld [vmem:[#allocation2 + $0x80] sm:$0xff]
  %v1459 = vld [vmem:[#allocation2 + $0x88] sm:$0xff]
  %v1460 = vld [vmem:[#allocation2 + $0x90] sm:$0xff]
  %v1461 = vld [vmem:[#allocation2 + $0x98] sm:$0xff]
  %v1462 = vpack.c.bf16 %v1450, %v1446
  %v1463 = vpack.c.bf16 %v1451, %v1447
  %v1464 = vpack.c.bf16 %v1452, %v1448
  %v1465 = vpack.c.bf16 %v1453, %v1449
  %v1466 = vpack.c.bf16 %v1458, %v1454
  %v1467 = vpack.c.bf16 %v1459, %v1455
  %v1468 = vpack.c.bf16 %v1460, %v1456
  %v1469 = vpack.c.bf16 %v1461, %v1457
  %v1470 = vld [vmem:[%s4] sm:$0xff]
  %v1471 = vld [vmem:[%s4 + $0x8] sm:$0xff]
  %v1472 = vld [vmem:[%s4 + $0x10] sm:$0xff]
  %v1473 = vld [vmem:[%s4 + $0x18] sm:$0xff]
  %v1474 = vld [vmem:[%s4 + $0x20] sm:$0xff]
  %v1475 = vld [vmem:[%s4 + $0x28] sm:$0xff]
  %v1476 = vld [vmem:[%s4 + $0x30] sm:$0xff]
  %v1477 = vld [vmem:[%s4 + $0x38] sm:$0xff]
  %v1478 = vld [vmem:[%s4 + $0x40] sm:$0xff]
  %v1479 = vld [vmem:[%s4 + $0x48] sm:$0xff]
  %v1480 = vld [vmem:[%s4 + $0x50] sm:$0xff]
  %v1481 = vld [vmem:[%s4 + $0x58] sm:$0xff]
  %v1482 = vld [vmem:[%s4 + $0x60] sm:$0xff]
  %v1483 = vld [vmem:[%s4 + $0x68] sm:$0xff]
  %v1484 = vld [vmem:[%s4 + $0x70] sm:$0xff]
  %v1485 = vld [vmem:[%s4 + $0x78] sm:$0xff]
  %v1486 = vld [vmem:[%s4 + $0x80] sm:$0xff]
  %v1487 = vld [vmem:[%s4 + $0x88] sm:$0xff]
  %v1488 = vld [vmem:[%s4 + $0x90] sm:$0xff]
  %v1489 = vld [vmem:[%s4 + $0x98] sm:$0xff]
  %v1490 = vld [vmem:[%s4 + $0xa0] sm:$0xff]
  %v1491 = vld [vmem:[%s4 + $0xa8] sm:$0xff]
  %v1492 = vld [vmem:[%s4 + $0xb0] sm:$0xff]
  %v1493 = vld [vmem:[%s4 + $0xb8] sm:$0xff]
  %v1494 = vld [vmem:[%s4 + $0xc0] sm:$0xff]
  %v1495 = vld [vmem:[%s4 + $0xc8] sm:$0xff]
  %v1496 = vld [vmem:[%s4 + $0xd0] sm:$0xff]
  %v1497 = vld [vmem:[%s4 + $0xd8] sm:$0xff]
  %v1498 = vld [vmem:[%s4 + $0xe0] sm:$0xff]
  %v1499 = vld [vmem:[%s4 + $0xe8] sm:$0xff]
  %v1500 = vld [vmem:[%s4 + $0xf0] sm:$0xff]
  %v1501 = vld [vmem:[%s4 + $0xf8] sm:$0xff]
  %v1502 = vld [vmem:[%s4 + $0x100] sm:$0xff]
  %v1503 = vld [vmem:[%s4 + $0x108] sm:$0xff]
  %v1504 = vld [vmem:[%s4 + $0x110] sm:$0xff]
  %v1505 = vld [vmem:[%s4 + $0x118] sm:$0xff]
  %v1506 = vld [vmem:[%s4 + $0x120] sm:$0xff]
  %v1507 = vld [vmem:[%s4 + $0x128] sm:$0xff]
  %v1508 = vld [vmem:[%s4 + $0x130] sm:$0xff]
  %v1509 = vld [vmem:[%s4 + $0x138] sm:$0xff]
  %v1510 = vld [vmem:[%s4 + $0x140] sm:$0xff]
  %v1511 = vld [vmem:[%s4 + $0x148] sm:$0xff]
  %v1512 = vld [vmem:[%s4 + $0x150] sm:$0xff]
  %v1513 = vld [vmem:[%s4 + $0x158] sm:$0xff]
  %v1514 = vld [vmem:[%s4 + $0x160] sm:$0xff]
  %v1515 = vld [vmem:[%s4 + $0x168] sm:$0xff]
  %v1516 = vld [vmem:[%s4 + $0x170] sm:$0xff]
  %v1517 = vld [vmem:[%s4 + $0x178] sm:$0xff]
  %v1518 = vld [vmem:[%s4 + $0x180] sm:$0xff]
  %v1519 = vld [vmem:[%s4 + $0x188] sm:$0xff]
  %v1520 = vld [vmem:[%s4 + $0x190] sm:$0xff]
  %v1521 = vld [vmem:[%s4 + $0x198] sm:$0xff]
  %v1522 = vld [vmem:[%s4 + $0x1a0] sm:$0xff]
  %v1523 = vld [vmem:[%s4 + $0x1a8] sm:$0xff]
  %v1524 = vld [vmem:[%s4 + $0x1b0] sm:$0xff]
  %v1525 = vld [vmem:[%s4 + $0x1b8] sm:$0xff]
  %v1526 = vld [vmem:[%s4 + $0x1c0] sm:$0xff]
  %v1527 = vld [vmem:[%s4 + $0x1c8] sm:$0xff]
  %v1528 = vld [vmem:[%s4 + $0x1d0] sm:$0xff]
  %v1529 = vld [vmem:[%s4 + $0x1d8] sm:$0xff]
  %v1530 = vld [vmem:[%s4 + $0x1e0] sm:$0xff]
  %v1531 = vld [vmem:[%s4 + $0x1e8] sm:$0xff]
  %v1532 = vld [vmem:[%s4 + $0x1f0] sm:$0xff]
  %v1533 = vld [vmem:[%s4 + $0x1f8] sm:$0xff]
  %v1534 = vld [vmem:[%s4 + $0x200] sm:$0xff]
  %v1535 = vld [vmem:[%s4 + $0x208] sm:$0xff]
  %v1536 = vld [vmem:[%s4 + $0x210] sm:$0xff]
  %v1537 = vld [vmem:[%s4 + $0x218] sm:$0xff]
  %v1538 = vld [vmem:[%s4 + $0x220] sm:$0xff]
  %v1539 = vld [vmem:[%s4 + $0x228] sm:$0xff]
  %v1540 = vld [vmem:[%s4 + $0x230] sm:$0xff]
  %v1541 = vld [vmem:[%s4 + $0x238] sm:$0xff]
  %v1542 = vld [vmem:[%s4 + $0x240] sm:$0xff]
  %v1543 = vld [vmem:[%s4 + $0x248] sm:$0xff]
  %v1544 = vld [vmem:[%s4 + $0x250] sm:$0xff]
  %v1545 = vld [vmem:[%s4 + $0x258] sm:$0xff]
  %v1546 = vld [vmem:[%s4 + $0x260] sm:$0xff]
  %v1547 = vld [vmem:[%s4 + $0x268] sm:$0xff]
  %v1548 = vld [vmem:[%s4 + $0x270] sm:$0xff]
  %v1549 = vld [vmem:[%s4 + $0x278] sm:$0xff]
  %v1550 = vld [vmem:[%s4 + $0x280] sm:$0xff]
  %v1551 = vld [vmem:[%s4 + $0x288] sm:$0xff]
  %v1552 = vld [vmem:[%s4 + $0x290] sm:$0xff]
  %v1553 = vld [vmem:[%s4 + $0x298] sm:$0xff]
  %v1554 = vld [vmem:[%s4 + $0x2a0] sm:$0xff]
  %v1555 = vld [vmem:[%s4 + $0x2a8] sm:$0xff]
  %v1556 = vld [vmem:[%s4 + $0x2b0] sm:$0xff]
  %v1557 = vld [vmem:[%s4 + $0x2b8] sm:$0xff]
  %v1558 = vld [vmem:[%s4 + $0x2c0] sm:$0xff]
  %v1559 = vld [vmem:[%s4 + $0x2c8] sm:$0xff]
  %v1560 = vld [vmem:[%s4 + $0x2d0] sm:$0xff]
  %v1561 = vld [vmem:[%s4 + $0x2d8] sm:$0xff]
  %v1562 = vld [vmem:[%s4 + $0x2e0] sm:$0xff]
  %v1563 = vld [vmem:[%s4 + $0x2e8] sm:$0xff]
  %v1564 = vld [vmem:[%s4 + $0x2f0] sm:$0xff]
  %v1565 = vld [vmem:[%s4 + $0x2f8] sm:$0xff]
  %v1566 = vld [vmem:[%s4 + $0x300] sm:$0xff]
  %v1567 = vld [vmem:[%s4 + $0x308] sm:$0xff]
  %v1568 = vld [vmem:[%s4 + $0x310] sm:$0xff]
  %v1569 = vld [vmem:[%s4 + $0x318] sm:$0xff]
  %v1570 = vld [vmem:[%s4 + $0x320] sm:$0xff]
  %v1571 = vld [vmem:[%s4 + $0x328] sm:$0xff]
  %v1572 = vld [vmem:[%s4 + $0x330] sm:$0xff]
  %v1573 = vld [vmem:[%s4 + $0x338] sm:$0xff]
  %v1574 = vld [vmem:[%s4 + $0x340] sm:$0xff]
  %v1575 = vld [vmem:[%s4 + $0x348] sm:$0xff]
  %v1576 = vld [vmem:[%s4 + $0x350] sm:$0xff]
  %v1577 = vld [vmem:[%s4 + $0x358] sm:$0xff]
  %v1578 = vld [vmem:[%s4 + $0x360] sm:$0xff]
  %v1579 = vld [vmem:[%s4 + $0x368] sm:$0xff]
  %v1580 = vld [vmem:[%s4 + $0x370] sm:$0xff]
  %v1581 = vld [vmem:[%s4 + $0x378] sm:$0xff]
  %v1582 = vld [vmem:[%s4 + $0x380] sm:$0xff]
  %v1583 = vld [vmem:[%s4 + $0x388] sm:$0xff]
  %v1584 = vld [vmem:[%s4 + $0x390] sm:$0xff]
  %v1585 = vld [vmem:[%s4 + $0x398] sm:$0xff]
  %v1586 = vld [vmem:[%s4 + $0x3a0] sm:$0xff]
  %v1587 = vld [vmem:[%s4 + $0x3a8] sm:$0xff]
  %v1588 = vld [vmem:[%s4 + $0x3b0] sm:$0xff]
  %v1589 = vld [vmem:[%s4 + $0x3b8] sm:$0xff]
  %v1590 = vld [vmem:[%s4 + $0x3c0] sm:$0xff]
  %v1591 = vld [vmem:[%s4 + $0x3c8] sm:$0xff]
  %v1592 = vld [vmem:[%s4 + $0x3d0] sm:$0xff]
  %v1593 = vld [vmem:[%s4 + $0x3d8] sm:$0xff]
  %v1594 = vld [vmem:[%s4 + $0x3e0] sm:$0xff]
  %v1595 = vld [vmem:[%s4 + $0x3e8] sm:$0xff]
  %v1596 = vld [vmem:[%s4 + $0x3f0] sm:$0xff]
  %v1597 = vld [vmem:[%s4 + $0x3f8] sm:$0xff]
  %v1598 = vpack.c.bf16 %v964, %v960
  %v1599 = vpack.c.bf16 %v965, %v961
  %v1600 = vpack.c.bf16 %v966, %v962
  %v1601 = vpack.c.bf16 %v967, %v963
  %v1602 = vpack.c.bf16 %v972, %v968
  %v1603 = vpack.c.bf16 %v973, %v969
  %v1604 = vpack.c.bf16 %v974, %v970
  %v1605 = vpack.c.bf16 %v975, %v971
  %s1606 = scalar_lea.vmem %s4, 1024
  %v1607 = vld [vmem:[%s1606] sm:$0xff]
  %v1608 = vld [vmem:[%s1606 + $0x8] sm:$0xff]
  %v1609 = vld [vmem:[%s1606 + $0x10] sm:$0xff]
  %v1610 = vld [vmem:[%s1606 + $0x18] sm:$0xff]
  %v1611 = vld [vmem:[%s1606 + $0x20] sm:$0xff]
  %v1612 = vld [vmem:[%s1606 + $0x28] sm:$0xff]
  %v1613 = vld [vmem:[%s1606 + $0x30] sm:$0xff]
  %v1614 = vld [vmem:[%s1606 + $0x38] sm:$0xff]
  %v1615 = vld [vmem:[%s1606 + $0x40] sm:$0xff]
  %v1616 = vld [vmem:[%s1606 + $0x48] sm:$0xff]
  %v1617 = vld [vmem:[%s1606 + $0x50] sm:$0xff]
  %v1618 = vld [vmem:[%s1606 + $0x58] sm:$0xff]
  %v1619 = vld [vmem:[%s1606 + $0x60] sm:$0xff]
  %v1620 = vld [vmem:[%s1606 + $0x68] sm:$0xff]
  %v1621 = vld [vmem:[%s1606 + $0x70] sm:$0xff]
  %v1622 = vld [vmem:[%s1606 + $0x78] sm:$0xff]
  %v1623 = vld [vmem:[%s1606 + $0x80] sm:$0xff]
  %v1624 = vld [vmem:[%s1606 + $0x88] sm:$0xff]
  %v1625 = vld [vmem:[%s1606 + $0x90] sm:$0xff]
  %v1626 = vld [vmem:[%s1606 + $0x98] sm:$0xff]
  %v1627 = vld [vmem:[%s1606 + $0xa0] sm:$0xff]
  %v1628 = vld [vmem:[%s1606 + $0xa8] sm:$0xff]
  %v1629 = vld [vmem:[%s1606 + $0xb0] sm:$0xff]
  %v1630 = vld [vmem:[%s1606 + $0xb8] sm:$0xff]
  %v1631 = vld [vmem:[%s1606 + $0xc0] sm:$0xff]
  %v1632 = vld [vmem:[%s1606 + $0xc8] sm:$0xff]
  %v1633 = vld [vmem:[%s1606 + $0xd0] sm:$0xff]
  %v1634 = vld [vmem:[%s1606 + $0xd8] sm:$0xff]
  %v1635 = vld [vmem:[%s1606 + $0xe0] sm:$0xff]
  %v1636 = vld [vmem:[%s1606 + $0xe8] sm:$0xff]
  %v1637 = vld [vmem:[%s1606 + $0xf0] sm:$0xff]
  %v1638 = vld [vmem:[%s1606 + $0xf8] sm:$0xff]
  %v1639 = vld [vmem:[%s1606 + $0x100] sm:$0xff]
  %v1640 = vld [vmem:[%s1606 + $0x108] sm:$0xff]
  %v1641 = vld [vmem:[%s1606 + $0x110] sm:$0xff]
  %v1642 = vld [vmem:[%s1606 + $0x118] sm:$0xff]
  %v1643 = vld [vmem:[%s1606 + $0x120] sm:$0xff]
  %v1644 = vld [vmem:[%s1606 + $0x128] sm:$0xff]
  %v1645 = vld [vmem:[%s1606 + $0x130] sm:$0xff]
  %v1646 = vld [vmem:[%s1606 + $0x138] sm:$0xff]
  %v1647 = vld [vmem:[%s1606 + $0x140] sm:$0xff]
  %v1648 = vld [vmem:[%s1606 + $0x148] sm:$0xff]
  %v1649 = vld [vmem:[%s1606 + $0x150] sm:$0xff]
  %v1650 = vld [vmem:[%s1606 + $0x158] sm:$0xff]
  %v1651 = vld [vmem:[%s1606 + $0x160] sm:$0xff]
  %v1652 = vld [vmem:[%s1606 + $0x168] sm:$0xff]
  %v1653 = vld [vmem:[%s1606 + $0x170] sm:$0xff]
  %v1654 = vld [vmem:[%s1606 + $0x178] sm:$0xff]
  %v1655 = vld [vmem:[%s1606 + $0x180] sm:$0xff]
  %v1656 = vld [vmem:[%s1606 + $0x188] sm:$0xff]
  %v1657 = vld [vmem:[%s1606 + $0x190] sm:$0xff]
  %v1658 = vld [vmem:[%s1606 + $0x198] sm:$0xff]
  %v1659 = vld [vmem:[%s1606 + $0x1a0] sm:$0xff]
  %v1660 = vld [vmem:[%s1606 + $0x1a8] sm:$0xff]
  %v1661 = vld [vmem:[%s1606 + $0x1b0] sm:$0xff]
  %v1662 = vld [vmem:[%s1606 + $0x1b8] sm:$0xff]
  %v1663 = vld [vmem:[%s1606 + $0x1c0] sm:$0xff]
  %v1664 = vld [vmem:[%s1606 + $0x1c8] sm:$0xff]
  %v1665 = vld [vmem:[%s1606 + $0x1d0] sm:$0xff]
  %v1666 = vld [vmem:[%s1606 + $0x1d8] sm:$0xff]
  %v1667 = vld [vmem:[%s1606 + $0x1e0] sm:$0xff]
  %v1668 = vld [vmem:[%s1606 + $0x1e8] sm:$0xff]
  %v1669 = vld [vmem:[%s1606 + $0x1f0] sm:$0xff]
  %v1670 = vld [vmem:[%s1606 + $0x1f8] sm:$0xff]
  %v1671 = vld [vmem:[%s1606 + $0x200] sm:$0xff]
  %v1672 = vld [vmem:[%s1606 + $0x208] sm:$0xff]
  %v1673 = vld [vmem:[%s1606 + $0x210] sm:$0xff]
  %v1674 = vld [vmem:[%s1606 + $0x218] sm:$0xff]
  %v1675 = vld [vmem:[%s1606 + $0x220] sm:$0xff]
  %v1676 = vld [vmem:[%s1606 + $0x228] sm:$0xff]
  %v1677 = vld [vmem:[%s1606 + $0x230] sm:$0xff]
  %v1678 = vld [vmem:[%s1606 + $0x238] sm:$0xff]
  %v1679 = vld [vmem:[%s1606 + $0x240] sm:$0xff]
  %v1680 = vld [vmem:[%s1606 + $0x248] sm:$0xff]
  %v1681 = vld [vmem:[%s1606 + $0x250] sm:$0xff]
  %v1682 = vld [vmem:[%s1606 + $0x258] sm:$0xff]
  %v1683 = vld [vmem:[%s1606 + $0x260] sm:$0xff]
  %v1684 = vld [vmem:[%s1606 + $0x268] sm:$0xff]
  %v1685 = vld [vmem:[%s1606 + $0x270] sm:$0xff]
  %v1686 = vld [vmem:[%s1606 + $0x278] sm:$0xff]
  %v1687 = vld [vmem:[%s1606 + $0x280] sm:$0xff]
  %v1688 = vld [vmem:[%s1606 + $0x288] sm:$0xff]
  %v1689 = vld [vmem:[%s1606 + $0x290] sm:$0xff]
  %v1690 = vld [vmem:[%s1606 + $0x298] sm:$0xff]
  %v1691 = vld [vmem:[%s1606 + $0x2a0] sm:$0xff]
  %v1692 = vld [vmem:[%s1606 + $0x2a8] sm:$0xff]
  %v1693 = vld [vmem:[%s1606 + $0x2b0] sm:$0xff]
  %v1694 = vld [vmem:[%s1606 + $0x2b8] sm:$0xff]
  %v1695 = vld [vmem:[%s1606 + $0x2c0] sm:$0xff]
  %v1696 = vld [vmem:[%s1606 + $0x2c8] sm:$0xff]
  %v1697 = vld [vmem:[%s1606 + $0x2d0] sm:$0xff]
  %v1698 = vld [vmem:[%s1606 + $0x2d8] sm:$0xff]
  %v1699 = vld [vmem:[%s1606 + $0x2e0] sm:$0xff]
  %v1700 = vld [vmem:[%s1606 + $0x2e8] sm:$0xff]
  %v1701 = vld [vmem:[%s1606 + $0x2f0] sm:$0xff]
  %v1702 = vld [vmem:[%s1606 + $0x2f8] sm:$0xff]
  %v1703 = vld [vmem:[%s1606 + $0x300] sm:$0xff]
  %v1704 = vld [vmem:[%s1606 + $0x308] sm:$0xff]
  %v1705 = vld [vmem:[%s1606 + $0x310] sm:$0xff]
  %v1706 = vld [vmem:[%s1606 + $0x318] sm:$0xff]
  %v1707 = vld [vmem:[%s1606 + $0x320] sm:$0xff]
  %v1708 = vld [vmem:[%s1606 + $0x328] sm:$0xff]
  %v1709 = vld [vmem:[%s1606 + $0x330] sm:$0xff]
  %v1710 = vld [vmem:[%s1606 + $0x338] sm:$0xff]
  %v1711 = vld [vmem:[%s1606 + $0x340] sm:$0xff]
  %v1712 = vld [vmem:[%s1606 + $0x348] sm:$0xff]
  %v1713 = vld [vmem:[%s1606 + $0x350] sm:$0xff]
  %v1714 = vld [vmem:[%s1606 + $0x358] sm:$0xff]
  %v1715 = vld [vmem:[%s1606 + $0x360] sm:$0xff]
  %v1716 = vld [vmem:[%s1606 + $0x368] sm:$0xff]
  %v1717 = vld [vmem:[%s1606 + $0x370] sm:$0xff]
  %v1718 = vld [vmem:[%s1606 + $0x378] sm:$0xff]
  %v1719 = vld [vmem:[%s1606 + $0x380] sm:$0xff]
  %v1720 = vld [vmem:[%s1606 + $0x388] sm:$0xff]
  %v1721 = vld [vmem:[%s1606 + $0x390] sm:$0xff]
  %v1722 = vld [vmem:[%s1606 + $0x398] sm:$0xff]
  %v1723 = vld [vmem:[%s1606 + $0x3a0] sm:$0xff]
  %v1724 = vld [vmem:[%s1606 + $0x3a8] sm:$0xff]
  %v1725 = vld [vmem:[%s1606 + $0x3b0] sm:$0xff]
  %v1726 = vld [vmem:[%s1606 + $0x3b8] sm:$0xff]
  %v1727 = vld [vmem:[%s1606 + $0x3c0] sm:$0xff]
  %v1728 = vld [vmem:[%s1606 + $0x3c8] sm:$0xff]
  %v1729 = vld [vmem:[%s1606 + $0x3d0] sm:$0xff]
  %v1730 = vld [vmem:[%s1606 + $0x3d8] sm:$0xff]
  %v1731 = vld [vmem:[%s1606 + $0x3e0] sm:$0xff]
  %v1732 = vld [vmem:[%s1606 + $0x3e8] sm:$0xff]
  %v1733 = vld [vmem:[%s1606 + $0x3f0] sm:$0xff]
  %v1734 = vld [vmem:[%s1606 + $0x3f8] sm:$0xff]
  %v1863 = vunpack.c.l.b16 %v1607
  %v1864 = vunpack.c.h.b16 %v1607
  %v1865 = vunpack.c.l.b16 %v1608
  %v1866 = vunpack.c.h.b16 %v1608
  %v1867 = vunpack.c.l.b16 %v1609
  %v1868 = vunpack.c.h.b16 %v1609
  %v1869 = vunpack.c.l.b16 %v1610
  %v1870 = vunpack.c.h.b16 %v1610
  %v1871 = vunpack.c.l.b16 %v1611
  %v1872 = vunpack.c.h.b16 %v1611
  %v1873 = vunpack.c.l.b16 %v1612
  %v1874 = vunpack.c.h.b16 %v1612
  %v1875 = vunpack.c.l.b16 %v1613
  %v1876 = vunpack.c.h.b16 %v1613
  %v1877 = vunpack.c.l.b16 %v1614
  %v1878 = vunpack.c.h.b16 %v1614
  %v1879 = vunpack.c.l.b16 %v1615
  %v1880 = vunpack.c.h.b16 %v1615
  %v1881 = vunpack.c.l.b16 %v1616
  %v1882 = vunpack.c.h.b16 %v1616
  %v1883 = vunpack.c.l.b16 %v1617
  %v1884 = vunpack.c.h.b16 %v1617
  %v1885 = vunpack.c.l.b16 %v1618
  %v1886 = vunpack.c.h.b16 %v1618
  %v1887 = vunpack.c.l.b16 %v1619
  %v1888 = vunpack.c.h.b16 %v1619
  %v1889 = vunpack.c.l.b16 %v1620
  %v1890 = vunpack.c.h.b16 %v1620
  %v1891 = vunpack.c.l.b16 %v1621
  %v1892 = vunpack.c.h.b16 %v1621
  %v1893 = vunpack.c.l.b16 %v1622
  %v1894 = vunpack.c.h.b16 %v1622
  %v1895 = vunpack.c.l.b16 %v1623
  %v1896 = vunpack.c.h.b16 %v1623
  %v1897 = vunpack.c.l.b16 %v1624
  %v1898 = vunpack.c.h.b16 %v1624
  %v1899 = vunpack.c.l.b16 %v1625
  %v1900 = vunpack.c.h.b16 %v1625
  %v1901 = vunpack.c.l.b16 %v1626
  %v1902 = vunpack.c.h.b16 %v1626
  %v1903 = vunpack.c.l.b16 %v1627
  %v1904 = vunpack.c.h.b16 %v1627
  %v1905 = vunpack.c.l.b16 %v1628
  %v1906 = vunpack.c.h.b16 %v1628
  %v1907 = vunpack.c.l.b16 %v1629
  %v1908 = vunpack.c.h.b16 %v1629
  %v1909 = vunpack.c.l.b16 %v1630
  %v1910 = vunpack.c.h.b16 %v1630
  %v1911 = vunpack.c.l.b16 %v1631
  %v1912 = vunpack.c.h.b16 %v1631
  %v1913 = vunpack.c.l.b16 %v1632
  %v1914 = vunpack.c.h.b16 %v1632
  %v1915 = vunpack.c.l.b16 %v1633
  %v1916 = vunpack.c.h.b16 %v1633
  %v1917 = vunpack.c.l.b16 %v1634
  %v1918 = vunpack.c.h.b16 %v1634
  %v1919 = vunpack.c.l.b16 %v1635
  %v1920 = vunpack.c.h.b16 %v1635
  %v1921 = vunpack.c.l.b16 %v1636
  %v1922 = vunpack.c.h.b16 %v1636
  %v1923 = vunpack.c.l.b16 %v1637
  %v1924 = vunpack.c.h.b16 %v1637
  %v1925 = vunpack.c.l.b16 %v1638
  %v1926 = vunpack.c.h.b16 %v1638
  %v1927 = vunpack.c.l.b16 %v1639
  %v1928 = vunpack.c.h.b16 %v1639
  %v1929 = vunpack.c.l.b16 %v1640
  %v1930 = vunpack.c.h.b16 %v1640
  %v1931 = vunpack.c.l.b16 %v1641
  %v1932 = vunpack.c.h.b16 %v1641
  %v1933 = vunpack.c.l.b16 %v1642
  %v1934 = vunpack.c.h.b16 %v1642
  %v1935 = vunpack.c.l.b16 %v1643
  %v1936 = vunpack.c.h.b16 %v1643
  %v1937 = vunpack.c.l.b16 %v1644
  %v1938 = vunpack.c.h.b16 %v1644
  %v1939 = vunpack.c.l.b16 %v1645
  %v1940 = vunpack.c.h.b16 %v1645
  %v1941 = vunpack.c.l.b16 %v1646
  %v1942 = vunpack.c.h.b16 %v1646
  %v1943 = vunpack.c.l.b16 %v1647
  %v1944 = vunpack.c.h.b16 %v1647
  %v1945 = vunpack.c.l.b16 %v1648
  %v1946 = vunpack.c.h.b16 %v1648
  %v1947 = vunpack.c.l.b16 %v1649
  %v1948 = vunpack.c.h.b16 %v1649
  %v1949 = vunpack.c.l.b16 %v1650
  %v1950 = vunpack.c.h.b16 %v1650
  %v1951 = vunpack.c.l.b16 %v1651
  %v1952 = vunpack.c.h.b16 %v1651
  %v1953 = vunpack.c.l.b16 %v1652
  %v1954 = vunpack.c.h.b16 %v1652
  %v1955 = vunpack.c.l.b16 %v1653
  %v1956 = vunpack.c.h.b16 %v1653
  %v1957 = vunpack.c.l.b16 %v1654
  %v1958 = vunpack.c.h.b16 %v1654
  %v1959 = vunpack.c.l.b16 %v1655
  %v1960 = vunpack.c.h.b16 %v1655
  %v1961 = vunpack.c.l.b16 %v1656
  %v1962 = vunpack.c.h.b16 %v1656
  %v1963 = vunpack.c.l.b16 %v1657
  %v1964 = vunpack.c.h.b16 %v1657
  %v1965 = vunpack.c.l.b16 %v1658
  %v1966 = vunpack.c.h.b16 %v1658
  %v1967 = vunpack.c.l.b16 %v1659
  %v1968 = vunpack.c.h.b16 %v1659
  %v1969 = vunpack.c.l.b16 %v1660
  %v1970 = vunpack.c.h.b16 %v1660
  %v1971 = vunpack.c.l.b16 %v1661
  %v1972 = vunpack.c.h.b16 %v1661
  %v1973 = vunpack.c.l.b16 %v1662
  %v1974 = vunpack.c.h.b16 %v1662
  %v1975 = vunpack.c.l.b16 %v1663
  %v1976 = vunpack.c.h.b16 %v1663
  %v1977 = vunpack.c.l.b16 %v1664
  %v1978 = vunpack.c.h.b16 %v1664
  %v1979 = vunpack.c.l.b16 %v1665
  %v1980 = vunpack.c.h.b16 %v1665
  %v1981 = vunpack.c.l.b16 %v1666
  %v1982 = vunpack.c.h.b16 %v1666
  %v1983 = vunpack.c.l.b16 %v1667
  %v1984 = vunpack.c.h.b16 %v1667
  %v1985 = vunpack.c.l.b16 %v1668
  %v1986 = vunpack.c.h.b16 %v1668
  %v1987 = vunpack.c.l.b16 %v1669
  %v1988 = vunpack.c.h.b16 %v1669
  %v1989 = vunpack.c.l.b16 %v1670
  %v1990 = vunpack.c.h.b16 %v1670
  %v1991 = vunpack.c.l.b16 %v1671
  %v1992 = vunpack.c.h.b16 %v1671
  %v1993 = vunpack.c.l.b16 %v1672
  %v1994 = vunpack.c.h.b16 %v1672
  %v1995 = vunpack.c.l.b16 %v1673
  %v1996 = vunpack.c.h.b16 %v1673
  %v1997 = vunpack.c.l.b16 %v1674
  %v1998 = vunpack.c.h.b16 %v1674
  %v1999 = vunpack.c.l.b16 %v1675
  %v2000 = vunpack.c.h.b16 %v1675
  %v2001 = vunpack.c.l.b16 %v1676
  %v2002 = vunpack.c.h.b16 %v1676
  %v2003 = vunpack.c.l.b16 %v1677
  %v2004 = vunpack.c.h.b16 %v1677
  %v2005 = vunpack.c.l.b16 %v1678
  %v2006 = vunpack.c.h.b16 %v1678
  %v2007 = vunpack.c.l.b16 %v1679
  %v2008 = vunpack.c.h.b16 %v1679
  %v2009 = vunpack.c.l.b16 %v1680
  %v2010 = vunpack.c.h.b16 %v1680
  %v2011 = vunpack.c.l.b16 %v1681
  %v2012 = vunpack.c.h.b16 %v1681
  %v2013 = vunpack.c.l.b16 %v1682
  %v2014 = vunpack.c.h.b16 %v1682
  %v2015 = vunpack.c.l.b16 %v1683
  %v2016 = vunpack.c.h.b16 %v1683
  %v2017 = vunpack.c.l.b16 %v1684
  %v2018 = vunpack.c.h.b16 %v1684
  %v2019 = vunpack.c.l.b16 %v1685
  %v2020 = vunpack.c.h.b16 %v1685
  %v2021 = vunpack.c.l.b16 %v1686
  %v2022 = vunpack.c.h.b16 %v1686
  %v2023 = vunpack.c.l.b16 %v1687
  %v2024 = vunpack.c.h.b16 %v1687
  %v2025 = vunpack.c.l.b16 %v1688
  %v2026 = vunpack.c.h.b16 %v1688
  %v2027 = vunpack.c.l.b16 %v1689
  %v2028 = vunpack.c.h.b16 %v1689
  %v2029 = vunpack.c.l.b16 %v1690
  %v2030 = vunpack.c.h.b16 %v1690
  %v2031 = vunpack.c.l.b16 %v1691
  %v2032 = vunpack.c.h.b16 %v1691
  %v2033 = vunpack.c.l.b16 %v1692
  %v2034 = vunpack.c.h.b16 %v1692
  %v2035 = vunpack.c.l.b16 %v1693
  %v2036 = vunpack.c.h.b16 %v1693
  %v2037 = vunpack.c.l.b16 %v1694
  %v2038 = vunpack.c.h.b16 %v1694
  %v2039 = vunpack.c.l.b16 %v1695
  %v2040 = vunpack.c.h.b16 %v1695
  %v2041 = vunpack.c.l.b16 %v1696
  %v2042 = vunpack.c.h.b16 %v1696
  %v2043 = vunpack.c.l.b16 %v1697
  %v2044 = vunpack.c.h.b16 %v1697
  %v2045 = vunpack.c.l.b16 %v1698
  %v2046 = vunpack.c.h.b16 %v1698
  %v2047 = vunpack.c.l.b16 %v1699
  %v2048 = vunpack.c.h.b16 %v1699
  %v2049 = vunpack.c.l.b16 %v1700
  %v2050 = vunpack.c.h.b16 %v1700
  %v2051 = vunpack.c.l.b16 %v1701
  %v2052 = vunpack.c.h.b16 %v1701
  %v2053 = vunpack.c.l.b16 %v1702
  %v2054 = vunpack.c.h.b16 %v1702
  %v2055 = vunpack.c.l.b16 %v1703
  %v2056 = vunpack.c.h.b16 %v1703
  %v2057 = vunpack.c.l.b16 %v1704
  %v2058 = vunpack.c.h.b16 %v1704
  %v2059 = vunpack.c.l.b16 %v1705
  %v2060 = vunpack.c.h.b16 %v1705
  %v2061 = vunpack.c.l.b16 %v1706
  %v2062 = vunpack.c.h.b16 %v1706
  %v2063 = vunpack.c.l.b16 %v1707
  %v2064 = vunpack.c.h.b16 %v1707
  %v2065 = vunpack.c.l.b16 %v1708
  %v2066 = vunpack.c.h.b16 %v1708
  %v2067 = vunpack.c.l.b16 %v1709
  %v2068 = vunpack.c.h.b16 %v1709
  %v2069 = vunpack.c.l.b16 %v1710
  %v2070 = vunpack.c.h.b16 %v1710
  %v2071 = vunpack.c.l.b16 %v1711
  %v2072 = vunpack.c.h.b16 %v1711
  %v2073 = vunpack.c.l.b16 %v1712
  %v2074 = vunpack.c.h.b16 %v1712
  %v2075 = vunpack.c.l.b16 %v1713
  %v2076 = vunpack.c.h.b16 %v1713
  %v2077 = vunpack.c.l.b16 %v1714
  %v2078 = vunpack.c.h.b16 %v1714
  %v2079 = vunpack.c.l.b16 %v1715
  %v2080 = vunpack.c.h.b16 %v1715
  %v2081 = vunpack.c.l.b16 %v1716
  %v2082 = vunpack.c.h.b16 %v1716
  %v2083 = vunpack.c.l.b16 %v1717
  %v2084 = vunpack.c.h.b16 %v1717
  %v2085 = vunpack.c.l.b16 %v1718
  %v2086 = vunpack.c.h.b16 %v1718
  %v2087 = vunpack.c.l.b16 %v1719
  %v2088 = vunpack.c.h.b16 %v1719
  %v2089 = vunpack.c.l.b16 %v1720
  %v2090 = vunpack.c.h.b16 %v1720
  %v2091 = vunpack.c.l.b16 %v1721
  %v2092 = vunpack.c.h.b16 %v1721
  %v2093 = vunpack.c.l.b16 %v1722
  %v2094 = vunpack.c.h.b16 %v1722
  %v2095 = vunpack.c.l.b16 %v1723
  %v2096 = vunpack.c.h.b16 %v1723
  %v2097 = vunpack.c.l.b16 %v1724
  %v2098 = vunpack.c.h.b16 %v1724
  %v2099 = vunpack.c.l.b16 %v1725
  %v2100 = vunpack.c.h.b16 %v1725
  %v2101 = vunpack.c.l.b16 %v1726
  %v2102 = vunpack.c.h.b16 %v1726
  %v2103 = vunpack.c.l.b16 %v1727
  %v2104 = vunpack.c.h.b16 %v1727
  %v2105 = vunpack.c.l.b16 %v1728
  %v2106 = vunpack.c.h.b16 %v1728
  %v2107 = vunpack.c.l.b16 %v1729
  %v2108 = vunpack.c.h.b16 %v1729
  %v2109 = vunpack.c.l.b16 %v1730
  %v2110 = vunpack.c.h.b16 %v1730
  %v2111 = vunpack.c.l.b16 %v1731
  %v2112 = vunpack.c.h.b16 %v1731
  %v2113 = vunpack.c.l.b16 %v1732
  %v2114 = vunpack.c.h.b16 %v1732
  %v2115 = vunpack.c.l.b16 %v1733
  %v2116 = vunpack.c.h.b16 %v1733
  %v2117 = vunpack.c.l.b16 %v1734
  %v2118 = vunpack.c.h.b16 %v1734
  %v2119 = vpack.c.b16 %v1867, %v1863
  %v2120 = vpack.c.b16 %v1868, %v1864
  %v2121 = vpack.c.b16 %v1869, %v1865
  %v2122 = vpack.c.b16 %v1870, %v1866
  %v2123 = vpack.c.b16 %v1875, %v1871
  %v2124 = vpack.c.b16 %v1876, %v1872
  %v2125 = vpack.c.b16 %v1877, %v1873
  %v2126 = vpack.c.b16 %v1878, %v1874
  %v2127 = vpack.c.b16 %v1883, %v1879
  %v2128 = vpack.c.b16 %v1884, %v1880
  %v2129 = vpack.c.b16 %v1885, %v1881
  %v2130 = vpack.c.b16 %v1886, %v1882
  %v2131 = vpack.c.b16 %v1891, %v1887
  %v2132 = vpack.c.b16 %v1892, %v1888
  %v2133 = vpack.c.b16 %v1893, %v1889
  %v2134 = vpack.c.b16 %v1894, %v1890
  %v2135 = vpack.c.b16 %v1899, %v1895
  %v2136 = vpack.c.b16 %v1900, %v1896
  %v2137 = vpack.c.b16 %v1901, %v1897
  %v2138 = vpack.c.b16 %v1902, %v1898
  %v2139 = vpack.c.b16 %v1907, %v1903
  %v2140 = vpack.c.b16 %v1908, %v1904
  %v2141 = vpack.c.b16 %v1909, %v1905
  %v2142 = vpack.c.b16 %v1910, %v1906
  %v2143 = vpack.c.b16 %v1915, %v1911
  %v2144 = vpack.c.b16 %v1916, %v1912
  %v2145 = vpack.c.b16 %v1917, %v1913
  %v2146 = vpack.c.b16 %v1918, %v1914
  %v2147 = vpack.c.b16 %v1923, %v1919
  %v2148 = vpack.c.b16 %v1924, %v1920
  %v2149 = vpack.c.b16 %v1925, %v1921
  %v2150 = vpack.c.b16 %v1926, %v1922
  %v2151 = vpack.c.b16 %v1931, %v1927
  %v2152 = vpack.c.b16 %v1932, %v1928
  %v2153 = vpack.c.b16 %v1933, %v1929
  %v2154 = vpack.c.b16 %v1934, %v1930
  %v2155 = vpack.c.b16 %v1939, %v1935
  %v2156 = vpack.c.b16 %v1940, %v1936
  %v2157 = vpack.c.b16 %v1941, %v1937
  %v2158 = vpack.c.b16 %v1942, %v1938
  %v2159 = vpack.c.b16 %v1947, %v1943
  %v2160 = vpack.c.b16 %v1948, %v1944
  %v2161 = vpack.c.b16 %v1949, %v1945
  %v2162 = vpack.c.b16 %v1950, %v1946
  %v2163 = vpack.c.b16 %v1955, %v1951
  %v2164 = vpack.c.b16 %v1956, %v1952
  %v2165 = vpack.c.b16 %v1957, %v1953
  %v2166 = vpack.c.b16 %v1958, %v1954
  %v2167 = vpack.c.b16 %v1963, %v1959
  %v2168 = vpack.c.b16 %v1964, %v1960
  %v2169 = vpack.c.b16 %v1965, %v1961
  %v2170 = vpack.c.b16 %v1966, %v1962
  %v2171 = vpack.c.b16 %v1971, %v1967
  %v2172 = vpack.c.b16 %v1972, %v1968
  %v2173 = vpack.c.b16 %v1973, %v1969
  %v2174 = vpack.c.b16 %v1974, %v1970
  %v2175 = vpack.c.b16 %v1979, %v1975
  %v2176 = vpack.c.b16 %v1980, %v1976
  %v2177 = vpack.c.b16 %v1981, %v1977
  %v2178 = vpack.c.b16 %v1982, %v1978
  %v2179 = vpack.c.b16 %v1987, %v1983
  %v2180 = vpack.c.b16 %v1988, %v1984
  %v2181 = vpack.c.b16 %v1989, %v1985
  %v2182 = vpack.c.b16 %v1990, %v1986
  %v2183 = vpack.c.b16 %v1995, %v1991
  %v2184 = vpack.c.b16 %v1996, %v1992
  %v2185 = vpack.c.b16 %v1997, %v1993
  %v2186 = vpack.c.b16 %v1998, %v1994
  %v2187 = vpack.c.b16 %v2003, %v1999
  %v2188 = vpack.c.b16 %v2004, %v2000
  %v2189 = vpack.c.b16 %v2005, %v2001
  %v2190 = vpack.c.b16 %v2006, %v2002
  %v2191 = vpack.c.b16 %v2011, %v2007
  %v2192 = vpack.c.b16 %v2012, %v2008
  %v2193 = vpack.c.b16 %v2013, %v2009
  %v2194 = vpack.c.b16 %v2014, %v2010
  %v2195 = vpack.c.b16 %v2019, %v2015
  %v2196 = vpack.c.b16 %v2020, %v2016
  %v2197 = vpack.c.b16 %v2021, %v2017
  %v2198 = vpack.c.b16 %v2022, %v2018
  %v2199 = vpack.c.b16 %v2027, %v2023
  %v2200 = vpack.c.b16 %v2028, %v2024
  %v2201 = vpack.c.b16 %v2029, %v2025
  %v2202 = vpack.c.b16 %v2030, %v2026
  %v2203 = vpack.c.b16 %v2035, %v2031
  %v2204 = vpack.c.b16 %v2036, %v2032
  %v2205 = vpack.c.b16 %v2037, %v2033
  %v2206 = vpack.c.b16 %v2038, %v2034
  %v2207 = vpack.c.b16 %v2043, %v2039
  %v2208 = vpack.c.b16 %v2044, %v2040
  %v2209 = vpack.c.b16 %v2045, %v2041
  %v2210 = vpack.c.b16 %v2046, %v2042
  %v2211 = vpack.c.b16 %v2051, %v2047
  %v2212 = vpack.c.b16 %v2052, %v2048
  %v2213 = vpack.c.b16 %v2053, %v2049
  %v2214 = vpack.c.b16 %v2054, %v2050
  %v2215 = vpack.c.b16 %v2059, %v2055
  %v2216 = vpack.c.b16 %v2060, %v2056
  %v2217 = vpack.c.b16 %v2061, %v2057
  %v2218 = vpack.c.b16 %v2062, %v2058
  %v2219 = vpack.c.b16 %v2067, %v2063
  %v2220 = vpack.c.b16 %v2068, %v2064
  %v2221 = vpack.c.b16 %v2069, %v2065
  %v2222 = vpack.c.b16 %v2070, %v2066
  %v2223 = vpack.c.b16 %v2075, %v2071
  %v2224 = vpack.c.b16 %v2076, %v2072
  %v2225 = vpack.c.b16 %v2077, %v2073
  %v2226 = vpack.c.b16 %v2078, %v2074
  %v2227 = vpack.c.b16 %v2083, %v2079
  %v2228 = vpack.c.b16 %v2084, %v2080
  %v2229 = vpack.c.b16 %v2085, %v2081
  %v2230 = vpack.c.b16 %v2086, %v2082
  %v2231 = vpack.c.b16 %v2091, %v2087
  %v2232 = vpack.c.b16 %v2092, %v2088
  %v2233 = vpack.c.b16 %v2093, %v2089
  %v2234 = vpack.c.b16 %v2094, %v2090
  %v2235 = vpack.c.b16 %v2099, %v2095
  %v2236 = vpack.c.b16 %v2100, %v2096
  %v2237 = vpack.c.b16 %v2101, %v2097
  %v2238 = vpack.c.b16 %v2102, %v2098
  %v2239 = vpack.c.b16 %v2107, %v2103
  %v2240 = vpack.c.b16 %v2108, %v2104
  %v2241 = vpack.c.b16 %v2109, %v2105
  %v2242 = vpack.c.b16 %v2110, %v2106
  %v2243 = vpack.c.b16 %v2115, %v2111
  %v2244 = vpack.c.b16 %v2116, %v2112
  %v2245 = vpack.c.b16 %v2117, %v2113
  %v2246 = vpack.c.b16 %v2118, %v2114
  %2375 = vmatprep.subr.bf16.mxu0 %v2120
  %2376 = vmatpush1.bf16.msra.mxu0 %v2119
  %2377 = vmatprep.subr.bf16.mxu0 %v2124
  %2378 = vmatpush1.bf16.msra.mxu0 %v2123
  %2379 = vmatprep.subr.bf16.mxu0 %v2128
  %2380 = vmatpush1.bf16.msra.mxu0 %v2127
  %2381 = vmatprep.subr.bf16.mxu0 %v2132
  %2382 = vmatpush1.bf16.msra.mxu0 %v2131
  %2383 = vmatprep.subr.bf16.mxu0 %v2136
  %2384 = vmatpush1.bf16.msra.mxu0 %v2135
  %2385 = vmatprep.subr.bf16.mxu0 %v2140
  %2386 = vmatpush1.bf16.msra.mxu0 %v2139
  %2387 = vmatprep.subr.bf16.mxu0 %v2144
  %2388 = vmatpush1.bf16.msra.mxu0 %v2143
  %2389 = vmatprep.subr.bf16.mxu0 %v2148
  %2390 = vmatpush1.bf16.msra.mxu0 %v2147
  %2391 = vmatprep.subr.bf16.mxu0 %v2152
  %2392 = vmatpush1.bf16.msra.mxu0 %v2151
  %2393 = vmatprep.subr.bf16.mxu0 %v2156
  %2394 = vmatpush1.bf16.msra.mxu0 %v2155
  %2395 = vmatprep.subr.bf16.mxu0 %v2160
  %2396 = vmatpush1.bf16.msra.mxu0 %v2159
  %2397 = vmatprep.subr.bf16.mxu0 %v2164
  %2398 = vmatpush1.bf16.msra.mxu0 %v2163
  %2399 = vmatprep.subr.bf16.mxu0 %v2168
  %2400 = vmatpush1.bf16.msra.mxu0 %v2167
  %2401 = vmatprep.subr.bf16.mxu0 %v2172
  %2402 = vmatpush1.bf16.msra.mxu0 %v2171
  %2403 = vmatprep.subr.bf16.mxu0 %v2176
  %2404 = vmatpush1.bf16.msra.mxu0 %v2175
  %2405 = vmatprep.subr.bf16.mxu0 %v2180
  %2406 = vmatpush1.bf16.msra.mxu0 %v2179
  %2407 = vmatprep.mubr.bf16.mxu0 %v1599
  %2408 = vmatmul.mubr.bf16.gmra.mrb[0].mxu0 %v1598
  %v2409 = vpop.f32.mrb[0].mxu0
  %v2410 = vadd.f32 0.0, %v2409
  %v2411 = vpop.f32.mrb[0].mxu0
  %v2412 = vadd.f32 0.0, %v2411
  %v2413 = vpop.f32.mrb[0].mxu0
  %v2414 = vadd.f32 0.0, %v2413
  %v2415 = vpop.f32.mrb[0].mxu0
  %v2416 = vadd.f32 0.0, %v2415
  %2417 = vmatprep.mubr.bf16.mxu0 %v1603
  %2418 = vmatmul.mubr.bf16.gmra.mrb[0].mxu0 %v1602
  %v2419 = vpop.f32.mrb[0].mxu0
  %v2420 = vadd.f32 0.0, %v2419
  %v2421 = vpop.f32.mrb[0].mxu0
  %v2422 = vadd.f32 0.0, %v2421
  %v2423 = vpop.f32.mrb[0].mxu0
  %v2424 = vadd.f32 0.0, %v2423
  %v2425 = vpop.f32.mrb[0].mxu0
  %v2426 = vadd.f32 0.0, %v2425
  %2427 = vdwg.mxu0
  %2428 = vmatprep.subr.bf16.mxu0 %v2184
  %2429 = vmatpush1.bf16.msra.mxu0 %v2183
  %2430 = vmatprep.subr.bf16.mxu0 %v2188
  %2431 = vmatpush1.bf16.msra.mxu0 %v2187
  %2432 = vmatprep.subr.bf16.mxu0 %v2192
  %2433 = vmatpush1.bf16.msra.mxu0 %v2191
  %2434 = vmatprep.subr.bf16.mxu0 %v2196
  %2435 = vmatpush1.bf16.msra.mxu0 %v2195
  %2436 = vmatprep.subr.bf16.mxu0 %v2200
  %2437 = vmatpush1.bf16.msra.mxu0 %v2199
  %2438 = vmatprep.subr.bf16.mxu0 %v2204
  %2439 = vmatpush1.bf16.msra.mxu0 %v2203
  %2440 = vmatprep.subr.bf16.mxu0 %v2208
  %2441 = vmatpush1.bf16.msra.mxu0 %v2207
  %2442 = vmatprep.subr.bf16.mxu0 %v2212
  %2443 = vmatpush1.bf16.msra.mxu0 %v2211
  %2444 = vmatprep.subr.bf16.mxu0 %v2216
  %2445 = vmatpush1.bf16.msra.mxu0 %v2215
  %2446 = vmatprep.subr.bf16.mxu0 %v2220
  %2447 = vmatpush1.bf16.msra.mxu0 %v2219
  %2448 = vmatprep.subr.bf16.mxu0 %v2224
  %2449 = vmatpush1.bf16.msra.mxu0 %v2223
  %2450 = vmatprep.subr.bf16.mxu0 %v2228
  %2451 = vmatpush1.bf16.msra.mxu0 %v2227
  %2452 = vmatprep.subr.bf16.mxu0 %v2232
  %2453 = vmatpush1.bf16.msra.mxu0 %v2231
  %2454 = vmatprep.subr.bf16.mxu0 %v2236
  %2455 = vmatpush1.bf16.msra.mxu0 %v2235
  %2456 = vmatprep.subr.bf16.mxu0 %v2240
  %2457 = vmatpush1.bf16.msra.mxu0 %v2239
  %2458 = vmatprep.subr.bf16.mxu0 %v2244
  %2459 = vmatpush1.bf16.msra.mxu0 %v2243
  %2460 = vmatprep.mubr.bf16.mxu0 %v1601
  %2461 = vmatmul.mubr.bf16.gmra.mrb[0].mxu0 %v1600
  %v2462 = vpop.f32.mrb[0].mxu0
  %v2463 = vadd.f32 %v2410, %v2462
  %v2464 = vpop.f32.mrb[0].mxu0
  %v2465 = vadd.f32 %v2412, %v2464
  %v2466 = vpop.f32.mrb[0].mxu0
  %v2467 = vadd.f32 %v2414, %v2466
  %v2468 = vpop.f32.mrb[0].mxu0
  %v2469 = vadd.f32 %v2416, %v2468
  %2470 = vmatprep.mubr.bf16.mxu0 %v1605
  %2471 = vmatmul.mubr.bf16.gmra.mrb[0].mxu0 %v1604
  %v2472 = vpop.f32.mrb[0].mxu0
  %v2473 = vadd.f32 %v2420, %v2472
  %v2474 = vpop.f32.mrb[0].mxu0
  %v2475 = vadd.f32 %v2422, %v2474
  %v2476 = vpop.f32.mrb[0].mxu0
  %v2477 = vadd.f32 %v2424, %v2476
  %v2478 = vpop.f32.mrb[0].mxu0
  %v2479 = vadd.f32 %v2426, %v2478
  %2480 = vdwg.mxu0
  %2481 = vmatprep.subr.bf16.mxu0 %v2122
  %2482 = vmatpush1.bf16.msra.mxu0 %v2121
  %2483 = vmatprep.subr.bf16.mxu0 %v2126
  %2484 = vmatpush1.bf16.msra.mxu0 %v2125
  %2485 = vmatprep.subr.bf16.mxu0 %v2130
  %2486 = vmatpush1.bf16.msra.mxu0 %v2129
  %2487 = vmatprep.subr.bf16.mxu0 %v2134
  %2488 = vmatpush1.bf16.msra.mxu0 %v2133
  %2489 = vmatprep.subr.bf16.mxu0 %v2138
  %2490 = vmatpush1.bf16.msra.mxu0 %v2137
  %2491 = vmatprep.subr.bf16.mxu0 %v2142
  %2492 = vmatpush1.bf16.msra.mxu0 %v2141
  %2493 = vmatprep.subr.bf16.mxu0 %v2146
  %2494 = vmatpush1.bf16.msra.mxu0 %v2145
  %2495 = vmatprep.subr.bf16.mxu0 %v2150
  %2496 = vmatpush1.bf16.msra.mxu0 %v2149
  %2497 = vmatprep.subr.bf16.mxu0 %v2154
  %2498 = vmatpush1.bf16.msra.mxu0 %v2153
  %2499 = vmatprep.subr.bf16.mxu0 %v2158
  %2500 = vmatpush1.bf16.msra.mxu0 %v2157
  %2501 = vmatprep.subr.bf16.mxu0 %v2162
  %2502 = vmatpush1.bf16.msra.mxu0 %v2161
  %2503 = vmatprep.subr.bf16.mxu0 %v2166
  %2504 = vmatpush1.bf16.msra.mxu0 %v2165
  %2505 = vmatprep.subr.bf16.mxu0 %v2170
  %2506 = vmatpush1.bf16.msra.mxu0 %v2169
  %2507 = vmatprep.subr.bf16.mxu0 %v2174
  %2508 = vmatpush1.bf16.msra.mxu0 %v2173
  %2509 = vmatprep.subr.bf16.mxu0 %v2178
  %2510 = vmatpush1.bf16.msra.mxu0 %v2177
  %2511 = vmatprep.subr.bf16.mxu0 %v2182
  %2512 = vmatpush1.bf16.msra.mxu0 %v2181
  %2513 = vmatprep.mubr.bf16.mxu0 %v1599
  %2514 = vmatmul.mubr.bf16.gmra.mrb[0].mxu0 %v1598
  %v2515 = vpop.f32.mrb[0].mxu0
  %v2516 = vadd.f32 0.0, %v2515
  %v2517 = vpop.f32.mrb[0].mxu0
  %v2518 = vadd.f32 0.0, %v2517
  %v2519 = vpop.f32.mrb[0].mxu0
  %v2520 = vadd.f32 0.0, %v2519
  %v2521 = vpop.f32.mrb[0].mxu0
  %v2522 = vadd.f32 0.0, %v2521
  %2523 = vmatprep.mubr.bf16.mxu0 %v1603
  %2524 = vmatmul.mubr.bf16.gmra.mrb[0].mxu0 %v1602
  %v2525 = vpop.f32.mrb[0].mxu0
  %v2526 = vadd.f32 0.0, %v2525
  %v2527 = vpop.f32.mrb[0].mxu0
  %v2528 = vadd.f32 0.0, %v2527
  %v2529 = vpop.f32.mrb[0].mxu0
  %v2530 = vadd.f32 0.0, %v2529
  %v2531 = vpop.f32.mrb[0].mxu0
  %v2532 = vadd.f32 0.0, %v2531
  %2533 = vdwg.mxu0
  %2534 = vmatprep.subr.bf16.mxu0 %v2186
  %2535 = vmatpush1.bf16.msra.mxu0 %v2185
  %2536 = vmatprep.subr.bf16.mxu0 %v2190
  %2537 = vmatpush1.bf16.msra.mxu0 %v2189
  %2538 = vmatprep.subr.bf16.mxu0 %v2194
  %2539 = vmatpush1.bf16.msra.mxu0 %v2193
  %2540 = vmatprep.subr.bf16.mxu0 %v2198
  %2541 = vmatpush1.bf16.msra.mxu0 %v2197
  %2542 = vmatprep.subr.bf16.mxu0 %v2202
  %2543 = vmatpush1.bf16.msra.mxu0 %v2201
  %2544 = vmatprep.subr.bf16.mxu0 %v2206
  %2545 = vmatpush1.bf16.msra.mxu0 %v2205
  %2546 = vmatprep.subr.bf16.mxu0 %v2210
  %2547 = vmatpush1.bf16.msra.mxu0 %v2209
  %2548 = vmatprep.subr.bf16.mxu0 %v2214
  %2549 = vmatpush1.bf16.msra.mxu0 %v2213
  %2550 = vmatprep.subr.bf16.mxu0 %v2218
  %2551 = vmatpush1.bf16.msra.mxu0 %v2217
  %2552 = vmatprep.subr.bf16.mxu0 %v2222
  %2553 = vmatpush1.bf16.msra.mxu0 %v2221
  %2554 = vmatprep.subr.bf16.mxu0 %v2226
  %2555 = vmatpush1.bf16.msra.mxu0 %v2225
  %2556 = vmatprep.subr.bf16.mxu0 %v2230
  %2557 = vmatpush1.bf16.msra.mxu0 %v2229
  %2558 = vmatprep.subr.bf16.mxu0 %v2234
  %2559 = vmatpush1.bf16.msra.mxu0 %v2233
  %2560 = vmatprep.subr.bf16.mxu0 %v2238
  %2561 = vmatpush1.bf16.msra.mxu0 %v2237
  %2562 = vmatprep.subr.bf16.mxu0 %v2242
  %2563 = vmatpush1.bf16.msra.mxu0 %v2241
  %2564 = vmatprep.subr.bf16.mxu0 %v2246
  %2565 = vmatpush1.bf16.msra.mxu0 %v2245
  %2566 = vmatprep.mubr.bf16.mxu0 %v1601
  %2567 = vmatmul.mubr.bf16.gmra.mrb[0].mxu0 %v1600
  %v2568 = vpop.f32.mrb[0].mxu0
  %v2569 = vadd.f32 %v2516, %v2568
  %v2570 = vpop.f32.mrb[0].mxu0
  %v2571 = vadd.f32 %v2518, %v2570
  %v2572 = vpop.f32.mrb[0].mxu0
  %v2573 = vadd.f32 %v2520, %v2572
  %v2574 = vpop.f32.mrb[0].mxu0
  %v2575 = vadd.f32 %v2522, %v2574
  %2576 = vmatprep.mubr.bf16.mxu0 %v1605
  %2577 = vmatmul.mubr.bf16.gmra.mrb[0].mxu0 %v1604
  %v2578 = vpop.f32.mrb[0].mxu0
  %v2579 = vadd.f32 %v2526, %v2578
  %v2580 = vpop.f32.mrb[0].mxu0
  %v2581 = vadd.f32 %v2528, %v2580
  %v2582 = vpop.f32.mrb[0].mxu0
  %v2583 = vadd.f32 %v2530, %v2582
  %v2584 = vpop.f32.mrb[0].mxu0
  %v2585 = vadd.f32 %v2532, %v2584
  %2586 = vdwg.mxu0
  %v2715 = vunpack.c.l.b16 %v1470
  %v2716 = vunpack.c.h.b16 %v1470
  %v2717 = vunpack.c.l.b16 %v1471
  %v2718 = vunpack.c.h.b16 %v1471
  %v2719 = vunpack.c.l.b16 %v1472
  %v2720 = vunpack.c.h.b16 %v1472
  %v2721 = vunpack.c.l.b16 %v1473
  %v2722 = vunpack.c.h.b16 %v1473
  %v2723 = vunpack.c.l.b16 %v1474
  %v2724 = vunpack.c.h.b16 %v1474
  %v2725 = vunpack.c.l.b16 %v1475
  %v2726 = vunpack.c.h.b16 %v1475
  %v2727 = vunpack.c.l.b16 %v1476
  %v2728 = vunpack.c.h.b16 %v1476
  %v2729 = vunpack.c.l.b16 %v1477
  %v2730 = vunpack.c.h.b16 %v1477
  %v2731 = vunpack.c.l.b16 %v1478
  %v2732 = vunpack.c.h.b16 %v1478
  %v2733 = vunpack.c.l.b16 %v1479
  %v2734 = vunpack.c.h.b16 %v1479
  %v2735 = vunpack.c.l.b16 %v1480
  %v2736 = vunpack.c.h.b16 %v1480
  %v2737 = vunpack.c.l.b16 %v1481
  %v2738 = vunpack.c.h.b16 %v1481
  %v2739 = vunpack.c.l.b16 %v1482
  %v2740 = vunpack.c.h.b16 %v1482
  %v2741 = vunpack.c.l.b16 %v1483
  %v2742 = vunpack.c.h.b16 %v1483
  %v2743 = vunpack.c.l.b16 %v1484
  %v2744 = vunpack.c.h.b16 %v1484
  %v2745 = vunpack.c.l.b16 %v1485
  %v2746 = vunpack.c.h.b16 %v1485
  %v2747 = vunpack.c.l.b16 %v1486
  %v2748 = vunpack.c.h.b16 %v1486
  %v2749 = vunpack.c.l.b16 %v1487
  %v2750 = vunpack.c.h.b16 %v1487
  %v2751 = vunpack.c.l.b16 %v1488
  %v2752 = vunpack.c.h.b16 %v1488
  %v2753 = vunpack.c.l.b16 %v1489
  %v2754 = vunpack.c.h.b16 %v1489
  %v2755 = vunpack.c.l.b16 %v1490
  %v2756 = vunpack.c.h.b16 %v1490
  %v2757 = vunpack.c.l.b16 %v1491
  %v2758 = vunpack.c.h.b16 %v1491
  %v2759 = vunpack.c.l.b16 %v1492
  %v2760 = vunpack.c.h.b16 %v1492
  %v2761 = vunpack.c.l.b16 %v1493
  %v2762 = vunpack.c.h.b16 %v1493
  %v2763 = vunpack.c.l.b16 %v1494
  %v2764 = vunpack.c.h.b16 %v1494
  %v2765 = vunpack.c.l.b16 %v1495
  %v2766 = vunpack.c.h.b16 %v1495
  %v2767 = vunpack.c.l.b16 %v1496
  %v2768 = vunpack.c.h.b16 %v1496
  %v2769 = vunpack.c.l.b16 %v1497
  %v2770 = vunpack.c.h.b16 %v1497
  %v2771 = vunpack.c.l.b16 %v1498
  %v2772 = vunpack.c.h.b16 %v1498
  %v2773 = vunpack.c.l.b16 %v1499
  %v2774 = vunpack.c.h.b16 %v1499
  %v2775 = vunpack.c.l.b16 %v1500
  %v2776 = vunpack.c.h.b16 %v1500
  %v2777 = vunpack.c.l.b16 %v1501
  %v2778 = vunpack.c.h.b16 %v1501
  %v2779 = vunpack.c.l.b16 %v1502
  %v2780 = vunpack.c.h.b16 %v1502
  %v2781 = vunpack.c.l.b16 %v1503
  %v2782 = vunpack.c.h.b16 %v1503
  %v2783 = vunpack.c.l.b16 %v1504
  %v2784 = vunpack.c.h.b16 %v1504
  %v2785 = vunpack.c.l.b16 %v1505
  %v2786 = vunpack.c.h.b16 %v1505
  %v2787 = vunpack.c.l.b16 %v1506
  %v2788 = vunpack.c.h.b16 %v1506
  %v2789 = vunpack.c.l.b16 %v1507
  %v2790 = vunpack.c.h.b16 %v1507
  %v2791 = vunpack.c.l.b16 %v1508
  %v2792 = vunpack.c.h.b16 %v1508
  %v2793 = vunpack.c.l.b16 %v1509
  %v2794 = vunpack.c.h.b16 %v1509
  %v2795 = vunpack.c.l.b16 %v1510
  %v2796 = vunpack.c.h.b16 %v1510
  %v2797 = vunpack.c.l.b16 %v1511
  %v2798 = vunpack.c.h.b16 %v1511
  %v2799 = vunpack.c.l.b16 %v1512
  %v2800 = vunpack.c.h.b16 %v1512
  %v2801 = vunpack.c.l.b16 %v1513
  %v2802 = vunpack.c.h.b16 %v1513
  %v2803 = vunpack.c.l.b16 %v1514
  %v2804 = vunpack.c.h.b16 %v1514
  %v2805 = vunpack.c.l.b16 %v1515
  %v2806 = vunpack.c.h.b16 %v1515
  %v2807 = vunpack.c.l.b16 %v1516
  %v2808 = vunpack.c.h.b16 %v1516
  %v2809 = vunpack.c.l.b16 %v1517
  %v2810 = vunpack.c.h.b16 %v1517
  %v2811 = vunpack.c.l.b16 %v1518
  %v2812 = vunpack.c.h.b16 %v1518
  %v2813 = vunpack.c.l.b16 %v1519
  %v2814 = vunpack.c.h.b16 %v1519
  %v2815 = vunpack.c.l.b16 %v1520
  %v2816 = vunpack.c.h.b16 %v1520
  %v2817 = vunpack.c.l.b16 %v1521
  %v2818 = vunpack.c.h.b16 %v1521
  %v2819 = vunpack.c.l.b16 %v1522
  %v2820 = vunpack.c.h.b16 %v1522
  %v2821 = vunpack.c.l.b16 %v1523
  %v2822 = vunpack.c.h.b16 %v1523
  %v2823 = vunpack.c.l.b16 %v1524
  %v2824 = vunpack.c.h.b16 %v1524
  %v2825 = vunpack.c.l.b16 %v1525
  %v2826 = vunpack.c.h.b16 %v1525
  %v2827 = vunpack.c.l.b16 %v1526
  %v2828 = vunpack.c.h.b16 %v1526
  %v2829 = vunpack.c.l.b16 %v1527
  %v2830 = vunpack.c.h.b16 %v1527
  %v2831 = vunpack.c.l.b16 %v1528
  %v2832 = vunpack.c.h.b16 %v1528
  %v2833 = vunpack.c.l.b16 %v1529
  %v2834 = vunpack.c.h.b16 %v1529
  %v2835 = vunpack.c.l.b16 %v1530
  %v2836 = vunpack.c.h.b16 %v1530
  %v2837 = vunpack.c.l.b16 %v1531
  %v2838 = vunpack.c.h.b16 %v1531
  %v2839 = vunpack.c.l.b16 %v1532
  %v2840 = vunpack.c.h.b16 %v1532
  %v2841 = vunpack.c.l.b16 %v1533
  %v2842 = vunpack.c.h.b16 %v1533
  %v2843 = vunpack.c.l.b16 %v1534
  %v2844 = vunpack.c.h.b16 %v1534
  %v2845 = vunpack.c.l.b16 %v1535
  %v2846 = vunpack.c.h.b16 %v1535
  %v2847 = vunpack.c.l.b16 %v1536
  %v2848 = vunpack.c.h.b16 %v1536
  %v2849 = vunpack.c.l.b16 %v1537
  %v2850 = vunpack.c.h.b16 %v1537
  %v2851 = vunpack.c.l.b16 %v1538
  %v2852 = vunpack.c.h.b16 %v1538
  %v2853 = vunpack.c.l.b16 %v1539
  %v2854 = vunpack.c.h.b16 %v1539
  %v2855 = vunpack.c.l.b16 %v1540
  %v2856 = vunpack.c.h.b16 %v1540
  %v2857 = vunpack.c.l.b16 %v1541
  %v2858 = vunpack.c.h.b16 %v1541
  %v2859 = vunpack.c.l.b16 %v1542
  %v2860 = vunpack.c.h.b16 %v1542
  %v2861 = vunpack.c.l.b16 %v1543
  %v2862 = vunpack.c.h.b16 %v1543
  %v2863 = vunpack.c.l.b16 %v1544
  %v2864 = vunpack.c.h.b16 %v1544
  %v2865 = vunpack.c.l.b16 %v1545
  %v2866 = vunpack.c.h.b16 %v1545
  %v2867 = vunpack.c.l.b16 %v1546
  %v2868 = vunpack.c.h.b16 %v1546
  %v2869 = vunpack.c.l.b16 %v1547
  %v2870 = vunpack.c.h.b16 %v1547
  %v2871 = vunpack.c.l.b16 %v1548
  %v2872 = vunpack.c.h.b16 %v1548
  %v2873 = vunpack.c.l.b16 %v1549
  %v2874 = vunpack.c.h.b16 %v1549
  %v2875 = vunpack.c.l.b16 %v1550
  %v2876 = vunpack.c.h.b16 %v1550
  %v2877 = vunpack.c.l.b16 %v1551
  %v2878 = vunpack.c.h.b16 %v1551
  %v2879 = vunpack.c.l.b16 %v1552
  %v2880 = vunpack.c.h.b16 %v1552
  %v2881 = vunpack.c.l.b16 %v1553
  %v2882 = vunpack.c.h.b16 %v1553
  %v2883 = vunpack.c.l.b16 %v1554
  %v2884 = vunpack.c.h.b16 %v1554
  %v2885 = vunpack.c.l.b16 %v1555
  %v2886 = vunpack.c.h.b16 %v1555
  %v2887 = vunpack.c.l.b16 %v1556
  %v2888 = vunpack.c.h.b16 %v1556
  %v2889 = vunpack.c.l.b16 %v1557
  %v2890 = vunpack.c.h.b16 %v1557
  %v2891 = vunpack.c.l.b16 %v1558
  %v2892 = vunpack.c.h.b16 %v1558
  %v2893 = vunpack.c.l.b16 %v1559
  %v2894 = vunpack.c.h.b16 %v1559
  %v2895 = vunpack.c.l.b16 %v1560
  %v2896 = vunpack.c.h.b16 %v1560
  %v2897 = vunpack.c.l.b16 %v1561
  %v2898 = vunpack.c.h.b16 %v1561
  %v2899 = vunpack.c.l.b16 %v1562
  %v2900 = vunpack.c.h.b16 %v1562
  %v2901 = vunpack.c.l.b16 %v1563
  %v2902 = vunpack.c.h.b16 %v1563
  %v2903 = vunpack.c.l.b16 %v1564
  %v2904 = vunpack.c.h.b16 %v1564
  %v2905 = vunpack.c.l.b16 %v1565
  %v2906 = vunpack.c.h.b16 %v1565
  %v2907 = vunpack.c.l.b16 %v1566
  %v2908 = vunpack.c.h.b16 %v1566
  %v2909 = vunpack.c.l.b16 %v1567
  %v2910 = vunpack.c.h.b16 %v1567
  %v2911 = vunpack.c.l.b16 %v1568
  %v2912 = vunpack.c.h.b16 %v1568
  %v2913 = vunpack.c.l.b16 %v1569
  %v2914 = vunpack.c.h.b16 %v1569
  %v2915 = vunpack.c.l.b16 %v1570
  %v2916 = vunpack.c.h.b16 %v1570
  %v2917 = vunpack.c.l.b16 %v1571
  %v2918 = vunpack.c.h.b16 %v1571
  %v2919 = vunpack.c.l.b16 %v1572
  %v2920 = vunpack.c.h.b16 %v1572
  %v2921 = vunpack.c.l.b16 %v1573
  %v2922 = vunpack.c.h.b16 %v1573
  %v2923 = vunpack.c.l.b16 %v1574
  %v2924 = vunpack.c.h.b16 %v1574
  %v2925 = vunpack.c.l.b16 %v1575
  %v2926 = vunpack.c.h.b16 %v1575
  %v2927 = vunpack.c.l.b16 %v1576
  %v2928 = vunpack.c.h.b16 %v1576
  %v2929 = vunpack.c.l.b16 %v1577
  %v2930 = vunpack.c.h.b16 %v1577
  %v2931 = vunpack.c.l.b16 %v1578
  %v2932 = vunpack.c.h.b16 %v1578
  %v2933 = vunpack.c.l.b16 %v1579
  %v2934 = vunpack.c.h.b16 %v1579
  %v2935 = vunpack.c.l.b16 %v1580
  %v2936 = vunpack.c.h.b16 %v1580
  %v2937 = vunpack.c.l.b16 %v1581
  %v2938 = vunpack.c.h.b16 %v1581
  %v2939 = vunpack.c.l.b16 %v1582
  %v2940 = vunpack.c.h.b16 %v1582
  %v2941 = vunpack.c.l.b16 %v1583
  %v2942 = vunpack.c.h.b16 %v1583
  %v2943 = vunpack.c.l.b16 %v1584
  %v2944 = vunpack.c.h.b16 %v1584
  %v2945 = vunpack.c.l.b16 %v1585
  %v2946 = vunpack.c.h.b16 %v1585
  %v2947 = vunpack.c.l.b16 %v1586
  %v2948 = vunpack.c.h.b16 %v1586
  %v2949 = vunpack.c.l.b16 %v1587
  %v2950 = vunpack.c.h.b16 %v1587
  %v2951 = vunpack.c.l.b16 %v1588
  %v2952 = vunpack.c.h.b16 %v1588
  %v2953 = vunpack.c.l.b16 %v1589
  %v2954 = vunpack.c.h.b16 %v1589
  %v2955 = vunpack.c.l.b16 %v1590
  %v2956 = vunpack.c.h.b16 %v1590
  %v2957 = vunpack.c.l.b16 %v1591
  %v2958 = vunpack.c.h.b16 %v1591
  %v2959 = vunpack.c.l.b16 %v1592
  %v2960 = vunpack.c.h.b16 %v1592
  %v2961 = vunpack.c.l.b16 %v1593
  %v2962 = vunpack.c.h.b16 %v1593
  %v2963 = vunpack.c.l.b16 %v1594
  %v2964 = vunpack.c.h.b16 %v1594
  %v2965 = vunpack.c.l.b16 %v1595
  %v2966 = vunpack.c.h.b16 %v1595
  %v2967 = vunpack.c.l.b16 %v1596
  %v2968 = vunpack.c.h.b16 %v1596
  %v2969 = vunpack.c.l.b16 %v1597
  %v2970 = vunpack.c.h.b16 %v1597
  %v2971 = vpack.c.b16 %v2719, %v2715
  %v2972 = vpack.c.b16 %v2720, %v2716
  %v2973 = vpack.c.b16 %v2721, %v2717
  %v2974 = vpack.c.b16 %v2722, %v2718
  %v2975 = vpack.c.b16 %v2727, %v2723
  %v2976 = vpack.c.b16 %v2728, %v2724
  %v2977 = vpack.c.b16 %v2729, %v2725
  %v2978 = vpack.c.b16 %v2730, %v2726
  %v2979 = vpack.c.b16 %v2735, %v2731
  %v2980 = vpack.c.b16 %v2736, %v2732
  %v2981 = vpack.c.b16 %v2737, %v2733
  %v2982 = vpack.c.b16 %v2738, %v2734
  %v2983 = vpack.c.b16 %v2743, %v2739
  %v2984 = vpack.c.b16 %v2744, %v2740
  %v2985 = vpack.c.b16 %v2745, %v2741
  %v2986 = vpack.c.b16 %v2746, %v2742
  %v2987 = vpack.c.b16 %v2751, %v2747
  %v2988 = vpack.c.b16 %v2752, %v2748
  %v2989 = vpack.c.b16 %v2753, %v2749
  %v2990 = vpack.c.b16 %v2754, %v2750
  %v2991 = vpack.c.b16 %v2759, %v2755
  %v2992 = vpack.c.b16 %v2760, %v2756
  %v2993 = vpack.c.b16 %v2761, %v2757
  %v2994 = vpack.c.b16 %v2762, %v2758
  %v2995 = vpack.c.b16 %v2767, %v2763
  %v2996 = vpack.c.b16 %v2768, %v2764
  %v2997 = vpack.c.b16 %v2769, %v2765
  %v2998 = vpack.c.b16 %v2770, %v2766
  %v2999 = vpack.c.b16 %v2775, %v2771
  %v3000 = vpack.c.b16 %v2776, %v2772
  %v3001 = vpack.c.b16 %v2777, %v2773
  %v3002 = vpack.c.b16 %v2778, %v2774
  %v3003 = vpack.c.b16 %v2783, %v2779
  %v3004 = vpack.c.b16 %v2784, %v2780
  %v3005 = vpack.c.b16 %v2785, %v2781
  %v3006 = vpack.c.b16 %v2786, %v2782
  %v3007 = vpack.c.b16 %v2791, %v2787
  %v3008 = vpack.c.b16 %v2792, %v2788
  %v3009 = vpack.c.b16 %v2793, %v2789
  %v3010 = vpack.c.b16 %v2794, %v2790
  %v3011 = vpack.c.b16 %v2799, %v2795
  %v3012 = vpack.c.b16 %v2800, %v2796
  %v3013 = vpack.c.b16 %v2801, %v2797
  %v3014 = vpack.c.b16 %v2802, %v2798
  %v3015 = vpack.c.b16 %v2807, %v2803
  %v3016 = vpack.c.b16 %v2808, %v2804
  %v3017 = vpack.c.b16 %v2809, %v2805
  %v3018 = vpack.c.b16 %v2810, %v2806
  %v3019 = vpack.c.b16 %v2815, %v2811
  %v3020 = vpack.c.b16 %v2816, %v2812
  %v3021 = vpack.c.b16 %v2817, %v2813
  %v3022 = vpack.c.b16 %v2818, %v2814
  %v3023 = vpack.c.b16 %v2823, %v2819
  %v3024 = vpack.c.b16 %v2824, %v2820
  %v3025 = vpack.c.b16 %v2825, %v2821
  %v3026 = vpack.c.b16 %v2826, %v2822
  %v3027 = vpack.c.b16 %v2831, %v2827
  %v3028 = vpack.c.b16 %v2832, %v2828
  %v3029 = vpack.c.b16 %v2833, %v2829
  %v3030 = vpack.c.b16 %v2834, %v2830
  %v3031 = vpack.c.b16 %v2839, %v2835
  %v3032 = vpack.c.b16 %v2840, %v2836
  %v3033 = vpack.c.b16 %v2841, %v2837
  %v3034 = vpack.c.b16 %v2842, %v2838
  %v3035 = vpack.c.b16 %v2847, %v2843
  %v3036 = vpack.c.b16 %v2848, %v2844
  %v3037 = vpack.c.b16 %v2849, %v2845
  %v3038 = vpack.c.b16 %v2850, %v2846
  %v3039 = vpack.c.b16 %v2855, %v2851
  %v3040 = vpack.c.b16 %v2856, %v2852
  %v3041 = vpack.c.b16 %v2857, %v2853
  %v3042 = vpack.c.b16 %v2858, %v2854
  %v3043 = vpack.c.b16 %v2863, %v2859
  %v3044 = vpack.c.b16 %v2864, %v2860
  %v3045 = vpack.c.b16 %v2865, %v2861
  %v3046 = vpack.c.b16 %v2866, %v2862
  %v3047 = vpack.c.b16 %v2871, %v2867
  %v3048 = vpack.c.b16 %v2872, %v2868
  %v3049 = vpack.c.b16 %v2873, %v2869
  %v3050 = vpack.c.b16 %v2874, %v2870
  %v3051 = vpack.c.b16 %v2879, %v2875
  %v3052 = vpack.c.b16 %v2880, %v2876
  %v3053 = vpack.c.b16 %v2881, %v2877
  %v3054 = vpack.c.b16 %v2882, %v2878
  %v3055 = vpack.c.b16 %v2887, %v2883
  %v3056 = vpack.c.b16 %v2888, %v2884
  %v3057 = vpack.c.b16 %v2889, %v2885
  %v3058 = vpack.c.b16 %v2890, %v2886
  %v3059 = vpack.c.b16 %v2895, %v2891
  %v3060 = vpack.c.b16 %v2896, %v2892
  %v3061 = vpack.c.b16 %v2897, %v2893
  %v3062 = vpack.c.b16 %v2898, %v2894
  %v3063 = vpack.c.b16 %v2903, %v2899
  %v3064 = vpack.c.b16 %v2904, %v2900
  %v3065 = vpack.c.b16 %v2905, %v2901
  %v3066 = vpack.c.b16 %v2906, %v2902
  %v3067 = vpack.c.b16 %v2911, %v2907
  %v3068 = vpack.c.b16 %v2912, %v2908
  %v3069 = vpack.c.b16 %v2913, %v2909
  %v3070 = vpack.c.b16 %v2914, %v2910
  %v3071 = vpack.c.b16 %v2919, %v2915
  %v3072 = vpack.c.b16 %v2920, %v2916
  %v3073 = vpack.c.b16 %v2921, %v2917
  %v3074 = vpack.c.b16 %v2922, %v2918
  %v3075 = vpack.c.b16 %v2927, %v2923
  %v3076 = vpack.c.b16 %v2928, %v2924
  %v3077 = vpack.c.b16 %v2929, %v2925
  %v3078 = vpack.c.b16 %v2930, %v2926
  %v3079 = vpack.c.b16 %v2935, %v2931
  %v3080 = vpack.c.b16 %v2936, %v2932
  %v3081 = vpack.c.b16 %v2937, %v2933
  %v3082 = vpack.c.b16 %v2938, %v2934
  %v3083 = vpack.c.b16 %v2943, %v2939
  %v3084 = vpack.c.b16 %v2944, %v2940
  %v3085 = vpack.c.b16 %v2945, %v2941
  %v3086 = vpack.c.b16 %v2946, %v2942
  %v3087 = vpack.c.b16 %v2951, %v2947
  %v3088 = vpack.c.b16 %v2952, %v2948
  %v3089 = vpack.c.b16 %v2953, %v2949
  %v3090 = vpack.c.b16 %v2954, %v2950
  %v3091 = vpack.c.b16 %v2959, %v2955
  %v3092 = vpack.c.b16 %v2960, %v2956
  %v3093 = vpack.c.b16 %v2961, %v2957
  %v3094 = vpack.c.b16 %v2962, %v2958
  %v3095 = vpack.c.b16 %v2967, %v2963
  %v3096 = vpack.c.b16 %v2968, %v2964
  %v3097 = vpack.c.b16 %v2969, %v2965
  %v3098 = vpack.c.b16 %v2970, %v2966
  %3227 = vmatprep.subr.bf16.mxu0 %v2972
  %3228 = vmatpush1.bf16.msra.mxu0 %v2971
  %3229 = vmatprep.subr.bf16.mxu0 %v2976
  %3230 = vmatpush1.bf16.msra.mxu0 %v2975
  %3231 = vmatprep.subr.bf16.mxu0 %v2980
  %3232 = vmatpush1.bf16.msra.mxu0 %v2979
  %3233 = vmatprep.subr.bf16.mxu0 %v2984
  %3234 = vmatpush1.bf16.msra.mxu0 %v2983
  %3235 = vmatprep.subr.bf16.mxu0 %v2988
  %3236 = vmatpush1.bf16.msra.mxu0 %v2987
  %3237 = vmatprep.subr.bf16.mxu0 %v2992
  %3238 = vmatpush1.bf16.msra.mxu0 %v2991
  %3239 = vmatprep.subr.bf16.mxu0 %v2996
  %3240 = vmatpush1.bf16.msra.mxu0 %v2995
  %3241 = vmatprep.subr.bf16.mxu0 %v3000
  %3242 = vmatpush1.bf16.msra.mxu0 %v2999
  %3243 = vmatprep.subr.bf16.mxu0 %v3004
  %3244 = vmatpush1.bf16.msra.mxu0 %v3003
  %3245 = vmatprep.subr.bf16.mxu0 %v3008
  %3246 = vmatpush1.bf16.msra.mxu0 %v3007
  %3247 = vmatprep.subr.bf16.mxu0 %v3012
  %3248 = vmatpush1.bf16.msra.mxu0 %v3011
  %3249 = vmatprep.subr.bf16.mxu0 %v3016
  %3250 = vmatpush1.bf16.msra.mxu0 %v3015
  %3251 = vmatprep.subr.bf16.mxu0 %v3020
  %3252 = vmatpush1.bf16.msra.mxu0 %v3019
  %3253 = vmatprep.subr.bf16.mxu0 %v3024
  %3254 = vmatpush1.bf16.msra.mxu0 %v3023
  %3255 = vmatprep.subr.bf16.mxu0 %v3028
  %3256 = vmatpush1.bf16.msra.mxu0 %v3027
  %3257 = vmatprep.subr.bf16.mxu0 %v3032
  %3258 = vmatpush1.bf16.msra.mxu0 %v3031
  %3259 = vmatprep.mubr.bf16.mxu0 %v1463
  %3260 = vmatmul.mubr.bf16.gmra.mrb[0].mxu0 %v1462
  %v3261 = vpop.f32.mrb[0].mxu0
  %v3262 = vadd.f32 %v2463, %v3261
  %v3263 = vpop.f32.mrb[0].mxu0
  %v3264 = vadd.f32 %v2465, %v3263
  %v3265 = vpop.f32.mrb[0].mxu0
  %v3266 = vadd.f32 %v2467, %v3265
  %v3267 = vpop.f32.mrb[0].mxu0
  %v3268 = vadd.f32 %v2469, %v3267
  %3269 = vmatprep.mubr.bf16.mxu0 %v1467
  %3270 = vmatmul.mubr.bf16.gmra.mrb[0].mxu0 %v1466
  %v3271 = vpop.f32.mrb[0].mxu0
  %v3272 = vadd.f32 %v2473, %v3271
  %v3273 = vpop.f32.mrb[0].mxu0
  %v3274 = vadd.f32 %v2475, %v3273
  %v3275 = vpop.f32.mrb[0].mxu0
  %v3276 = vadd.f32 %v2477, %v3275
  %v3277 = vpop.f32.mrb[0].mxu0
  %v3278 = vadd.f32 %v2479, %v3277
  %3279 = vdwg.mxu0
  %3280 = vmatprep.subr.bf16.mxu0 %v3036
  %3281 = vmatpush1.bf16.msra.mxu0 %v3035
  %3282 = vmatprep.subr.bf16.mxu0 %v3040
  %3283 = vmatpush1.bf16.msra.mxu0 %v3039
  %3284 = vmatprep.subr.bf16.mxu0 %v3044
  %3285 = vmatpush1.bf16.msra.mxu0 %v3043
  %3286 = vmatprep.subr.bf16.mxu0 %v3048
  %3287 = vmatpush1.bf16.msra.mxu0 %v3047
  %3288 = vmatprep.subr.bf16.mxu0 %v3052
  %3289 = vmatpush1.bf16.msra.mxu0 %v3051
  %3290 = vmatprep.subr.bf16.mxu0 %v3056
  %3291 = vmatpush1.bf16.msra.mxu0 %v3055
  %3292 = vmatprep.subr.bf16.mxu0 %v3060
  %3293 = vmatpush1.bf16.msra.mxu0 %v3059
  %3294 = vmatprep.subr.bf16.mxu0 %v3064
  %3295 = vmatpush1.bf16.msra.mxu0 %v3063
  %3296 = vmatprep.subr.bf16.mxu0 %v3068
  %3297 = vmatpush1.bf16.msra.mxu0 %v3067
  %3298 = vmatprep.subr.bf16.mxu0 %v3072
  %3299 = vmatpush1.bf16.msra.mxu0 %v3071
  %3300 = vmatprep.subr.bf16.mxu0 %v3076
  %3301 = vmatpush1.bf16.msra.mxu0 %v3075
  %3302 = vmatprep.subr.bf16.mxu0 %v3080
  %3303 = vmatpush1.bf16.msra.mxu0 %v3079
  %3304 = vmatprep.subr.bf16.mxu0 %v3084
  %3305 = vmatpush1.bf16.msra.mxu0 %v3083
  %3306 = vmatprep.subr.bf16.mxu0 %v3088
  %3307 = vmatpush1.bf16.msra.mxu0 %v3087
  %3308 = vmatprep.subr.bf16.mxu0 %v3092
  %3309 = vmatpush1.bf16.msra.mxu0 %v3091
  %3310 = vmatprep.subr.bf16.mxu0 %v3096
  %3311 = vmatpush1.bf16.msra.mxu0 %v3095
  %3312 = vmatprep.mubr.bf16.mxu0 %v1465
  %3313 = vmatmul.mubr.bf16.gmra.mrb[0].mxu0 %v1464
  %v3314 = vpop.f32.mrb[0].mxu0
  %v3315 = vadd.f32 %v3262, %v3314
  %v3316 = vpop.f32.mrb[0].mxu0
  %v3317 = vadd.f32 %v3264, %v3316
  %v3318 = vpop.f32.mrb[0].mxu0
  %v3319 = vadd.f32 %v3266, %v3318
  %v3320 = vpop.f32.mrb[0].mxu0
  %v3321 = vadd.f32 %v3268, %v3320
  %3322 = vmatprep.mubr.bf16.mxu0 %v1469
  %3323 = vmatmul.mubr.bf16.gmra.mrb[0].mxu0 %v1468
  %v3324 = vpop.f32.mrb[0].mxu0
  %v3325 = vadd.f32 %v3272, %v3324
  %v3326 = vpop.f32.mrb[0].mxu0
  %v3327 = vadd.f32 %v3274, %v3326
  %v3328 = vpop.f32.mrb[0].mxu0
  %v3329 = vadd.f32 %v3276, %v3328
  %v3330 = vpop.f32.mrb[0].mxu0
  %v3331 = vadd.f32 %v3278, %v3330
  %3332 = vdwg.mxu0
  %3333 = vmatprep.subr.bf16.mxu0 %v2974
  %3334 = vmatpush1.bf16.msra.mxu0 %v2973
  %3335 = vmatprep.subr.bf16.mxu0 %v2978
  %3336 = vmatpush1.bf16.msra.mxu0 %v2977
  %3337 = vmatprep.subr.bf16.mxu0 %v2982
  %3338 = vmatpush1.bf16.msra.mxu0 %v2981
  %3339 = vmatprep.subr.bf16.mxu0 %v2986
  %3340 = vmatpush1.bf16.msra.mxu0 %v2985
  %3341 = vmatprep.subr.bf16.mxu0 %v2990
  %3342 = vmatpush1.bf16.msra.mxu0 %v2989
  %3343 = vmatprep.subr.bf16.mxu0 %v2994
  %3344 = vmatpush1.bf16.msra.mxu0 %v2993
  %3345 = vmatprep.subr.bf16.mxu0 %v2998
  %3346 = vmatpush1.bf16.msra.mxu0 %v2997
  %3347 = vmatprep.subr.bf16.mxu0 %v3002
  %3348 = vmatpush1.bf16.msra.mxu0 %v3001
  %3349 = vmatprep.subr.bf16.mxu0 %v3006
  %3350 = vmatpush1.bf16.msra.mxu0 %v3005
  %3351 = vmatprep.subr.bf16.mxu0 %v3010
  %3352 = vmatpush1.bf16.msra.mxu0 %v3009
  %3353 = vmatprep.subr.bf16.mxu0 %v3014
  %3354 = vmatpush1.bf16.msra.mxu0 %v3013
  %3355 = vmatprep.subr.bf16.mxu0 %v3018
  %3356 = vmatpush1.bf16.msra.mxu0 %v3017
  %3357 = vmatprep.subr.bf16.mxu0 %v3022
  %3358 = vmatpush1.bf16.msra.mxu0 %v3021
  %3359 = vmatprep.subr.bf16.mxu0 %v3026
  %3360 = vmatpush1.bf16.msra.mxu0 %v3025
  %3361 = vmatprep.subr.bf16.mxu0 %v3030
  %3362 = vmatpush1.bf16.msra.mxu0 %v3029
  %3363 = vmatprep.subr.bf16.mxu0 %v3034
  %3364 = vmatpush1.bf16.msra.mxu0 %v3033
  %3365 = vmatprep.mubr.bf16.mxu0 %v1463
  %3366 = vmatmul.mubr.bf16.gmra.mrb[0].mxu0 %v1462
  %v3367 = vpop.f32.mrb[0].mxu0
  %v3368 = vadd.f32 %v2569, %v3367
  %v3369 = vpop.f32.mrb[0].mxu0
  %v3370 = vadd.f32 %v2571, %v3369
  %v3371 = vpop.f32.mrb[0].mxu0
  %v3372 = vadd.f32 %v2573, %v3371
  %v3373 = vpop.f32.mrb[0].mxu0
  %v3374 = vadd.f32 %v2575, %v3373
  %3375 = vmatprep.mubr.bf16.mxu0 %v1467
  %3376 = vmatmul.mubr.bf16.gmra.mrb[0].mxu0 %v1466
  %v3377 = vpop.f32.mrb[0].mxu0
  %v3378 = vadd.f32 %v2579, %v3377
  %v3379 = vpop.f32.mrb[0].mxu0
  %v3380 = vadd.f32 %v2581, %v3379
  %v3381 = vpop.f32.mrb[0].mxu0
  %v3382 = vadd.f32 %v2583, %v3381
  %v3383 = vpop.f32.mrb[0].mxu0
  %v3384 = vadd.f32 %v2585, %v3383
  %3385 = vdwg.mxu0
  %3386 = vmatprep.subr.bf16.mxu0 %v3038
  %3387 = vmatpush1.bf16.msra.mxu0 %v3037
  %3388 = vmatprep.subr.bf16.mxu0 %v3042
  %3389 = vmatpush1.bf16.msra.mxu0 %v3041
  %3390 = vmatprep.subr.bf16.mxu0 %v3046
  %3391 = vmatpush1.bf16.msra.mxu0 %v3045
  %3392 = vmatprep.subr.bf16.mxu0 %v3050
  %3393 = vmatpush1.bf16.msra.mxu0 %v3049
  %3394 = vmatprep.subr.bf16.mxu0 %v3054
  %3395 = vmatpush1.bf16.msra.mxu0 %v3053
  %3396 = vmatprep.subr.bf16.mxu0 %v3058
  %3397 = vmatpush1.bf16.msra.mxu0 %v3057
  %3398 = vmatprep.subr.bf16.mxu0 %v3062
  %3399 = vmatpush1.bf16.msra.mxu0 %v3061
  %3400 = vmatprep.subr.bf16.mxu0 %v3066
  %3401 = vmatpush1.bf16.msra.mxu0 %v3065
  %3402 = vmatprep.subr.bf16.mxu0 %v3070
  %3403 = vmatpush1.bf16.msra.mxu0 %v3069
  %3404 = vmatprep.subr.bf16.mxu0 %v3074
  %3405 = vmatpush1.bf16.msra.mxu0 %v3073
  %3406 = vmatprep.subr.bf16.mxu0 %v3078
  %3407 = vmatpush1.bf16.msra.mxu0 %v3077
  %3408 = vmatprep.subr.bf16.mxu0 %v3082
  %3409 = vmatpush1.bf16.msra.mxu0 %v3081
  %3410 = vmatprep.subr.bf16.mxu0 %v3086
  %3411 = vmatpush1.bf16.msra.mxu0 %v3085
  %3412 = vmatprep.subr.bf16.mxu0 %v3090
  %3413 = vmatpush1.bf16.msra.mxu0 %v3089
  %3414 = vmatprep.subr.bf16.mxu0 %v3094
  %3415 = vmatpush1.bf16.msra.mxu0 %v3093
  %3416 = vmatprep.subr.bf16.mxu0 %v3098
  %3417 = vmatpush1.bf16.msra.mxu0 %v3097
  %3418 = vmatprep.mubr.bf16.mxu0 %v1465
  %3419 = vmatmul.mubr.bf16.gmra.mrb[0].mxu0 %v1464
  %v3420 = vpop.f32.mrb[0].mxu0
  %v3421 = vadd.f32 %v3368, %v3420
  %v3422 = vpop.f32.mrb[0].mxu0
  %v3423 = vadd.f32 %v3370, %v3422
  %v3424 = vpop.f32.mrb[0].mxu0
  %v3425 = vadd.f32 %v3372, %v3424
  %v3426 = vpop.f32.mrb[0].mxu0
  %v3427 = vadd.f32 %v3374, %v3426
  %3428 = vmatprep.mubr.bf16.mxu0 %v1469
  %3429 = vmatmul.mubr.bf16.gmra.mrb[0].mxu0 %v1468
  %v3430 = vpop.f32.mrb[0].mxu0
  %v3431 = vadd.f32 %v3378, %v3430
  %v3432 = vpop.f32.mrb[0].mxu0
  %v3433 = vadd.f32 %v3380, %v3432
  %v3434 = vpop.f32.mrb[0].mxu0
  %v3435 = vadd.f32 %v3382, %v3434
  %v3436 = vpop.f32.mrb[0].mxu0
  %v3437 = vadd.f32 %v3384, %v3436
  %3438 = vdwg.mxu0
  %v3439 = vpack.c.bf16 %v1336, %v1332
  %v3440 = vpack.c.bf16 %v1337, %v1333
  %v3441 = vpack.c.bf16 %v1338, %v1334
  %v3442 = vpack.c.bf16 %v1339, %v1335
  %v3443 = vpack.c.bf16 %v1344, %v1340
  %v3444 = vpack.c.bf16 %v1345, %v1341
  %v3445 = vpack.c.bf16 %v1346, %v1342
  %v3446 = vpack.c.bf16 %v1347, %v1343
  %s3447 = scalar_lea.vmem %s4, 2048
  %v3448 = vld [vmem:[%s3447] sm:$0xff]
  %v3449 = vld [vmem:[%s3447 + $0x8] sm:$0xff]
  %v3450 = vld [vmem:[%s3447 + $0x10] sm:$0xff]
  %v3451 = vld [vmem:[%s3447 + $0x18] sm:$0xff]
  %v3452 = vld [vmem:[%s3447 + $0x20] sm:$0xff]
  %v3453 = vld [vmem:[%s3447 + $0x28] sm:$0xff]
  %v3454 = vld [vmem:[%s3447 + $0x30] sm:$0xff]
  %v3455 = vld [vmem:[%s3447 + $0x38] sm:$0xff]
  %v3456 = vld [vmem:[%s3447 + $0x40] sm:$0xff]
  %v3457 = vld [vmem:[%s3447 + $0x48] sm:$0xff]
  %v3458 = vld [vmem:[%s3447 + $0x50] sm:$0xff]
  %v3459 = vld [vmem:[%s3447 + $0x58] sm:$0xff]
  %v3460 = vld [vmem:[%s3447 + $0x60] sm:$0xff]
  %v3461 = vld [vmem:[%s3447 + $0x68] sm:$0xff]
  %v3462 = vld [vmem:[%s3447 + $0x70] sm:$0xff]
  %v3463 = vld [vmem:[%s3447 + $0x78] sm:$0xff]
  %v3464 = vld [vmem:[%s3447 + $0x80] sm:$0xff]
  %v3465 = vld [vmem:[%s3447 + $0x88] sm:$0xff]
  %v3466 = vld [vmem:[%s3447 + $0x90] sm:$0xff]
  %v3467 = vld [vmem:[%s3447 + $0x98] sm:$0xff]
  %v3468 = vld [vmem:[%s3447 + $0xa0] sm:$0xff]
  %v3469 = vld [vmem:[%s3447 + $0xa8] sm:$0xff]
  %v3470 = vld [vmem:[%s3447 + $0xb0] sm:$0xff]
  %v3471 = vld [vmem:[%s3447 + $0xb8] sm:$0xff]
  %v3472 = vld [vmem:[%s3447 + $0xc0] sm:$0xff]
  %v3473 = vld [vmem:[%s3447 + $0xc8] sm:$0xff]
  %v3474 = vld [vmem:[%s3447 + $0xd0] sm:$0xff]
  %v3475 = vld [vmem:[%s3447 + $0xd8] sm:$0xff]
  %v3476 = vld [vmem:[%s3447 + $0xe0] sm:$0xff]
  %v3477 = vld [vmem:[%s3447 + $0xe8] sm:$0xff]
  %v3478 = vld [vmem:[%s3447 + $0xf0] sm:$0xff]
  %v3479 = vld [vmem:[%s3447 + $0xf8] sm:$0xff]
  %v3480 = vld [vmem:[%s3447 + $0x100] sm:$0xff]
  %v3481 = vld [vmem:[%s3447 + $0x108] sm:$0xff]
  %v3482 = vld [vmem:[%s3447 + $0x110] sm:$0xff]
  %v3483 = vld [vmem:[%s3447 + $0x118] sm:$0xff]
  %v3484 = vld [vmem:[%s3447 + $0x120] sm:$0xff]
  %v3485 = vld [vmem:[%s3447 + $0x128] sm:$0xff]
  %v3486 = vld [vmem:[%s3447 + $0x130] sm:$0xff]
  %v3487 = vld [vmem:[%s3447 + $0x138] sm:$0xff]
  %v3488 = vld [vmem:[%s3447 + $0x140] sm:$0xff]
  %v3489 = vld [vmem:[%s3447 + $0x148] sm:$0xff]
  %v3490 = vld [vmem:[%s3447 + $0x150] sm:$0xff]
  %v3491 = vld [vmem:[%s3447 + $0x158] sm:$0xff]
  %v3492 = vld [vmem:[%s3447 + $0x160] sm:$0xff]
  %v3493 = vld [vmem:[%s3447 + $0x168] sm:$0xff]
  %v3494 = vld [vmem:[%s3447 + $0x170] sm:$0xff]
  %v3495 = vld [vmem:[%s3447 + $0x178] sm:$0xff]
  %v3496 = vld [vmem:[%s3447 + $0x180] sm:$0xff]
  %v3497 = vld [vmem:[%s3447 + $0x188] sm:$0xff]
  %v3498 = vld [vmem:[%s3447 + $0x190] sm:$0xff]
  %v3499 = vld [vmem:[%s3447 + $0x198] sm:$0xff]
  %v3500 = vld [vmem:[%s3447 + $0x1a0] sm:$0xff]
  %v3501 = vld [vmem:[%s3447 + $0x1a8] sm:$0xff]
  %v3502 = vld [vmem:[%s3447 + $0x1b0] sm:$0xff]
  %v3503 = vld [vmem:[%s3447 + $0x1b8] sm:$0xff]
  %v3504 = vld [vmem:[%s3447 + $0x1c0] sm:$0xff]
  %v3505 = vld [vmem:[%s3447 + $0x1c8] sm:$0xff]
  %v3506 = vld [vmem:[%s3447 + $0x1d0] sm:$0xff]
  %v3507 = vld [vmem:[%s3447 + $0x1d8] sm:$0xff]
  %v3508 = vld [vmem:[%s3447 + $0x1e0] sm:$0xff]
  %v3509 = vld [vmem:[%s3447 + $0x1e8] sm:$0xff]
  %v3510 = vld [vmem:[%s3447 + $0x1f0] sm:$0xff]
  %v3511 = vld [vmem:[%s3447 + $0x1f8] sm:$0xff]
  %v3512 = vld [vmem:[%s3447 + $0x200] sm:$0xff]
  %v3513 = vld [vmem:[%s3447 + $0x208] sm:$0xff]
  %v3514 = vld [vmem:[%s3447 + $0x210] sm:$0xff]
  %v3515 = vld [vmem:[%s3447 + $0x218] sm:$0xff]
  %v3516 = vld [vmem:[%s3447 + $0x220] sm:$0xff]
  %v3517 = vld [vmem:[%s3447 + $0x228] sm:$0xff]
  %v3518 = vld [vmem:[%s3447 + $0x230] sm:$0xff]
  %v3519 = vld [vmem:[%s3447 + $0x238] sm:$0xff]
  %v3520 = vld [vmem:[%s3447 + $0x240] sm:$0xff]
  %v3521 = vld [vmem:[%s3447 + $0x248] sm:$0xff]
  %v3522 = vld [vmem:[%s3447 + $0x250] sm:$0xff]
  %v3523 = vld [vmem:[%s3447 + $0x258] sm:$0xff]
  %v3524 = vld [vmem:[%s3447 + $0x260] sm:$0xff]
  %v3525 = vld [vmem:[%s3447 + $0x268] sm:$0xff]
  %v3526 = vld [vmem:[%s3447 + $0x270] sm:$0xff]
  %v3527 = vld [vmem:[%s3447 + $0x278] sm:$0xff]
  %v3528 = vld [vmem:[%s3447 + $0x280] sm:$0xff]
  %v3529 = vld [vmem:[%s3447 + $0x288] sm:$0xff]
  %v3530 = vld [vmem:[%s3447 + $0x290] sm:$0xff]
  %v3531 = vld [vmem:[%s3447 + $0x298] sm:$0xff]
  %v3532 = vld [vmem:[%s3447 + $0x2a0] sm:$0xff]
  %v3533 = vld [vmem:[%s3447 + $0x2a8] sm:$0xff]
  %v3534 = vld [vmem:[%s3447 + $0x2b0] sm:$0xff]
  %v3535 = vld [vmem:[%s3447 + $0x2b8] sm:$0xff]
  %v3536 = vld [vmem:[%s3447 + $0x2c0] sm:$0xff]
  %v3537 = vld [vmem:[%s3447 + $0x2c8] sm:$0xff]
  %v3538 = vld [vmem:[%s3447 + $0x2d0] sm:$0xff]
  %v3539 = vld [vmem:[%s3447 + $0x2d8] sm:$0xff]
  %v3540 = vld [vmem:[%s3447 + $0x2e0] sm:$0xff]
  %v3541 = vld [vmem:[%s3447 + $0x2e8] sm:$0xff]
  %v3542 = vld [vmem:[%s3447 + $0x2f0] sm:$0xff]
  %v3543 = vld [vmem:[%s3447 + $0x2f8] sm:$0xff]
  %v3544 = vld [vmem:[%s3447 + $0x300] sm:$0xff]
  %v3545 = vld [vmem:[%s3447 + $0x308] sm:$0xff]
  %v3546 = vld [vmem:[%s3447 + $0x310] sm:$0xff]
  %v3547 = vld [vmem:[%s3447 + $0x318] sm:$0xff]
  %v3548 = vld [vmem:[%s3447 + $0x320] sm:$0xff]
  %v3549 = vld [vmem:[%s3447 + $0x328] sm:$0xff]
  %v3550 = vld [vmem:[%s3447 + $0x330] sm:$0xff]
  %v3551 = vld [vmem:[%s3447 + $0x338] sm:$0xff]
  %v3552 = vld [vmem:[%s3447 + $0x340] sm:$0xff]
  %v3553 = vld [vmem:[%s3447 + $0x348] sm:$0xff]
  %v3554 = vld [vmem:[%s3447 + $0x350] sm:$0xff]
  %v3555 = vld [vmem:[%s3447 + $0x358] sm:$0xff]
  %v3556 = vld [vmem:[%s3447 + $0x360] sm:$0xff]
  %v3557 = vld [vmem:[%s3447 + $0x368] sm:$0xff]
  %v3558 = vld [vmem:[%s3447 + $0x370] sm:$0xff]
  %v3559 = vld [vmem:[%s3447 + $0x378] sm:$0xff]
  %v3560 = vld [vmem:[%s3447 + $0x380] sm:$0xff]
  %v3561 = vld [vmem:[%s3447 + $0x388] sm:$0xff]
  %v3562 = vld [vmem:[%s3447 + $0x390] sm:$0xff]
  %v3563 = vld [vmem:[%s3447 + $0x398] sm:$0xff]
  %v3564 = vld [vmem:[%s3447 + $0x3a0] sm:$0xff]
  %v3565 = vld [vmem:[%s3447 + $0x3a8] sm:$0xff]
  %v3566 = vld [vmem:[%s3447 + $0x3b0] sm:$0xff]
  %v3567 = vld [vmem:[%s3447 + $0x3b8] sm:$0xff]
  %v3568 = vld [vmem:[%s3447 + $0x3c0] sm:$0xff]
  %v3569 = vld [vmem:[%s3447 + $0x3c8] sm:$0xff]
  %v3570 = vld [vmem:[%s3447 + $0x3d0] sm:$0xff]
  %v3571 = vld [vmem:[%s3447 + $0x3d8] sm:$0xff]
  %v3572 = vld [vmem:[%s3447 + $0x3e0] sm:$0xff]
  %v3573 = vld [vmem:[%s3447 + $0x3e8] sm:$0xff]
  %v3574 = vld [vmem:[%s3447 + $0x3f0] sm:$0xff]
  %v3575 = vld [vmem:[%s3447 + $0x3f8] sm:$0xff]
  %v3704 = vunpack.c.l.b16 %v3448
  %v3705 = vunpack.c.h.b16 %v3448
  %v3706 = vunpack.c.l.b16 %v3449
  %v3707 = vunpack.c.h.b16 %v3449
  %v3708 = vunpack.c.l.b16 %v3450
  %v3709 = vunpack.c.h.b16 %v3450
  %v3710 = vunpack.c.l.b16 %v3451
  %v3711 = vunpack.c.h.b16 %v3451
  %v3712 = vunpack.c.l.b16 %v3452
  %v3713 = vunpack.c.h.b16 %v3452
  %v3714 = vunpack.c.l.b16 %v3453
  %v3715 = vunpack.c.h.b16 %v3453
  %v3716 = vunpack.c.l.b16 %v3454
  %v3717 = vunpack.c.h.b16 %v3454
  %v3718 = vunpack.c.l.b16 %v3455
  %v3719 = vunpack.c.h.b16 %v3455
  %v3720 = vunpack.c.l.b16 %v3456
  %v3721 = vunpack.c.h.b16 %v3456
  %v3722 = vunpack.c.l.b16 %v3457
  %v3723 = vunpack.c.h.b16 %v3457
  %v3724 = vunpack.c.l.b16 %v3458
  %v3725 = vunpack.c.h.b16 %v3458
  %v3726 = vunpack.c.l.b16 %v3459
  %v3727 = vunpack.c.h.b16 %v3459
  %v3728 = vunpack.c.l.b16 %v3460
  %v3729 = vunpack.c.h.b16 %v3460
  %v3730 = vunpack.c.l.b16 %v3461
  %v3731 = vunpack.c.h.b16 %v3461
  %v3732 = vunpack.c.l.b16 %v3462
  %v3733 = vunpack.c.h.b16 %v3462
  %v3734 = vunpack.c.l.b16 %v3463
  %v3735 = vunpack.c.h.b16 %v3463
  %v3736 = vunpack.c.l.b16 %v3464
  %v3737 = vunpack.c.h.b16 %v3464
  %v3738 = vunpack.c.l.b16 %v3465
  %v3739 = vunpack.c.h.b16 %v3465
  %v3740 = vunpack.c.l.b16 %v3466
  %v3741 = vunpack.c.h.b16 %v3466
  %v3742 = vunpack.c.l.b16 %v3467
  %v3743 = vunpack.c.h.b16 %v3467
  %v3744 = vunpack.c.l.b16 %v3468
  %v3745 = vunpack.c.h.b16 %v3468
  %v3746 = vunpack.c.l.b16 %v3469
  %v3747 = vunpack.c.h.b16 %v3469
  %v3748 = vunpack.c.l.b16 %v3470
  %v3749 = vunpack.c.h.b16 %v3470
  %v3750 = vunpack.c.l.b16 %v3471
  %v3751 = vunpack.c.h.b16 %v3471
  %v3752 = vunpack.c.l.b16 %v3472
  %v3753 = vunpack.c.h.b16 %v3472
  %v3754 = vunpack.c.l.b16 %v3473
  %v3755 = vunpack.c.h.b16 %v3473
  %v3756 = vunpack.c.l.b16 %v3474
  %v3757 = vunpack.c.h.b16 %v3474
  %v3758 = vunpack.c.l.b16 %v3475
  %v3759 = vunpack.c.h.b16 %v3475
  %v3760 = vunpack.c.l.b16 %v3476
  %v3761 = vunpack.c.h.b16 %v3476
  %v3762 = vunpack.c.l.b16 %v3477
  %v3763 = vunpack.c.h.b16 %v3477
  %v3764 = vunpack.c.l.b16 %v3478
  %v3765 = vunpack.c.h.b16 %v3478
  %v3766 = vunpack.c.l.b16 %v3479
  %v3767 = vunpack.c.h.b16 %v3479
  %v3768 = vunpack.c.l.b16 %v3480
  %v3769 = vunpack.c.h.b16 %v3480
  %v3770 = vunpack.c.l.b16 %v3481
  %v3771 = vunpack.c.h.b16 %v3481
  %v3772 = vunpack.c.l.b16 %v3482
  %v3773 = vunpack.c.h.b16 %v3482
  %v3774 = vunpack.c.l.b16 %v3483
  %v3775 = vunpack.c.h.b16 %v3483
  %v3776 = vunpack.c.l.b16 %v3484
  %v3777 = vunpack.c.h.b16 %v3484
  %v3778 = vunpack.c.l.b16 %v3485
  %v3779 = vunpack.c.h.b16 %v3485
  %v3780 = vunpack.c.l.b16 %v3486
  %v3781 = vunpack.c.h.b16 %v3486
  %v3782 = vunpack.c.l.b16 %v3487
  %v3783 = vunpack.c.h.b16 %v3487
  %v3784 = vunpack.c.l.b16 %v3488
  %v3785 = vunpack.c.h.b16 %v3488
  %v3786 = vunpack.c.l.b16 %v3489
  %v3787 = vunpack.c.h.b16 %v3489
  %v3788 = vunpack.c.l.b16 %v3490
  %v3789 = vunpack.c.h.b16 %v3490
  %v3790 = vunpack.c.l.b16 %v3491
  %v3791 = vunpack.c.h.b16 %v3491
  %v3792 = vunpack.c.l.b16 %v3492
  %v3793 = vunpack.c.h.b16 %v3492
  %v3794 = vunpack.c.l.b16 %v3493
  %v3795 = vunpack.c.h.b16 %v3493
  %v3796 = vunpack.c.l.b16 %v3494
  %v3797 = vunpack.c.h.b16 %v3494
  %v3798 = vunpack.c.l.b16 %v3495
  %v3799 = vunpack.c.h.b16 %v3495
  %v3800 = vunpack.c.l.b16 %v3496
  %v3801 = vunpack.c.h.b16 %v3496
  %v3802 = vunpack.c.l.b16 %v3497
  %v3803 = vunpack.c.h.b16 %v3497
  %v3804 = vunpack.c.l.b16 %v3498
  %v3805 = vunpack.c.h.b16 %v3498
  %v3806 = vunpack.c.l.b16 %v3499
  %v3807 = vunpack.c.h.b16 %v3499
  %v3808 = vunpack.c.l.b16 %v3500
  %v3809 = vunpack.c.h.b16 %v3500
  %v3810 = vunpack.c.l.b16 %v3501
  %v3811 = vunpack.c.h.b16 %v3501
  %v3812 = vunpack.c.l.b16 %v3502
  %v3813 = vunpack.c.h.b16 %v3502
  %v3814 = vunpack.c.l.b16 %v3503
  %v3815 = vunpack.c.h.b16 %v3503
  %v3816 = vunpack.c.l.b16 %v3504
  %v3817 = vunpack.c.h.b16 %v3504
  %v3818 = vunpack.c.l.b16 %v3505
  %v3819 = vunpack.c.h.b16 %v3505
  %v3820 = vunpack.c.l.b16 %v3506
  %v3821 = vunpack.c.h.b16 %v3506
  %v3822 = vunpack.c.l.b16 %v3507
  %v3823 = vunpack.c.h.b16 %v3507
  %v3824 = vunpack.c.l.b16 %v3508
  %v3825 = vunpack.c.h.b16 %v3508
  %v3826 = vunpack.c.l.b16 %v3509
  %v3827 = vunpack.c.h.b16 %v3509
  %v3828 = vunpack.c.l.b16 %v3510
  %v3829 = vunpack.c.h.b16 %v3510
  %v3830 = vunpack.c.l.b16 %v3511
  %v3831 = vunpack.c.h.b16 %v3511
  %v3832 = vunpack.c.l.b16 %v3512
  %v3833 = vunpack.c.h.b16 %v3512
  %v3834 = vunpack.c.l.b16 %v3513
  %v3835 = vunpack.c.h.b16 %v3513
  %v3836 = vunpack.c.l.b16 %v3514
  %v3837 = vunpack.c.h.b16 %v3514
  %v3838 = vunpack.c.l.b16 %v3515
  %v3839 = vunpack.c.h.b16 %v3515
  %v3840 = vunpack.c.l.b16 %v3516
  %v3841 = vunpack.c.h.b16 %v3516
  %v3842 = vunpack.c.l.b16 %v3517
  %v3843 = vunpack.c.h.b16 %v3517
  %v3844 = vunpack.c.l.b16 %v3518
  %v3845 = vunpack.c.h.b16 %v3518
  %v3846 = vunpack.c.l.b16 %v3519
  %v3847 = vunpack.c.h.b16 %v3519
  %v3848 = vunpack.c.l.b16 %v3520
  %v3849 = vunpack.c.h.b16 %v3520
  %v3850 = vunpack.c.l.b16 %v3521
  %v3851 = vunpack.c.h.b16 %v3521
  %v3852 = vunpack.c.l.b16 %v3522
  %v3853 = vunpack.c.h.b16 %v3522
  %v3854 = vunpack.c.l.b16 %v3523
  %v3855 = vunpack.c.h.b16 %v3523
  %v3856 = vunpack.c.l.b16 %v3524
  %v3857 = vunpack.c.h.b16 %v3524
  %v3858 = vunpack.c.l.b16 %v3525
  %v3859 = vunpack.c.h.b16 %v3525
  %v3860 = vunpack.c.l.b16 %v3526
  %v3861 = vunpack.c.h.b16 %v3526
  %v3862 = vunpack.c.l.b16 %v3527
  %v3863 = vunpack.c.h.b16 %v3527
  %v3864 = vunpack.c.l.b16 %v3528
  %v3865 = vunpack.c.h.b16 %v3528
  %v3866 = vunpack.c.l.b16 %v3529
  %v3867 = vunpack.c.h.b16 %v3529
  %v3868 = vunpack.c.l.b16 %v3530
  %v3869 = vunpack.c.h.b16 %v3530
  %v3870 = vunpack.c.l.b16 %v3531
  %v3871 = vunpack.c.h.b16 %v3531
  %v3872 = vunpack.c.l.b16 %v3532
  %v3873 = vunpack.c.h.b16 %v3532
  %v3874 = vunpack.c.l.b16 %v3533
  %v3875 = vunpack.c.h.b16 %v3533
  %v3876 = vunpack.c.l.b16 %v3534
  %v3877 = vunpack.c.h.b16 %v3534
  %v3878 = vunpack.c.l.b16 %v3535
  %v3879 = vunpack.c.h.b16 %v3535
  %v3880 = vunpack.c.l.b16 %v3536
  %v3881 = vunpack.c.h.b16 %v3536
  %v3882 = vunpack.c.l.b16 %v3537
  %v3883 = vunpack.c.h.b16 %v3537
  %v3884 = vunpack.c.l.b16 %v3538
  %v3885 = vunpack.c.h.b16 %v3538
  %v3886 = vunpack.c.l.b16 %v3539
  %v3887 = vunpack.c.h.b16 %v3539
  %v3888 = vunpack.c.l.b16 %v3540
  %v3889 = vunpack.c.h.b16 %v3540
  %v3890 = vunpack.c.l.b16 %v3541
  %v3891 = vunpack.c.h.b16 %v3541
  %v3892 = vunpack.c.l.b16 %v3542
  %v3893 = vunpack.c.h.b16 %v3542
  %v3894 = vunpack.c.l.b16 %v3543
  %v3895 = vunpack.c.h.b16 %v3543
  %v3896 = vunpack.c.l.b16 %v3544
  %v3897 = vunpack.c.h.b16 %v3544
  %v3898 = vunpack.c.l.b16 %v3545
  %v3899 = vunpack.c.h.b16 %v3545
  %v3900 = vunpack.c.l.b16 %v3546
  %v3901 = vunpack.c.h.b16 %v3546
  %v3902 = vunpack.c.l.b16 %v3547
  %v3903 = vunpack.c.h.b16 %v3547
  %v3904 = vunpack.c.l.b16 %v3548
  %v3905 = vunpack.c.h.b16 %v3548
  %v3906 = vunpack.c.l.b16 %v3549
  %v3907 = vunpack.c.h.b16 %v3549
  %v3908 = vunpack.c.l.b16 %v3550
  %v3909 = vunpack.c.h.b16 %v3550
  %v3910 = vunpack.c.l.b16 %v3551
  %v3911 = vunpack.c.h.b16 %v3551
  %v3912 = vunpack.c.l.b16 %v3552
  %v3913 = vunpack.c.h.b16 %v3552
  %v3914 = vunpack.c.l.b16 %v3553
  %v3915 = vunpack.c.h.b16 %v3553
  %v3916 = vunpack.c.l.b16 %v3554
  %v3917 = vunpack.c.h.b16 %v3554
  %v3918 = vunpack.c.l.b16 %v3555
  %v3919 = vunpack.c.h.b16 %v3555
  %v3920 = vunpack.c.l.b16 %v3556
  %v3921 = vunpack.c.h.b16 %v3556
  %v3922 = vunpack.c.l.b16 %v3557
  %v3923 = vunpack.c.h.b16 %v3557
  %v3924 = vunpack.c.l.b16 %v3558
  %v3925 = vunpack.c.h.b16 %v3558
  %v3926 = vunpack.c.l.b16 %v3559
  %v3927 = vunpack.c.h.b16 %v3559
  %v3928 = vunpack.c.l.b16 %v3560
  %v3929 = vunpack.c.h.b16 %v3560
  %v3930 = vunpack.c.l.b16 %v3561
  %v3931 = vunpack.c.h.b16 %v3561
  %v3932 = vunpack.c.l.b16 %v3562
  %v3933 = vunpack.c.h.b16 %v3562
  %v3934 = vunpack.c.l.b16 %v3563
  %v3935 = vunpack.c.h.b16 %v3563
  %v3936 = vunpack.c.l.b16 %v3564
  %v3937 = vunpack.c.h.b16 %v3564
  %v3938 = vunpack.c.l.b16 %v3565
  %v3939 = vunpack.c.h.b16 %v3565
  %v3940 = vunpack.c.l.b16 %v3566
  %v3941 = vunpack.c.h.b16 %v3566
  %v3942 = vunpack.c.l.b16 %v3567
  %v3943 = vunpack.c.h.b16 %v3567
  %v3944 = vunpack.c.l.b16 %v3568
  %v3945 = vunpack.c.h.b16 %v3568
  %v3946 = vunpack.c.l.b16 %v3569
  %v3947 = vunpack.c.h.b16 %v3569
  %v3948 = vunpack.c.l.b16 %v3570
  %v3949 = vunpack.c.h.b16 %v3570
  %v3950 = vunpack.c.l.b16 %v3571
  %v3951 = vunpack.c.h.b16 %v3571
  %v3952 = vunpack.c.l.b16 %v3572
  %v3953 = vunpack.c.h.b16 %v3572
  %v3954 = vunpack.c.l.b16 %v3573
  %v3955 = vunpack.c.h.b16 %v3573
  %v3956 = vunpack.c.l.b16 %v3574
  %v3957 = vunpack.c.h.b16 %v3574
  %v3958 = vunpack.c.l.b16 %v3575
  %v3959 = vunpack.c.h.b16 %v3575
  %v3960 = vpack.c.b16 %v3708, %v3704
  %v3961 = vpack.c.b16 %v3709, %v3705
  %v3962 = vpack.c.b16 %v3710, %v3706
  %v3963 = vpack.c.b16 %v3711, %v3707
  %v3964 = vpack.c.b16 %v3716, %v3712
  %v3965 = vpack.c.b16 %v3717, %v3713
  %v3966 = vpack.c.b16 %v3718, %v3714
  %v3967 = vpack.c.b16 %v3719, %v3715
  %v3968 = vpack.c.b16 %v3724, %v3720
  %v3969 = vpack.c.b16 %v3725, %v3721
  %v3970 = vpack.c.b16 %v3726, %v3722
  %v3971 = vpack.c.b16 %v3727, %v3723
  %v3972 = vpack.c.b16 %v3732, %v3728
  %v3973 = vpack.c.b16 %v3733, %v3729
  %v3974 = vpack.c.b16 %v3734, %v3730
  %v3975 = vpack.c.b16 %v3735, %v3731
  %v3976 = vpack.c.b16 %v3740, %v3736
  %v3977 = vpack.c.b16 %v3741, %v3737
  %v3978 = vpack.c.b16 %v3742, %v3738
  %v3979 = vpack.c.b16 %v3743, %v3739
  %v3980 = vpack.c.b16 %v3748, %v3744
  %v3981 = vpack.c.b16 %v3749, %v3745
  %v3982 = vpack.c.b16 %v3750, %v3746
  %v3983 = vpack.c.b16 %v3751, %v3747
  %v3984 = vpack.c.b16 %v3756, %v3752
  %v3985 = vpack.c.b16 %v3757, %v3753
  %v3986 = vpack.c.b16 %v3758, %v3754
  %v3987 = vpack.c.b16 %v3759, %v3755
  %v3988 = vpack.c.b16 %v3764, %v3760
  %v3989 = vpack.c.b16 %v3765, %v3761
  %v3990 = vpack.c.b16 %v3766, %v3762
  %v3991 = vpack.c.b16 %v3767, %v3763
  %v3992 = vpack.c.b16 %v3772, %v3768
  %v3993 = vpack.c.b16 %v3773, %v3769
  %v3994 = vpack.c.b16 %v3774, %v3770
  %v3995 = vpack.c.b16 %v3775, %v3771
  %v3996 = vpack.c.b16 %v3780, %v3776
  %v3997 = vpack.c.b16 %v3781, %v3777
  %v3998 = vpack.c.b16 %v3782, %v3778
  %v3999 = vpack.c.b16 %v3783, %v3779
  %v4000 = vpack.c.b16 %v3788, %v3784
  %v4001 = vpack.c.b16 %v3789, %v3785
  %v4002 = vpack.c.b16 %v3790, %v3786
  %v4003 = vpack.c.b16 %v3791, %v3787
  %v4004 = vpack.c.b16 %v3796, %v3792
  %v4005 = vpack.c.b16 %v3797, %v3793
  %v4006 = vpack.c.b16 %v3798, %v3794
  %v4007 = vpack.c.b16 %v3799, %v3795
  %v4008 = vpack.c.b16 %v3804, %v3800
  %v4009 = vpack.c.b16 %v3805, %v3801
  %v4010 = vpack.c.b16 %v3806, %v3802
  %v4011 = vpack.c.b16 %v3807, %v3803
  %v4012 = vpack.c.b16 %v3812, %v3808
  %v4013 = vpack.c.b16 %v3813, %v3809
  %v4014 = vpack.c.b16 %v3814, %v3810
  %v4015 = vpack.c.b16 %v3815, %v3811
  %v4016 = vpack.c.b16 %v3820, %v3816
  %v4017 = vpack.c.b16 %v3821, %v3817
  %v4018 = vpack.c.b16 %v3822, %v3818
  %v4019 = vpack.c.b16 %v3823, %v3819
  %v4020 = vpack.c.b16 %v3828, %v3824
  %v4021 = vpack.c.b16 %v3829, %v3825
  %v4022 = vpack.c.b16 %v3830, %v3826
  %v4023 = vpack.c.b16 %v3831, %v3827
  %v4024 = vpack.c.b16 %v3836, %v3832
  %v4025 = vpack.c.b16 %v3837, %v3833
  %v4026 = vpack.c.b16 %v3838, %v3834
  %v4027 = vpack.c.b16 %v3839, %v3835
  %v4028 = vpack.c.b16 %v3844, %v3840
  %v4029 = vpack.c.b16 %v3845, %v3841
  %v4030 = vpack.c.b16 %v3846, %v3842
  %v4031 = vpack.c.b16 %v3847, %v3843
  %v4032 = vpack.c.b16 %v3852, %v3848
  %v4033 = vpack.c.b16 %v3853, %v3849
  %v4034 = vpack.c.b16 %v3854, %v3850
  %v4035 = vpack.c.b16 %v3855, %v3851
  %v4036 = vpack.c.b16 %v3860, %v3856
  %v4037 = vpack.c.b16 %v3861, %v3857
  %v4038 = vpack.c.b16 %v3862, %v3858
  %v4039 = vpack.c.b16 %v3863, %v3859
  %v4040 = vpack.c.b16 %v3868, %v3864
  %v4041 = vpack.c.b16 %v3869, %v3865
  %v4042 = vpack.c.b16 %v3870, %v3866
  %v4043 = vpack.c.b16 %v3871, %v3867
  %v4044 = vpack.c.b16 %v3876, %v3872
  %v4045 = vpack.c.b16 %v3877, %v3873
  %v4046 = vpack.c.b16 %v3878, %v3874
  %v4047 = vpack.c.b16 %v3879, %v3875
  %v4048 = vpack.c.b16 %v3884, %v3880
  %v4049 = vpack.c.b16 %v3885, %v3881
  %v4050 = vpack.c.b16 %v3886, %v3882
  %v4051 = vpack.c.b16 %v3887, %v3883
  %v4052 = vpack.c.b16 %v3892, %v3888
  %v4053 = vpack.c.b16 %v3893, %v3889
  %v4054 = vpack.c.b16 %v3894, %v3890
  %v4055 = vpack.c.b16 %v3895, %v3891
  %v4056 = vpack.c.b16 %v3900, %v3896
  %v4057 = vpack.c.b16 %v3901, %v3897
  %v4058 = vpack.c.b16 %v3902, %v3898
  %v4059 = vpack.c.b16 %v3903, %v3899
  %v4060 = vpack.c.b16 %v3908, %v3904
  %v4061 = vpack.c.b16 %v3909, %v3905
  %v4062 = vpack.c.b16 %v3910, %v3906
  %v4063 = vpack.c.b16 %v3911, %v3907
  %v4064 = vpack.c.b16 %v3916, %v3912
  %v4065 = vpack.c.b16 %v3917, %v3913
  %v4066 = vpack.c.b16 %v3918, %v3914
  %v4067 = vpack.c.b16 %v3919, %v3915
  %v4068 = vpack.c.b16 %v3924, %v3920
  %v4069 = vpack.c.b16 %v3925, %v3921
  %v4070 = vpack.c.b16 %v3926, %v3922
  %v4071 = vpack.c.b16 %v3927, %v3923
  %v4072 = vpack.c.b16 %v3932, %v3928
  %v4073 = vpack.c.b16 %v3933, %v3929
  %v4074 = vpack.c.b16 %v3934, %v3930
  %v4075 = vpack.c.b16 %v3935, %v3931
  %v4076 = vpack.c.b16 %v3940, %v3936
  %v4077 = vpack.c.b16 %v3941, %v3937
  %v4078 = vpack.c.b16 %v3942, %v3938
  %v4079 = vpack.c.b16 %v3943, %v3939
  %v4080 = vpack.c.b16 %v3948, %v3944
  %v4081 = vpack.c.b16 %v3949, %v3945
  %v4082 = vpack.c.b16 %v3950, %v3946
  %v4083 = vpack.c.b16 %v3951, %v3947
  %v4084 = vpack.c.b16 %v3956, %v3952
  %v4085 = vpack.c.b16 %v3957, %v3953
  %v4086 = vpack.c.b16 %v3958, %v3954
  %v4087 = vpack.c.b16 %v3959, %v3955
  %4216 = vmatprep.subr.bf16.mxu0 %v3961
  %4217 = vmatpush1.bf16.msra.mxu0 %v3960
  %4218 = vmatprep.subr.bf16.mxu0 %v3965
  %4219 = vmatpush1.bf16.msra.mxu0 %v3964
  %4220 = vmatprep.subr.bf16.mxu0 %v3969
  %4221 = vmatpush1.bf16.msra.mxu0 %v3968
  %4222 = vmatprep.subr.bf16.mxu0 %v3973
  %4223 = vmatpush1.bf16.msra.mxu0 %v3972
  %4224 = vmatprep.subr.bf16.mxu0 %v3977
  %4225 = vmatpush1.bf16.msra.mxu0 %v3976
  %4226 = vmatprep.subr.bf16.mxu0 %v3981
  %4227 = vmatpush1.bf16.msra.mxu0 %v3980
  %4228 = vmatprep.subr.bf16.mxu0 %v3985
  %4229 = vmatpush1.bf16.msra.mxu0 %v3984
  %4230 = vmatprep.subr.bf16.mxu0 %v3989
  %4231 = vmatpush1.bf16.msra.mxu0 %v3988
  %4232 = vmatprep.subr.bf16.mxu0 %v3993
  %4233 = vmatpush1.bf16.msra.mxu0 %v3992
  %4234 = vmatprep.subr.bf16.mxu0 %v3997
  %4235 = vmatpush1.bf16.msra.mxu0 %v3996
  %4236 = vmatprep.subr.bf16.mxu0 %v4001
  %4237 = vmatpush1.bf16.msra.mxu0 %v4000
  %4238 = vmatprep.subr.bf16.mxu0 %v4005
  %4239 = vmatpush1.bf16.msra.mxu0 %v4004
  %4240 = vmatprep.subr.bf16.mxu0 %v4009
  %4241 = vmatpush1.bf16.msra.mxu0 %v4008
  %4242 = vmatprep.subr.bf16.mxu0 %v4013
  %4243 = vmatpush1.bf16.msra.mxu0 %v4012
  %4244 = vmatprep.subr.bf16.mxu0 %v4017
  %4245 = vmatpush1.bf16.msra.mxu0 %v4016
  %4246 = vmatprep.subr.bf16.mxu0 %v4021
  %4247 = vmatpush1.bf16.msra.mxu0 %v4020
  %4248 = vmatprep.mubr.bf16.mxu0 %v3440
  %4249 = vmatmul.mubr.bf16.gmra.mrb[0].mxu0 %v3439
  %v4250 = vpop.f32.mrb[0].mxu0
  %v4251 = vadd.f32 0.0, %v4250
  %v4252 = vpop.f32.mrb[0].mxu0
  %v4253 = vadd.f32 0.0, %v4252
  %v4254 = vpop.f32.mrb[0].mxu0
  %v4255 = vadd.f32 0.0, %v4254
  %v4256 = vpop.f32.mrb[0].mxu0
  %v4257 = vadd.f32 0.0, %v4256
  %4258 = vmatprep.mubr.bf16.mxu0 %v3444
  %4259 = vmatmul.mubr.bf16.gmra.mrb[0].mxu0 %v3443
  %v4260 = vpop.f32.mrb[0].mxu0
  %v4261 = vadd.f32 0.0, %v4260
  %v4262 = vpop.f32.mrb[0].mxu0
  %v4263 = vadd.f32 0.0, %v4262
  %v4264 = vpop.f32.mrb[0].mxu0
  %v4265 = vadd.f32 0.0, %v4264
  %v4266 = vpop.f32.mrb[0].mxu0
  %v4267 = vadd.f32 0.0, %v4266
  %4268 = vdwg.mxu0
  %4269 = vmatprep.subr.bf16.mxu0 %v4025
  %4270 = vmatpush1.bf16.msra.mxu0 %v4024
  %4271 = vmatprep.subr.bf16.mxu0 %v4029
  %4272 = vmatpush1.bf16.msra.mxu0 %v4028
  %4273 = vmatprep.subr.bf16.mxu0 %v4033
  %4274 = vmatpush1.bf16.msra.mxu0 %v4032
  %4275 = vmatprep.subr.bf16.mxu0 %v4037
  %4276 = vmatpush1.bf16.msra.mxu0 %v4036
  %4277 = vmatprep.subr.bf16.mxu0 %v4041
  %4278 = vmatpush1.bf16.msra.mxu0 %v4040
  %4279 = vmatprep.subr.bf16.mxu0 %v4045
  %4280 = vmatpush1.bf16.msra.mxu0 %v4044
  %4281 = vmatprep.subr.bf16.mxu0 %v4049
  %4282 = vmatpush1.bf16.msra.mxu0 %v4048
  %4283 = vmatprep.subr.bf16.mxu0 %v4053
  %4284 = vmatpush1.bf16.msra.mxu0 %v4052
  %4285 = vmatprep.subr.bf16.mxu0 %v4057
  %4286 = vmatpush1.bf16.msra.mxu0 %v4056
  %4287 = vmatprep.subr.bf16.mxu0 %v4061
  %4288 = vmatpush1.bf16.msra.mxu0 %v4060
  %4289 = vmatprep.subr.bf16.mxu0 %v4065
  %4290 = vmatpush1.bf16.msra.mxu0 %v4064
  %4291 = vmatprep.subr.bf16.mxu0 %v4069
  %4292 = vmatpush1.bf16.msra.mxu0 %v4068
  %4293 = vmatprep.subr.bf16.mxu0 %v4073
  %4294 = vmatpush1.bf16.msra.mxu0 %v4072
  %4295 = vmatprep.subr.bf16.mxu0 %v4077
  %4296 = vmatpush1.bf16.msra.mxu0 %v4076
  %4297 = vmatprep.subr.bf16.mxu0 %v4081
  %4298 = vmatpush1.bf16.msra.mxu0 %v4080
  %4299 = vmatprep.subr.bf16.mxu0 %v4085
  %4300 = vmatpush1.bf16.msra.mxu0 %v4084
  %4301 = vmatprep.mubr.bf16.mxu0 %v3442
  %4302 = vmatmul.mubr.bf16.gmra.mrb[0].mxu0 %v3441
  %v4303 = vpop.f32.mrb[0].mxu0
  %v4304 = vadd.f32 %v4251, %v4303
  %v4305 = vpop.f32.mrb[0].mxu0
  %v4306 = vadd.f32 %v4253, %v4305
  %v4307 = vpop.f32.mrb[0].mxu0
  %v4308 = vadd.f32 %v4255, %v4307
  %v4309 = vpop.f32.mrb[0].mxu0
  %v4310 = vadd.f32 %v4257, %v4309
  %4311 = vmatprep.mubr.bf16.mxu0 %v3446
  %4312 = vmatmul.mubr.bf16.gmra.mrb[0].mxu0 %v3445
  %v4313 = vpop.f32.mrb[0].mxu0
  %v4314 = vadd.f32 %v4261, %v4313
  %v4315 = vpop.f32.mrb[0].mxu0
  %v4316 = vadd.f32 %v4263, %v4315
  %v4317 = vpop.f32.mrb[0].mxu0
  %v4318 = vadd.f32 %v4265, %v4317
  %v4319 = vpop.f32.mrb[0].mxu0
  %v4320 = vadd.f32 %v4267, %v4319
  %4321 = vdwg.mxu0
  %4322 = vmatprep.subr.bf16.mxu0 %v3963
  %4323 = vmatpush1.bf16.msra.mxu0 %v3962
  %4324 = vmatprep.subr.bf16.mxu0 %v3967
  %4325 = vmatpush1.bf16.msra.mxu0 %v3966
  %4326 = vmatprep.subr.bf16.mxu0 %v3971
  %4327 = vmatpush1.bf16.msra.mxu0 %v3970
  %4328 = vmatprep.subr.bf16.mxu0 %v3975
  %4329 = vmatpush1.bf16.msra.mxu0 %v3974
  %4330 = vmatprep.subr.bf16.mxu0 %v3979
  %4331 = vmatpush1.bf16.msra.mxu0 %v3978
  %4332 = vmatprep.subr.bf16.mxu0 %v3983
  %4333 = vmatpush1.bf16.msra.mxu0 %v3982
  %4334 = vmatprep.subr.bf16.mxu0 %v3987
  %4335 = vmatpush1.bf16.msra.mxu0 %v3986
  %4336 = vmatprep.subr.bf16.mxu0 %v3991
  %4337 = vmatpush1.bf16.msra.mxu0 %v3990
  %4338 = vmatprep.subr.bf16.mxu0 %v3995
  %4339 = vmatpush1.bf16.msra.mxu0 %v3994
  %4340 = vmatprep.subr.bf16.mxu0 %v3999
  %4341 = vmatpush1.bf16.msra.mxu0 %v3998
  %4342 = vmatprep.subr.bf16.mxu0 %v4003
  %4343 = vmatpush1.bf16.msra.mxu0 %v4002
  %4344 = vmatprep.subr.bf16.mxu0 %v4007
  %4345 = vmatpush1.bf16.msra.mxu0 %v4006
  %4346 = vmatprep.subr.bf16.mxu0 %v4011
  %4347 = vmatpush1.bf16.msra.mxu0 %v4010
  %4348 = vmatprep.subr.bf16.mxu0 %v4015
  %4349 = vmatpush1.bf16.msra.mxu0 %v4014
  %4350 = vmatprep.subr.bf16.mxu0 %v4019
  %4351 = vmatpush1.bf16.msra.mxu0 %v4018
  %4352 = vmatprep.subr.bf16.mxu0 %v4023
  %4353 = vmatpush1.bf16.msra.mxu0 %v4022
  %4354 = vmatprep.mubr.bf16.mxu0 %v3440
  %4355 = vmatmul.mubr.bf16.gmra.mrb[0].mxu0 %v3439
  %v4356 = vpop.f32.mrb[0].mxu0
  %v4357 = vadd.f32 0.0, %v4356
  %v4358 = vpop.f32.mrb[0].mxu0
  %v4359 = vadd.f32 0.0, %v4358
  %v4360 = vpop.f32.mrb[0].mxu0
  %v4361 = vadd.f32 0.0, %v4360
  %v4362 = vpop.f32.mrb[0].mxu0
  %v4363 = vadd.f32 0.0, %v4362
  %4364 = vmatprep.mubr.bf16.mxu0 %v3444
  %4365 = vmatmul.mubr.bf16.gmra.mrb[0].mxu0 %v3443
  %v4366 = vpop.f32.mrb[0].mxu0
  %v4367 = vadd.f32 0.0, %v4366
  %v4368 = vpop.f32.mrb[0].mxu0
  %v4369 = vadd.f32 0.0, %v4368
  %v4370 = vpop.f32.mrb[0].mxu0
  %v4371 = vadd.f32 0.0, %v4370
  %v4372 = vpop.f32.mrb[0].mxu0
  %v4373 = vadd.f32 0.0, %v4372
  %4374 = vdwg.mxu0
  %4375 = vmatprep.subr.bf16.mxu0 %v4027
  %4376 = vmatpush1.bf16.msra.mxu0 %v4026
  %4377 = vmatprep.subr.bf16.mxu0 %v4031
  %4378 = vmatpush1.bf16.msra.mxu0 %v4030
  %4379 = vmatprep.subr.bf16.mxu0 %v4035
  %4380 = vmatpush1.bf16.msra.mxu0 %v4034
  %4381 = vmatprep.subr.bf16.mxu0 %v4039
  %4382 = vmatpush1.bf16.msra.mxu0 %v4038
  %4383 = vmatprep.subr.bf16.mxu0 %v4043
  %4384 = vmatpush1.bf16.msra.mxu0 %v4042
  %4385 = vmatprep.subr.bf16.mxu0 %v4047
  %4386 = vmatpush1.bf16.msra.mxu0 %v4046
  %4387 = vmatprep.subr.bf16.mxu0 %v4051
  %4388 = vmatpush1.bf16.msra.mxu0 %v4050
  %4389 = vmatprep.subr.bf16.mxu0 %v4055
  %4390 = vmatpush1.bf16.msra.mxu0 %v4054
  %4391 = vmatprep.subr.bf16.mxu0 %v4059
  %4392 = vmatpush1.bf16.msra.mxu0 %v4058
  %4393 = vmatprep.subr.bf16.mxu0 %v4063
  %4394 = vmatpush1.bf16.msra.mxu0 %v4062
  %4395 = vmatprep.subr.bf16.mxu0 %v4067
  %4396 = vmatpush1.bf16.msra.mxu0 %v4066
  %4397 = vmatprep.subr.bf16.mxu0 %v4071
  %4398 = vmatpush1.bf16.msra.mxu0 %v4070
  %4399 = vmatprep.subr.bf16.mxu0 %v4075
  %4400 = vmatpush1.bf16.msra.mxu0 %v4074
  %4401 = vmatprep.subr.bf16.mxu0 %v4079
  %4402 = vmatpush1.bf16.msra.mxu0 %v4078
  %4403 = vmatprep.subr.bf16.mxu0 %v4083
  %4404 = vmatpush1.bf16.msra.mxu0 %v4082
  %4405 = vmatprep.subr.bf16.mxu0 %v4087
  %4406 = vmatpush1.bf16.msra.mxu0 %v4086
  %4407 = vmatprep.mubr.bf16.mxu0 %v3442
  %4408 = vmatmul.mubr.bf16.gmra.mrb[0].mxu0 %v3441
  %v4409 = vpop.f32.mrb[0].mxu0
  %v4410 = vadd.f32 %v4357, %v4409
  %v4411 = vpop.f32.mrb[0].mxu0
  %v4412 = vadd.f32 %v4359, %v4411
  %v4413 = vpop.f32.mrb[0].mxu0
  %v4414 = vadd.f32 %v4361, %v4413
  %v4415 = vpop.f32.mrb[0].mxu0
  %v4416 = vadd.f32 %v4363, %v4415
  %4417 = vmatprep.mubr.bf16.mxu0 %v3446
  %4418 = vmatmul.mubr.bf16.gmra.mrb[0].mxu0 %v3445
  %v4419 = vpop.f32.mrb[0].mxu0
  %v4420 = vadd.f32 %v4367, %v4419
  %v4421 = vpop.f32.mrb[0].mxu0
  %v4422 = vadd.f32 %v4369, %v4421
  %v4423 = vpop.f32.mrb[0].mxu0
  %v4424 = vadd.f32 %v4371, %v4423
  %v4425 = vpop.f32.mrb[0].mxu0
  %v4426 = vadd.f32 %v4373, %v4425
  %4427 = vdwg.mxu0
  %v4428 = vadd.f32 %v3315, %v4304
  %v4429 = vadd.f32 %v3317, %v4306
  %v4430 = vadd.f32 %v3421, %v4410
  %v4431 = vadd.f32 %v3423, %v4412
  %v4432 = vadd.f32 %v3319, %v4308
  %v4433 = vadd.f32 %v3321, %v4310
  %v4434 = vadd.f32 %v3425, %v4414
  %v4435 = vadd.f32 %v3427, %v4416
  %v4436 = vadd.f32 %v3325, %v4314
  %v4437 = vadd.f32 %v3327, %v4316
  %v4438 = vadd.f32 %v3431, %v4420
  %v4439 = vadd.f32 %v3433, %v4422
  %v4440 = vadd.f32 %v3329, %v4318
  %v4441 = vadd.f32 %v3331, %v4320
  %v4442 = vadd.f32 %v3435, %v4424
  %v4443 = vadd.f32 %v3437, %v4426
  %v4444 = vld [vmem:[%s5] sm:$0xf]
  %v4446 = vlaneseq
  %v4447 = vshrl.u32 %v4446, 7
  %v4448 = vsub.s32 0, %v4447
  %v4449 = vrot.slane %v4444, %v4448
  %v4450 = vlaneseq
  %v4451 = vshrl.u32 %v4450, 7
  %v4452 = vsub.s32 1, %v4451
  %v4453 = vrot.slane %v4444, %v4452
  %v4454 = vlaneseq
  %v4455 = vshrl.u32 %v4454, 7
  %v4456 = vsub.s32 2, %v4455
  %v4457 = vrot.slane %v4444, %v4456
  %v4458 = vlaneseq
  %v4459 = vshrl.u32 %v4458, 7
  %v4460 = vsub.s32 3, %v4459
  %v4461 = vrot.slane %v4444, %v4460
  %v4466 = vadd.f32 %v4428, %v4449
  %v4467 = vadd.f32 %v4429, %v4453
  %v4468 = vadd.f32 %v4430, %v4457
  %v4469 = vadd.f32 %v4431, %v4461
  %v4470 = vadd.f32 %v4432, %v4449
  %v4471 = vadd.f32 %v4433, %v4453
  %v4472 = vadd.f32 %v4434, %v4457
  %v4473 = vadd.f32 %v4435, %v4461
  %v4474 = vadd.f32 %v4436, %v4449
  %v4475 = vadd.f32 %v4437, %v4453
  %v4476 = vadd.f32 %v4438, %v4457
  %v4477 = vadd.f32 %v4439, %v4461
  %v4478 = vadd.f32 %v4440, %v4449
  %v4479 = vadd.f32 %v4441, %v4453
  %v4480 = vadd.f32 %v4442, %v4457
  %v4481 = vadd.f32 %v4443, %v4461
  %v4482 = vmax.f32 %v4466, 0.0
  %v4483 = vmax.f32 %v4467, 0.0
  %v4484 = vmax.f32 %v4468, 0.0
  %v4485 = vmax.f32 %v4469, 0.0
  %v4486 = vmax.f32 %v4470, 0.0
  %v4487 = vmax.f32 %v4471, 0.0
  %v4488 = vmax.f32 %v4472, 0.0
  %v4489 = vmax.f32 %v4473, 0.0
  %v4490 = vmax.f32 %v4474, 0.0
  %v4491 = vmax.f32 %v4475, 0.0
  %v4492 = vmax.f32 %v4476, 0.0
  %v4493 = vmax.f32 %v4477, 0.0
  %v4494 = vmax.f32 %v4478, 0.0
  %v4495 = vmax.f32 %v4479, 0.0
  %v4496 = vmax.f32 %v4480, 0.0
  %v4497 = vmax.f32 %v4481, 0.0
  %4498 = vst [vmem:[%s10] sm:$0xff] %v4482
  %4499 = vst [vmem:[%s10 + $0x8] sm:$0xff] %v4483
  %4500 = vst [vmem:[%s10 + $0x10] sm:$0xff] %v4484
  %4501 = vst [vmem:[%s10 + $0x18] sm:$0xff] %v4485
  %4502 = vst [vmem:[%s10 + $0x20] sm:$0xff] %v4486
  %4503 = vst [vmem:[%s10 + $0x28] sm:$0xff] %v4487
  %4504 = vst [vmem:[%s10 + $0x30] sm:$0xff] %v4488
  %4505 = vst [vmem:[%s10 + $0x38] sm:$0xff] %v4489
  %4506 = vst [vmem:[%s10 + $0x40] sm:$0xff] %v4490
  %4507 = vst [vmem:[%s10 + $0x48] sm:$0xff] %v4491
  %4508 = vst [vmem:[%s10 + $0x50] sm:$0xff] %v4492
  %4509 = vst [vmem:[%s10 + $0x58] sm:$0xff] %v4493
  %4510 = vst [vmem:[%s10 + $0x60] sm:$0xff] %v4494
  %4511 = vst [vmem:[%s10 + $0x68] sm:$0xff] %v4495
  %4512 = vst [vmem:[%s10 + $0x70] sm:$0xff] %v4496
  %4513 = vst [vmem:[%s10 + $0x78] sm:$0xff] %v4497
  %4514 = vst.msk [vmem:[#allocation3] ss:$8 sm:$0xf] %vm1351, 0.0
  %4515 = vst.msk [vmem:[#allocation3] ss:$8 sm:$0x0] %vm1351, 0.0
  %s4516 = scalar_lea.vmem [#allocation3], 96
  %4517 = vst.msk [vmem:[%s4516] ss:$8 sm:$0xf] %vm1351, 0.0
  %4518 = vst.msk [vmem:[%s4516] ss:$8 sm:$0x0] %vm1351, 0.0
  %s4519 = scalar_lea.vmem [#allocation3], 65
  %4520 = vst.msk [vmem:[%s4519] ss:$8 sm:$0xf] %vm1351, 0.0
  %4521 = vst.msk [vmem:[%s4519] ss:$8 sm:$0x0] %vm1351, 0.0
  %s4522 = scalar_lea.vmem [#allocation3], 161
  %4523 = vst.msk [vmem:[%s4522] ss:$8 sm:$0xf] %vm1351, 0.0
  %4524 = vst.msk [vmem:[%s4522] ss:$8 sm:$0x0] %vm1351, 0.0
  %v4541 = vrot.slane %v4482, 7
  %v4542 = vrot.slane %v4483, 7
  %v4543 = vrot.slane %v4484, 7
  %v4544 = vrot.slane %v4485, 7
  %v4545 = vrot.slane %v4486, 7
  %v4546 = vsel %vm1373, %v4541, %v4545
  %v4547 = vrot.slane %v4487, 7
  %v4548 = vsel %vm1373, %v4542, %v4547
  %v4549 = vrot.slane %v4488, 7
  %v4550 = vsel %vm1373, %v4543, %v4549
  %v4551 = vrot.slane %v4489, 7
  %v4552 = vsel %vm1373, %v4544, %v4551
  %v4553 = vrot.slane %v4490, 7
  %v4554 = vrot.slane %v4491, 7
  %v4555 = vrot.slane %v4492, 7
  %v4556 = vrot.slane %v4493, 7
  %v4557 = vrot.slane %v4494, 7
  %v4558 = vsel %vm1373, %v4553, %v4557
  %v4559 = vrot.slane %v4495, 7
  %v4560 = vsel %vm1373, %v4554, %v4559
  %v4561 = vrot.slane %v4496, 7
  %v4562 = vsel %vm1373, %v4555, %v4561
  %v4563 = vrot.slane %v4497, 7
  %v4564 = vsel %vm1373, %v4556, %v4563
  %4589 = vst [vmem:[#allocation3] sm:$0xfe] %v4541
  %4590 = vst [vmem:[#allocation3 + $0x8] sm:$0xfe] %v4542
  %4591 = vst [vmem:[#allocation3 + $0x10] sm:$0xfe] %v4543
  %4592 = vst [vmem:[#allocation3 + $0x18] sm:$0xfe] %v4544
  %4593 = vst [vmem:[#allocation3 + $0x20] sm:$0xff] %v4546
  %4594 = vst [vmem:[#allocation3 + $0x28] sm:$0xff] %v4548
  %4595 = vst [vmem:[#allocation3 + $0x30] sm:$0xff] %v4550
  %4596 = vst [vmem:[#allocation3 + $0x38] sm:$0xff] %v4552
  %4597 = vst [vmem:[#allocation3 + $0x40] sm:$0x1] %v4545
  %4598 = vst [vmem:[#allocation3 + $0x48] sm:$0x1] %v4547
  %4599 = vst [vmem:[#allocation3 + $0x50] sm:$0x1] %v4549
  %4600 = vst [vmem:[#allocation3 + $0x58] sm:$0x1] %v4551
  %4601 = vst [vmem:[#allocation3 + $0x60] sm:$0xfe] %v4553
  %4602 = vst [vmem:[#allocation3 + $0x68] sm:$0xfe] %v4554
  %4603 = vst [vmem:[#allocation3 + $0x70] sm:$0xfe] %v4555
  %4604 = vst [vmem:[#allocation3 + $0x78] sm:$0xfe] %v4556
  %4605 = vst [vmem:[#allocation3 + $0x80] sm:$0xff] %v4558
  %4606 = vst [vmem:[#allocation3 + $0x88] sm:$0xff] %v4560
  %4607 = vst [vmem:[#allocation3 + $0x90] sm:$0xff] %v4562
  %4608 = vst [vmem:[#allocation3 + $0x98] sm:$0xff] %v4564
  %4609 = vst [vmem:[#allocation3 + $0xa0] sm:$0x1] %v4557
  %4610 = vst [vmem:[#allocation3 + $0xa8] sm:$0x1] %v4559
  %4611 = vst [vmem:[#allocation3 + $0xb0] sm:$0x1] %v4561
  %4612 = vst [vmem:[#allocation3 + $0xb8] sm:$0x1] %v4563
  %v4613 = vld [vmem:[#allocation3] sm:$0xff]
  %v4614 = vld [vmem:[#allocation3 + $0x8] sm:$0xff]
  %v4615 = vld [vmem:[#allocation3 + $0x10] sm:$0xff]
  %v4616 = vld [vmem:[#allocation3 + $0x18] sm:$0xff]
  %v4617 = vld [vmem:[#allocation3 + $0x20] sm:$0xff]
  %v4618 = vld [vmem:[#allocation3 + $0x28] sm:$0xff]
  %v4619 = vld [vmem:[#allocation3 + $0x30] sm:$0xff]
  %v4620 = vld [vmem:[#allocation3 + $0x38] sm:$0xff]
  %v4621 = vld [vmem:[#allocation3 + $0x60] sm:$0xff]
  %v4622 = vld [vmem:[#allocation3 + $0x68] sm:$0xff]
  %v4623 = vld [vmem:[#allocation3 + $0x70] sm:$0xff]
  %v4624 = vld [vmem:[#allocation3 + $0x78] sm:$0xff]
  %v4625 = vld [vmem:[#allocation3 + $0x80] sm:$0xff]
  %v4626 = vld [vmem:[#allocation3 + $0x88] sm:$0xff]
  %v4627 = vld [vmem:[#allocation3 + $0x90] sm:$0xff]
  %v4628 = vld [vmem:[#allocation3 + $0x98] sm:$0xff]
  %v4629 = vpack.c.bf16 %v4617, %v4613
  %v4630 = vpack.c.bf16 %v4618, %v4614
  %v4631 = vpack.c.bf16 %v4619, %v4615
  %v4632 = vpack.c.bf16 %v4620, %v4616
  %v4633 = vpack.c.bf16 %v4625, %v4621
  %v4634 = vpack.c.bf16 %v4626, %v4622
  %v4635 = vpack.c.bf16 %v4627, %v4623
  %v4636 = vpack.c.bf16 %v4628, %v4624
  %v4637 = vld [vmem:[#allocation3] sm:$0xfc]
  %v4638 = vld [vmem:[#allocation3 + $0x8] sm:$0xfc]
  %v4639 = vld [vmem:[#allocation3 + $0x10] sm:$0xfc]
  %v4640 = vld [vmem:[#allocation3 + $0x18] sm:$0xfc]
  %v4641 = vld [vmem:[#allocation3 + $0x40] sm:$0x3]
  %v4642 = vld [vmem:[#allocation3 + $0x48] sm:$0x3]
  %v4643 = vld [vmem:[#allocation3 + $0x50] sm:$0x3]
  %v4644 = vld [vmem:[#allocation3 + $0x58] sm:$0x3]
  %v4645 = vld [vmem:[#allocation3 + $0x60] sm:$0xfc]
  %v4646 = vld [vmem:[#allocation3 + $0x68] sm:$0xfc]
  %v4647 = vld [vmem:[#allocation3 + $0x70] sm:$0xfc]
  %v4648 = vld [vmem:[#allocation3 + $0x78] sm:$0xfc]
  %v4649 = vld [vmem:[#allocation3 + $0xa0] sm:$0x3]
  %v4650 = vld [vmem:[#allocation3 + $0xa8] sm:$0x3]
  %v4651 = vld [vmem:[#allocation3 + $0xb0] sm:$0x3]
  %v4652 = vld [vmem:[#allocation3 + $0xb8] sm:$0x3]
  %vm4677 = vcmask 1045504
  %v4678 = vrot.slane %v4637, 2
  %v4679 = vrot.slane %v4617, 2
  %v4680 = vsel %vm4677, %v4678, %v4679
  %v4681 = vrot.slane %v4638, 2
  %v4682 = vrot.slane %v4618, 2
  %v4683 = vsel %vm4677, %v4681, %v4682
  %v4684 = vrot.slane %v4639, 2
  %v4685 = vrot.slane %v4619, 2
  %v4686 = vsel %vm4677, %v4684, %v4685
  %v4687 = vrot.slane %v4640, 2
  %v4688 = vrot.slane %v4620, 2
  %v4689 = vsel %vm4677, %v4687, %v4688
  %v4690 = vrot.slane %v4641, 2
  %v4691 = vsel %vm4677, %v4679, %v4690
  %v4692 = vrot.slane %v4642, 2
  %v4693 = vsel %vm4677, %v4682, %v4692
  %v4694 = vrot.slane %v4643, 2
  %v4695 = vsel %vm4677, %v4685, %v4694
  %v4696 = vrot.slane %v4644, 2
  %v4697 = vsel %vm4677, %v4688, %v4696
  %v4698 = vrot.slane %v4645, 2
  %v4699 = vrot.slane %v4625, 2
  %v4700 = vsel %vm4677, %v4698, %v4699
  %v4701 = vrot.slane %v4646, 2
  %v4702 = vrot.slane %v4626, 2
  %v4703 = vsel %vm4677, %v4701, %v4702
  %v4704 = vrot.slane %v4647, 2
  %v4705 = vrot.slane %v4627, 2
  %v4706 = vsel %vm4677, %v4704, %v4705
  %v4707 = vrot.slane %v4648, 2
  %v4708 = vrot.slane %v4628, 2
  %v4709 = vsel %vm4677, %v4707, %v4708
  %v4710 = vrot.slane %v4649, 2
  %v4711 = vsel %vm4677, %v4699, %v4710
  %v4712 = vrot.slane %v4650, 2
  %v4713 = vsel %vm4677, %v4702, %v4712
  %v4714 = vrot.slane %v4651, 2
  %v4715 = vsel %vm4677, %v4705, %v4714
  %v4716 = vrot.slane %v4652, 2
  %v4717 = vsel %vm4677, %v4708, %v4716
  %v4734 = vpack.c.bf16 %v4691, %v4680
  %v4735 = vpack.c.bf16 %v4693, %v4683
  %v4736 = vpack.c.bf16 %v4695, %v4686
  %v4737 = vpack.c.bf16 %v4697, %v4689
  %v4738 = vpack.c.bf16 %v4711, %v4700
  %v4739 = vpack.c.bf16 %v4713, %v4703
  %v4740 = vpack.c.bf16 %v4715, %v4706
  %v4741 = vpack.c.bf16 %v4717, %v4709
  %v4742 = vld [vmem:[%s6] sm:$0xff]
  %v4743 = vld [vmem:[%s6 + $0x8] sm:$0xff]
  %v4744 = vld [vmem:[%s6 + $0x10] sm:$0xff]
  %v4745 = vld [vmem:[%s6 + $0x18] sm:$0xff]
  %v4746 = vld [vmem:[%s6 + $0x20] sm:$0xff]
  %v4747 = vld [vmem:[%s6 + $0x28] sm:$0xff]
  %v4748 = vld [vmem:[%s6 + $0x30] sm:$0xff]
  %v4749 = vld [vmem:[%s6 + $0x38] sm:$0xff]
  %v4750 = vld [vmem:[%s6 + $0x40] sm:$0xff]
  %v4751 = vld [vmem:[%s6 + $0x48] sm:$0xff]
  %v4752 = vld [vmem:[%s6 + $0x50] sm:$0xff]
  %v4753 = vld [vmem:[%s6 + $0x58] sm:$0xff]
  %v4754 = vld [vmem:[%s6 + $0x60] sm:$0xff]
  %v4755 = vld [vmem:[%s6 + $0x68] sm:$0xff]
  %v4756 = vld [vmem:[%s6 + $0x70] sm:$0xff]
  %v4757 = vld [vmem:[%s6 + $0x78] sm:$0xff]
  %v4758 = vld [vmem:[%s6 + $0x80] sm:$0xff]
  %v4759 = vld [vmem:[%s6 + $0x88] sm:$0xff]
  %v4760 = vld [vmem:[%s6 + $0x90] sm:$0xff]
  %v4761 = vld [vmem:[%s6 + $0x98] sm:$0xff]
  %v4762 = vld [vmem:[%s6 + $0xa0] sm:$0xff]
  %v4763 = vld [vmem:[%s6 + $0xa8] sm:$0xff]
  %v4764 = vld [vmem:[%s6 + $0xb0] sm:$0xff]
  %v4765 = vld [vmem:[%s6 + $0xb8] sm:$0xff]
  %v4766 = vld [vmem:[%s6 + $0xc0] sm:$0xff]
  %v4767 = vld [vmem:[%s6 + $0xc8] sm:$0xff]
  %v4768 = vld [vmem:[%s6 + $0xd0] sm:$0xff]
  %v4769 = vld [vmem:[%s6 + $0xd8] sm:$0xff]
  %v4770 = vld [vmem:[%s6 + $0xe0] sm:$0xff]
  %v4771 = vld [vmem:[%s6 + $0xe8] sm:$0xff]
  %v4772 = vld [vmem:[%s6 + $0xf0] sm:$0xff]
  %v4773 = vld [vmem:[%s6 + $0xf8] sm:$0xff]
  %v4774 = vld [vmem:[%s6 + $0x100] sm:$0xff]
  %v4775 = vld [vmem:[%s6 + $0x108] sm:$0xff]
  %v4776 = vld [vmem:[%s6 + $0x110] sm:$0xff]
  %v4777 = vld [vmem:[%s6 + $0x118] sm:$0xff]
  %v4778 = vld [vmem:[%s6 + $0x120] sm:$0xff]
  %v4779 = vld [vmem:[%s6 + $0x128] sm:$0xff]
  %v4780 = vld [vmem:[%s6 + $0x130] sm:$0xff]
  %v4781 = vld [vmem:[%s6 + $0x138] sm:$0xff]
  %v4782 = vld [vmem:[%s6 + $0x140] sm:$0xff]
  %v4783 = vld [vmem:[%s6 + $0x148] sm:$0xff]
  %v4784 = vld [vmem:[%s6 + $0x150] sm:$0xff]
  %v4785 = vld [vmem:[%s6 + $0x158] sm:$0xff]
  %v4786 = vld [vmem:[%s6 + $0x160] sm:$0xff]
  %v4787 = vld [vmem:[%s6 + $0x168] sm:$0xff]
  %v4788 = vld [vmem:[%s6 + $0x170] sm:$0xff]
  %v4789 = vld [vmem:[%s6 + $0x178] sm:$0xff]
  %v4790 = vld [vmem:[%s6 + $0x180] sm:$0xff]
  %v4791 = vld [vmem:[%s6 + $0x188] sm:$0xff]
  %v4792 = vld [vmem:[%s6 + $0x190] sm:$0xff]
  %v4793 = vld [vmem:[%s6 + $0x198] sm:$0xff]
  %v4794 = vld [vmem:[%s6 + $0x1a0] sm:$0xff]
  %v4795 = vld [vmem:[%s6 + $0x1a8] sm:$0xff]
  %v4796 = vld [vmem:[%s6 + $0x1b0] sm:$0xff]
  %v4797 = vld [vmem:[%s6 + $0x1b8] sm:$0xff]
  %v4798 = vld [vmem:[%s6 + $0x1c0] sm:$0xff]
  %v4799 = vld [vmem:[%s6 + $0x1c8] sm:$0xff]
  %v4800 = vld [vmem:[%s6 + $0x1d0] sm:$0xff]
  %v4801 = vld [vmem:[%s6 + $0x1d8] sm:$0xff]
  %v4802 = vld [vmem:[%s6 + $0x1e0] sm:$0xff]
  %v4803 = vld [vmem:[%s6 + $0x1e8] sm:$0xff]
  %v4804 = vld [vmem:[%s6 + $0x1f0] sm:$0xff]
  %v4805 = vld [vmem:[%s6 + $0x1f8] sm:$0xff]
  %v4806 = vld [vmem:[%s6 + $0x200] sm:$0xff]
  %v4807 = vld [vmem:[%s6 + $0x208] sm:$0xff]
  %v4808 = vld [vmem:[%s6 + $0x210] sm:$0xff]
  %v4809 = vld [vmem:[%s6 + $0x218] sm:$0xff]
  %v4810 = vld [vmem:[%s6 + $0x220] sm:$0xff]
  %v4811 = vld [vmem:[%s6 + $0x228] sm:$0xff]
  %v4812 = vld [vmem:[%s6 + $0x230] sm:$0xff]
  %v4813 = vld [vmem:[%s6 + $0x238] sm:$0xff]
  %v4814 = vld [vmem:[%s6 + $0x240] sm:$0xff]
  %v4815 = vld [vmem:[%s6 + $0x248] sm:$0xff]
  %v4816 = vld [vmem:[%s6 + $0x250] sm:$0xff]
  %v4817 = vld [vmem:[%s6 + $0x258] sm:$0xff]
  %v4818 = vld [vmem:[%s6 + $0x260] sm:$0xff]
  %v4819 = vld [vmem:[%s6 + $0x268] sm:$0xff]
  %v4820 = vld [vmem:[%s6 + $0x270] sm:$0xff]
  %v4821 = vld [vmem:[%s6 + $0x278] sm:$0xff]
  %v4822 = vld [vmem:[%s6 + $0x280] sm:$0xff]
  %v4823 = vld [vmem:[%s6 + $0x288] sm:$0xff]
  %v4824 = vld [vmem:[%s6 + $0x290] sm:$0xff]
  %v4825 = vld [vmem:[%s6 + $0x298] sm:$0xff]
  %v4826 = vld [vmem:[%s6 + $0x2a0] sm:$0xff]
  %v4827 = vld [vmem:[%s6 + $0x2a8] sm:$0xff]
  %v4828 = vld [vmem:[%s6 + $0x2b0] sm:$0xff]
  %v4829 = vld [vmem:[%s6 + $0x2b8] sm:$0xff]
  %v4830 = vld [vmem:[%s6 + $0x2c0] sm:$0xff]
  %v4831 = vld [vmem:[%s6 + $0x2c8] sm:$0xff]
  %v4832 = vld [vmem:[%s6 + $0x2d0] sm:$0xff]
  %v4833 = vld [vmem:[%s6 + $0x2d8] sm:$0xff]
  %v4834 = vld [vmem:[%s6 + $0x2e0] sm:$0xff]
  %v4835 = vld [vmem:[%s6 + $0x2e8] sm:$0xff]
  %v4836 = vld [vmem:[%s6 + $0x2f0] sm:$0xff]
  %v4837 = vld [vmem:[%s6 + $0x2f8] sm:$0xff]
  %v4838 = vld [vmem:[%s6 + $0x300] sm:$0xff]
  %v4839 = vld [vmem:[%s6 + $0x308] sm:$0xff]
  %v4840 = vld [vmem:[%s6 + $0x310] sm:$0xff]
  %v4841 = vld [vmem:[%s6 + $0x318] sm:$0xff]
  %v4842 = vld [vmem:[%s6 + $0x320] sm:$0xff]
  %v4843 = vld [vmem:[%s6 + $0x328] sm:$0xff]
  %v4844 = vld [vmem:[%s6 + $0x330] sm:$0xff]
  %v4845 = vld [vmem:[%s6 + $0x338] sm:$0xff]
  %v4846 = vld [vmem:[%s6 + $0x340] sm:$0xff]
  %v4847 = vld [vmem:[%s6 + $0x348] sm:$0xff]
  %v4848 = vld [vmem:[%s6 + $0x350] sm:$0xff]
  %v4849 = vld [vmem:[%s6 + $0x358] sm:$0xff]
  %v4850 = vld [vmem:[%s6 + $0x360] sm:$0xff]
  %v4851 = vld [vmem:[%s6 + $0x368] sm:$0xff]
  %v4852 = vld [vmem:[%s6 + $0x370] sm:$0xff]
  %v4853 = vld [vmem:[%s6 + $0x378] sm:$0xff]
  %v4854 = vld [vmem:[%s6 + $0x380] sm:$0xff]
  %v4855 = vld [vmem:[%s6 + $0x388] sm:$0xff]
  %v4856 = vld [vmem:[%s6 + $0x390] sm:$0xff]
  %v4857 = vld [vmem:[%s6 + $0x398] sm:$0xff]
  %v4858 = vld [vmem:[%s6 + $0x3a0] sm:$0xff]
  %v4859 = vld [vmem:[%s6 + $0x3a8] sm:$0xff]
  %v4860 = vld [vmem:[%s6 + $0x3b0] sm:$0xff]
  %v4861 = vld [vmem:[%s6 + $0x3b8] sm:$0xff]
  %v4862 = vld [vmem:[%s6 + $0x3c0] sm:$0xff]
  %v4863 = vld [vmem:[%s6 + $0x3c8] sm:$0xff]
  %v4864 = vld [vmem:[%s6 + $0x3d0] sm:$0xff]
  %v4865 = vld [vmem:[%s6 + $0x3d8] sm:$0xff]
  %v4866 = vld [vmem:[%s6 + $0x3e0] sm:$0xff]
  %v4867 = vld [vmem:[%s6 + $0x3e8] sm:$0xff]
  %v4868 = vld [vmem:[%s6 + $0x3f0] sm:$0xff]
  %v4869 = vld [vmem:[%s6 + $0x3f8] sm:$0xff]
  %v4870 = vpack.c.bf16 %v4486, %v4482
  %v4871 = vpack.c.bf16 %v4487, %v4483
  %v4872 = vpack.c.bf16 %v4488, %v4484
  %v4873 = vpack.c.bf16 %v4489, %v4485
  %v4874 = vpack.c.bf16 %v4494, %v4490
  %v4875 = vpack.c.bf16 %v4495, %v4491
  %v4876 = vpack.c.bf16 %v4496, %v4492
  %v4877 = vpack.c.bf16 %v4497, %v4493
  %s4878 = scalar_lea.vmem %s6, 1024
  %v4879 = vld [vmem:[%s4878] sm:$0xff]
  %v4880 = vld [vmem:[%s4878 + $0x8] sm:$0xff]
  %v4881 = vld [vmem:[%s4878 + $0x10] sm:$0xff]
  %v4882 = vld [vmem:[%s4878 + $0x18] sm:$0xff]
  %v4883 = vld [vmem:[%s4878 + $0x20] sm:$0xff]
  %v4884 = vld [vmem:[%s4878 + $0x28] sm:$0xff]
  %v4885 = vld [vmem:[%s4878 + $0x30] sm:$0xff]
  %v4886 = vld [vmem:[%s4878 + $0x38] sm:$0xff]
  %v4887 = vld [vmem:[%s4878 + $0x40] sm:$0xff]
  %v4888 = vld [vmem:[%s4878 + $0x48] sm:$0xff]
  %v4889 = vld [vmem:[%s4878 + $0x50] sm:$0xff]
  %v4890 = vld [vmem:[%s4878 + $0x58] sm:$0xff]
  %v4891 = vld [vmem:[%s4878 + $0x60] sm:$0xff]
  %v4892 = vld [vmem:[%s4878 + $0x68] sm:$0xff]
  %v4893 = vld [vmem:[%s4878 + $0x70] sm:$0xff]
  %v4894 = vld [vmem:[%s4878 + $0x78] sm:$0xff]
  %v4895 = vld [vmem:[%s4878 + $0x80] sm:$0xff]
  %v4896 = vld [vmem:[%s4878 + $0x88] sm:$0xff]
  %v4897 = vld [vmem:[%s4878 + $0x90] sm:$0xff]
  %v4898 = vld [vmem:[%s4878 + $0x98] sm:$0xff]
  %v4899 = vld [vmem:[%s4878 + $0xa0] sm:$0xff]
  %v4900 = vld [vmem:[%s4878 + $0xa8] sm:$0xff]
  %v4901 = vld [vmem:[%s4878 + $0xb0] sm:$0xff]
  %v4902 = vld [vmem:[%s4878 + $0xb8] sm:$0xff]
  %v4903 = vld [vmem:[%s4878 + $0xc0] sm:$0xff]
  %v4904 = vld [vmem:[%s4878 + $0xc8] sm:$0xff]
  %v4905 = vld [vmem:[%s4878 + $0xd0] sm:$0xff]
  %v4906 = vld [vmem:[%s4878 + $0xd8] sm:$0xff]
  %v4907 = vld [vmem:[%s4878 + $0xe0] sm:$0xff]
  %v4908 = vld [vmem:[%s4878 + $0xe8] sm:$0xff]
  %v4909 = vld [vmem:[%s4878 + $0xf0] sm:$0xff]
  %v4910 = vld [vmem:[%s4878 + $0xf8] sm:$0xff]
  %v4911 = vld [vmem:[%s4878 + $0x100] sm:$0xff]
  %v4912 = vld [vmem:[%s4878 + $0x108] sm:$0xff]
  %v4913 = vld [vmem:[%s4878 + $0x110] sm:$0xff]
  %v4914 = vld [vmem:[%s4878 + $0x118] sm:$0xff]
  %v4915 = vld [vmem:[%s4878 + $0x120] sm:$0xff]
  %v4916 = vld [vmem:[%s4878 + $0x128] sm:$0xff]
  %v4917 = vld [vmem:[%s4878 + $0x130] sm:$0xff]
  %v4918 = vld [vmem:[%s4878 + $0x138] sm:$0xff]
  %v4919 = vld [vmem:[%s4878 + $0x140] sm:$0xff]
  %v4920 = vld [vmem:[%s4878 + $0x148] sm:$0xff]
  %v4921 = vld [vmem:[%s4878 + $0x150] sm:$0xff]
  %v4922 = vld [vmem:[%s4878 + $0x158] sm:$0xff]
  %v4923 = vld [vmem:[%s4878 + $0x160] sm:$0xff]
  %v4924 = vld [vmem:[%s4878 + $0x168] sm:$0xff]
  %v4925 = vld [vmem:[%s4878 + $0x170] sm:$0xff]
  %v4926 = vld [vmem:[%s4878 + $0x178] sm:$0xff]
  %v4927 = vld [vmem:[%s4878 + $0x180] sm:$0xff]
  %v4928 = vld [vmem:[%s4878 + $0x188] sm:$0xff]
  %v4929 = vld [vmem:[%s4878 + $0x190] sm:$0xff]
  %v4930 = vld [vmem:[%s4878 + $0x198] sm:$0xff]
  %v4931 = vld [vmem:[%s4878 + $0x1a0] sm:$0xff]
  %v4932 = vld [vmem:[%s4878 + $0x1a8] sm:$0xff]
  %v4933 = vld [vmem:[%s4878 + $0x1b0] sm:$0xff]
  %v4934 = vld [vmem:[%s4878 + $0x1b8] sm:$0xff]
  %v4935 = vld [vmem:[%s4878 + $0x1c0] sm:$0xff]
  %v4936 = vld [vmem:[%s4878 + $0x1c8] sm:$0xff]
  %v4937 = vld [vmem:[%s4878 + $0x1d0] sm:$0xff]
  %v4938 = vld [vmem:[%s4878 + $0x1d8] sm:$0xff]
  %v4939 = vld [vmem:[%s4878 + $0x1e0] sm:$0xff]
  %v4940 = vld [vmem:[%s4878 + $0x1e8] sm:$0xff]
  %v4941 = vld [vmem:[%s4878 + $0x1f0] sm:$0xff]
  %v4942 = vld [vmem:[%s4878 + $0x1f8] sm:$0xff]
  %v4943 = vld [vmem:[%s4878 + $0x200] sm:$0xff]
  %v4944 = vld [vmem:[%s4878 + $0x208] sm:$0xff]
  %v4945 = vld [vmem:[%s4878 + $0x210] sm:$0xff]
  %v4946 = vld [vmem:[%s4878 + $0x218] sm:$0xff]
  %v4947 = vld [vmem:[%s4878 + $0x220] sm:$0xff]
  %v4948 = vld [vmem:[%s4878 + $0x228] sm:$0xff]
  %v4949 = vld [vmem:[%s4878 + $0x230] sm:$0xff]
  %v4950 = vld [vmem:[%s4878 + $0x238] sm:$0xff]
  %v4951 = vld [vmem:[%s4878 + $0x240] sm:$0xff]
  %v4952 = vld [vmem:[%s4878 + $0x248] sm:$0xff]
  %v4953 = vld [vmem:[%s4878 + $0x250] sm:$0xff]
  %v4954 = vld [vmem:[%s4878 + $0x258] sm:$0xff]
  %v4955 = vld [vmem:[%s4878 + $0x260] sm:$0xff]
  %v4956 = vld [vmem:[%s4878 + $0x268] sm:$0xff]
  %v4957 = vld [vmem:[%s4878 + $0x270] sm:$0xff]
  %v4958 = vld [vmem:[%s4878 + $0x278] sm:$0xff]
  %v4959 = vld [vmem:[%s4878 + $0x280] sm:$0xff]
  %v4960 = vld [vmem:[%s4878 + $0x288] sm:$0xff]
  %v4961 = vld [vmem:[%s4878 + $0x290] sm:$0xff]
  %v4962 = vld [vmem:[%s4878 + $0x298] sm:$0xff]
  %v4963 = vld [vmem:[%s4878 + $0x2a0] sm:$0xff]
  %v4964 = vld [vmem:[%s4878 + $0x2a8] sm:$0xff]
  %v4965 = vld [vmem:[%s4878 + $0x2b0] sm:$0xff]
  %v4966 = vld [vmem:[%s4878 + $0x2b8] sm:$0xff]
  %v4967 = vld [vmem:[%s4878 + $0x2c0] sm:$0xff]
  %v4968 = vld [vmem:[%s4878 + $0x2c8] sm:$0xff]
  %v4969 = vld [vmem:[%s4878 + $0x2d0] sm:$0xff]
  %v4970 = vld [vmem:[%s4878 + $0x2d8] sm:$0xff]
  %v4971 = vld [vmem:[%s4878 + $0x2e0] sm:$0xff]
  %v4972 = vld [vmem:[%s4878 + $0x2e8] sm:$0xff]
  %v4973 = vld [vmem:[%s4878 + $0x2f0] sm:$0xff]
  %v4974 = vld [vmem:[%s4878 + $0x2f8] sm:$0xff]
  %v4975 = vld [vmem:[%s4878 + $0x300] sm:$0xff]
  %v4976 = vld [vmem:[%s4878 + $0x308] sm:$0xff]
  %v4977 = vld [vmem:[%s4878 + $0x310] sm:$0xff]
  %v4978 = vld [vmem:[%s4878 + $0x318] sm:$0xff]
  %v4979 = vld [vmem:[%s4878 + $0x320] sm:$0xff]
  %v4980 = vld [vmem:[%s4878 + $0x328] sm:$0xff]
  %v4981 = vld [vmem:[%s4878 + $0x330] sm:$0xff]
  %v4982 = vld [vmem:[%s4878 + $0x338] sm:$0xff]
  %v4983 = vld [vmem:[%s4878 + $0x340] sm:$0xff]
  %v4984 = vld [vmem:[%s4878 + $0x348] sm:$0xff]
  %v4985 = vld [vmem:[%s4878 + $0x350] sm:$0xff]
  %v4986 = vld [vmem:[%s4878 + $0x358] sm:$0xff]
  %v4987 = vld [vmem:[%s4878 + $0x360] sm:$0xff]
  %v4988 = vld [vmem:[%s4878 + $0x368] sm:$0xff]
  %v4989 = vld [vmem:[%s4878 + $0x370] sm:$0xff]
  %v4990 = vld [vmem:[%s4878 + $0x378] sm:$0xff]
  %v4991 = vld [vmem:[%s4878 + $0x380] sm:$0xff]
  %v4992 = vld [vmem:[%s4878 + $0x388] sm:$0xff]
  %v4993 = vld [vmem:[%s4878 + $0x390] sm:$0xff]
  %v4994 = vld [vmem:[%s4878 + $0x398] sm:$0xff]
  %v4995 = vld [vmem:[%s4878 + $0x3a0] sm:$0xff]
  %v4996 = vld [vmem:[%s4878 + $0x3a8] sm:$0xff]
  %v4997 = vld [vmem:[%s4878 + $0x3b0] sm:$0xff]
  %v4998 = vld [vmem:[%s4878 + $0x3b8] sm:$0xff]
  %v4999 = vld [vmem:[%s4878 + $0x3c0] sm:$0xff]
  %v5000 = vld [vmem:[%s4878 + $0x3c8] sm:$0xff]
  %v5001 = vld [vmem:[%s4878 + $0x3d0] sm:$0xff]
  %v5002 = vld [vmem:[%s4878 + $0x3d8] sm:$0xff]
  %v5003 = vld [vmem:[%s4878 + $0x3e0] sm:$0xff]
  %v5004 = vld [vmem:[%s4878 + $0x3e8] sm:$0xff]
  %v5005 = vld [vmem:[%s4878 + $0x3f0] sm:$0xff]
  %v5006 = vld [vmem:[%s4878 + $0x3f8] sm:$0xff]
  %v5135 = vunpack.c.l.b16 %v4879
  %v5136 = vunpack.c.h.b16 %v4879
  %v5137 = vunpack.c.l.b16 %v4880
  %v5138 = vunpack.c.h.b16 %v4880
  %v5139 = vunpack.c.l.b16 %v4881
  %v5140 = vunpack.c.h.b16 %v4881
  %v5141 = vunpack.c.l.b16 %v4882
  %v5142 = vunpack.c.h.b16 %v4882
  %v5143 = vunpack.c.l.b16 %v4883
  %v5144 = vunpack.c.h.b16 %v4883
  %v5145 = vunpack.c.l.b16 %v4884
  %v5146 = vunpack.c.h.b16 %v4884
  %v5147 = vunpack.c.l.b16 %v4885
  %v5148 = vunpack.c.h.b16 %v4885
  %v5149 = vunpack.c.l.b16 %v4886
  %v5150 = vunpack.c.h.b16 %v4886
  %v5151 = vunpack.c.l.b16 %v4887
  %v5152 = vunpack.c.h.b16 %v4887
  %v5153 = vunpack.c.l.b16 %v4888
  %v5154 = vunpack.c.h.b16 %v4888
  %v5155 = vunpack.c.l.b16 %v4889
  %v5156 = vunpack.c.h.b16 %v4889
  %v5157 = vunpack.c.l.b16 %v4890
  %v5158 = vunpack.c.h.b16 %v4890
  %v5159 = vunpack.c.l.b16 %v4891
  %v5160 = vunpack.c.h.b16 %v4891
  %v5161 = vunpack.c.l.b16 %v4892
  %v5162 = vunpack.c.h.b16 %v4892
  %v5163 = vunpack.c.l.b16 %v4893
  %v5164 = vunpack.c.h.b16 %v4893
  %v5165 = vunpack.c.l.b16 %v4894
  %v5166 = vunpack.c.h.b16 %v4894
  %v5167 = vunpack.c.l.b16 %v4895
  %v5168 = vunpack.c.h.b16 %v4895
  %v5169 = vunpack.c.l.b16 %v4896
  %v5170 = vunpack.c.h.b16 %v4896
  %v5171 = vunpack.c.l.b16 %v4897
  %v5172 = vunpack.c.h.b16 %v4897
  %v5173 = vunpack.c.l.b16 %v4898
  %v5174 = vunpack.c.h.b16 %v4898
  %v5175 = vunpack.c.l.b16 %v4899
  %v5176 = vunpack.c.h.b16 %v4899
  %v5177 = vunpack.c.l.b16 %v4900
  %v5178 = vunpack.c.h.b16 %v4900
  %v5179 = vunpack.c.l.b16 %v4901
  %v5180 = vunpack.c.h.b16 %v4901
  %v5181 = vunpack.c.l.b16 %v4902
  %v5182 = vunpack.c.h.b16 %v4902
  %v5183 = vunpack.c.l.b16 %v4903
  %v5184 = vunpack.c.h.b16 %v4903
  %v5185 = vunpack.c.l.b16 %v4904
  %v5186 = vunpack.c.h.b16 %v4904
  %v5187 = vunpack.c.l.b16 %v4905
  %v5188 = vunpack.c.h.b16 %v4905
  %v5189 = vunpack.c.l.b16 %v4906
  %v5190 = vunpack.c.h.b16 %v4906
  %v5191 = vunpack.c.l.b16 %v4907
  %v5192 = vunpack.c.h.b16 %v4907
  %v5193 = vunpack.c.l.b16 %v4908
  %v5194 = vunpack.c.h.b16 %v4908
  %v5195 = vunpack.c.l.b16 %v4909
  %v5196 = vunpack.c.h.b16 %v4909
  %v5197 = vunpack.c.l.b16 %v4910
  %v5198 = vunpack.c.h.b16 %v4910
  %v5199 = vunpack.c.l.b16 %v4911
  %v5200 = vunpack.c.h.b16 %v4911
  %v5201 = vunpack.c.l.b16 %v4912
  %v5202 = vunpack.c.h.b16 %v4912
  %v5203 = vunpack.c.l.b16 %v4913
  %v5204 = vunpack.c.h.b16 %v4913
  %v5205 = vunpack.c.l.b16 %v4914
  %v5206 = vunpack.c.h.b16 %v4914
  %v5207 = vunpack.c.l.b16 %v4915
  %v5208 = vunpack.c.h.b16 %v4915
  %v5209 = vunpack.c.l.b16 %v4916
  %v5210 = vunpack.c.h.b16 %v4916
  %v5211 = vunpack.c.l.b16 %v4917
  %v5212 = vunpack.c.h.b16 %v4917
  %v5213 = vunpack.c.l.b16 %v4918
  %v5214 = vunpack.c.h.b16 %v4918
  %v5215 = vunpack.c.l.b16 %v4919
  %v5216 = vunpack.c.h.b16 %v4919
  %v5217 = vunpack.c.l.b16 %v4920
  %v5218 = vunpack.c.h.b16 %v4920
  %v5219 = vunpack.c.l.b16 %v4921
  %v5220 = vunpack.c.h.b16 %v4921
  %v5221 = vunpack.c.l.b16 %v4922
  %v5222 = vunpack.c.h.b16 %v4922
  %v5223 = vunpack.c.l.b16 %v4923
  %v5224 = vunpack.c.h.b16 %v4923
  %v5225 = vunpack.c.l.b16 %v4924
  %v5226 = vunpack.c.h.b16 %v4924
  %v5227 = vunpack.c.l.b16 %v4925
  %v5228 = vunpack.c.h.b16 %v4925
  %v5229 = vunpack.c.l.b16 %v4926
  %v5230 = vunpack.c.h.b16 %v4926
  %v5231 = vunpack.c.l.b16 %v4927
  %v5232 = vunpack.c.h.b16 %v4927
  %v5233 = vunpack.c.l.b16 %v4928
  %v5234 = vunpack.c.h.b16 %v4928
  %v5235 = vunpack.c.l.b16 %v4929
  %v5236 = vunpack.c.h.b16 %v4929
  %v5237 = vunpack.c.l.b16 %v4930
  %v5238 = vunpack.c.h.b16 %v4930
  %v5239 = vunpack.c.l.b16 %v4931
  %v5240 = vunpack.c.h.b16 %v4931
  %v5241 = vunpack.c.l.b16 %v4932
  %v5242 = vunpack.c.h.b16 %v4932
  %v5243 = vunpack.c.l.b16 %v4933
  %v5244 = vunpack.c.h.b16 %v4933
  %v5245 = vunpack.c.l.b16 %v4934
  %v5246 = vunpack.c.h.b16 %v4934
  %v5247 = vunpack.c.l.b16 %v4935
  %v5248 = vunpack.c.h.b16 %v4935
  %v5249 = vunpack.c.l.b16 %v4936
  %v5250 = vunpack.c.h.b16 %v4936
  %v5251 = vunpack.c.l.b16 %v4937
  %v5252 = vunpack.c.h.b16 %v4937
  %v5253 = vunpack.c.l.b16 %v4938
  %v5254 = vunpack.c.h.b16 %v4938
  %v5255 = vunpack.c.l.b16 %v4939
  %v5256 = vunpack.c.h.b16 %v4939
  %v5257 = vunpack.c.l.b16 %v4940
  %v5258 = vunpack.c.h.b16 %v4940
  %v5259 = vunpack.c.l.b16 %v4941
  %v5260 = vunpack.c.h.b16 %v4941
  %v5261 = vunpack.c.l.b16 %v4942
  %v5262 = vunpack.c.h.b16 %v4942
  %v5263 = vunpack.c.l.b16 %v4943
  %v5264 = vunpack.c.h.b16 %v4943
  %v5265 = vunpack.c.l.b16 %v4944
  %v5266 = vunpack.c.h.b16 %v4944
  %v5267 = vunpack.c.l.b16 %v4945
  %v5268 = vunpack.c.h.b16 %v4945
  %v5269 = vunpack.c.l.b16 %v4946
  %v5270 = vunpack.c.h.b16 %v4946
  %v5271 = vunpack.c.l.b16 %v4947
  %v5272 = vunpack.c.h.b16 %v4947
  %v5273 = vunpack.c.l.b16 %v4948
  %v5274 = vunpack.c.h.b16 %v4948
  %v5275 = vunpack.c.l.b16 %v4949
  %v5276 = vunpack.c.h.b16 %v4949
  %v5277 = vunpack.c.l.b16 %v4950
  %v5278 = vunpack.c.h.b16 %v4950
  %v5279 = vunpack.c.l.b16 %v4951
  %v5280 = vunpack.c.h.b16 %v4951
  %v5281 = vunpack.c.l.b16 %v4952
  %v5282 = vunpack.c.h.b16 %v4952
  %v5283 = vunpack.c.l.b16 %v4953
  %v5284 = vunpack.c.h.b16 %v4953
  %v5285 = vunpack.c.l.b16 %v4954
  %v5286 = vunpack.c.h.b16 %v4954
  %v5287 = vunpack.c.l.b16 %v4955
  %v5288 = vunpack.c.h.b16 %v4955
  %v5289 = vunpack.c.l.b16 %v4956
  %v5290 = vunpack.c.h.b16 %v4956
  %v5291 = vunpack.c.l.b16 %v4957
  %v5292 = vunpack.c.h.b16 %v4957
  %v5293 = vunpack.c.l.b16 %v4958
  %v5294 = vunpack.c.h.b16 %v4958
  %v5295 = vunpack.c.l.b16 %v4959
  %v5296 = vunpack.c.h.b16 %v4959
  %v5297 = vunpack.c.l.b16 %v4960
  %v5298 = vunpack.c.h.b16 %v4960
  %v5299 = vunpack.c.l.b16 %v4961
  %v5300 = vunpack.c.h.b16 %v4961
  %v5301 = vunpack.c.l.b16 %v4962
  %v5302 = vunpack.c.h.b16 %v4962
  %v5303 = vunpack.c.l.b16 %v4963
  %v5304 = vunpack.c.h.b16 %v4963
  %v5305 = vunpack.c.l.b16 %v4964
  %v5306 = vunpack.c.h.b16 %v4964
  %v5307 = vunpack.c.l.b16 %v4965
  %v5308 = vunpack.c.h.b16 %v4965
  %v5309 = vunpack.c.l.b16 %v4966
  %v5310 = vunpack.c.h.b16 %v4966
  %v5311 = vunpack.c.l.b16 %v4967
  %v5312 = vunpack.c.h.b16 %v4967
  %v5313 = vunpack.c.l.b16 %v4968
  %v5314 = vunpack.c.h.b16 %v4968
  %v5315 = vunpack.c.l.b16 %v4969
  %v5316 = vunpack.c.h.b16 %v4969
  %v5317 = vunpack.c.l.b16 %v4970
  %v5318 = vunpack.c.h.b16 %v4970
  %v5319 = vunpack.c.l.b16 %v4971
  %v5320 = vunpack.c.h.b16 %v4971
  %v5321 = vunpack.c.l.b16 %v4972
  %v5322 = vunpack.c.h.b16 %v4972
  %v5323 = vunpack.c.l.b16 %v4973
  %v5324 = vunpack.c.h.b16 %v4973
  %v5325 = vunpack.c.l.b16 %v4974
  %v5326 = vunpack.c.h.b16 %v4974
  %v5327 = vunpack.c.l.b16 %v4975
  %v5328 = vunpack.c.h.b16 %v4975
  %v5329 = vunpack.c.l.b16 %v4976
  %v5330 = vunpack.c.h.b16 %v4976
  %v5331 = vunpack.c.l.b16 %v4977
  %v5332 = vunpack.c.h.b16 %v4977
  %v5333 = vunpack.c.l.b16 %v4978
  %v5334 = vunpack.c.h.b16 %v4978
  %v5335 = vunpack.c.l.b16 %v4979
  %v5336 = vunpack.c.h.b16 %v4979
  %v5337 = vunpack.c.l.b16 %v4980
  %v5338 = vunpack.c.h.b16 %v4980
  %v5339 = vunpack.c.l.b16 %v4981
  %v5340 = vunpack.c.h.b16 %v4981
  %v5341 = vunpack.c.l.b16 %v4982
  %v5342 = vunpack.c.h.b16 %v4982
  %v5343 = vunpack.c.l.b16 %v4983
  %v5344 = vunpack.c.h.b16 %v4983
  %v5345 = vunpack.c.l.b16 %v4984
  %v5346 = vunpack.c.h.b16 %v4984
  %v5347 = vunpack.c.l.b16 %v4985
  %v5348 = vunpack.c.h.b16 %v4985
  %v5349 = vunpack.c.l.b16 %v4986
  %v5350 = vunpack.c.h.b16 %v4986
  %v5351 = vunpack.c.l.b16 %v4987
  %v5352 = vunpack.c.h.b16 %v4987
  %v5353 = vunpack.c.l.b16 %v4988
  %v5354 = vunpack.c.h.b16 %v4988
  %v5355 = vunpack.c.l.b16 %v4989
  %v5356 = vunpack.c.h.b16 %v4989
  %v5357 = vunpack.c.l.b16 %v4990
  %v5358 = vunpack.c.h.b16 %v4990
  %v5359 = vunpack.c.l.b16 %v4991
  %v5360 = vunpack.c.h.b16 %v4991
  %v5361 = vunpack.c.l.b16 %v4992
  %v5362 = vunpack.c.h.b16 %v4992
  %v5363 = vunpack.c.l.b16 %v4993
  %v5364 = vunpack.c.h.b16 %v4993
  %v5365 = vunpack.c.l.b16 %v4994
  %v5366 = vunpack.c.h.b16 %v4994
  %v5367 = vunpack.c.l.b16 %v4995
  %v5368 = vunpack.c.h.b16 %v4995
  %v5369 = vunpack.c.l.b16 %v4996
  %v5370 = vunpack.c.h.b16 %v4996
  %v5371 = vunpack.c.l.b16 %v4997
  %v5372 = vunpack.c.h.b16 %v4997
  %v5373 = vunpack.c.l.b16 %v4998
  %v5374 = vunpack.c.h.b16 %v4998
  %v5375 = vunpack.c.l.b16 %v4999
  %v5376 = vunpack.c.h.b16 %v4999
  %v5377 = vunpack.c.l.b16 %v5000
  %v5378 = vunpack.c.h.b16 %v5000
  %v5379 = vunpack.c.l.b16 %v5001
  %v5380 = vunpack.c.h.b16 %v5001
  %v5381 = vunpack.c.l.b16 %v5002
  %v5382 = vunpack.c.h.b16 %v5002
  %v5383 = vunpack.c.l.b16 %v5003
  %v5384 = vunpack.c.h.b16 %v5003
  %v5385 = vunpack.c.l.b16 %v5004
  %v5386 = vunpack.c.h.b16 %v5004
  %v5387 = vunpack.c.l.b16 %v5005
  %v5388 = vunpack.c.h.b16 %v5005
  %v5389 = vunpack.c.l.b16 %v5006
  %v5390 = vunpack.c.h.b16 %v5006
  %v5391 = vpack.c.b16 %v5139, %v5135
  %v5392 = vpack.c.b16 %v5140, %v5136
  %v5393 = vpack.c.b16 %v5141, %v5137
  %v5394 = vpack.c.b16 %v5142, %v5138
  %v5395 = vpack.c.b16 %v5147, %v5143
  %v5396 = vpack.c.b16 %v5148, %v5144
  %v5397 = vpack.c.b16 %v5149, %v5145
  %v5398 = vpack.c.b16 %v5150, %v5146
  %v5399 = vpack.c.b16 %v5155, %v5151
  %v5400 = vpack.c.b16 %v5156, %v5152
  %v5401 = vpack.c.b16 %v5157, %v5153
  %v5402 = vpack.c.b16 %v5158, %v5154
  %v5403 = vpack.c.b16 %v5163, %v5159
  %v5404 = vpack.c.b16 %v5164, %v5160
  %v5405 = vpack.c.b16 %v5165, %v5161
  %v5406 = vpack.c.b16 %v5166, %v5162
  %v5407 = vpack.c.b16 %v5171, %v5167
  %v5408 = vpack.c.b16 %v5172, %v5168
  %v5409 = vpack.c.b16 %v5173, %v5169
  %v5410 = vpack.c.b16 %v5174, %v5170
  %v5411 = vpack.c.b16 %v5179, %v5175
  %v5412 = vpack.c.b16 %v5180, %v5176
  %v5413 = vpack.c.b16 %v5181, %v5177
  %v5414 = vpack.c.b16 %v5182, %v5178
  %v5415 = vpack.c.b16 %v5187, %v5183
  %v5416 = vpack.c.b16 %v5188, %v5184
  %v5417 = vpack.c.b16 %v5189, %v5185
  %v5418 = vpack.c.b16 %v5190, %v5186
  %v5419 = vpack.c.b16 %v5195, %v5191
  %v5420 = vpack.c.b16 %v5196, %v5192
  %v5421 = vpack.c.b16 %v5197, %v5193
  %v5422 = vpack.c.b16 %v5198, %v5194
  %v5423 = vpack.c.b16 %v5203, %v5199
  %v5424 = vpack.c.b16 %v5204, %v5200
  %v5425 = vpack.c.b16 %v5205, %v5201
  %v5426 = vpack.c.b16 %v5206, %v5202
  %v5427 = vpack.c.b16 %v5211, %v5207
  %v5428 = vpack.c.b16 %v5212, %v5208
  %v5429 = vpack.c.b16 %v5213, %v5209
  %v5430 = vpack.c.b16 %v5214, %v5210
  %v5431 = vpack.c.b16 %v5219, %v5215
  %v5432 = vpack.c.b16 %v5220, %v5216
  %v5433 = vpack.c.b16 %v5221, %v5217
  %v5434 = vpack.c.b16 %v5222, %v5218
  %v5435 = vpack.c.b16 %v5227, %v5223
  %v5436 = vpack.c.b16 %v5228, %v5224
  %v5437 = vpack.c.b16 %v5229, %v5225
  %v5438 = vpack.c.b16 %v5230, %v5226
  %v5439 = vpack.c.b16 %v5235, %v5231
  %v5440 = vpack.c.b16 %v5236, %v5232
  %v5441 = vpack.c.b16 %v5237, %v5233
  %v5442 = vpack.c.b16 %v5238, %v5234
  %v5443 = vpack.c.b16 %v5243, %v5239
  %v5444 = vpack.c.b16 %v5244, %v5240
  %v5445 = vpack.c.b16 %v5245, %v5241
  %v5446 = vpack.c.b16 %v5246, %v5242
  %v5447 = vpack.c.b16 %v5251, %v5247
  %v5448 = vpack.c.b16 %v5252, %v5248
  %v5449 = vpack.c.b16 %v5253, %v5249
  %v5450 = vpack.c.b16 %v5254, %v5250
  %v5451 = vpack.c.b16 %v5259, %v5255
  %v5452 = vpack.c.b16 %v5260, %v5256
  %v5453 = vpack.c.b16 %v5261, %v5257
  %v5454 = vpack.c.b16 %v5262, %v5258
  %v5455 = vpack.c.b16 %v5267, %v5263
  %v5456 = vpack.c.b16 %v5268, %v5264
  %v5457 = vpack.c.b16 %v5269, %v5265
  %v5458 = vpack.c.b16 %v5270, %v5266
  %v5459 = vpack.c.b16 %v5275, %v5271
  %v5460 = vpack.c.b16 %v5276, %v5272
  %v5461 = vpack.c.b16 %v5277, %v5273
  %v5462 = vpack.c.b16 %v5278, %v5274
  %v5463 = vpack.c.b16 %v5283, %v5279
  %v5464 = vpack.c.b16 %v5284, %v5280
  %v5465 = vpack.c.b16 %v5285, %v5281
  %v5466 = vpack.c.b16 %v5286, %v5282
  %v5467 = vpack.c.b16 %v5291, %v5287
  %v5468 = vpack.c.b16 %v5292, %v5288
  %v5469 = vpack.c.b16 %v5293, %v5289
  %v5470 = vpack.c.b16 %v5294, %v5290
  %v5471 = vpack.c.b16 %v5299, %v5295
  %v5472 = vpack.c.b16 %v5300, %v5296
  %v5473 = vpack.c.b16 %v5301, %v5297
  %v5474 = vpack.c.b16 %v5302, %v5298
  %v5475 = vpack.c.b16 %v5307, %v5303
  %v5476 = vpack.c.b16 %v5308, %v5304
  %v5477 = vpack.c.b16 %v5309, %v5305
  %v5478 = vpack.c.b16 %v5310, %v5306
  %v5479 = vpack.c.b16 %v5315, %v5311
  %v5480 = vpack.c.b16 %v5316, %v5312
  %v5481 = vpack.c.b16 %v5317, %v5313
  %v5482 = vpack.c.b16 %v5318, %v5314
  %v5483 = vpack.c.b16 %v5323, %v5319
  %v5484 = vpack.c.b16 %v5324, %v5320
  %v5485 = vpack.c.b16 %v5325, %v5321
  %v5486 = vpack.c.b16 %v5326, %v5322
  %v5487 = vpack.c.b16 %v5331, %v5327
  %v5488 = vpack.c.b16 %v5332, %v5328
  %v5489 = vpack.c.b16 %v5333, %v5329
  %v5490 = vpack.c.b16 %v5334, %v5330
  %v5491 = vpack.c.b16 %v5339, %v5335
  %v5492 = vpack.c.b16 %v5340, %v5336
  %v5493 = vpack.c.b16 %v5341, %v5337
  %v5494 = vpack.c.b16 %v5342, %v5338
  %v5495 = vpack.c.b16 %v5347, %v5343
  %v5496 = vpack.c.b16 %v5348, %v5344
  %v5497 = vpack.c.b16 %v5349, %v5345
  %v5498 = vpack.c.b16 %v5350, %v5346
  %v5499 = vpack.c.b16 %v5355, %v5351
  %v5500 = vpack.c.b16 %v5356, %v5352
  %v5501 = vpack.c.b16 %v5357, %v5353
  %v5502 = vpack.c.b16 %v5358, %v5354
  %v5503 = vpack.c.b16 %v5363, %v5359
  %v5504 = vpack.c.b16 %v5364, %v5360
  %v5505 = vpack.c.b16 %v5365, %v5361
  %v5506 = vpack.c.b16 %v5366, %v5362
  %v5507 = vpack.c.b16 %v5371, %v5367
  %v5508 = vpack.c.b16 %v5372, %v5368
  %v5509 = vpack.c.b16 %v5373, %v5369
  %v5510 = vpack.c.b16 %v5374, %v5370
  %v5511 = vpack.c.b16 %v5379, %v5375
  %v5512 = vpack.c.b16 %v5380, %v5376
  %v5513 = vpack.c.b16 %v5381, %v5377
  %v5514 = vpack.c.b16 %v5382, %v5378
  %v5515 = vpack.c.b16 %v5387, %v5383
  %v5516 = vpack.c.b16 %v5388, %v5384
  %v5517 = vpack.c.b16 %v5389, %v5385
  %v5518 = vpack.c.b16 %v5390, %v5386
  %5647 = vmatprep.subr.bf16.mxu0 %v5392
  %5648 = vmatpush1.bf16.msra.mxu0 %v5391
  %5649 = vmatprep.subr.bf16.mxu0 %v5396
  %5650 = vmatpush1.bf16.msra.mxu0 %v5395
  %5651 = vmatprep.subr.bf16.mxu0 %v5400
  %5652 = vmatpush1.bf16.msra.mxu0 %v5399
  %5653 = vmatprep.subr.bf16.mxu0 %v5404
  %5654 = vmatpush1.bf16.msra.mxu0 %v5403
  %5655 = vmatprep.subr.bf16.mxu0 %v5408
  %5656 = vmatpush1.bf16.msra.mxu0 %v5407
  %5657 = vmatprep.subr.bf16.mxu0 %v5412
  %5658 = vmatpush1.bf16.msra.mxu0 %v5411
  %5659 = vmatprep.subr.bf16.mxu0 %v5416
  %5660 = vmatpush1.bf16.msra.mxu0 %v5415
  %5661 = vmatprep.subr.bf16.mxu0 %v5420
  %5662 = vmatpush1.bf16.msra.mxu0 %v5419
  %5663 = vmatprep.subr.bf16.mxu0 %v5424
  %5664 = vmatpush1.bf16.msra.mxu0 %v5423
  %5665 = vmatprep.subr.bf16.mxu0 %v5428
  %5666 = vmatpush1.bf16.msra.mxu0 %v5427
  %5667 = vmatprep.subr.bf16.mxu0 %v5432
  %5668 = vmatpush1.bf16.msra.mxu0 %v5431
  %5669 = vmatprep.subr.bf16.mxu0 %v5436
  %5670 = vmatpush1.bf16.msra.mxu0 %v5435
  %5671 = vmatprep.subr.bf16.mxu0 %v5440
  %5672 = vmatpush1.bf16.msra.mxu0 %v5439
  %5673 = vmatprep.subr.bf16.mxu0 %v5444
  %5674 = vmatpush1.bf16.msra.mxu0 %v5443
  %5675 = vmatprep.subr.bf16.mxu0 %v5448
  %5676 = vmatpush1.bf16.msra.mxu0 %v5447
  %5677 = vmatprep.subr.bf16.mxu0 %v5452
  %5678 = vmatpush1.bf16.msra.mxu0 %v5451
  %5679 = vmatprep.mubr.bf16.mxu0 %v4871
  %5680 = vmatmul.mubr.bf16.gmra.mrb[0].mxu0 %v4870
  %v5681 = vpop.f32.mrb[0].mxu0
  %v5682 = vadd.f32 0.0, %v5681
  %v5683 = vpop.f32.mrb[0].mxu0
  %v5684 = vadd.f32 0.0, %v5683
  %v5685 = vpop.f32.mrb[0].mxu0
  %v5686 = vadd.f32 0.0, %v5685
  %v5687 = vpop.f32.mrb[0].mxu0
  %v5688 = vadd.f32 0.0, %v5687
  %5689 = vmatprep.mubr.bf16.mxu0 %v4875
  %5690 = vmatmul.mubr.bf16.gmra.mrb[0].mxu0 %v4874
  %v5691 = vpop.f32.mrb[0].mxu0
  %v5692 = vadd.f32 0.0, %v5691
  %v5693 = vpop.f32.mrb[0].mxu0
  %v5694 = vadd.f32 0.0, %v5693
  %v5695 = vpop.f32.mrb[0].mxu0
  %v5696 = vadd.f32 0.0, %v5695
  %v5697 = vpop.f32.mrb[0].mxu0
  %v5698 = vadd.f32 0.0, %v5697
  %5699 = vdwg.mxu0
  %5700 = vmatprep.subr.bf16.mxu0 %v5456
  %5701 = vmatpush1.bf16.msra.mxu0 %v5455
  %5702 = vmatprep.subr.bf16.mxu0 %v5460
  %5703 = vmatpush1.bf16.msra.mxu0 %v5459
  %5704 = vmatprep.subr.bf16.mxu0 %v5464
  %5705 = vmatpush1.bf16.msra.mxu0 %v5463
  %5706 = vmatprep.subr.bf16.mxu0 %v5468
  %5707 = vmatpush1.bf16.msra.mxu0 %v5467
  %5708 = vmatprep.subr.bf16.mxu0 %v5472
  %5709 = vmatpush1.bf16.msra.mxu0 %v5471
  %5710 = vmatprep.subr.bf16.mxu0 %v5476
  %5711 = vmatpush1.bf16.msra.mxu0 %v5475
  %5712 = vmatprep.subr.bf16.mxu0 %v5480
  %5713 = vmatpush1.bf16.msra.mxu0 %v5479
  %5714 = vmatprep.subr.bf16.mxu0 %v5484
  %5715 = vmatpush1.bf16.msra.mxu0 %v5483
  %5716 = vmatprep.subr.bf16.mxu0 %v5488
  %5717 = vmatpush1.bf16.msra.mxu0 %v5487
  %5718 = vmatprep.subr.bf16.mxu0 %v5492
  %5719 = vmatpush1.bf16.msra.mxu0 %v5491
  %5720 = vmatprep.subr.bf16.mxu0 %v5496
  %5721 = vmatpush1.bf16.msra.mxu0 %v5495
  %5722 = vmatprep.subr.bf16.mxu0 %v5500
  %5723 = vmatpush1.bf16.msra.mxu0 %v5499
  %5724 = vmatprep.subr.bf16.mxu0 %v5504
  %5725 = vmatpush1.bf16.msra.mxu0 %v5503
  %5726 = vmatprep.subr.bf16.mxu0 %v5508
  %5727 = vmatpush1.bf16.msra.mxu0 %v5507
  %5728 = vmatprep.subr.bf16.mxu0 %v5512
  %5729 = vmatpush1.bf16.msra.mxu0 %v5511
  %5730 = vmatprep.subr.bf16.mxu0 %v5516
  %5731 = vmatpush1.bf16.msra.mxu0 %v5515
  %5732 = vmatprep.mubr.bf16.mxu0 %v4873
  %5733 = vmatmul.mubr.bf16.gmra.mrb[0].mxu0 %v4872
  %v5734 = vpop.f32.mrb[0].mxu0
  %v5735 = vadd.f32 %v5682, %v5734
  %v5736 = vpop.f32.mrb[0].mxu0
  %v5737 = vadd.f32 %v5684, %v5736
  %v5738 = vpop.f32.mrb[0].mxu0
  %v5739 = vadd.f32 %v5686, %v5738
  %v5740 = vpop.f32.mrb[0].mxu0
  %v5741 = vadd.f32 %v5688, %v5740
  %5742 = vmatprep.mubr.bf16.mxu0 %v4877
  %5743 = vmatmul.mubr.bf16.gmra.mrb[0].mxu0 %v4876
  %v5744 = vpop.f32.mrb[0].mxu0
  %v5745 = vadd.f32 %v5692, %v5744
  %v5746 = vpop.f32.mrb[0].mxu0
  %v5747 = vadd.f32 %v5694, %v5746
  %v5748 = vpop.f32.mrb[0].mxu0
  %v5749 = vadd.f32 %v5696, %v5748
  %v5750 = vpop.f32.mrb[0].mxu0
  %v5751 = vadd.f32 %v5698, %v5750
  %5752 = vdwg.mxu0
  %5753 = vmatprep.subr.bf16.mxu0 %v5394
  %5754 = vmatpush1.bf16.msra.mxu0 %v5393
  %5755 = vmatprep.subr.bf16.mxu0 %v5398
  %5756 = vmatpush1.bf16.msra.mxu0 %v5397
  %5757 = vmatprep.subr.bf16.mxu0 %v5402
  %5758 = vmatpush1.bf16.msra.mxu0 %v5401
  %5759 = vmatprep.subr.bf16.mxu0 %v5406
  %5760 = vmatpush1.bf16.msra.mxu0 %v5405
  %5761 = vmatprep.subr.bf16.mxu0 %v5410
  %5762 = vmatpush1.bf16.msra.mxu0 %v5409
  %5763 = vmatprep.subr.bf16.mxu0 %v5414
  %5764 = vmatpush1.bf16.msra.mxu0 %v5413
  %5765 = vmatprep.subr.bf16.mxu0 %v5418
  %5766 = vmatpush1.bf16.msra.mxu0 %v5417
  %5767 = vmatprep.subr.bf16.mxu0 %v5422
  %5768 = vmatpush1.bf16.msra.mxu0 %v5421
  %5769 = vmatprep.subr.bf16.mxu0 %v5426
  %5770 = vmatpush1.bf16.msra.mxu0 %v5425
  %5771 = vmatprep.subr.bf16.mxu0 %v5430
  %5772 = vmatpush1.bf16.msra.mxu0 %v5429
  %5773 = vmatprep.subr.bf16.mxu0 %v5434
  %5774 = vmatpush1.bf16.msra.mxu0 %v5433
  %5775 = vmatprep.subr.bf16.mxu0 %v5438
  %5776 = vmatpush1.bf16.msra.mxu0 %v5437
  %5777 = vmatprep.subr.bf16.mxu0 %v5442
  %5778 = vmatpush1.bf16.msra.mxu0 %v5441
  %5779 = vmatprep.subr.bf16.mxu0 %v5446
  %5780 = vmatpush1.bf16.msra.mxu0 %v5445
  %5781 = vmatprep.subr.bf16.mxu0 %v5450
  %5782 = vmatpush1.bf16.msra.mxu0 %v5449
  %5783 = vmatprep.subr.bf16.mxu0 %v5454
  %5784 = vmatpush1.bf16.msra.mxu0 %v5453
  %5785 = vmatprep.mubr.bf16.mxu0 %v4871
  %5786 = vmatmul.mubr.bf16.gmra.mrb[0].mxu0 %v4870
  %v5787 = vpop.f32.mrb[0].mxu0
  %v5788 = vadd.f32 0.0, %v5787
  %v5789 = vpop.f32.mrb[0].mxu0
  %v5790 = vadd.f32 0.0, %v5789
  %v5791 = vpop.f32.mrb[0].mxu0
  %v5792 = vadd.f32 0.0, %v5791
  %v5793 = vpop.f32.mrb[0].mxu0
  %v5794 = vadd.f32 0.0, %v5793
  %5795 = vmatprep.mubr.bf16.mxu0 %v4875
  %5796 = vmatmul.mubr.bf16.gmra.mrb[0].mxu0 %v4874
  %v5797 = vpop.f32.mrb[0].mxu0
  %v5798 = vadd.f32 0.0, %v5797
  %v5799 = vpop.f32.mrb[0].mxu0
  %v5800 = vadd.f32 0.0, %v5799
  %v5801 = vpop.f32.mrb[0].mxu0
  %v5802 = vadd.f32 0.0, %v5801
  %v5803 = vpop.f32.mrb[0].mxu0
  %v5804 = vadd.f32 0.0, %v5803
  %5805 = vdwg.mxu0
  %5806 = vmatprep.subr.bf16.mxu0 %v5458
  %5807 = vmatpush1.bf16.msra.mxu0 %v5457
  %5808 = vmatprep.subr.bf16.mxu0 %v5462
  %5809 = vmatpush1.bf16.msra.mxu0 %v5461
  %5810 = vmatprep.subr.bf16.mxu0 %v5466
  %5811 = vmatpush1.bf16.msra.mxu0 %v5465
  %5812 = vmatprep.subr.bf16.mxu0 %v5470
  %5813 = vmatpush1.bf16.msra.mxu0 %v5469
  %5814 = vmatprep.subr.bf16.mxu0 %v5474
  %5815 = vmatpush1.bf16.msra.mxu0 %v5473
  %5816 = vmatprep.subr.bf16.mxu0 %v5478
  %5817 = vmatpush1.bf16.msra.mxu0 %v5477
  %5818 = vmatprep.subr.bf16.mxu0 %v5482
  %5819 = vmatpush1.bf16.msra.mxu0 %v5481
  %5820 = vmatprep.subr.bf16.mxu0 %v5486
  %5821 = vmatpush1.bf16.msra.mxu0 %v5485
  %5822 = vmatprep.subr.bf16.mxu0 %v5490
  %5823 = vmatpush1.bf16.msra.mxu0 %v5489
  %5824 = vmatprep.subr.bf16.mxu0 %v5494
  %5825 = vmatpush1.bf16.msra.mxu0 %v5493
  %5826 = vmatprep.subr.bf16.mxu0 %v5498
  %5827 = vmatpush1.bf16.msra.mxu0 %v5497
  %5828 = vmatprep.subr.bf16.mxu0 %v5502
  %5829 = vmatpush1.bf16.msra.mxu0 %v5501
  %5830 = vmatprep.subr.bf16.mxu0 %v5506
  %5831 = vmatpush1.bf16.msra.mxu0 %v5505
  %5832 = vmatprep.subr.bf16.mxu0 %v5510
  %5833 = vmatpush1.bf16.msra.mxu0 %v5509
  %5834 = vmatprep.subr.bf16.mxu0 %v5514
  %5835 = vmatpush1.bf16.msra.mxu0 %v5513
  %5836 = vmatprep.subr.bf16.mxu0 %v5518
  %5837 = vmatpush1.bf16.msra.mxu0 %v5517
  %5838 = vmatprep.mubr.bf16.mxu0 %v4873
  %5839 = vmatmul.mubr.bf16.gmra.mrb[0].mxu0 %v4872
  %v5840 = vpop.f32.mrb[0].mxu0
  %v5841 = vadd.f32 %v5788, %v5840
  %v5842 = vpop.f32.mrb[0].mxu0
  %v5843 = vadd.f32 %v5790, %v5842
  %v5844 = vpop.f32.mrb[0].mxu0
  %v5845 = vadd.f32 %v5792, %v5844
  %v5846 = vpop.f32.mrb[0].mxu0
  %v5847 = vadd.f32 %v5794, %v5846
  %5848 = vmatprep.mubr.bf16.mxu0 %v4877
  %5849 = vmatmul.mubr.bf16.gmra.mrb[0].mxu0 %v4876
  %v5850 = vpop.f32.mrb[0].mxu0
  %v5851 = vadd.f32 %v5798, %v5850
  %v5852 = vpop.f32.mrb[0].mxu0
  %v5853 = vadd.f32 %v5800, %v5852
  %v5854 = vpop.f32.mrb[0].mxu0
  %v5855 = vadd.f32 %v5802, %v5854
  %v5856 = vpop.f32.mrb[0].mxu0
  %v5857 = vadd.f32 %v5804, %v5856
  %5858 = vdwg.mxu0
  %v5987 = vunpack.c.l.b16 %v4742
  %v5988 = vunpack.c.h.b16 %v4742
  %v5989 = vunpack.c.l.b16 %v4743
  %v5990 = vunpack.c.h.b16 %v4743
  %v5991 = vunpack.c.l.b16 %v4744
  %v5992 = vunpack.c.h.b16 %v4744
  %v5993 = vunpack.c.l.b16 %v4745
  %v5994 = vunpack.c.h.b16 %v4745
  %v5995 = vunpack.c.l.b16 %v4746
  %v5996 = vunpack.c.h.b16 %v4746
  %v5997 = vunpack.c.l.b16 %v4747
  %v5998 = vunpack.c.h.b16 %v4747
  %v5999 = vunpack.c.l.b16 %v4748
  %v6000 = vunpack.c.h.b16 %v4748
  %v6001 = vunpack.c.l.b16 %v4749
  %v6002 = vunpack.c.h.b16 %v4749
  %v6003 = vunpack.c.l.b16 %v4750
  %v6004 = vunpack.c.h.b16 %v4750
  %v6005 = vunpack.c.l.b16 %v4751
  %v6006 = vunpack.c.h.b16 %v4751
  %v6007 = vunpack.c.l.b16 %v4752
  %v6008 = vunpack.c.h.b16 %v4752
  %v6009 = vunpack.c.l.b16 %v4753
  %v6010 = vunpack.c.h.b16 %v4753
  %v6011 = vunpack.c.l.b16 %v4754
  %v6012 = vunpack.c.h.b16 %v4754
  %v6013 = vunpack.c.l.b16 %v4755
  %v6014 = vunpack.c.h.b16 %v4755
  %v6015 = vunpack.c.l.b16 %v4756
  %v6016 = vunpack.c.h.b16 %v4756
  %v6017 = vunpack.c.l.b16 %v4757
  %v6018 = vunpack.c.h.b16 %v4757
  %v6019 = vunpack.c.l.b16 %v4758
  %v6020 = vunpack.c.h.b16 %v4758
  %v6021 = vunpack.c.l.b16 %v4759
  %v6022 = vunpack.c.h.b16 %v4759
  %v6023 = vunpack.c.l.b16 %v4760
  %v6024 = vunpack.c.h.b16 %v4760
  %v6025 = vunpack.c.l.b16 %v4761
  %v6026 = vunpack.c.h.b16 %v4761
  %v6027 = vunpack.c.l.b16 %v4762
  %v6028 = vunpack.c.h.b16 %v4762
  %v6029 = vunpack.c.l.b16 %v4763
  %v6030 = vunpack.c.h.b16 %v4763
  %v6031 = vunpack.c.l.b16 %v4764
  %v6032 = vunpack.c.h.b16 %v4764
  %v6033 = vunpack.c.l.b16 %v4765
  %v6034 = vunpack.c.h.b16 %v4765
  %v6035 = vunpack.c.l.b16 %v4766
  %v6036 = vunpack.c.h.b16 %v4766
  %v6037 = vunpack.c.l.b16 %v4767
  %v6038 = vunpack.c.h.b16 %v4767
  %v6039 = vunpack.c.l.b16 %v4768
  %v6040 = vunpack.c.h.b16 %v4768
  %v6041 = vunpack.c.l.b16 %v4769
  %v6042 = vunpack.c.h.b16 %v4769
  %v6043 = vunpack.c.l.b16 %v4770
  %v6044 = vunpack.c.h.b16 %v4770
  %v6045 = vunpack.c.l.b16 %v4771
  %v6046 = vunpack.c.h.b16 %v4771
  %v6047 = vunpack.c.l.b16 %v4772
  %v6048 = vunpack.c.h.b16 %v4772
  %v6049 = vunpack.c.l.b16 %v4773
  %v6050 = vunpack.c.h.b16 %v4773
  %v6051 = vunpack.c.l.b16 %v4774
  %v6052 = vunpack.c.h.b16 %v4774
  %v6053 = vunpack.c.l.b16 %v4775
  %v6054 = vunpack.c.h.b16 %v4775
  %v6055 = vunpack.c.l.b16 %v4776
  %v6056 = vunpack.c.h.b16 %v4776
  %v6057 = vunpack.c.l.b16 %v4777
  %v6058 = vunpack.c.h.b16 %v4777
  %v6059 = vunpack.c.l.b16 %v4778
  %v6060 = vunpack.c.h.b16 %v4778
  %v6061 = vunpack.c.l.b16 %v4779
  %v6062 = vunpack.c.h.b16 %v4779
  %v6063 = vunpack.c.l.b16 %v4780
  %v6064 = vunpack.c.h.b16 %v4780
  %v6065 = vunpack.c.l.b16 %v4781
  %v6066 = vunpack.c.h.b16 %v4781
  %v6067 = vunpack.c.l.b16 %v4782
  %v6068 = vunpack.c.h.b16 %v4782
  %v6069 = vunpack.c.l.b16 %v4783
  %v6070 = vunpack.c.h.b16 %v4783
  %v6071 = vunpack.c.l.b16 %v4784
  %v6072 = vunpack.c.h.b16 %v4784
  %v6073 = vunpack.c.l.b16 %v4785
  %v6074 = vunpack.c.h.b16 %v4785
  %v6075 = vunpack.c.l.b16 %v4786
  %v6076 = vunpack.c.h.b16 %v4786
  %v6077 = vunpack.c.l.b16 %v4787
  %v6078 = vunpack.c.h.b16 %v4787
  %v6079 = vunpack.c.l.b16 %v4788
  %v6080 = vunpack.c.h.b16 %v4788
  %v6081 = vunpack.c.l.b16 %v4789
  %v6082 = vunpack.c.h.b16 %v4789
  %v6083 = vunpack.c.l.b16 %v4790
  %v6084 = vunpack.c.h.b16 %v4790
  %v6085 = vunpack.c.l.b16 %v4791
  %v6086 = vunpack.c.h.b16 %v4791
  %v6087 = vunpack.c.l.b16 %v4792
  %v6088 = vunpack.c.h.b16 %v4792
  %v6089 = vunpack.c.l.b16 %v4793
  %v6090 = vunpack.c.h.b16 %v4793
  %v6091 = vunpack.c.l.b16 %v4794
  %v6092 = vunpack.c.h.b16 %v4794
  %v6093 = vunpack.c.l.b16 %v4795
  %v6094 = vunpack.c.h.b16 %v4795
  %v6095 = vunpack.c.l.b16 %v4796
  %v6096 = vunpack.c.h.b16 %v4796
  %v6097 = vunpack.c.l.b16 %v4797
  %v6098 = vunpack.c.h.b16 %v4797
  %v6099 = vunpack.c.l.b16 %v4798
  %v6100 = vunpack.c.h.b16 %v4798
  %v6101 = vunpack.c.l.b16 %v4799
  %v6102 = vunpack.c.h.b16 %v4799
  %v6103 = vunpack.c.l.b16 %v4800
  %v6104 = vunpack.c.h.b16 %v4800
  %v6105 = vunpack.c.l.b16 %v4801
  %v6106 = vunpack.c.h.b16 %v4801
  %v6107 = vunpack.c.l.b16 %v4802
  %v6108 = vunpack.c.h.b16 %v4802
  %v6109 = vunpack.c.l.b16 %v4803
  %v6110 = vunpack.c.h.b16 %v4803
  %v6111 = vunpack.c.l.b16 %v4804
  %v6112 = vunpack.c.h.b16 %v4804
  %v6113 = vunpack.c.l.b16 %v4805
  %v6114 = vunpack.c.h.b16 %v4805
  %v6115 = vunpack.c.l.b16 %v4806
  %v6116 = vunpack.c.h.b16 %v4806
  %v6117 = vunpack.c.l.b16 %v4807
  %v6118 = vunpack.c.h.b16 %v4807
  %v6119 = vunpack.c.l.b16 %v4808
  %v6120 = vunpack.c.h.b16 %v4808
  %v6121 = vunpack.c.l.b16 %v4809
  %v6122 = vunpack.c.h.b16 %v4809
  %v6123 = vunpack.c.l.b16 %v4810
  %v6124 = vunpack.c.h.b16 %v4810
  %v6125 = vunpack.c.l.b16 %v4811
  %v6126 = vunpack.c.h.b16 %v4811
  %v6127 = vunpack.c.l.b16 %v4812
  %v6128 = vunpack.c.h.b16 %v4812
  %v6129 = vunpack.c.l.b16 %v4813
  %v6130 = vunpack.c.h.b16 %v4813
  %v6131 = vunpack.c.l.b16 %v4814
  %v6132 = vunpack.c.h.b16 %v4814
  %v6133 = vunpack.c.l.b16 %v4815
  %v6134 = vunpack.c.h.b16 %v4815
  %v6135 = vunpack.c.l.b16 %v4816
  %v6136 = vunpack.c.h.b16 %v4816
  %v6137 = vunpack.c.l.b16 %v4817
  %v6138 = vunpack.c.h.b16 %v4817
  %v6139 = vunpack.c.l.b16 %v4818
  %v6140 = vunpack.c.h.b16 %v4818
  %v6141 = vunpack.c.l.b16 %v4819
  %v6142 = vunpack.c.h.b16 %v4819
  %v6143 = vunpack.c.l.b16 %v4820
  %v6144 = vunpack.c.h.b16 %v4820
  %v6145 = vunpack.c.l.b16 %v4821
  %v6146 = vunpack.c.h.b16 %v4821
  %v6147 = vunpack.c.l.b16 %v4822
  %v6148 = vunpack.c.h.b16 %v4822
  %v6149 = vunpack.c.l.b16 %v4823
  %v6150 = vunpack.c.h.b16 %v4823
  %v6151 = vunpack.c.l.b16 %v4824
  %v6152 = vunpack.c.h.b16 %v4824
  %v6153 = vunpack.c.l.b16 %v4825
  %v6154 = vunpack.c.h.b16 %v4825
  %v6155 = vunpack.c.l.b16 %v4826
  %v6156 = vunpack.c.h.b16 %v4826
  %v6157 = vunpack.c.l.b16 %v4827
  %v6158 = vunpack.c.h.b16 %v4827
  %v6159 = vunpack.c.l.b16 %v4828
  %v6160 = vunpack.c.h.b16 %v4828
  %v6161 = vunpack.c.l.b16 %v4829
  %v6162 = vunpack.c.h.b16 %v4829
  %v6163 = vunpack.c.l.b16 %v4830
  %v6164 = vunpack.c.h.b16 %v4830
  %v6165 = vunpack.c.l.b16 %v4831
  %v6166 = vunpack.c.h.b16 %v4831
  %v6167 = vunpack.c.l.b16 %v4832
  %v6168 = vunpack.c.h.b16 %v4832
  %v6169 = vunpack.c.l.b16 %v4833
  %v6170 = vunpack.c.h.b16 %v4833
  %v6171 = vunpack.c.l.b16 %v4834
  %v6172 = vunpack.c.h.b16 %v4834
  %v6173 = vunpack.c.l.b16 %v4835
  %v6174 = vunpack.c.h.b16 %v4835
  %v6175 = vunpack.c.l.b16 %v4836
  %v6176 = vunpack.c.h.b16 %v4836
  %v6177 = vunpack.c.l.b16 %v4837
  %v6178 = vunpack.c.h.b16 %v4837
  %v6179 = vunpack.c.l.b16 %v4838
  %v6180 = vunpack.c.h.b16 %v4838
  %v6181 = vunpack.c.l.b16 %v4839
  %v6182 = vunpack.c.h.b16 %v4839
  %v6183 = vunpack.c.l.b16 %v4840
  %v6184 = vunpack.c.h.b16 %v4840
  %v6185 = vunpack.c.l.b16 %v4841
  %v6186 = vunpack.c.h.b16 %v4841
  %v6187 = vunpack.c.l.b16 %v4842
  %v6188 = vunpack.c.h.b16 %v4842
  %v6189 = vunpack.c.l.b16 %v4843
  %v6190 = vunpack.c.h.b16 %v4843
  %v6191 = vunpack.c.l.b16 %v4844
  %v6192 = vunpack.c.h.b16 %v4844
  %v6193 = vunpack.c.l.b16 %v4845
  %v6194 = vunpack.c.h.b16 %v4845
  %v6195 = vunpack.c.l.b16 %v4846
  %v6196 = vunpack.c.h.b16 %v4846
  %v6197 = vunpack.c.l.b16 %v4847
  %v6198 = vunpack.c.h.b16 %v4847
  %v6199 = vunpack.c.l.b16 %v4848
  %v6200 = vunpack.c.h.b16 %v4848
  %v6201 = vunpack.c.l.b16 %v4849
  %v6202 = vunpack.c.h.b16 %v4849
  %v6203 = vunpack.c.l.b16 %v4850
  %v6204 = vunpack.c.h.b16 %v4850
  %v6205 = vunpack.c.l.b16 %v4851
  %v6206 = vunpack.c.h.b16 %v4851
  %v6207 = vunpack.c.l.b16 %v4852
  %v6208 = vunpack.c.h.b16 %v4852
  %v6209 = vunpack.c.l.b16 %v4853
  %v6210 = vunpack.c.h.b16 %v4853
  %v6211 = vunpack.c.l.b16 %v4854
  %v6212 = vunpack.c.h.b16 %v4854
  %v6213 = vunpack.c.l.b16 %v4855
  %v6214 = vunpack.c.h.b16 %v4855
  %v6215 = vunpack.c.l.b16 %v4856
  %v6216 = vunpack.c.h.b16 %v4856
  %v6217 = vunpack.c.l.b16 %v4857
  %v6218 = vunpack.c.h.b16 %v4857
  %v6219 = vunpack.c.l.b16 %v4858
  %v6220 = vunpack.c.h.b16 %v4858
  %v6221 = vunpack.c.l.b16 %v4859
  %v6222 = vunpack.c.h.b16 %v4859
  %v6223 = vunpack.c.l.b16 %v4860
  %v6224 = vunpack.c.h.b16 %v4860
  %v6225 = vunpack.c.l.b16 %v4861
  %v6226 = vunpack.c.h.b16 %v4861
  %v6227 = vunpack.c.l.b16 %v4862
  %v6228 = vunpack.c.h.b16 %v4862
  %v6229 = vunpack.c.l.b16 %v4863
  %v6230 = vunpack.c.h.b16 %v4863
  %v6231 = vunpack.c.l.b16 %v4864
  %v6232 = vunpack.c.h.b16 %v4864
  %v6233 = vunpack.c.l.b16 %v4865
  %v6234 = vunpack.c.h.b16 %v4865
  %v6235 = vunpack.c.l.b16 %v4866
  %v6236 = vunpack.c.h.b16 %v4866
  %v6237 = vunpack.c.l.b16 %v4867
  %v6238 = vunpack.c.h.b16 %v4867
  %v6239 = vunpack.c.l.b16 %v4868
  %v6240 = vunpack.c.h.b16 %v4868
  %v6241 = vunpack.c.l.b16 %v4869
  %v6242 = vunpack.c.h.b16 %v4869
  %v6243 = vpack.c.b16 %v5991, %v5987
  %v6244 = vpack.c.b16 %v5992, %v5988
  %v6245 = vpack.c.b16 %v5993, %v5989
  %v6246 = vpack.c.b16 %v5994, %v5990
  %v6247 = vpack.c.b16 %v5999, %v5995
  %v6248 = vpack.c.b16 %v6000, %v5996
  %v6249 = vpack.c.b16 %v6001, %v5997
  %v6250 = vpack.c.b16 %v6002, %v5998
  %v6251 = vpack.c.b16 %v6007, %v6003
  %v6252 = vpack.c.b16 %v6008, %v6004
  %v6253 = vpack.c.b16 %v6009, %v6005
  %v6254 = vpack.c.b16 %v6010, %v6006
  %v6255 = vpack.c.b16 %v6015, %v6011
  %v6256 = vpack.c.b16 %v6016, %v6012
  %v6257 = vpack.c.b16 %v6017, %v6013
  %v6258 = vpack.c.b16 %v6018, %v6014
  %v6259 = vpack.c.b16 %v6023, %v6019
  %v6260 = vpack.c.b16 %v6024, %v6020
  %v6261 = vpack.c.b16 %v6025, %v6021
  %v6262 = vpack.c.b16 %v6026, %v6022
  %v6263 = vpack.c.b16 %v6031, %v6027
  %v6264 = vpack.c.b16 %v6032, %v6028
  %v6265 = vpack.c.b16 %v6033, %v6029
  %v6266 = vpack.c.b16 %v6034, %v6030
  %v6267 = vpack.c.b16 %v6039, %v6035
  %v6268 = vpack.c.b16 %v6040, %v6036
  %v6269 = vpack.c.b16 %v6041, %v6037
  %v6270 = vpack.c.b16 %v6042, %v6038
  %v6271 = vpack.c.b16 %v6047, %v6043
  %v6272 = vpack.c.b16 %v6048, %v6044
  %v6273 = vpack.c.b16 %v6049, %v6045
  %v6274 = vpack.c.b16 %v6050, %v6046
  %v6275 = vpack.c.b16 %v6055, %v6051
  %v6276 = vpack.c.b16 %v6056, %v6052
  %v6277 = vpack.c.b16 %v6057, %v6053
  %v6278 = vpack.c.b16 %v6058, %v6054
  %v6279 = vpack.c.b16 %v6063, %v6059
  %v6280 = vpack.c.b16 %v6064, %v6060
  %v6281 = vpack.c.b16 %v6065, %v6061
  %v6282 = vpack.c.b16 %v6066, %v6062
  %v6283 = vpack.c.b16 %v6071, %v6067
  %v6284 = vpack.c.b16 %v6072, %v6068
  %v6285 = vpack.c.b16 %v6073, %v6069
  %v6286 = vpack.c.b16 %v6074, %v6070
  %v6287 = vpack.c.b16 %v6079, %v6075
  %v6288 = vpack.c.b16 %v6080, %v6076
  %v6289 = vpack.c.b16 %v6081, %v6077
  %v6290 = vpack.c.b16 %v6082, %v6078
  %v6291 = vpack.c.b16 %v6087, %v6083
  %v6292 = vpack.c.b16 %v6088, %v6084
  %v6293 = vpack.c.b16 %v6089, %v6085
  %v6294 = vpack.c.b16 %v6090, %v6086
  %v6295 = vpack.c.b16 %v6095, %v6091
  %v6296 = vpack.c.b16 %v6096, %v6092
  %v6297 = vpack.c.b16 %v6097, %v6093
  %v6298 = vpack.c.b16 %v6098, %v6094
  %v6299 = vpack.c.b16 %v6103, %v6099
  %v6300 = vpack.c.b16 %v6104, %v6100
  %v6301 = vpack.c.b16 %v6105, %v6101
  %v6302 = vpack.c.b16 %v6106, %v6102
  %v6303 = vpack.c.b16 %v6111, %v6107
  %v6304 = vpack.c.b16 %v6112, %v6108
  %v6305 = vpack.c.b16 %v6113, %v6109
  %v6306 = vpack.c.b16 %v6114, %v6110
  %v6307 = vpack.c.b16 %v6119, %v6115
  %v6308 = vpack.c.b16 %v6120, %v6116
  %v6309 = vpack.c.b16 %v6121, %v6117
  %v6310 = vpack.c.b16 %v6122, %v6118
  %v6311 = vpack.c.b16 %v6127, %v6123
  %v6312 = vpack.c.b16 %v6128, %v6124
  %v6313 = vpack.c.b16 %v6129, %v6125
  %v6314 = vpack.c.b16 %v6130, %v6126
  %v6315 = vpack.c.b16 %v6135, %v6131
  %v6316 = vpack.c.b16 %v6136, %v6132
  %v6317 = vpack.c.b16 %v6137, %v6133
  %v6318 = vpack.c.b16 %v6138, %v6134
  %v6319 = vpack.c.b16 %v6143, %v6139
  %v6320 = vpack.c.b16 %v6144, %v6140
  %v6321 = vpack.c.b16 %v6145, %v6141
  %v6322 = vpack.c.b16 %v6146, %v6142
  %v6323 = vpack.c.b16 %v6151, %v6147
  %v6324 = vpack.c.b16 %v6152, %v6148
  %v6325 = vpack.c.b16 %v6153, %v6149
  %v6326 = vpack.c.b16 %v6154, %v6150
  %v6327 = vpack.c.b16 %v6159, %v6155
  %v6328 = vpack.c.b16 %v6160, %v6156
  %v6329 = vpack.c.b16 %v6161, %v6157
  %v6330 = vpack.c.b16 %v6162, %v6158
  %v6331 = vpack.c.b16 %v6167, %v6163
  %v6332 = vpack.c.b16 %v6168, %v6164
  %v6333 = vpack.c.b16 %v6169, %v6165
  %v6334 = vpack.c.b16 %v6170, %v6166
  %v6335 = vpack.c.b16 %v6175, %v6171
  %v6336 = vpack.c.b16 %v6176, %v6172
  %v6337 = vpack.c.b16 %v6177, %v6173
  %v6338 = vpack.c.b16 %v6178, %v6174
  %v6339 = vpack.c.b16 %v6183, %v6179
  %v6340 = vpack.c.b16 %v6184, %v6180
  %v6341 = vpack.c.b16 %v6185, %v6181
  %v6342 = vpack.c.b16 %v6186, %v6182
  %v6343 = vpack.c.b16 %v6191, %v6187
  %v6344 = vpack.c.b16 %v6192, %v6188
  %v6345 = vpack.c.b16 %v6193, %v6189
  %v6346 = vpack.c.b16 %v6194, %v6190
  %v6347 = vpack.c.b16 %v6199, %v6195
  %v6348 = vpack.c.b16 %v6200, %v6196
  %v6349 = vpack.c.b16 %v6201, %v6197
  %v6350 = vpack.c.b16 %v6202, %v6198
  %v6351 = vpack.c.b16 %v6207, %v6203
  %v6352 = vpack.c.b16 %v6208, %v6204
  %v6353 = vpack.c.b16 %v6209, %v6205
  %v6354 = vpack.c.b16 %v6210, %v6206
  %v6355 = vpack.c.b16 %v6215, %v6211
  %v6356 = vpack.c.b16 %v6216, %v6212
  %v6357 = vpack.c.b16 %v6217, %v6213
  %v6358 = vpack.c.b16 %v6218, %v6214
  %v6359 = vpack.c.b16 %v6223, %v6219
  %v6360 = vpack.c.b16 %v6224, %v6220
  %v6361 = vpack.c.b16 %v6225, %v6221
  %v6362 = vpack.c.b16 %v6226, %v6222
  %v6363 = vpack.c.b16 %v6231, %v6227
  %v6364 = vpack.c.b16 %v6232, %v6228
  %v6365 = vpack.c.b16 %v6233, %v6229
  %v6366 = vpack.c.b16 %v6234, %v6230
  %v6367 = vpack.c.b16 %v6239, %v6235
  %v6368 = vpack.c.b16 %v6240, %v6236
  %v6369 = vpack.c.b16 %v6241, %v6237
  %v6370 = vpack.c.b16 %v6242, %v6238
  %6499 = vmatprep.subr.bf16.mxu0 %v6244
  %6500 = vmatpush1.bf16.msra.mxu0 %v6243
  %6501 = vmatprep.subr.bf16.mxu0 %v6248
  %6502 = vmatpush1.bf16.msra.mxu0 %v6247
  %6503 = vmatprep.subr.bf16.mxu0 %v6252
  %6504 = vmatpush1.bf16.msra.mxu0 %v6251
  %6505 = vmatprep.subr.bf16.mxu0 %v6256
  %6506 = vmatpush1.bf16.msra.mxu0 %v6255
  %6507 = vmatprep.subr.bf16.mxu0 %v6260
  %6508 = vmatpush1.bf16.msra.mxu0 %v6259
  %6509 = vmatprep.subr.bf16.mxu0 %v6264
  %6510 = vmatpush1.bf16.msra.mxu0 %v6263
  %6511 = vmatprep.subr.bf16.mxu0 %v6268
  %6512 = vmatpush1.bf16.msra.mxu0 %v6267
  %6513 = vmatprep.subr.bf16.mxu0 %v6272
  %6514 = vmatpush1.bf16.msra.mxu0 %v6271
  %6515 = vmatprep.subr.bf16.mxu0 %v6276
  %6516 = vmatpush1.bf16.msra.mxu0 %v6275
  %6517 = vmatprep.subr.bf16.mxu0 %v6280
  %6518 = vmatpush1.bf16.msra.mxu0 %v6279
  %6519 = vmatprep.subr.bf16.mxu0 %v6284
  %6520 = vmatpush1.bf16.msra.mxu0 %v6283
  %6521 = vmatprep.subr.bf16.mxu0 %v6288
  %6522 = vmatpush1.bf16.msra.mxu0 %v6287
  %6523 = vmatprep.subr.bf16.mxu0 %v6292
  %6524 = vmatpush1.bf16.msra.mxu0 %v6291
  %6525 = vmatprep.subr.bf16.mxu0 %v6296
  %6526 = vmatpush1.bf16.msra.mxu0 %v6295
  %6527 = vmatprep.subr.bf16.mxu0 %v6300
  %6528 = vmatpush1.bf16.msra.mxu0 %v6299
  %6529 = vmatprep.subr.bf16.mxu0 %v6304
  %6530 = vmatpush1.bf16.msra.mxu0 %v6303
  %6531 = vmatprep.mubr.bf16.mxu0 %v4630
  %6532 = vmatmul.mubr.bf16.gmra.mrb[0].mxu0 %v4629
  %v6533 = vpop.f32.mrb[0].mxu0
  %v6534 = vadd.f32 %v5735, %v6533
  %v6535 = vpop.f32.mrb[0].mxu0
  %v6536 = vadd.f32 %v5737, %v6535
  %v6537 = vpop.f32.mrb[0].mxu0
  %v6538 = vadd.f32 %v5739, %v6537
  %v6539 = vpop.f32.mrb[0].mxu0
  %v6540 = vadd.f32 %v5741, %v6539
  %6541 = vmatprep.mubr.bf16.mxu0 %v4634
  %6542 = vmatmul.mubr.bf16.gmra.mrb[0].mxu0 %v4633
  %v6543 = vpop.f32.mrb[0].mxu0
  %v6544 = vadd.f32 %v5745, %v6543
  %v6545 = vpop.f32.mrb[0].mxu0
  %v6546 = vadd.f32 %v5747, %v6545
  %v6547 = vpop.f32.mrb[0].mxu0
  %v6548 = vadd.f32 %v5749, %v6547
  %v6549 = vpop.f32.mrb[0].mxu0
  %v6550 = vadd.f32 %v5751, %v6549
  %6551 = vdwg.mxu0
  %6552 = vmatprep.subr.bf16.mxu0 %v6308
  %6553 = vmatpush1.bf16.msra.mxu0 %v6307
  %6554 = vmatprep.subr.bf16.mxu0 %v6312
  %6555 = vmatpush1.bf16.msra.mxu0 %v6311
  %6556 = vmatprep.subr.bf16.mxu0 %v6316
  %6557 = vmatpush1.bf16.msra.mxu0 %v6315
  %6558 = vmatprep.subr.bf16.mxu0 %v6320
  %6559 = vmatpush1.bf16.msra.mxu0 %v6319
  %6560 = vmatprep.subr.bf16.mxu0 %v6324
  %6561 = vmatpush1.bf16.msra.mxu0 %v6323
  %6562 = vmatprep.subr.bf16.mxu0 %v6328
  %6563 = vmatpush1.bf16.msra.mxu0 %v6327
  %6564 = vmatprep.subr.bf16.mxu0 %v6332
  %6565 = vmatpush1.bf16.msra.mxu0 %v6331
  %6566 = vmatprep.subr.bf16.mxu0 %v6336
  %6567 = vmatpush1.bf16.msra.mxu0 %v6335
  %6568 = vmatprep.subr.bf16.mxu0 %v6340
  %6569 = vmatpush1.bf16.msra.mxu0 %v6339
  %6570 = vmatprep.subr.bf16.mxu0 %v6344
  %6571 = vmatpush1.bf16.msra.mxu0 %v6343
  %6572 = vmatprep.subr.bf16.mxu0 %v6348
  %6573 = vmatpush1.bf16.msra.mxu0 %v6347
  %6574 = vmatprep.subr.bf16.mxu0 %v6352
  %6575 = vmatpush1.bf16.msra.mxu0 %v6351
  %6576 = vmatprep.subr.bf16.mxu0 %v6356
  %6577 = vmatpush1.bf16.msra.mxu0 %v6355
  %6578 = vmatprep.subr.bf16.mxu0 %v6360
  %6579 = vmatpush1.bf16.msra.mxu0 %v6359
  %6580 = vmatprep.subr.bf16.mxu0 %v6364
  %6581 = vmatpush1.bf16.msra.mxu0 %v6363
  %6582 = vmatprep.subr.bf16.mxu0 %v6368
  %6583 = vmatpush1.bf16.msra.mxu0 %v6367
  %6584 = vmatprep.mubr.bf16.mxu0 %v4632
  %6585 = vmatmul.mubr.bf16.gmra.mrb[0].mxu0 %v4631
  %v6586 = vpop.f32.mrb[0].mxu0
  %v6587 = vadd.f32 %v6534, %v6586
  %v6588 = vpop.f32.mrb[0].mxu0
  %v6589 = vadd.f32 %v6536, %v6588
  %v6590 = vpop.f32.mrb[0].mxu0
  %v6591 = vadd.f32 %v6538, %v6590
  %v6592 = vpop.f32.mrb[0].mxu0
  %v6593 = vadd.f32 %v6540, %v6592
  %6594 = vmatprep.mubr.bf16.mxu0 %v4636
  %6595 = vmatmul.mubr.bf16.gmra.mrb[0].mxu0 %v4635
  %v6596 = vpop.f32.mrb[0].mxu0
  %v6597 = vadd.f32 %v6544, %v6596
  %v6598 = vpop.f32.mrb[0].mxu0
  %v6599 = vadd.f32 %v6546, %v6598
  %v6600 = vpop.f32.mrb[0].mxu0
  %v6601 = vadd.f32 %v6548, %v6600
  %v6602 = vpop.f32.mrb[0].mxu0
  %v6603 = vadd.f32 %v6550, %v6602
  %6604 = vdwg.mxu0
  %6605 = vmatprep.subr.bf16.mxu0 %v6246
  %6606 = vmatpush1.bf16.msra.mxu0 %v6245
  %6607 = vmatprep.subr.bf16.mxu0 %v6250
  %6608 = vmatpush1.bf16.msra.mxu0 %v6249
  %6609 = vmatprep.subr.bf16.mxu0 %v6254
  %6610 = vmatpush1.bf16.msra.mxu0 %v6253
  %6611 = vmatprep.subr.bf16.mxu0 %v6258
  %6612 = vmatpush1.bf16.msra.mxu0 %v6257
  %6613 = vmatprep.subr.bf16.mxu0 %v6262
  %6614 = vmatpush1.bf16.msra.mxu0 %v6261
  %6615 = vmatprep.subr.bf16.mxu0 %v6266
  %6616 = vmatpush1.bf16.msra.mxu0 %v6265
  %6617 = vmatprep.subr.bf16.mxu0 %v6270
  %6618 = vmatpush1.bf16.msra.mxu0 %v6269
  %6619 = vmatprep.subr.bf16.mxu0 %v6274
  %6620 = vmatpush1.bf16.msra.mxu0 %v6273
  %6621 = vmatprep.subr.bf16.mxu0 %v6278
  %6622 = vmatpush1.bf16.msra.mxu0 %v6277
  %6623 = vmatprep.subr.bf16.mxu0 %v6282
  %6624 = vmatpush1.bf16.msra.mxu0 %v6281
  %6625 = vmatprep.subr.bf16.mxu0 %v6286
  %6626 = vmatpush1.bf16.msra.mxu0 %v6285
  %6627 = vmatprep.subr.bf16.mxu0 %v6290
  %6628 = vmatpush1.bf16.msra.mxu0 %v6289
  %6629 = vmatprep.subr.bf16.mxu0 %v6294
  %6630 = vmatpush1.bf16.msra.mxu0 %v6293
  %6631 = vmatprep.subr.bf16.mxu0 %v6298
  %6632 = vmatpush1.bf16.msra.mxu0 %v6297
  %6633 = vmatprep.subr.bf16.mxu0 %v6302
  %6634 = vmatpush1.bf16.msra.mxu0 %v6301
  %6635 = vmatprep.subr.bf16.mxu0 %v6306
  %6636 = vmatpush1.bf16.msra.mxu0 %v6305
  %6637 = vmatprep.mubr.bf16.mxu0 %v4630
  %6638 = vmatmul.mubr.bf16.gmra.mrb[0].mxu0 %v4629
  %v6639 = vpop.f32.mrb[0].mxu0
  %v6640 = vadd.f32 %v5841, %v6639
  %v6641 = vpop.f32.mrb[0].mxu0
  %v6642 = vadd.f32 %v5843, %v6641
  %v6643 = vpop.f32.mrb[0].mxu0
  %v6644 = vadd.f32 %v5845, %v6643
  %v6645 = vpop.f32.mrb[0].mxu0
  %v6646 = vadd.f32 %v5847, %v6645
  %6647 = vmatprep.mubr.bf16.mxu0 %v4634
  %6648 = vmatmul.mubr.bf16.gmra.mrb[0].mxu0 %v4633
  %v6649 = vpop.f32.mrb[0].mxu0
  %v6650 = vadd.f32 %v5851, %v6649
  %v6651 = vpop.f32.mrb[0].mxu0
  %v6652 = vadd.f32 %v5853, %v6651
  %v6653 = vpop.f32.mrb[0].mxu0
  %v6654 = vadd.f32 %v5855, %v6653
  %v6655 = vpop.f32.mrb[0].mxu0
  %v6656 = vadd.f32 %v5857, %v6655
  %6657 = vdwg.mxu0
  %6658 = vmatprep.subr.bf16.mxu0 %v6310
  %6659 = vmatpush1.bf16.msra.mxu0 %v6309
  %6660 = vmatprep.subr.bf16.mxu0 %v6314
  %6661 = vmatpush1.bf16.msra.mxu0 %v6313
  %6662 = vmatprep.subr.bf16.mxu0 %v6318
  %6663 = vmatpush1.bf16.msra.mxu0 %v6317
  %6664 = vmatprep.subr.bf16.mxu0 %v6322
  %6665 = vmatpush1.bf16.msra.mxu0 %v6321
  %6666 = vmatprep.subr.bf16.mxu0 %v6326
  %6667 = vmatpush1.bf16.msra.mxu0 %v6325
  %6668 = vmatprep.subr.bf16.mxu0 %v6330
  %6669 = vmatpush1.bf16.msra.mxu0 %v6329
  %6670 = vmatprep.subr.bf16.mxu0 %v6334
  %6671 = vmatpush1.bf16.msra.mxu0 %v6333
  %6672 = vmatprep.subr.bf16.mxu0 %v6338
  %6673 = vmatpush1.bf16.msra.mxu0 %v6337
  %6674 = vmatprep.subr.bf16.mxu0 %v6342
  %6675 = vmatpush1.bf16.msra.mxu0 %v6341
  %6676 = vmatprep.subr.bf16.mxu0 %v6346
  %6677 = vmatpush1.bf16.msra.mxu0 %v6345
  %6678 = vmatprep.subr.bf16.mxu0 %v6350
  %6679 = vmatpush1.bf16.msra.mxu0 %v6349
  %6680 = vmatprep.subr.bf16.mxu0 %v6354
  %6681 = vmatpush1.bf16.msra.mxu0 %v6353
  %6682 = vmatprep.subr.bf16.mxu0 %v6358
  %6683 = vmatpush1.bf16.msra.mxu0 %v6357
  %6684 = vmatprep.subr.bf16.mxu0 %v6362
  %6685 = vmatpush1.bf16.msra.mxu0 %v6361
  %6686 = vmatprep.subr.bf16.mxu0 %v6366
  %6687 = vmatpush1.bf16.msra.mxu0 %v6365
  %6688 = vmatprep.subr.bf16.mxu0 %v6370
  %6689 = vmatpush1.bf16.msra.mxu0 %v6369
  %6690 = vmatprep.mubr.bf16.mxu0 %v4632
  %6691 = vmatmul.mubr.bf16.gmra.mrb[0].mxu0 %v4631
  %v6692 = vpop.f32.mrb[0].mxu0
  %v6693 = vadd.f32 %v6640, %v6692
  %v6694 = vpop.f32.mrb[0].mxu0
  %v6695 = vadd.f32 %v6642, %v6694
  %v6696 = vpop.f32.mrb[0].mxu0
  %v6697 = vadd.f32 %v6644, %v6696
  %v6698 = vpop.f32.mrb[0].mxu0
  %v6699 = vadd.f32 %v6646, %v6698
  %6700 = vmatprep.mubr.bf16.mxu0 %v4636
  %6701 = vmatmul.mubr.bf16.gmra.mrb[0].mxu0 %v4635
  %v6702 = vpop.f32.mrb[0].mxu0
  %v6703 = vadd.f32 %v6650, %v6702
  %v6704 = vpop.f32.mrb[0].mxu0
  %v6705 = vadd.f32 %v6652, %v6704
  %v6706 = vpop.f32.mrb[0].mxu0
  %v6707 = vadd.f32 %v6654, %v6706
  %v6708 = vpop.f32.mrb[0].mxu0
  %v6709 = vadd.f32 %v6656, %v6708
  %6710 = vdwg.mxu0
  %s6711 = scalar_lea.vmem %s6, 2048
  %v6712 = vld [vmem:[%s6711] sm:$0xff]
  %v6713 = vld [vmem:[%s6711 + $0x8] sm:$0xff]
  %v6714 = vld [vmem:[%s6711 + $0x10] sm:$0xff]
  %v6715 = vld [vmem:[%s6711 + $0x18] sm:$0xff]
  %v6716 = vld [vmem:[%s6711 + $0x20] sm:$0xff]
  %v6717 = vld [vmem:[%s6711 + $0x28] sm:$0xff]
  %v6718 = vld [vmem:[%s6711 + $0x30] sm:$0xff]
  %v6719 = vld [vmem:[%s6711 + $0x38] sm:$0xff]
  %v6720 = vld [vmem:[%s6711 + $0x40] sm:$0xff]
  %v6721 = vld [vmem:[%s6711 + $0x48] sm:$0xff]
  %v6722 = vld [vmem:[%s6711 + $0x50] sm:$0xff]
  %v6723 = vld [vmem:[%s6711 + $0x58] sm:$0xff]
  %v6724 = vld [vmem:[%s6711 + $0x60] sm:$0xff]
  %v6725 = vld [vmem:[%s6711 + $0x68] sm:$0xff]
  %v6726 = vld [vmem:[%s6711 + $0x70] sm:$0xff]
  %v6727 = vld [vmem:[%s6711 + $0x78] sm:$0xff]
  %v6728 = vld [vmem:[%s6711 + $0x80] sm:$0xff]
  %v6729 = vld [vmem:[%s6711 + $0x88] sm:$0xff]
  %v6730 = vld [vmem:[%s6711 + $0x90] sm:$0xff]
  %v6731 = vld [vmem:[%s6711 + $0x98] sm:$0xff]
  %v6732 = vld [vmem:[%s6711 + $0xa0] sm:$0xff]
  %v6733 = vld [vmem:[%s6711 + $0xa8] sm:$0xff]
  %v6734 = vld [vmem:[%s6711 + $0xb0] sm:$0xff]
  %v6735 = vld [vmem:[%s6711 + $0xb8] sm:$0xff]
  %v6736 = vld [vmem:[%s6711 + $0xc0] sm:$0xff]
  %v6737 = vld [vmem:[%s6711 + $0xc8] sm:$0xff]
  %v6738 = vld [vmem:[%s6711 + $0xd0] sm:$0xff]
  %v6739 = vld [vmem:[%s6711 + $0xd8] sm:$0xff]
  %v6740 = vld [vmem:[%s6711 + $0xe0] sm:$0xff]
  %v6741 = vld [vmem:[%s6711 + $0xe8] sm:$0xff]
  %v6742 = vld [vmem:[%s6711 + $0xf0] sm:$0xff]
  %v6743 = vld [vmem:[%s6711 + $0xf8] sm:$0xff]
  %v6744 = vld [vmem:[%s6711 + $0x100] sm:$0xff]
  %v6745 = vld [vmem:[%s6711 + $0x108] sm:$0xff]
  %v6746 = vld [vmem:[%s6711 + $0x110] sm:$0xff]
  %v6747 = vld [vmem:[%s6711 + $0x118] sm:$0xff]
  %v6748 = vld [vmem:[%s6711 + $0x120] sm:$0xff]
  %v6749 = vld [vmem:[%s6711 + $0x128] sm:$0xff]
  %v6750 = vld [vmem:[%s6711 + $0x130] sm:$0xff]
  %v6751 = vld [vmem:[%s6711 + $0x138] sm:$0xff]
  %v6752 = vld [vmem:[%s6711 + $0x140] sm:$0xff]
  %v6753 = vld [vmem:[%s6711 + $0x148] sm:$0xff]
  %v6754 = vld [vmem:[%s6711 + $0x150] sm:$0xff]
  %v6755 = vld [vmem:[%s6711 + $0x158] sm:$0xff]
  %v6756 = vld [vmem:[%s6711 + $0x160] sm:$0xff]
  %v6757 = vld [vmem:[%s6711 + $0x168] sm:$0xff]
  %v6758 = vld [vmem:[%s6711 + $0x170] sm:$0xff]
  %v6759 = vld [vmem:[%s6711 + $0x178] sm:$0xff]
  %v6760 = vld [vmem:[%s6711 + $0x180] sm:$0xff]
  %v6761 = vld [vmem:[%s6711 + $0x188] sm:$0xff]
  %v6762 = vld [vmem:[%s6711 + $0x190] sm:$0xff]
  %v6763 = vld [vmem:[%s6711 + $0x198] sm:$0xff]
  %v6764 = vld [vmem:[%s6711 + $0x1a0] sm:$0xff]
  %v6765 = vld [vmem:[%s6711 + $0x1a8] sm:$0xff]
  %v6766 = vld [vmem:[%s6711 + $0x1b0] sm:$0xff]
  %v6767 = vld [vmem:[%s6711 + $0x1b8] sm:$0xff]
  %v6768 = vld [vmem:[%s6711 + $0x1c0] sm:$0xff]
  %v6769 = vld [vmem:[%s6711 + $0x1c8] sm:$0xff]
  %v6770 = vld [vmem:[%s6711 + $0x1d0] sm:$0xff]
  %v6771 = vld [vmem:[%s6711 + $0x1d8] sm:$0xff]
  %v6772 = vld [vmem:[%s6711 + $0x1e0] sm:$0xff]
  %v6773 = vld [vmem:[%s6711 + $0x1e8] sm:$0xff]
  %v6774 = vld [vmem:[%s6711 + $0x1f0] sm:$0xff]
  %v6775 = vld [vmem:[%s6711 + $0x1f8] sm:$0xff]
  %v6776 = vld [vmem:[%s6711 + $0x200] sm:$0xff]
  %v6777 = vld [vmem:[%s6711 + $0x208] sm:$0xff]
  %v6778 = vld [vmem:[%s6711 + $0x210] sm:$0xff]
  %v6779 = vld [vmem:[%s6711 + $0x218] sm:$0xff]
  %v6780 = vld [vmem:[%s6711 + $0x220] sm:$0xff]
  %v6781 = vld [vmem:[%s6711 + $0x228] sm:$0xff]
  %v6782 = vld [vmem:[%s6711 + $0x230] sm:$0xff]
  %v6783 = vld [vmem:[%s6711 + $0x238] sm:$0xff]
  %v6784 = vld [vmem:[%s6711 + $0x240] sm:$0xff]
  %v6785 = vld [vmem:[%s6711 + $0x248] sm:$0xff]
  %v6786 = vld [vmem:[%s6711 + $0x250] sm:$0xff]
  %v6787 = vld [vmem:[%s6711 + $0x258] sm:$0xff]
  %v6788 = vld [vmem:[%s6711 + $0x260] sm:$0xff]
  %v6789 = vld [vmem:[%s6711 + $0x268] sm:$0xff]
  %v6790 = vld [vmem:[%s6711 + $0x270] sm:$0xff]
  %v6791 = vld [vmem:[%s6711 + $0x278] sm:$0xff]
  %v6792 = vld [vmem:[%s6711 + $0x280] sm:$0xff]
  %v6793 = vld [vmem:[%s6711 + $0x288] sm:$0xff]
  %v6794 = vld [vmem:[%s6711 + $0x290] sm:$0xff]
  %v6795 = vld [vmem:[%s6711 + $0x298] sm:$0xff]
  %v6796 = vld [vmem:[%s6711 + $0x2a0] sm:$0xff]
  %v6797 = vld [vmem:[%s6711 + $0x2a8] sm:$0xff]
  %v6798 = vld [vmem:[%s6711 + $0x2b0] sm:$0xff]
  %v6799 = vld [vmem:[%s6711 + $0x2b8] sm:$0xff]
  %v6800 = vld [vmem:[%s6711 + $0x2c0] sm:$0xff]
  %v6801 = vld [vmem:[%s6711 + $0x2c8] sm:$0xff]
  %v6802 = vld [vmem:[%s6711 + $0x2d0] sm:$0xff]
  %v6803 = vld [vmem:[%s6711 + $0x2d8] sm:$0xff]
  %v6804 = vld [vmem:[%s6711 + $0x2e0] sm:$0xff]
  %v6805 = vld [vmem:[%s6711 + $0x2e8] sm:$0xff]
  %v6806 = vld [vmem:[%s6711 + $0x2f0] sm:$0xff]
  %v6807 = vld [vmem:[%s6711 + $0x2f8] sm:$0xff]
  %v6808 = vld [vmem:[%s6711 + $0x300] sm:$0xff]
  %v6809 = vld [vmem:[%s6711 + $0x308] sm:$0xff]
  %v6810 = vld [vmem:[%s6711 + $0x310] sm:$0xff]
  %v6811 = vld [vmem:[%s6711 + $0x318] sm:$0xff]
  %v6812 = vld [vmem:[%s6711 + $0x320] sm:$0xff]
  %v6813 = vld [vmem:[%s6711 + $0x328] sm:$0xff]
  %v6814 = vld [vmem:[%s6711 + $0x330] sm:$0xff]
  %v6815 = vld [vmem:[%s6711 + $0x338] sm:$0xff]
  %v6816 = vld [vmem:[%s6711 + $0x340] sm:$0xff]
  %v6817 = vld [vmem:[%s6711 + $0x348] sm:$0xff]
  %v6818 = vld [vmem:[%s6711 + $0x350] sm:$0xff]
  %v6819 = vld [vmem:[%s6711 + $0x358] sm:$0xff]
  %v6820 = vld [vmem:[%s6711 + $0x360] sm:$0xff]
  %v6821 = vld [vmem:[%s6711 + $0x368] sm:$0xff]
  %v6822 = vld [vmem:[%s6711 + $0x370] sm:$0xff]
  %v6823 = vld [vmem:[%s6711 + $0x378] sm:$0xff]
  %v6824 = vld [vmem:[%s6711 + $0x380] sm:$0xff]
  %v6825 = vld [vmem:[%s6711 + $0x388] sm:$0xff]
  %v6826 = vld [vmem:[%s6711 + $0x390] sm:$0xff]
  %v6827 = vld [vmem:[%s6711 + $0x398] sm:$0xff]
  %v6828 = vld [vmem:[%s6711 + $0x3a0] sm:$0xff]
  %v6829 = vld [vmem:[%s6711 + $0x3a8] sm:$0xff]
  %v6830 = vld [vmem:[%s6711 + $0x3b0] sm:$0xff]
  %v6831 = vld [vmem:[%s6711 + $0x3b8] sm:$0xff]
  %v6832 = vld [vmem:[%s6711 + $0x3c0] sm:$0xff]
  %v6833 = vld [vmem:[%s6711 + $0x3c8] sm:$0xff]
  %v6834 = vld [vmem:[%s6711 + $0x3d0] sm:$0xff]
  %v6835 = vld [vmem:[%s6711 + $0x3d8] sm:$0xff]
  %v6836 = vld [vmem:[%s6711 + $0x3e0] sm:$0xff]
  %v6837 = vld [vmem:[%s6711 + $0x3e8] sm:$0xff]
  %v6838 = vld [vmem:[%s6711 + $0x3f0] sm:$0xff]
  %v6839 = vld [vmem:[%s6711 + $0x3f8] sm:$0xff]
  %v6968 = vunpack.c.l.b16 %v6712
  %v6969 = vunpack.c.h.b16 %v6712
  %v6970 = vunpack.c.l.b16 %v6713
  %v6971 = vunpack.c.h.b16 %v6713
  %v6972 = vunpack.c.l.b16 %v6714
  %v6973 = vunpack.c.h.b16 %v6714
  %v6974 = vunpack.c.l.b16 %v6715
  %v6975 = vunpack.c.h.b16 %v6715
  %v6976 = vunpack.c.l.b16 %v6716
  %v6977 = vunpack.c.h.b16 %v6716
  %v6978 = vunpack.c.l.b16 %v6717
  %v6979 = vunpack.c.h.b16 %v6717
  %v6980 = vunpack.c.l.b16 %v6718
  %v6981 = vunpack.c.h.b16 %v6718
  %v6982 = vunpack.c.l.b16 %v6719
  %v6983 = vunpack.c.h.b16 %v6719
  %v6984 = vunpack.c.l.b16 %v6720
  %v6985 = vunpack.c.h.b16 %v6720
  %v6986 = vunpack.c.l.b16 %v6721
  %v6987 = vunpack.c.h.b16 %v6721
  %v6988 = vunpack.c.l.b16 %v6722
  %v6989 = vunpack.c.h.b16 %v6722
  %v6990 = vunpack.c.l.b16 %v6723
  %v6991 = vunpack.c.h.b16 %v6723
  %v6992 = vunpack.c.l.b16 %v6724
  %v6993 = vunpack.c.h.b16 %v6724
  %v6994 = vunpack.c.l.b16 %v6725
  %v6995 = vunpack.c.h.b16 %v6725
  %v6996 = vunpack.c.l.b16 %v6726
  %v6997 = vunpack.c.h.b16 %v6726
  %v6998 = vunpack.c.l.b16 %v6727
  %v6999 = vunpack.c.h.b16 %v6727
  %v7000 = vunpack.c.l.b16 %v6728
  %v7001 = vunpack.c.h.b16 %v6728
  %v7002 = vunpack.c.l.b16 %v6729
  %v7003 = vunpack.c.h.b16 %v6729
  %v7004 = vunpack.c.l.b16 %v6730
  %v7005 = vunpack.c.h.b16 %v6730
  %v7006 = vunpack.c.l.b16 %v6731
  %v7007 = vunpack.c.h.b16 %v6731
  %v7008 = vunpack.c.l.b16 %v6732
  %v7009 = vunpack.c.h.b16 %v6732
  %v7010 = vunpack.c.l.b16 %v6733
  %v7011 = vunpack.c.h.b16 %v6733
  %v7012 = vunpack.c.l.b16 %v6734
  %v7013 = vunpack.c.h.b16 %v6734
  %v7014 = vunpack.c.l.b16 %v6735
  %v7015 = vunpack.c.h.b16 %v6735
  %v7016 = vunpack.c.l.b16 %v6736
  %v7017 = vunpack.c.h.b16 %v6736
  %v7018 = vunpack.c.l.b16 %v6737
  %v7019 = vunpack.c.h.b16 %v6737
  %v7020 = vunpack.c.l.b16 %v6738
  %v7021 = vunpack.c.h.b16 %v6738
  %v7022 = vunpack.c.l.b16 %v6739
  %v7023 = vunpack.c.h.b16 %v6739
  %v7024 = vunpack.c.l.b16 %v6740
  %v7025 = vunpack.c.h.b16 %v6740
  %v7026 = vunpack.c.l.b16 %v6741
  %v7027 = vunpack.c.h.b16 %v6741
  %v7028 = vunpack.c.l.b16 %v6742
  %v7029 = vunpack.c.h.b16 %v6742
  %v7030 = vunpack.c.l.b16 %v6743
  %v7031 = vunpack.c.h.b16 %v6743
  %v7032 = vunpack.c.l.b16 %v6744
  %v7033 = vunpack.c.h.b16 %v6744
  %v7034 = vunpack.c.l.b16 %v6745
  %v7035 = vunpack.c.h.b16 %v6745
  %v7036 = vunpack.c.l.b16 %v6746
  %v7037 = vunpack.c.h.b16 %v6746
  %v7038 = vunpack.c.l.b16 %v6747
  %v7039 = vunpack.c.h.b16 %v6747
  %v7040 = vunpack.c.l.b16 %v6748
  %v7041 = vunpack.c.h.b16 %v6748
  %v7042 = vunpack.c.l.b16 %v6749
  %v7043 = vunpack.c.h.b16 %v6749
  %v7044 = vunpack.c.l.b16 %v6750
  %v7045 = vunpack.c.h.b16 %v6750
  %v7046 = vunpack.c.l.b16 %v6751
  %v7047 = vunpack.c.h.b16 %v6751
  %v7048 = vunpack.c.l.b16 %v6752
  %v7049 = vunpack.c.h.b16 %v6752
  %v7050 = vunpack.c.l.b16 %v6753
  %v7051 = vunpack.c.h.b16 %v6753
  %v7052 = vunpack.c.l.b16 %v6754
  %v7053 = vunpack.c.h.b16 %v6754
  %v7054 = vunpack.c.l.b16 %v6755
  %v7055 = vunpack.c.h.b16 %v6755
  %v7056 = vunpack.c.l.b16 %v6756
  %v7057 = vunpack.c.h.b16 %v6756
  %v7058 = vunpack.c.l.b16 %v6757
  %v7059 = vunpack.c.h.b16 %v6757
  %v7060 = vunpack.c.l.b16 %v6758
  %v7061 = vunpack.c.h.b16 %v6758
  %v7062 = vunpack.c.l.b16 %v6759
  %v7063 = vunpack.c.h.b16 %v6759
  %v7064 = vunpack.c.l.b16 %v6760
  %v7065 = vunpack.c.h.b16 %v6760
  %v7066 = vunpack.c.l.b16 %v6761
  %v7067 = vunpack.c.h.b16 %v6761
  %v7068 = vunpack.c.l.b16 %v6762
  %v7069 = vunpack.c.h.b16 %v6762
  %v7070 = vunpack.c.l.b16 %v6763
  %v7071 = vunpack.c.h.b16 %v6763
  %v7072 = vunpack.c.l.b16 %v6764
  %v7073 = vunpack.c.h.b16 %v6764
  %v7074 = vunpack.c.l.b16 %v6765
  %v7075 = vunpack.c.h.b16 %v6765
  %v7076 = vunpack.c.l.b16 %v6766
  %v7077 = vunpack.c.h.b16 %v6766
  %v7078 = vunpack.c.l.b16 %v6767
  %v7079 = vunpack.c.h.b16 %v6767
  %v7080 = vunpack.c.l.b16 %v6768
  %v7081 = vunpack.c.h.b16 %v6768
  %v7082 = vunpack.c.l.b16 %v6769
  %v7083 = vunpack.c.h.b16 %v6769
  %v7084 = vunpack.c.l.b16 %v6770
  %v7085 = vunpack.c.h.b16 %v6770
  %v7086 = vunpack.c.l.b16 %v6771
  %v7087 = vunpack.c.h.b16 %v6771
  %v7088 = vunpack.c.l.b16 %v6772
  %v7089 = vunpack.c.h.b16 %v6772
  %v7090 = vunpack.c.l.b16 %v6773
  %v7091 = vunpack.c.h.b16 %v6773
  %v7092 = vunpack.c.l.b16 %v6774
  %v7093 = vunpack.c.h.b16 %v6774
  %v7094 = vunpack.c.l.b16 %v6775
  %v7095 = vunpack.c.h.b16 %v6775
  %v7096 = vunpack.c.l.b16 %v6776
  %v7097 = vunpack.c.h.b16 %v6776
  %v7098 = vunpack.c.l.b16 %v6777
  %v7099 = vunpack.c.h.b16 %v6777
  %v7100 = vunpack.c.l.b16 %v6778
  %v7101 = vunpack.c.h.b16 %v6778
  %v7102 = vunpack.c.l.b16 %v6779
  %v7103 = vunpack.c.h.b16 %v6779
  %v7104 = vunpack.c.l.b16 %v6780
  %v7105 = vunpack.c.h.b16 %v6780
  %v7106 = vunpack.c.l.b16 %v6781
  %v7107 = vunpack.c.h.b16 %v6781
  %v7108 = vunpack.c.l.b16 %v6782
  %v7109 = vunpack.c.h.b16 %v6782
  %v7110 = vunpack.c.l.b16 %v6783
  %v7111 = vunpack.c.h.b16 %v6783
  %v7112 = vunpack.c.l.b16 %v6784
  %v7113 = vunpack.c.h.b16 %v6784
  %v7114 = vunpack.c.l.b16 %v6785
  %v7115 = vunpack.c.h.b16 %v6785
  %v7116 = vunpack.c.l.b16 %v6786
  %v7117 = vunpack.c.h.b16 %v6786
  %v7118 = vunpack.c.l.b16 %v6787
  %v7119 = vunpack.c.h.b16 %v6787
  %v7120 = vunpack.c.l.b16 %v6788
  %v7121 = vunpack.c.h.b16 %v6788
  %v7122 = vunpack.c.l.b16 %v6789
  %v7123 = vunpack.c.h.b16 %v6789
  %v7124 = vunpack.c.l.b16 %v6790
  %v7125 = vunpack.c.h.b16 %v6790
  %v7126 = vunpack.c.l.b16 %v6791
  %v7127 = vunpack.c.h.b16 %v6791
  %v7128 = vunpack.c.l.b16 %v6792
  %v7129 = vunpack.c.h.b16 %v6792
  %v7130 = vunpack.c.l.b16 %v6793
  %v7131 = vunpack.c.h.b16 %v6793
  %v7132 = vunpack.c.l.b16 %v6794
  %v7133 = vunpack.c.h.b16 %v6794
  %v7134 = vunpack.c.l.b16 %v6795
  %v7135 = vunpack.c.h.b16 %v6795
  %v7136 = vunpack.c.l.b16 %v6796
  %v7137 = vunpack.c.h.b16 %v6796
  %v7138 = vunpack.c.l.b16 %v6797
  %v7139 = vunpack.c.h.b16 %v6797
  %v7140 = vunpack.c.l.b16 %v6798
  %v7141 = vunpack.c.h.b16 %v6798
  %v7142 = vunpack.c.l.b16 %v6799
  %v7143 = vunpack.c.h.b16 %v6799
  %v7144 = vunpack.c.l.b16 %v6800
  %v7145 = vunpack.c.h.b16 %v6800
  %v7146 = vunpack.c.l.b16 %v6801
  %v7147 = vunpack.c.h.b16 %v6801
  %v7148 = vunpack.c.l.b16 %v6802
  %v7149 = vunpack.c.h.b16 %v6802
  %v7150 = vunpack.c.l.b16 %v6803
  %v7151 = vunpack.c.h.b16 %v6803
  %v7152 = vunpack.c.l.b16 %v6804
  %v7153 = vunpack.c.h.b16 %v6804
  %v7154 = vunpack.c.l.b16 %v6805
  %v7155 = vunpack.c.h.b16 %v6805
  %v7156 = vunpack.c.l.b16 %v6806
  %v7157 = vunpack.c.h.b16 %v6806
  %v7158 = vunpack.c.l.b16 %v6807
  %v7159 = vunpack.c.h.b16 %v6807
  %v7160 = vunpack.c.l.b16 %v6808
  %v7161 = vunpack.c.h.b16 %v6808
  %v7162 = vunpack.c.l.b16 %v6809
  %v7163 = vunpack.c.h.b16 %v6809
  %v7164 = vunpack.c.l.b16 %v6810
  %v7165 = vunpack.c.h.b16 %v6810
  %v7166 = vunpack.c.l.b16 %v6811
  %v7167 = vunpack.c.h.b16 %v6811
  %v7168 = vunpack.c.l.b16 %v6812
  %v7169 = vunpack.c.h.b16 %v6812
  %v7170 = vunpack.c.l.b16 %v6813
  %v7171 = vunpack.c.h.b16 %v6813
  %v7172 = vunpack.c.l.b16 %v6814
  %v7173 = vunpack.c.h.b16 %v6814
  %v7174 = vunpack.c.l.b16 %v6815
  %v7175 = vunpack.c.h.b16 %v6815
  %v7176 = vunpack.c.l.b16 %v6816
  %v7177 = vunpack.c.h.b16 %v6816
  %v7178 = vunpack.c.l.b16 %v6817
  %v7179 = vunpack.c.h.b16 %v6817
  %v7180 = vunpack.c.l.b16 %v6818
  %v7181 = vunpack.c.h.b16 %v6818
  %v7182 = vunpack.c.l.b16 %v6819
  %v7183 = vunpack.c.h.b16 %v6819
  %v7184 = vunpack.c.l.b16 %v6820
  %v7185 = vunpack.c.h.b16 %v6820
  %v7186 = vunpack.c.l.b16 %v6821
  %v7187 = vunpack.c.h.b16 %v6821
  %v7188 = vunpack.c.l.b16 %v6822
  %v7189 = vunpack.c.h.b16 %v6822
  %v7190 = vunpack.c.l.b16 %v6823
  %v7191 = vunpack.c.h.b16 %v6823
  %v7192 = vunpack.c.l.b16 %v6824
  %v7193 = vunpack.c.h.b16 %v6824
  %v7194 = vunpack.c.l.b16 %v6825
  %v7195 = vunpack.c.h.b16 %v6825
  %v7196 = vunpack.c.l.b16 %v6826
  %v7197 = vunpack.c.h.b16 %v6826
  %v7198 = vunpack.c.l.b16 %v6827
  %v7199 = vunpack.c.h.b16 %v6827
  %v7200 = vunpack.c.l.b16 %v6828
  %v7201 = vunpack.c.h.b16 %v6828
  %v7202 = vunpack.c.l.b16 %v6829
  %v7203 = vunpack.c.h.b16 %v6829
  %v7204 = vunpack.c.l.b16 %v6830
  %v7205 = vunpack.c.h.b16 %v6830
  %v7206 = vunpack.c.l.b16 %v6831
  %v7207 = vunpack.c.h.b16 %v6831
  %v7208 = vunpack.c.l.b16 %v6832
  %v7209 = vunpack.c.h.b16 %v6832
  %v7210 = vunpack.c.l.b16 %v6833
  %v7211 = vunpack.c.h.b16 %v6833
  %v7212 = vunpack.c.l.b16 %v6834
  %v7213 = vunpack.c.h.b16 %v6834
  %v7214 = vunpack.c.l.b16 %v6835
  %v7215 = vunpack.c.h.b16 %v6835
  %v7216 = vunpack.c.l.b16 %v6836
  %v7217 = vunpack.c.h.b16 %v6836
  %v7218 = vunpack.c.l.b16 %v6837
  %v7219 = vunpack.c.h.b16 %v6837
  %v7220 = vunpack.c.l.b16 %v6838
  %v7221 = vunpack.c.h.b16 %v6838
  %v7222 = vunpack.c.l.b16 %v6839
  %v7223 = vunpack.c.h.b16 %v6839
  %v7224 = vpack.c.b16 %v6972, %v6968
  %v7225 = vpack.c.b16 %v6973, %v6969
  %v7226 = vpack.c.b16 %v6974, %v6970
  %v7227 = vpack.c.b16 %v6975, %v6971
  %v7228 = vpack.c.b16 %v6980, %v6976
  %v7229 = vpack.c.b16 %v6981, %v6977
  %v7230 = vpack.c.b16 %v6982, %v6978
  %v7231 = vpack.c.b16 %v6983, %v6979
  %v7232 = vpack.c.b16 %v6988, %v6984
  %v7233 = vpack.c.b16 %v6989, %v6985
  %v7234 = vpack.c.b16 %v6990, %v6986
  %v7235 = vpack.c.b16 %v6991, %v6987
  %v7236 = vpack.c.b16 %v6996, %v6992
  %v7237 = vpack.c.b16 %v6997, %v6993
  %v7238 = vpack.c.b16 %v6998, %v6994
  %v7239 = vpack.c.b16 %v6999, %v6995
  %v7240 = vpack.c.b16 %v7004, %v7000
  %v7241 = vpack.c.b16 %v7005, %v7001
  %v7242 = vpack.c.b16 %v7006, %v7002
  %v7243 = vpack.c.b16 %v7007, %v7003
  %v7244 = vpack.c.b16 %v7012, %v7008
  %v7245 = vpack.c.b16 %v7013, %v7009
  %v7246 = vpack.c.b16 %v7014, %v7010
  %v7247 = vpack.c.b16 %v7015, %v7011
  %v7248 = vpack.c.b16 %v7020, %v7016
  %v7249 = vpack.c.b16 %v7021, %v7017
  %v7250 = vpack.c.b16 %v7022, %v7018
  %v7251 = vpack.c.b16 %v7023, %v7019
  %v7252 = vpack.c.b16 %v7028, %v7024
  %v7253 = vpack.c.b16 %v7029, %v7025
  %v7254 = vpack.c.b16 %v7030, %v7026
  %v7255 = vpack.c.b16 %v7031, %v7027
  %v7256 = vpack.c.b16 %v7036, %v7032
  %v7257 = vpack.c.b16 %v7037, %v7033
  %v7258 = vpack.c.b16 %v7038, %v7034
  %v7259 = vpack.c.b16 %v7039, %v7035
  %v7260 = vpack.c.b16 %v7044, %v7040
  %v7261 = vpack.c.b16 %v7045, %v7041
  %v7262 = vpack.c.b16 %v7046, %v7042
  %v7263 = vpack.c.b16 %v7047, %v7043
  %v7264 = vpack.c.b16 %v7052, %v7048
  %v7265 = vpack.c.b16 %v7053, %v7049
  %v7266 = vpack.c.b16 %v7054, %v7050
  %v7267 = vpack.c.b16 %v7055, %v7051
  %v7268 = vpack.c.b16 %v7060, %v7056
  %v7269 = vpack.c.b16 %v7061, %v7057
  %v7270 = vpack.c.b16 %v7062, %v7058
  %v7271 = vpack.c.b16 %v7063, %v7059
  %v7272 = vpack.c.b16 %v7068, %v7064
  %v7273 = vpack.c.b16 %v7069, %v7065
  %v7274 = vpack.c.b16 %v7070, %v7066
  %v7275 = vpack.c.b16 %v7071, %v7067
  %v7276 = vpack.c.b16 %v7076, %v7072
  %v7277 = vpack.c.b16 %v7077, %v7073
  %v7278 = vpack.c.b16 %v7078, %v7074
  %v7279 = vpack.c.b16 %v7079, %v7075
  %v7280 = vpack.c.b16 %v7084, %v7080
  %v7281 = vpack.c.b16 %v7085, %v7081
  %v7282 = vpack.c.b16 %v7086, %v7082
  %v7283 = vpack.c.b16 %v7087, %v7083
  %v7284 = vpack.c.b16 %v7092, %v7088
  %v7285 = vpack.c.b16 %v7093, %v7089
  %v7286 = vpack.c.b16 %v7094, %v7090
  %v7287 = vpack.c.b16 %v7095, %v7091
  %v7288 = vpack.c.b16 %v7100, %v7096
  %v7289 = vpack.c.b16 %v7101, %v7097
  %v7290 = vpack.c.b16 %v7102, %v7098
  %v7291 = vpack.c.b16 %v7103, %v7099
  %v7292 = vpack.c.b16 %v7108, %v7104
  %v7293 = vpack.c.b16 %v7109, %v7105
  %v7294 = vpack.c.b16 %v7110, %v7106
  %v7295 = vpack.c.b16 %v7111, %v7107
  %v7296 = vpack.c.b16 %v7116, %v7112
  %v7297 = vpack.c.b16 %v7117, %v7113
  %v7298 = vpack.c.b16 %v7118, %v7114
  %v7299 = vpack.c.b16 %v7119, %v7115
  %v7300 = vpack.c.b16 %v7124, %v7120
  %v7301 = vpack.c.b16 %v7125, %v7121
  %v7302 = vpack.c.b16 %v7126, %v7122
  %v7303 = vpack.c.b16 %v7127, %v7123
  %v7304 = vpack.c.b16 %v7132, %v7128
  %v7305 = vpack.c.b16 %v7133, %v7129
  %v7306 = vpack.c.b16 %v7134, %v7130
  %v7307 = vpack.c.b16 %v7135, %v7131
  %v7308 = vpack.c.b16 %v7140, %v7136
  %v7309 = vpack.c.b16 %v7141, %v7137
  %v7310 = vpack.c.b16 %v7142, %v7138
  %v7311 = vpack.c.b16 %v7143, %v7139
  %v7312 = vpack.c.b16 %v7148, %v7144
  %v7313 = vpack.c.b16 %v7149, %v7145
  %v7314 = vpack.c.b16 %v7150, %v7146
  %v7315 = vpack.c.b16 %v7151, %v7147
  %v7316 = vpack.c.b16 %v7156, %v7152
  %v7317 = vpack.c.b16 %v7157, %v7153
  %v7318 = vpack.c.b16 %v7158, %v7154
  %v7319 = vpack.c.b16 %v7159, %v7155
  %v7320 = vpack.c.b16 %v7164, %v7160
  %v7321 = vpack.c.b16 %v7165, %v7161
  %v7322 = vpack.c.b16 %v7166, %v7162
  %v7323 = vpack.c.b16 %v7167, %v7163
  %v7324 = vpack.c.b16 %v7172, %v7168
  %v7325 = vpack.c.b16 %v7173, %v7169
  %v7326 = vpack.c.b16 %v7174, %v7170
  %v7327 = vpack.c.b16 %v7175, %v7171
  %v7328 = vpack.c.b16 %v7180, %v7176
  %v7329 = vpack.c.b16 %v7181, %v7177
  %v7330 = vpack.c.b16 %v7182, %v7178
  %v7331 = vpack.c.b16 %v7183, %v7179
  %v7332 = vpack.c.b16 %v7188, %v7184
  %v7333 = vpack.c.b16 %v7189, %v7185
  %v7334 = vpack.c.b16 %v7190, %v7186
  %v7335 = vpack.c.b16 %v7191, %v7187
  %v7336 = vpack.c.b16 %v7196, %v7192
  %v7337 = vpack.c.b16 %v7197, %v7193
  %v7338 = vpack.c.b16 %v7198, %v7194
  %v7339 = vpack.c.b16 %v7199, %v7195
  %v7340 = vpack.c.b16 %v7204, %v7200
  %v7341 = vpack.c.b16 %v7205, %v7201
  %v7342 = vpack.c.b16 %v7206, %v7202
  %v7343 = vpack.c.b16 %v7207, %v7203
  %v7344 = vpack.c.b16 %v7212, %v7208
  %v7345 = vpack.c.b16 %v7213, %v7209
  %v7346 = vpack.c.b16 %v7214, %v7210
  %v7347 = vpack.c.b16 %v7215, %v7211
  %v7348 = vpack.c.b16 %v7220, %v7216
  %v7349 = vpack.c.b16 %v7221, %v7217
  %v7350 = vpack.c.b16 %v7222, %v7218
  %v7351 = vpack.c.b16 %v7223, %v7219
  %7480 = vmatprep.subr.bf16.mxu0 %v7225
  %7481 = vmatpush1.bf16.msra.mxu0 %v7224
  %7482 = vmatprep.subr.bf16.mxu0 %v7229
  %7483 = vmatpush1.bf16.msra.mxu0 %v7228
  %7484 = vmatprep.subr.bf16.mxu0 %v7233
  %7485 = vmatpush1.bf16.msra.mxu0 %v7232
  %7486 = vmatprep.subr.bf16.mxu0 %v7237
  %7487 = vmatpush1.bf16.msra.mxu0 %v7236
  %7488 = vmatprep.subr.bf16.mxu0 %v7241
  %7489 = vmatpush1.bf16.msra.mxu0 %v7240
  %7490 = vmatprep.subr.bf16.mxu0 %v7245
  %7491 = vmatpush1.bf16.msra.mxu0 %v7244
  %7492 = vmatprep.subr.bf16.mxu0 %v7249
  %7493 = vmatpush1.bf16.msra.mxu0 %v7248
  %7494 = vmatprep.subr.bf16.mxu0 %v7253
  %7495 = vmatpush1.bf16.msra.mxu0 %v7252
  %7496 = vmatprep.subr.bf16.mxu0 %v7257
  %7497 = vmatpush1.bf16.msra.mxu0 %v7256
  %7498 = vmatprep.subr.bf16.mxu0 %v7261
  %7499 = vmatpush1.bf16.msra.mxu0 %v7260
  %7500 = vmatprep.subr.bf16.mxu0 %v7265
  %7501 = vmatpush1.bf16.msra.mxu0 %v7264
  %7502 = vmatprep.subr.bf16.mxu0 %v7269
  %7503 = vmatpush1.bf16.msra.mxu0 %v7268
  %7504 = vmatprep.subr.bf16.mxu0 %v7273
  %7505 = vmatpush1.bf16.msra.mxu0 %v7272
  %7506 = vmatprep.subr.bf16.mxu0 %v7277
  %7507 = vmatpush1.bf16.msra.mxu0 %v7276
  %7508 = vmatprep.subr.bf16.mxu0 %v7281
  %7509 = vmatpush1.bf16.msra.mxu0 %v7280
  %7510 = vmatprep.subr.bf16.mxu0 %v7285
  %7511 = vmatpush1.bf16.msra.mxu0 %v7284
  %7512 = vmatprep.mubr.bf16.mxu0 %v4735
  %7513 = vmatmul.mubr.bf16.gmra.mrb[0].mxu0 %v4734
  %v7514 = vpop.f32.mrb[0].mxu0
  %v7515 = vadd.f32 0.0, %v7514
  %v7516 = vpop.f32.mrb[0].mxu0
  %v7517 = vadd.f32 0.0, %v7516
  %v7518 = vpop.f32.mrb[0].mxu0
  %v7519 = vadd.f32 0.0, %v7518
  %v7520 = vpop.f32.mrb[0].mxu0
  %v7521 = vadd.f32 0.0, %v7520
  %7522 = vmatprep.mubr.bf16.mxu0 %v4739
  %7523 = vmatmul.mubr.bf16.gmra.mrb[0].mxu0 %v4738
  %v7524 = vpop.f32.mrb[0].mxu0
  %v7525 = vadd.f32 0.0, %v7524
  %v7526 = vpop.f32.mrb[0].mxu0
  %v7527 = vadd.f32 0.0, %v7526
  %v7528 = vpop.f32.mrb[0].mxu0
  %v7529 = vadd.f32 0.0, %v7528
  %v7530 = vpop.f32.mrb[0].mxu0
  %v7531 = vadd.f32 0.0, %v7530
  %7532 = vdwg.mxu0
  %7533 = vmatprep.subr.bf16.mxu0 %v7289
  %7534 = vmatpush1.bf16.msra.mxu0 %v7288
  %7535 = vmatprep.subr.bf16.mxu0 %v7293
  %7536 = vmatpush1.bf16.msra.mxu0 %v7292
  %7537 = vmatprep.subr.bf16.mxu0 %v7297
  %7538 = vmatpush1.bf16.msra.mxu0 %v7296
  %7539 = vmatprep.subr.bf16.mxu0 %v7301
  %7540 = vmatpush1.bf16.msra.mxu0 %v7300
  %7541 = vmatprep.subr.bf16.mxu0 %v7305
  %7542 = vmatpush1.bf16.msra.mxu0 %v7304
  %7543 = vmatprep.subr.bf16.mxu0 %v7309
  %7544 = vmatpush1.bf16.msra.mxu0 %v7308
  %7545 = vmatprep.subr.bf16.mxu0 %v7313
  %7546 = vmatpush1.bf16.msra.mxu0 %v7312
  %7547 = vmatprep.subr.bf16.mxu0 %v7317
  %7548 = vmatpush1.bf16.msra.mxu0 %v7316
  %7549 = vmatprep.subr.bf16.mxu0 %v7321
  %7550 = vmatpush1.bf16.msra.mxu0 %v7320
  %7551 = vmatprep.subr.bf16.mxu0 %v7325
  %7552 = vmatpush1.bf16.msra.mxu0 %v7324
  %7553 = vmatprep.subr.bf16.mxu0 %v7329
  %7554 = vmatpush1.bf16.msra.mxu0 %v7328
  %7555 = vmatprep.subr.bf16.mxu0 %v7333
  %7556 = vmatpush1.bf16.msra.mxu0 %v7332
  %7557 = vmatprep.subr.bf16.mxu0 %v7337
  %7558 = vmatpush1.bf16.msra.mxu0 %v7336
  %7559 = vmatprep.subr.bf16.mxu0 %v7341
  %7560 = vmatpush1.bf16.msra.mxu0 %v7340
  %7561 = vmatprep.subr.bf16.mxu0 %v7345
  %7562 = vmatpush1.bf16.msra.mxu0 %v7344
  %7563 = vmatprep.subr.bf16.mxu0 %v7349
  %7564 = vmatpush1.bf16.msra.mxu0 %v7348
  %7565 = vmatprep.mubr.bf16.mxu0 %v4737
  %7566 = vmatmul.mubr.bf16.gmra.mrb[0].mxu0 %v4736
  %v7567 = vpop.f32.mrb[0].mxu0
  %v7568 = vadd.f32 %v7515, %v7567
  %v7569 = vpop.f32.mrb[0].mxu0
  %v7570 = vadd.f32 %v7517, %v7569
  %v7571 = vpop.f32.mrb[0].mxu0
  %v7572 = vadd.f32 %v7519, %v7571
  %v7573 = vpop.f32.mrb[0].mxu0
  %v7574 = vadd.f32 %v7521, %v7573
  %7575 = vmatprep.mubr.bf16.mxu0 %v4741
  %7576 = vmatmul.mubr.bf16.gmra.mrb[0].mxu0 %v4740
  %v7577 = vpop.f32.mrb[0].mxu0
  %v7578 = vadd.f32 %v7525, %v7577
  %v7579 = vpop.f32.mrb[0].mxu0
  %v7580 = vadd.f32 %v7527, %v7579
  %v7581 = vpop.f32.mrb[0].mxu0
  %v7582 = vadd.f32 %v7529, %v7581
  %v7583 = vpop.f32.mrb[0].mxu0
  %v7584 = vadd.f32 %v7531, %v7583
  %7585 = vdwg.mxu0
  %7586 = vmatprep.subr.bf16.mxu0 %v7227
  %7587 = vmatpush1.bf16.msra.mxu0 %v7226
  %7588 = vmatprep.subr.bf16.mxu0 %v7231
  %7589 = vmatpush1.bf16.msra.mxu0 %v7230
  %7590 = vmatprep.subr.bf16.mxu0 %v7235
  %7591 = vmatpush1.bf16.msra.mxu0 %v7234
  %7592 = vmatprep.subr.bf16.mxu0 %v7239
  %7593 = vmatpush1.bf16.msra.mxu0 %v7238
  %7594 = vmatprep.subr.bf16.mxu0 %v7243
  %7595 = vmatpush1.bf16.msra.mxu0 %v7242
  %7596 = vmatprep.subr.bf16.mxu0 %v7247
  %7597 = vmatpush1.bf16.msra.mxu0 %v7246
  %7598 = vmatprep.subr.bf16.mxu0 %v7251
  %7599 = vmatpush1.bf16.msra.mxu0 %v7250
  %7600 = vmatprep.subr.bf16.mxu0 %v7255
  %7601 = vmatpush1.bf16.msra.mxu0 %v7254
  %7602 = vmatprep.subr.bf16.mxu0 %v7259
  %7603 = vmatpush1.bf16.msra.mxu0 %v7258
  %7604 = vmatprep.subr.bf16.mxu0 %v7263
  %7605 = vmatpush1.bf16.msra.mxu0 %v7262
  %7606 = vmatprep.subr.bf16.mxu0 %v7267
  %7607 = vmatpush1.bf16.msra.mxu0 %v7266
  %7608 = vmatprep.subr.bf16.mxu0 %v7271
  %7609 = vmatpush1.bf16.msra.mxu0 %v7270
  %7610 = vmatprep.subr.bf16.mxu0 %v7275
  %7611 = vmatpush1.bf16.msra.mxu0 %v7274
  %7612 = vmatprep.subr.bf16.mxu0 %v7279
  %7613 = vmatpush1.bf16.msra.mxu0 %v7278
  %7614 = vmatprep.subr.bf16.mxu0 %v7283
  %7615 = vmatpush1.bf16.msra.mxu0 %v7282
  %7616 = vmatprep.subr.bf16.mxu0 %v7287
  %7617 = vmatpush1.bf16.msra.mxu0 %v7286
  %7618 = vmatprep.mubr.bf16.mxu0 %v4735
  %7619 = vmatmul.mubr.bf16.gmra.mrb[0].mxu0 %v4734
  %v7620 = vpop.f32.mrb[0].mxu0
  %v7621 = vadd.f32 0.0, %v7620
  %v7622 = vpop.f32.mrb[0].mxu0
  %v7623 = vadd.f32 0.0, %v7622
  %v7624 = vpop.f32.mrb[0].mxu0
  %v7625 = vadd.f32 0.0, %v7624
  %v7626 = vpop.f32.mrb[0].mxu0
  %v7627 = vadd.f32 0.0, %v7626
  %7628 = vmatprep.mubr.bf16.mxu0 %v4739
  %7629 = vmatmul.mubr.bf16.gmra.mrb[0].mxu0 %v4738
  %v7630 = vpop.f32.mrb[0].mxu0
  %v7631 = vadd.f32 0.0, %v7630
  %v7632 = vpop.f32.mrb[0].mxu0
  %v7633 = vadd.f32 0.0, %v7632
  %v7634 = vpop.f32.mrb[0].mxu0
  %v7635 = vadd.f32 0.0, %v7634
  %v7636 = vpop.f32.mrb[0].mxu0
  %v7637 = vadd.f32 0.0, %v7636
  %7638 = vdwg.mxu0
  %7639 = vmatprep.subr.bf16.mxu0 %v7291
  %7640 = vmatpush1.bf16.msra.mxu0 %v7290
  %7641 = vmatprep.subr.bf16.mxu0 %v7295
  %7642 = vmatpush1.bf16.msra.mxu0 %v7294
  %7643 = vmatprep.subr.bf16.mxu0 %v7299
  %7644 = vmatpush1.bf16.msra.mxu0 %v7298
  %7645 = vmatprep.subr.bf16.mxu0 %v7303
  %7646 = vmatpush1.bf16.msra.mxu0 %v7302
  %7647 = vmatprep.subr.bf16.mxu0 %v7307
  %7648 = vmatpush1.bf16.msra.mxu0 %v7306
  %7649 = vmatprep.subr.bf16.mxu0 %v7311
  %7650 = vmatpush1.bf16.msra.mxu0 %v7310
  %7651 = vmatprep.subr.bf16.mxu0 %v7315
  %7652 = vmatpush1.bf16.msra.mxu0 %v7314
  %7653 = vmatprep.subr.bf16.mxu0 %v7319
  %7654 = vmatpush1.bf16.msra.mxu0 %v7318
  %7655 = vmatprep.subr.bf16.mxu0 %v7323
  %7656 = vmatpush1.bf16.msra.mxu0 %v7322
  %7657 = vmatprep.subr.bf16.mxu0 %v7327
  %7658 = vmatpush1.bf16.msra.mxu0 %v7326
  %7659 = vmatprep.subr.bf16.mxu0 %v7331
  %7660 = vmatpush1.bf16.msra.mxu0 %v7330
  %7661 = vmatprep.subr.bf16.mxu0 %v7335
  %7662 = vmatpush1.bf16.msra.mxu0 %v7334
  %7663 = vmatprep.subr.bf16.mxu0 %v7339
  %7664 = vmatpush1.bf16.msra.mxu0 %v7338
  %7665 = vmatprep.subr.bf16.mxu0 %v7343
  %7666 = vmatpush1.bf16.msra.mxu0 %v7342
  %7667 = vmatprep.subr.bf16.mxu0 %v7347
  %7668 = vmatpush1.bf16.msra.mxu0 %v7346
  %7669 = vmatprep.subr.bf16.mxu0 %v7351
  %7670 = vmatpush1.bf16.msra.mxu0 %v7350
  %7671 = vmatprep.mubr.bf16.mxu0 %v4737
  %7672 = vmatmul.mubr.bf16.gmra.mrb[0].mxu0 %v4736
  %v7673 = vpop.f32.mrb[0].mxu0
  %v7674 = vadd.f32 %v7621, %v7673
  %v7675 = vpop.f32.mrb[0].mxu0
  %v7676 = vadd.f32 %v7623, %v7675
  %v7677 = vpop.f32.mrb[0].mxu0
  %v7678 = vadd.f32 %v7625, %v7677
  %v7679 = vpop.f32.mrb[0].mxu0
  %v7680 = vadd.f32 %v7627, %v7679
  %7681 = vmatprep.mubr.bf16.mxu0 %v4741
  %7682 = vmatmul.mubr.bf16.gmra.mrb[0].mxu0 %v4740
  %v7683 = vpop.f32.mrb[0].mxu0
  %v7684 = vadd.f32 %v7631, %v7683
  %v7685 = vpop.f32.mrb[0].mxu0
  %v7686 = vadd.f32 %v7633, %v7685
  %v7687 = vpop.f32.mrb[0].mxu0
  %v7688 = vadd.f32 %v7635, %v7687
  %v7689 = vpop.f32.mrb[0].mxu0
  %v7690 = vadd.f32 %v7637, %v7689
  %7691 = vdwg.mxu0
  %v7692 = vadd.f32 %v6587, %v7568
  %v7693 = vadd.f32 %v6589, %v7570
  %v7694 = vadd.f32 %v6693, %v7674
  %v7695 = vadd.f32 %v6695, %v7676
  %v7696 = vadd.f32 %v6591, %v7572
  %v7697 = vadd.f32 %v6593, %v7574
  %v7698 = vadd.f32 %v6697, %v7678
  %v7699 = vadd.f32 %v6699, %v7680
  %v7700 = vadd.f32 %v6597, %v7578
  %v7701 = vadd.f32 %v6599, %v7580
  %v7702 = vadd.f32 %v6703, %v7684
  %v7703 = vadd.f32 %v6705, %v7686
  %v7704 = vadd.f32 %v6601, %v7582
  %v7705 = vadd.f32 %v6603, %v7584
  %v7706 = vadd.f32 %v6707, %v7688
  %v7707 = vadd.f32 %v6709, %v7690
  %v7708 = vld [vmem:[%s7] sm:$0xf]
  %v7710 = vlaneseq
  %v7711 = vshrl.u32 %v7710, 7
  %v7712 = vsub.s32 0, %v7711
  %v7713 = vrot.slane %v7708, %v7712
  %v7714 = vlaneseq
  %v7715 = vshrl.u32 %v7714, 7
  %v7716 = vsub.s32 1, %v7715
  %v7717 = vrot.slane %v7708, %v7716
  %v7718 = vlaneseq
  %v7719 = vshrl.u32 %v7718, 7
  %v7720 = vsub.s32 2, %v7719
  %v7721 = vrot.slane %v7708, %v7720
  %v7722 = vlaneseq
  %v7723 = vshrl.u32 %v7722, 7
  %v7724 = vsub.s32 3, %v7723
  %v7725 = vrot.slane %v7708, %v7724
  %v7730 = vadd.f32 %v7692, %v7713
  %v7731 = vadd.f32 %v7693, %v7717
  %v7732 = vadd.f32 %v7694, %v7721
  %v7733 = vadd.f32 %v7695, %v7725
  %v7734 = vadd.f32 %v7696, %v7713
  %v7735 = vadd.f32 %v7697, %v7717
  %v7736 = vadd.f32 %v7698, %v7721
  %v7737 = vadd.f32 %v7699, %v7725
  %v7738 = vadd.f32 %v7700, %v7713
  %v7739 = vadd.f32 %v7701, %v7717
  %v7740 = vadd.f32 %v7702, %v7721
  %v7741 = vadd.f32 %v7703, %v7725
  %v7742 = vadd.f32 %v7704, %v7713
  %v7743 = vadd.f32 %v7705, %v7717
  %v7744 = vadd.f32 %v7706, %v7721
  %v7745 = vadd.f32 %v7707, %v7725
  %v7746 = vmax.f32 %v7730, 0.0
  %v7747 = vmax.f32 %v7731, 0.0
  %v7748 = vmax.f32 %v7732, 0.0
  %v7749 = vmax.f32 %v7733, 0.0
  %v7750 = vmax.f32 %v7734, 0.0
  %v7751 = vmax.f32 %v7735, 0.0
  %v7752 = vmax.f32 %v7736, 0.0
  %v7753 = vmax.f32 %v7737, 0.0
  %v7754 = vmax.f32 %v7738, 0.0
  %v7755 = vmax.f32 %v7739, 0.0
  %v7756 = vmax.f32 %v7740, 0.0
  %v7757 = vmax.f32 %v7741, 0.0
  %v7758 = vmax.f32 %v7742, 0.0
  %v7759 = vmax.f32 %v7743, 0.0
  %v7760 = vmax.f32 %v7744, 0.0
  %v7761 = vmax.f32 %v7745, 0.0
  %v7762 = vpack.c.bf16 %v7750, %v7746
  %v7763 = vpack.c.bf16 %v7751, %v7747
  %v7764 = vpack.c.bf16 %v7752, %v7748
  %v7765 = vpack.c.bf16 %v7753, %v7749
  %v7766 = vpack.c.bf16 %v7758, %v7754
  %v7767 = vpack.c.bf16 %v7759, %v7755
  %v7768 = vpack.c.bf16 %v7760, %v7756
  %v7769 = vpack.c.bf16 %v7761, %v7757
  %v7770 = vld [vmem:[%s8] sm:$0xff]
  %v7771 = vld [vmem:[%s8 + $0x8] sm:$0xff]
  %v7772 = vld [vmem:[%s8 + $0x10] sm:$0xff]
  %v7773 = vld [vmem:[%s8 + $0x18] sm:$0xff]
  %v7774 = vld [vmem:[%s8 + $0x20] sm:$0xff]
  %v7775 = vld [vmem:[%s8 + $0x28] sm:$0xff]
  %v7776 = vld [vmem:[%s8 + $0x30] sm:$0xff]
  %v7777 = vld [vmem:[%s8 + $0x38] sm:$0xff]
  %v7778 = vld [vmem:[%s8 + $0x40] sm:$0xff]
  %v7779 = vld [vmem:[%s8 + $0x48] sm:$0xff]
  %v7780 = vld [vmem:[%s8 + $0x50] sm:$0xff]
  %v7781 = vld [vmem:[%s8 + $0x58] sm:$0xff]
  %v7782 = vld [vmem:[%s8 + $0x60] sm:$0xff]
  %v7783 = vld [vmem:[%s8 + $0x68] sm:$0xff]
  %v7784 = vld [vmem:[%s8 + $0x70] sm:$0xff]
  %v7785 = vld [vmem:[%s8 + $0x78] sm:$0xff]
  %v7786 = vld [vmem:[%s8 + $0x80] sm:$0xff]
  %v7787 = vld [vmem:[%s8 + $0x88] sm:$0xff]
  %v7788 = vld [vmem:[%s8 + $0x90] sm:$0xff]
  %v7789 = vld [vmem:[%s8 + $0x98] sm:$0xff]
  %v7790 = vld [vmem:[%s8 + $0xa0] sm:$0xff]
  %v7791 = vld [vmem:[%s8 + $0xa8] sm:$0xff]
  %v7792 = vld [vmem:[%s8 + $0xb0] sm:$0xff]
  %v7793 = vld [vmem:[%s8 + $0xb8] sm:$0xff]
  %v7794 = vld [vmem:[%s8 + $0xc0] sm:$0xff]
  %v7795 = vld [vmem:[%s8 + $0xc8] sm:$0xff]
  %v7796 = vld [vmem:[%s8 + $0xd0] sm:$0xff]
  %v7797 = vld [vmem:[%s8 + $0xd8] sm:$0xff]
  %v7798 = vld [vmem:[%s8 + $0xe0] sm:$0xff]
  %v7799 = vld [vmem:[%s8 + $0xe8] sm:$0xff]
  %v7800 = vld [vmem:[%s8 + $0xf0] sm:$0xff]
  %v7801 = vld [vmem:[%s8 + $0xf8] sm:$0xff]
  %v7802 = vld [vmem:[%s8 + $0x100] sm:$0xff]
  %v7803 = vld [vmem:[%s8 + $0x108] sm:$0xff]
  %v7804 = vld [vmem:[%s8 + $0x110] sm:$0xff]
  %v7805 = vld [vmem:[%s8 + $0x118] sm:$0xff]
  %v7806 = vld [vmem:[%s8 + $0x120] sm:$0xff]
  %v7807 = vld [vmem:[%s8 + $0x128] sm:$0xff]
  %v7808 = vld [vmem:[%s8 + $0x130] sm:$0xff]
  %v7809 = vld [vmem:[%s8 + $0x138] sm:$0xff]
  %v7810 = vld [vmem:[%s8 + $0x140] sm:$0xff]
  %v7811 = vld [vmem:[%s8 + $0x148] sm:$0xff]
  %v7812 = vld [vmem:[%s8 + $0x150] sm:$0xff]
  %v7813 = vld [vmem:[%s8 + $0x158] sm:$0xff]
  %v7814 = vld [vmem:[%s8 + $0x160] sm:$0xff]
  %v7815 = vld [vmem:[%s8 + $0x168] sm:$0xff]
  %v7816 = vld [vmem:[%s8 + $0x170] sm:$0xff]
  %v7817 = vld [vmem:[%s8 + $0x178] sm:$0xff]
  %v7818 = vld [vmem:[%s8 + $0x180] sm:$0xff]
  %v7819 = vld [vmem:[%s8 + $0x188] sm:$0xff]
  %v7820 = vld [vmem:[%s8 + $0x190] sm:$0xff]
  %v7821 = vld [vmem:[%s8 + $0x198] sm:$0xff]
  %v7822 = vld [vmem:[%s8 + $0x1a0] sm:$0xff]
  %v7823 = vld [vmem:[%s8 + $0x1a8] sm:$0xff]
  %v7824 = vld [vmem:[%s8 + $0x1b0] sm:$0xff]
  %v7825 = vld [vmem:[%s8 + $0x1b8] sm:$0xff]
  %v7826 = vld [vmem:[%s8 + $0x1c0] sm:$0xff]
  %v7827 = vld [vmem:[%s8 + $0x1c8] sm:$0xff]
  %v7828 = vld [vmem:[%s8 + $0x1d0] sm:$0xff]
  %v7829 = vld [vmem:[%s8 + $0x1d8] sm:$0xff]
  %v7830 = vld [vmem:[%s8 + $0x1e0] sm:$0xff]
  %v7831 = vld [vmem:[%s8 + $0x1e8] sm:$0xff]
  %v7832 = vld [vmem:[%s8 + $0x1f0] sm:$0xff]
  %v7833 = vld [vmem:[%s8 + $0x1f8] sm:$0xff]
  %v7834 = vld [vmem:[%s9] sm:$0x3]
  %v7836 = vlaneseq
  %v7837 = vshrl.u32 %v7836, 7
  %v7838 = vsub.s32 0, %v7837
  %v7839 = vrot.slane %v7834, %v7838
  %v7840 = vlaneseq
  %v7841 = vshrl.u32 %v7840, 7
  %v7842 = vsub.s32 1, %v7841
  %v7843 = vrot.slane %v7834, %v7842
  %v7910 = vunpack.c.l.b16 %v7770
  %v7911 = vunpack.c.h.b16 %v7770
  %v7912 = vunpack.c.l.b16 %v7771
  %v7913 = vunpack.c.h.b16 %v7771
  %v7914 = vunpack.c.l.b16 %v7772
  %v7915 = vunpack.c.h.b16 %v7772
  %v7916 = vunpack.c.l.b16 %v7773
  %v7917 = vunpack.c.h.b16 %v7773
  %v7918 = vunpack.c.l.b16 %v7774
  %v7919 = vunpack.c.h.b16 %v7774
  %v7920 = vunpack.c.l.b16 %v7775
  %v7921 = vunpack.c.h.b16 %v7775
  %v7922 = vunpack.c.l.b16 %v7776
  %v7923 = vunpack.c.h.b16 %v7776
  %v7924 = vunpack.c.l.b16 %v7777
  %v7925 = vunpack.c.h.b16 %v7777
  %v7926 = vunpack.c.l.b16 %v7778
  %v7927 = vunpack.c.h.b16 %v7778
  %v7928 = vunpack.c.l.b16 %v7779
  %v7929 = vunpack.c.h.b16 %v7779
  %v7930 = vunpack.c.l.b16 %v7780
  %v7931 = vunpack.c.h.b16 %v7780
  %v7932 = vunpack.c.l.b16 %v7781
  %v7933 = vunpack.c.h.b16 %v7781
  %v7934 = vunpack.c.l.b16 %v7782
  %v7935 = vunpack.c.h.b16 %v7782
  %v7936 = vunpack.c.l.b16 %v7783
  %v7937 = vunpack.c.h.b16 %v7783
  %v7938 = vunpack.c.l.b16 %v7784
  %v7939 = vunpack.c.h.b16 %v7784
  %v7940 = vunpack.c.l.b16 %v7785
  %v7941 = vunpack.c.h.b16 %v7785
  %v7942 = vunpack.c.l.b16 %v7786
  %v7943 = vunpack.c.h.b16 %v7786
  %v7944 = vunpack.c.l.b16 %v7787
  %v7945 = vunpack.c.h.b16 %v7787
  %v7946 = vunpack.c.l.b16 %v7788
  %v7947 = vunpack.c.h.b16 %v7788
  %v7948 = vunpack.c.l.b16 %v7789
  %v7949 = vunpack.c.h.b16 %v7789
  %v7950 = vunpack.c.l.b16 %v7790
  %v7951 = vunpack.c.h.b16 %v7790
  %v7952 = vunpack.c.l.b16 %v7791
  %v7953 = vunpack.c.h.b16 %v7791
  %v7954 = vunpack.c.l.b16 %v7792
  %v7955 = vunpack.c.h.b16 %v7792
  %v7956 = vunpack.c.l.b16 %v7793
  %v7957 = vunpack.c.h.b16 %v7793
  %v7958 = vunpack.c.l.b16 %v7794
  %v7959 = vunpack.c.h.b16 %v7794
  %v7960 = vunpack.c.l.b16 %v7795
  %v7961 = vunpack.c.h.b16 %v7795
  %v7962 = vunpack.c.l.b16 %v7796
  %v7963 = vunpack.c.h.b16 %v7796
  %v7964 = vunpack.c.l.b16 %v7797
  %v7965 = vunpack.c.h.b16 %v7797
  %v7966 = vunpack.c.l.b16 %v7798
  %v7967 = vunpack.c.h.b16 %v7798
  %v7968 = vunpack.c.l.b16 %v7799
  %v7969 = vunpack.c.h.b16 %v7799
  %v7970 = vunpack.c.l.b16 %v7800
  %v7971 = vunpack.c.h.b16 %v7800
  %v7972 = vunpack.c.l.b16 %v7801
  %v7973 = vunpack.c.h.b16 %v7801
  %v7974 = vunpack.c.l.b16 %v7802
  %v7975 = vunpack.c.h.b16 %v7802
  %v7976 = vunpack.c.l.b16 %v7803
  %v7977 = vunpack.c.h.b16 %v7803
  %v7978 = vunpack.c.l.b16 %v7804
  %v7979 = vunpack.c.h.b16 %v7804
  %v7980 = vunpack.c.l.b16 %v7805
  %v7981 = vunpack.c.h.b16 %v7805
  %v7982 = vunpack.c.l.b16 %v7806
  %v7983 = vunpack.c.h.b16 %v7806
  %v7984 = vunpack.c.l.b16 %v7807
  %v7985 = vunpack.c.h.b16 %v7807
  %v7986 = vunpack.c.l.b16 %v7808
  %v7987 = vunpack.c.h.b16 %v7808
  %v7988 = vunpack.c.l.b16 %v7809
  %v7989 = vunpack.c.h.b16 %v7809
  %v7990 = vunpack.c.l.b16 %v7810
  %v7991 = vunpack.c.h.b16 %v7810
  %v7992 = vunpack.c.l.b16 %v7811
  %v7993 = vunpack.c.h.b16 %v7811
  %v7994 = vunpack.c.l.b16 %v7812
  %v7995 = vunpack.c.h.b16 %v7812
  %v7996 = vunpack.c.l.b16 %v7813
  %v7997 = vunpack.c.h.b16 %v7813
  %v7998 = vunpack.c.l.b16 %v7814
  %v7999 = vunpack.c.h.b16 %v7814
  %v8000 = vunpack.c.l.b16 %v7815
  %v8001 = vunpack.c.h.b16 %v7815
  %v8002 = vunpack.c.l.b16 %v7816
  %v8003 = vunpack.c.h.b16 %v7816
  %v8004 = vunpack.c.l.b16 %v7817
  %v8005 = vunpack.c.h.b16 %v7817
  %v8006 = vunpack.c.l.b16 %v7818
  %v8007 = vunpack.c.h.b16 %v7818
  %v8008 = vunpack.c.l.b16 %v7819
  %v8009 = vunpack.c.h.b16 %v7819
  %v8010 = vunpack.c.l.b16 %v7820
  %v8011 = vunpack.c.h.b16 %v7820
  %v8012 = vunpack.c.l.b16 %v7821
  %v8013 = vunpack.c.h.b16 %v7821
  %v8014 = vunpack.c.l.b16 %v7822
  %v8015 = vunpack.c.h.b16 %v7822
  %v8016 = vunpack.c.l.b16 %v7823
  %v8017 = vunpack.c.h.b16 %v7823
  %v8018 = vunpack.c.l.b16 %v7824
  %v8019 = vunpack.c.h.b16 %v7824
  %v8020 = vunpack.c.l.b16 %v7825
  %v8021 = vunpack.c.h.b16 %v7825
  %v8022 = vunpack.c.l.b16 %v7826
  %v8023 = vunpack.c.h.b16 %v7826
  %v8024 = vunpack.c.l.b16 %v7827
  %v8025 = vunpack.c.h.b16 %v7827
  %v8026 = vunpack.c.l.b16 %v7828
  %v8027 = vunpack.c.h.b16 %v7828
  %v8028 = vunpack.c.l.b16 %v7829
  %v8029 = vunpack.c.h.b16 %v7829
  %v8030 = vunpack.c.l.b16 %v7830
  %v8031 = vunpack.c.h.b16 %v7830
  %v8032 = vunpack.c.l.b16 %v7831
  %v8033 = vunpack.c.h.b16 %v7831
  %v8034 = vunpack.c.l.b16 %v7832
  %v8035 = vunpack.c.h.b16 %v7832
  %v8036 = vunpack.c.l.b16 %v7833
  %v8037 = vunpack.c.h.b16 %v7833
  %v8038 = vpack.c.b16 %v7912, %v7910
  %v8039 = vpack.c.b16 %v7913, %v7911
  %v8040 = vpack.c.b16 %v7916, %v7914
  %v8041 = vpack.c.b16 %v7917, %v7915
  %v8042 = vpack.c.b16 %v7920, %v7918
  %v8043 = vpack.c.b16 %v7921, %v7919
  %v8044 = vpack.c.b16 %v7924, %v7922
  %v8045 = vpack.c.b16 %v7925, %v7923
  %v8046 = vpack.c.b16 %v7928, %v7926
  %v8047 = vpack.c.b16 %v7929, %v7927
  %v8048 = vpack.c.b16 %v7932, %v7930
  %v8049 = vpack.c.b16 %v7933, %v7931
  %v8050 = vpack.c.b16 %v7936, %v7934
  %v8051 = vpack.c.b16 %v7937, %v7935
  %v8052 = vpack.c.b16 %v7940, %v7938
  %v8053 = vpack.c.b16 %v7941, %v7939
  %v8054 = vpack.c.b16 %v7944, %v7942
  %v8055 = vpack.c.b16 %v7945, %v7943
  %v8056 = vpack.c.b16 %v7948, %v7946
  %v8057 = vpack.c.b16 %v7949, %v7947
  %v8058 = vpack.c.b16 %v7952, %v7950
  %v8059 = vpack.c.b16 %v7953, %v7951
  %v8060 = vpack.c.b16 %v7956, %v7954
  %v8061 = vpack.c.b16 %v7957, %v7955
  %v8062 = vpack.c.b16 %v7960, %v7958
  %v8063 = vpack.c.b16 %v7961, %v7959
  %v8064 = vpack.c.b16 %v7964, %v7962
  %v8065 = vpack.c.b16 %v7965, %v7963
  %v8066 = vpack.c.b16 %v7968, %v7966
  %v8067 = vpack.c.b16 %v7969, %v7967
  %v8068 = vpack.c.b16 %v7972, %v7970
  %v8069 = vpack.c.b16 %v7973, %v7971
  %v8070 = vpack.c.b16 %v7976, %v7974
  %v8071 = vpack.c.b16 %v7977, %v7975
  %v8072 = vpack.c.b16 %v7980, %v7978
  %v8073 = vpack.c.b16 %v7981, %v7979
  %v8074 = vpack.c.b16 %v7984, %v7982
  %v8075 = vpack.c.b16 %v7985, %v7983
  %v8076 = vpack.c.b16 %v7988, %v7986
  %v8077 = vpack.c.b16 %v7989, %v7987
  %v8078 = vpack.c.b16 %v7992, %v7990
  %v8079 = vpack.c.b16 %v7993, %v7991
  %v8080 = vpack.c.b16 %v7996, %v7994
  %v8081 = vpack.c.b16 %v7997, %v7995
  %v8082 = vpack.c.b16 %v8000, %v7998
  %v8083 = vpack.c.b16 %v8001, %v7999
  %v8084 = vpack.c.b16 %v8004, %v8002
  %v8085 = vpack.c.b16 %v8005, %v8003
  %v8086 = vpack.c.b16 %v8008, %v8006
  %v8087 = vpack.c.b16 %v8009, %v8007
  %v8088 = vpack.c.b16 %v8012, %v8010
  %v8089 = vpack.c.b16 %v8013, %v8011
  %v8090 = vpack.c.b16 %v8016, %v8014
  %v8091 = vpack.c.b16 %v8017, %v8015
  %v8092 = vpack.c.b16 %v8020, %v8018
  %v8093 = vpack.c.b16 %v8021, %v8019
  %v8094 = vpack.c.b16 %v8024, %v8022
  %v8095 = vpack.c.b16 %v8025, %v8023
  %v8096 = vpack.c.b16 %v8028, %v8026
  %v8097 = vpack.c.b16 %v8029, %v8027
  %v8098 = vpack.c.b16 %v8032, %v8030
  %v8099 = vpack.c.b16 %v8033, %v8031
  %v8100 = vpack.c.b16 %v8036, %v8034
  %v8101 = vpack.c.b16 %v8037, %v8035
  %8166 = vmatprep.subr.bf16.mxu0 %v8039
  %8167 = vmatpush1.bf16.msra.mxu0 %v8038
  %8168 = vmatprep.subr.bf16.mxu0 %v8041
  %8169 = vmatpush1.bf16.msra.mxu0 %v8040
  %8170 = vmatprep.subr.bf16.mxu0 %v8043
  %8171 = vmatpush1.bf16.msra.mxu0 %v8042
  %8172 = vmatprep.subr.bf16.mxu0 %v8045
  %8173 = vmatpush1.bf16.msra.mxu0 %v8044
  %8174 = vmatprep.subr.bf16.mxu0 %v8047
  %8175 = vmatpush1.bf16.msra.mxu0 %v8046
  %8176 = vmatprep.subr.bf16.mxu0 %v8049
  %8177 = vmatpush1.bf16.msra.mxu0 %v8048
  %8178 = vmatprep.subr.bf16.mxu0 %v8051
  %8179 = vmatpush1.bf16.msra.mxu0 %v8050
  %8180 = vmatprep.subr.bf16.mxu0 %v8053
  %8181 = vmatpush1.bf16.msra.mxu0 %v8052
  %8182 = vmatprep.subr.bf16.mxu0 %v8055
  %8183 = vmatpush1.bf16.msra.mxu0 %v8054
  %8184 = vmatprep.subr.bf16.mxu0 %v8057
  %8185 = vmatpush1.bf16.msra.mxu0 %v8056
  %8186 = vmatprep.subr.bf16.mxu0 %v8059
  %8187 = vmatpush1.bf16.msra.mxu0 %v8058
  %8188 = vmatprep.subr.bf16.mxu0 %v8061
  %8189 = vmatpush1.bf16.msra.mxu0 %v8060
  %8190 = vmatprep.subr.bf16.mxu0 %v8063
  %8191 = vmatpush1.bf16.msra.mxu0 %v8062
  %8192 = vmatprep.subr.bf16.mxu0 %v8065
  %8193 = vmatpush1.bf16.msra.mxu0 %v8064
  %8194 = vmatprep.subr.bf16.mxu0 %v8067
  %8195 = vmatpush1.bf16.msra.mxu0 %v8066
  %8196 = vmatprep.subr.bf16.mxu0 %v8069
  %8197 = vmatpush1.bf16.msra.mxu0 %v8068
  %8198 = vmatprep.mubr.bf16.mxu0 %v7763
  %8199 = vmatmul.mubr.bf16.gmra.mrb[0].mxu0 %v7762
  %v8200 = vpop.f32.mrb[0].mxu0
  %v8201 = vadd.f32 %v7839, %v8200
  %v8202 = vpop.f32.mrb[0].mxu0
  %v8203 = vadd.f32 %v7843, %v8202
  %v8204 = vpop.f32.mrb[0].mxu0
  %v8205 = vadd.f32 %v7839, %v8204
  %v8206 = vpop.f32.mrb[0].mxu0
  %v8207 = vadd.f32 %v7843, %v8206
  %8208 = vmatprep.mubr.bf16.mxu0 %v7767
  %8209 = vmatmul.mubr.bf16.gmra.mrb[0].mxu0 %v7766
  %v8210 = vpop.f32.mrb[0].mxu0
  %v8211 = vadd.f32 %v7839, %v8210
  %v8212 = vpop.f32.mrb[0].mxu0
  %v8213 = vadd.f32 %v7843, %v8212
  %v8214 = vpop.f32.mrb[0].mxu0
  %v8215 = vadd.f32 %v7839, %v8214
  %v8216 = vpop.f32.mrb[0].mxu0
  %v8217 = vadd.f32 %v7843, %v8216
  %8218 = vdwg.mxu0
  %8219 = vmatprep.subr.bf16.mxu0 %v8071
  %8220 = vmatpush1.bf16.msra.mxu0 %v8070
  %8221 = vmatprep.subr.bf16.mxu0 %v8073
  %8222 = vmatpush1.bf16.msra.mxu0 %v8072
  %8223 = vmatprep.subr.bf16.mxu0 %v8075
  %8224 = vmatpush1.bf16.msra.mxu0 %v8074
  %8225 = vmatprep.subr.bf16.mxu0 %v8077
  %8226 = vmatpush1.bf16.msra.mxu0 %v8076
  %8227 = vmatprep.subr.bf16.mxu0 %v8079
  %8228 = vmatpush1.bf16.msra.mxu0 %v8078
  %8229 = vmatprep.subr.bf16.mxu0 %v8081
  %8230 = vmatpush1.bf16.msra.mxu0 %v8080
  %8231 = vmatprep.subr.bf16.mxu0 %v8083
  %8232 = vmatpush1.bf16.msra.mxu0 %v8082
  %8233 = vmatprep.subr.bf16.mxu0 %v8085
  %8234 = vmatpush1.bf16.msra.mxu0 %v8084
  %8235 = vmatprep.subr.bf16.mxu0 %v8087
  %8236 = vmatpush1.bf16.msra.mxu0 %v8086
  %8237 = vmatprep.subr.bf16.mxu0 %v8089
  %8238 = vmatpush1.bf16.msra.mxu0 %v8088
  %8239 = vmatprep.subr.bf16.mxu0 %v8091
  %8240 = vmatpush1.bf16.msra.mxu0 %v8090
  %8241 = vmatprep.subr.bf16.mxu0 %v8093
  %8242 = vmatpush1.bf16.msra.mxu0 %v8092
  %8243 = vmatprep.subr.bf16.mxu0 %v8095
  %8244 = vmatpush1.bf16.msra.mxu0 %v8094
  %8245 = vmatprep.subr.bf16.mxu0 %v8097
  %8246 = vmatpush1.bf16.msra.mxu0 %v8096
  %8247 = vmatprep.subr.bf16.mxu0 %v8099
  %8248 = vmatpush1.bf16.msra.mxu0 %v8098
  %8249 = vmatprep.subr.bf16.mxu0 %v8101
  %8250 = vmatpush1.bf16.msra.mxu0 %v8100
  %8251 = vmatprep.mubr.bf16.mxu0 %v7765
  %8252 = vmatmul.mubr.bf16.gmra.mrb[0].mxu0 %v7764
  %v8253 = vpop.f32.mrb[0].mxu0
  %v8254 = vadd.f32 %v8201, %v8253
  %v8255 = vpop.f32.mrb[0].mxu0
  %v8256 = vadd.f32 %v8203, %v8255
  %v8257 = vpop.f32.mrb[0].mxu0
  %v8258 = vadd.f32 %v8205, %v8257
  %v8259 = vpop.f32.mrb[0].mxu0
  %v8260 = vadd.f32 %v8207, %v8259
  %8261 = vmatprep.mubr.bf16.mxu0 %v7769
  %8262 = vmatmul.mubr.bf16.gmra.mrb[0].mxu0 %v7768
  %v8263 = vpop.f32.mrb[0].mxu0
  %v8264 = vadd.f32 %v8211, %v8263
  %v8265 = vpop.f32.mrb[0].mxu0
  %v8266 = vadd.f32 %v8213, %v8265
  %v8267 = vpop.f32.mrb[0].mxu0
  %v8268 = vadd.f32 %v8215, %v8267
  %v8269 = vpop.f32.mrb[0].mxu0
  %v8270 = vadd.f32 %v8217, %v8269
  %8271 = vdwg.mxu0
  %8272 = vst [vmem:[%s11] sm:$0xff] %v8254
  %8273 = vst [vmem:[%s11 + $0x8] sm:$0xff] %v8256
  %8274 = vst [vmem:[%s11 + $0x10] sm:$0xff] %v8258
  %8275 = vst [vmem:[%s11 + $0x18] sm:$0xff] %v8260
  %8276 = vst [vmem:[%s11 + $0x20] sm:$0xff] %v8264
  %8277 = vst [vmem:[%s11 + $0x28] sm:$0xff] %v8266
  %8278 = vst [vmem:[%s11 + $0x30] sm:$0xff] %v8268
  %8279 = vst [vmem:[%s11 + $0x38] sm:$0xff] %v8270
  // Predicated region
  $region42: #{_forward_core.2} parent=0 // pred_check
    _
  $region43: #{_forward_core.2} parent=0 // pred_check_branch
    %8281 = sbr.rel (0) target = $region45
  $region44: #{_forward_core.2} parent=0 // pred_region
    _
  $region45: #{_forward_core.2} parent=0 // pred_fallthru
    _
  // Predicated region
  $region46: #{_forward_core.2} parent=0 // pred_check
    _
  $region47: #{_forward_core.2} parent=0 // pred_check_branch
    %8283 = sbr.rel (0) target = $region49
  $region48: #{_forward_core.2} parent=0 // pred_region
    _
  $region49: #{_forward_core.2} parent=0 // pred_fallthru
    _
  // Predicated region
  $region50: #{_forward_core.2} parent=0 // pred_check
    _
  $region51: #{_forward_core.2} parent=0 // pred_check_branch
    %8285 = sbr.rel (0) target = $region53
  $region52: #{_forward_core.2} parent=0 // pred_region
    _
  $region53: #{_forward_core.2} parent=0 // pred_fallthru
    _
  // Predicated region
  $region54: #{_forward_core.2} parent=0 // pred_check
    _
  $region55: #{_forward_core.2} parent=0 // pred_check_branch
    %8287 = sbr.rel (0) target = $region57
  $region56: #{_forward_core.2} parent=0 // pred_region
    _
  $region57: #{_forward_core.2} parent=0 // pred_fallthru
    _

</llo_original>
